<compile_context>
chip_gen: v5e
topology: v5e:2x2
jax: 0.10.0
libtpu: 0.0.40
codegen_flags: <defaults>
</compile_context>

<pallas_src>
import jax
import jax.numpy as jnp
from jax.experimental import pallas as pl
from jax.experimental.pallas import tpu as pltpu

HIDDEN = 1024
BN_EPS = 1e-5
LRELU_SLOPE = 0.2
# 256-row batch tiles feed the 256-wide MXU on v6e/v7x; use 128 on v5e.
DEFAULT_TILE_ROWS = 256


def _leaky_relu(x, slope=LRELU_SLOPE):
    return jnp.where(x > 0, x, slope * x)


def _round_up(n, m):
    return ((n + m - 1) // m) * m


def make_discriminator_params(key, z_dim, x_dim):
    """PyTorch-style Linear init: U(-1/sqrt(fan_in), +1/sqrt(fan_in)), f32."""
    d_in = z_dim + x_dim
    ks = jax.random.split(key, 6)

    def lin(kw, kb, fan_in, fan_out):
        bound = 1.0 / jnp.sqrt(jnp.float32(fan_in))
        w = jax.random.uniform(kw, (fan_in, fan_out), jnp.float32, -bound, bound)
        b = jax.random.uniform(kb, (1, fan_out), jnp.float32, -bound, bound)
        return w, b

    w1, b1 = lin(ks[0], ks[1], d_in, HIDDEN)
    w2, b2 = lin(ks[2], ks[3], HIDDEN, HIDDEN)
    w3, b3 = lin(ks[4], ks[5], HIDDEN, 1)
    return (w1, b1, w2, b2, w3, b3)


def prepare_kernel_params(params):
    """Kernel-side layout: bf16 weight storage (halves the dominant HBM DMA),
    the head weight stored as a (1, 1024) row so the logits come out with the
    batch dimension on lanes (lane-dense output)."""
    w1, b1, w2, b2, w3, b3 = params
    return (w1.astype(jnp.bfloat16),
            b1.astype(jnp.float32),
            w2.astype(jnp.bfloat16),
            b2.astype(jnp.float32),
            w3.T.astype(jnp.bfloat16).reshape(1, HIDDEN),
            b3.astype(jnp.float32).reshape(1, 1))


# --------------------------------------------------------------------------
# Pass 1: zx -> Linear -> LeakyReLU -> Linear (pre-BN), per-tile BN stats.
# --------------------------------------------------------------------------
def _make_pass1_kernel(TB, num_tiles, need_mask, n_last):
    def kernel(zx_ref, w1_ref, b1_ref, w2_ref, b2_ref,
               h2_ref, psum_ref, pm2_ref):
        # ---- Linear(z_dim + x_dim -> 1024) + LeakyReLU (bf16 MXU, f32 acc) --
        h1 = jnp.dot(zx_ref[...].astype(jnp.bfloat16), w1_ref[...],
                     preferred_element_type=jnp.float32) + b1_ref[...]
        h1 = _leaky_relu(h1)

        # ---- Linear(1024 -> 1024), pre-BatchNorm -----------------------------
        h2 = jnp.dot(h1.astype(jnp.bfloat16), w2_ref[...],
                     preferred_element_type=jnp.float32) + b2_ref[...]
        h2_ref[...] = h2.astype(jnp.bfloat16)   # bf16 writeback (half traffic)

        # ---- per-tile BN statistics (centered -> no cancellation) -----------
        if need_mask:
            # Only the last tile contains padded rows; mask them out there.
            is_last = pl.program_id(0) == num_tiles - 1
            rows = jax.lax.broadcasted_iota(jnp.int32, (TB, 1), 0)
            valid = jnp.where(is_last, (rows < n_last).astype(jnp.float32), 1.0)
            cnt = jnp.where(is_last, jnp.float32(n_last), jnp.float32(TB))
            tsum = jnp.sum(h2 * valid, axis=0, keepdims=True)
            diff = (h2 - tsum / cnt) * valid
        else:
            tsum = jnp.sum(h2, axis=0, keepdims=True)
            diff = h2 - tsum * (1.0 / TB)
        psum_ref[0] = tsum                                     # (1, HIDDEN)
        pm2_ref[0] = jnp.sum(diff * diff, axis=0, keepdims=True)

    return kernel


def _run_pass1(zx, w1, b1, w2, b2, *, TB, num_tiles, b_pad, d_in,
               need_mask, n_last, single_buffer_weights=True):
    kernel = _make_pass1_kernel(TB, num_tiles, need_mask, n_last)

    def build(single_buffer):
        # Weight blocks never change index -> single-buffer them if supported.
        wkw = dict(pipeline_mode=pl.Buffered(1)) if single_buffer else {}
        in_specs = [
            pl.BlockSpec((TB, d_in), lambda i: (i, 0)),              # zx tile
            pl.BlockSpec((d_in, HIDDEN), lambda i: (0, 0), **wkw),   # W1
            pl.BlockSpec((1, HIDDEN), lambda i: (0, 0), **wkw),      # b1
            pl.BlockSpec((HIDDEN, HIDDEN), lambda i: (0, 0), **wkw), # W2
            pl.BlockSpec((1, HIDDEN), lambda i: (0, 0), **wkw),      # b2
        ]
        out_specs = [
            pl.BlockSpec((TB, HIDDEN), lambda i: (i, 0)),            # h2 (bf16)
            pl.BlockSpec((1, 1, HIDDEN), lambda i: (i, 0, 0)),       # tile sum
            pl.BlockSpec((1, 1, HIDDEN), lambda i: (i, 0, 0)),       # tile M2
        ]
        out_shape = (
            jax.ShapeDtypeStruct((b_pad, HIDDEN), jnp.bfloat16),
            jax.ShapeDtypeStruct((num_tiles, 1, HIDDEN), jnp.float32),
            jax.ShapeDtypeStruct((num_tiles, 1, HIDDEN), jnp.float32),
        )

        weight_bytes = (d_in * HIDDEN * 2 + HIDDEN * 4
                        + HIDDEN * HIDDEN * 2 + HIDDEN * 4)
        weight_bufs = 1 if single_buffer else 2
        # Per-tile working set only (independent of B): double-buffered zx tile
        # + resident weights + double-buffered bf16 h2 tile + tiny stats blocks.
        working = (2 * TB * d_in * 4
                   + weight_bufs * weight_bytes
                   + 2 * TB * HIDDEN * 2
                   + 4 * HIDDEN * 4)
        vmem_limit = int(min(max(working + (8 << 20), 16 << 20), 64 << 20))

        cost = pl.CostEstimate(
            flops=2 * b_pad * (d_in * HIDDEN + HIDDEN * HIDDEN),
            transcendentals=0,
            bytes_accessed=(b_pad * d_in * 4 + weight_bytes
                            + b_pad * HIDDEN * 2 + num_tiles * 2 * HIDDEN * 4),
        )
        return pl.pallas_call(
            kernel,
            out_shape=out_shape,
            grid_spec=pltpu.PrefetchScalarGridSpec(
                num_scalar_prefetch=0,
                grid=(num_tiles,),
                in_specs=in_specs,
                out_specs=out_specs,
            ),
            compiler_params=pltpu.CompilerParams(
                dimension_semantics=("parallel",),   # no cross-tile state
                vmem_limit_bytes=vmem_limit,
            ),
            cost_estimate=cost,
        )

    if single_buffer_weights:
        try:
            return build(True)(zx, w1, b1, w2, b2)
        except Exception:
            pass  # pl.Buffered(1) rejected -> default double buffering below
    return build(False)(zx, w1, b1, w2, b2)


# --------------------------------------------------------------------------
# Pass 2: BatchNorm (given mean / inv_std) -> LeakyReLU -> Linear(1024, 1)
#         -> Sigmoid, logits stored lane-dense with batch on lanes.
# --------------------------------------------------------------------------
def _pass2_kernel(h2_ref, mean_ref, istd_ref, w3_ref, b3_ref, out_ref):
    hn = (h2_ref[...].astype(jnp.float32) - mean_ref[...]) * istd_ref[...]
    hn = _leaky_relu(hn)
    # (1, 1024) @ (1024, TB) -> (1, TB): one logit per row, batch on lanes.
    logits = jnp.dot(w3_ref[...], hn.astype(jnp.bfloat16).T,
                     preferred_element_type=jnp.float32) + b3_ref[...]
    out_ref[...] = jax.nn.sigmoid(logits)


def _run_pass2(h2, mean, inv_std, w3r, b3, *, TB, num_tiles, b_pad):
    working = 2 * TB * HIDDEN * 2 + 2 * 3 * HIDDEN * 4 + 2 * TB * 4 + 64
    vmem_limit = int(min(max(working + (8 << 20), 16 << 20), 64 << 20))
    cost = pl.CostEstimate(
        flops=2 * b_pad * HIDDEN + 6 * b_pad * HIDDEN,
        transcendentals=2 * b_pad,                    # sigmoid: exp + recip
        bytes_accessed=b_pad * HIDDEN * 2 + 3 * HIDDEN * 4 + b_pad * 4,
    )
    return pl.pallas_call(
        _pass2_kernel,
        out_shape=jax.ShapeDtypeStruct((1, b_pad), jnp.float32),
        grid_spec=pltpu.PrefetchScalarGridSpec(
            num_scalar_prefetch=0,
            grid=(num_tiles,),
            in_specs=[
                pl.BlockSpec((TB, HIDDEN), lambda i: (i, 0)),   # h2 tile (bf16)
                pl.BlockSpec((1, HIDDEN), lambda i: (0, 0)),    # mean
                pl.BlockSpec((1, HIDDEN), lambda i: (0, 0)),    # inv_std
                pl.BlockSpec((1, HIDDEN), lambda i: (0, 0)),    # W3 row
                pl.BlockSpec((1, 1), lambda i: (0, 0)),         # b3
            ],
            out_specs=pl.BlockSpec((1, TB), lambda i: (0, i)),
        ),
        compiler_params=pltpu.CompilerParams(
            dimension_semantics=("parallel",),
            vmem_limit_bytes=vmem_limit,
        ),
        cost_estimate=cost,
    )(h2, mean, inv_std, w3r, b3)


# --------------------------------------------------------------------------
# Wrapper
# --------------------------------------------------------------------------
def discriminator_forward(z, x, kernel_params, tile_rows=DEFAULT_TILE_ROWS):
    w1, b1, w2, b2, w3r, b3 = kernel_params
    z = z.astype(jnp.float32)
    x = x.astype(jnp.float32)
    B = z.shape[0]
    d_in = z.shape[1] + x.shape[1]

    # Fused layer-1 operand: wrapper-side concat of the tiny z / x arrays.
    zx = jnp.concatenate((z, x), axis=1)

    TB = min(tile_rows, _round_up(B, 8))
    num_tiles = pl.cdiv(B, TB)
    b_pad = num_tiles * TB
    need_mask = b_pad != B
    n_last = B - (num_tiles - 1) * TB
    if need_mask:
        zx = jnp.pad(zx, ((0, b_pad - B), (0, 0)))

    # ---- pass 1: pre-BN activations (bf16, HBM) + per-tile stats ------------
    h2, psum, pm2 = _run_pass1(zx, w1, b1, w2, b2, TB=TB, num_tiles=num_tiles,
                               b_pad=b_pad, d_in=d_in, need_mask=need_mask,
                               n_last=n_last)

    # ---- combine per-tile stats (Chan's parallel variance; tiny, pure JAX) --
    psum = psum.reshape(num_tiles, HIDDEN)
    pm2 = pm2.reshape(num_tiles, HIDDEN)
    counts = jnp.full((num_tiles, 1), float(TB), jnp.float32)
    if need_mask:
        counts = counts.at[-1, 0].set(float(n_last))
    mean = jnp.sum(psum, axis=0, keepdims=True) / B
    tile_means = psum / counts
    m2 = (jnp.sum(pm2, axis=0, keepdims=True)
          + jnp.sum(counts * (tile_means - mean) ** 2, axis=0, keepdims=True))
    var = m2 / B                                  # biased (PyTorch training BN)
    inv_std = jax.lax.rsqrt(var + BN_EPS)

    # ---- pass 2: BN + LeakyReLU + head + sigmoid -----------------------------
    out = _run_pass2(h2, mean, inv_std, w3r, b3,
                     TB=TB, num_tiles=num_tiles, b_pad=b_pad)
    return out[0, :B].reshape(B, 1)


def _reference_forward(z, x, params):
    """Pure-JAX reference. Uses the same bf16-rounded weights the kernel sees
    so the comparison isolates in-kernel numerics (bf16 activation casts)."""
    w1, b1, w2, b2, w3, b3 = params
    q = lambda w: w.astype(jnp.bfloat16).astype(jnp.float32)
    h = jnp.concatenate((z, x), axis=1).astype(jnp.float32)
    h = h @ q(w1) + b1
    h = jnp.where(h > 0, h, LRELU_SLOPE * h)
    h = h @ q(w2) + b2
    mean = jnp.mean(h, axis=0, keepdims=True)
    var = jnp.mean((h - mean) ** 2, axis=0, keepdims=True)
    h = (h - mean) / jnp.sqrt(var + BN_EPS)
    h = jnp.where(h > 0, h, LRELU_SLOPE * h)
    return jax.nn.sigmoid(h @ q(w3) + b3)


if __name__ == "__main__":
    key = jax.random.PRNGKey(0)
    k_param, k_z, k_x = jax.random.split(key, 3)

    B, Z_DIM, X_DIM = 8, 16, 48
    params = make_discriminator_params(k_param, Z_DIM, X_DIM)
    kparams = prepare_kernel_params(params)

    z = jax.random.normal(k_z, (B, Z_DIM), jnp.float32)
    x = jax.random.normal(k_x, (B, X_DIM), jnp.float32)

    out = jax.block_until_ready(discriminator_forward(z, x, kparams))
    ref = jax.block_until_ready(_reference_forward(z, x, params))

    assert out.shape == (B, 1)
    # bf16 matmul operands / bf16 pre-BN activation storage (f32 accumulation
    # and f32 BN statistics) vs. an all-f32 activation reference -> loose
    # tolerance; outputs are post-sigmoid in (0, 1).
    assert jnp.allclose(out, ref, atol=2.5e-2, rtol=0.0), (out, ref)

    print("KERNEL_OK")
</pallas_src>

<mosaic_0001>
module attributes {stable_mosaic.version = 11 : i64} {
  func.func @kernel(%arg0: i32, %arg1: memref<8x64xf32, #tpu.memory_space<vmem>>, %arg2: memref<64x1024xbf16, #tpu.memory_space<vmem>>, %arg3: memref<1x1024xf32, #tpu.memory_space<vmem>>, %arg4: memref<1024x1024xbf16, #tpu.memory_space<vmem>>, %arg5: memref<1x1024xf32, #tpu.memory_space<vmem>>, %arg6: memref<8x1024xbf16, #tpu.memory_space<vmem>>, %arg7: memref<1x1x1024xf32, #tpu.memory_space<vmem>>, %arg8: memref<1x1x1024xf32, #tpu.memory_space<vmem>>) attributes {dimension_semantics = [#tpu.dimension_semantics<parallel>], iteration_bounds = array<i64: 1>, scalar_prefetch = 0 : i64, scratch_operands = 0 : i64, tpu.core_type = #tpu.core_type<tc>, window_params = [{transform_indices = @transform_0, window_bounds = array<i64: 8, 64>}, {pipeline_mode = #tpu.pipeline_mode<synchronous>, transform_indices = @transform_1, window_bounds = array<i64: 64, 1024>}, {pipeline_mode = #tpu.pipeline_mode<synchronous>, transform_indices = @transform_2, window_bounds = array<i64: 1, 1024>}, {pipeline_mode = #tpu.pipeline_mode<synchronous>, transform_indices = @transform_3, window_bounds = array<i64: 1024, 1024>}, {pipeline_mode = #tpu.pipeline_mode<synchronous>, transform_indices = @transform_4, window_bounds = array<i64: 1, 1024>}, {transform_indices = @transform_5, window_bounds = array<i64: 8, 1024>}, {transform_indices = @transform_6, window_bounds = array<i64: 1, 1, 1024>}, {transform_indices = @transform_7, window_bounds = array<i64: 1, 1, 1024>}]} {
    %c0 = arith.constant 0 : index
    %c0_0 = arith.constant 0 : index
    %0 = vector.load %arg1[%c0, %c0_0] : memref<8x64xf32, #tpu.memory_space<vmem>>, vector<8x64xf32>
    %1 = arith.truncf %0 : vector<8x64xf32> to vector<8x64xbf16>
    %c0_1 = arith.constant 0 : index
    %c0_2 = arith.constant 0 : index
    %2 = vector.load %arg2[%c0_1, %c0_2] : memref<64x1024xbf16, #tpu.memory_space<vmem>>, vector<64x1024xbf16>
    %cst = arith.constant dense<0.000000e+00> : vector<8x1024xf32>
    %3 = tpu.matmul %1, %2, %cst {dimension_numbers = #tpu.dot_dimension_numbers<[1], [0], [0], [1], [0, 0, 1, 1], [], []>} : vector<8x64xbf16>, vector<64x1024xbf16>, vector<8x1024xf32> -> vector<8x1024xf32>
    %c0_3 = arith.constant 0 : index
    %c0_4 = arith.constant 0 : index
    %4 = vector.load %arg3[%c0_3, %c0_4] : memref<1x1024xf32, #tpu.memory_space<vmem>>, vector<1x1024xf32>
    %5 = vector.broadcast %4 : vector<1x1024xf32> to vector<8x1024xf32>
    %6 = arith.addf %3, %5 : vector<8x1024xf32>
    %cst_5 = arith.constant 0.000000e+00 : f32
    %7 = vector.broadcast %cst_5 : f32 to vector<8x1024xf32>
    %8 = arith.cmpf ogt, %6, %7 : vector<8x1024xf32>
    %cst_6 = arith.constant 2.000000e-01 : f32
    %9 = vector.broadcast %cst_6 : f32 to vector<8x1024xf32>
    %10 = arith.mulf %9, %6 : vector<8x1024xf32>
    %11 = arith.select %8, %6, %10 : vector<8x1024xi1>, vector<8x1024xf32>
    %12 = arith.truncf %11 : vector<8x1024xf32> to vector<8x1024xbf16>
    %c0_7 = arith.constant 0 : index
    %c0_8 = arith.constant 0 : index
    %13 = vector.load %arg4[%c0_7, %c0_8] : memref<1024x1024xbf16, #tpu.memory_space<vmem>>, vector<1024x1024xbf16>
    %cst_9 = arith.constant dense<0.000000e+00> : vector<8x1024xf32>
    %14 = tpu.matmul %12, %13, %cst_9 {dimension_numbers = #tpu.dot_dimension_numbers<[1], [0], [0], [1], [0, 0, 1, 1], [], []>} : vector<8x1024xbf16>, vector<1024x1024xbf16>, vector<8x1024xf32> -> vector<8x1024xf32>
    %c0_10 = arith.constant 0 : index
    %c0_11 = arith.constant 0 : index
    %15 = vector.load %arg5[%c0_10, %c0_11] : memref<1x1024xf32, #tpu.memory_space<vmem>>, vector<1x1024xf32>
    %16 = vector.broadcast %15 : vector<1x1024xf32> to vector<8x1024xf32>
    %17 = arith.addf %14, %16 : vector<8x1024xf32>
    %18 = arith.truncf %17 : vector<8x1024xf32> to vector<8x1024xbf16>
    %c0_12 = arith.constant 0 : index
    %c0_13 = arith.constant 0 : index
    %19 = vector.load %arg6[%c0_12, %c0_13] : memref<8x1024xbf16, #tpu.memory_space<vmem>>, vector<8x1024xbf16>
    tpu.vector_store %arg6[%c0_12, %c0_13], %18 {strides = array<i32>} : memref<8x1024xbf16, #tpu.memory_space<vmem>>, vector<8x1024xbf16>,
    %cst_14 = arith.constant dense<0.000000e+00> : vector<1024xf32>
    %20 = vector.multi_reduction <add>, %17, %cst_14 [0] : vector<8x1024xf32> to vector<1024xf32>
    %21 = vector.shape_cast %20 : vector<1024xf32> to vector<1x1024xf32>
    %cst_15 = arith.constant 1.250000e-01 : f32
    %22 = vector.broadcast %cst_15 : f32 to vector<1x1024xf32>
    %23 = arith.mulf %21, %22 : vector<1x1024xf32>
    %24 = vector.broadcast %23 : vector<1x1024xf32> to vector<8x1024xf32>
    %25 = arith.subf %17, %24 : vector<8x1024xf32>
    %c0_16 = arith.constant 0 : index
    %c0_17 = arith.constant 0 : index
    %c0_18 = arith.constant 0 : index
    %26 = vector.load %arg7[%c0_16, %c0_17, %c0_18] : memref<1x1x1024xf32, #tpu.memory_space<vmem>>, vector<1x1x1024xf32>
    %27 = vector.shape_cast %26 : vector<1x1x1024xf32> to vector<1x1024xf32>
    %28 = vector.shape_cast %21 : vector<1x1024xf32> to vector<1x1x1024xf32>
    tpu.vector_store %arg7[%c0_16, %c0_17, %c0_18], %28 {strides = array<i32>} : memref<1x1x1024xf32, #tpu.memory_space<vmem>>, vector<1x1x1024xf32>,
    %29 = arith.mulf %25, %25 : vector<8x1024xf32>
    %cst_19 = arith.constant dense<0.000000e+00> : vector<1024xf32>
    %30 = vector.multi_reduction <add>, %29, %cst_19 [0] : vector<8x1024xf32> to vector<1024xf32>
    %31 = vector.shape_cast %30 : vector<1024xf32> to vector<1x1024xf32>
    %c0_20 = arith.constant 0 : index
    %c0_21 = arith.constant 0 : index
    %c0_22 = arith.constant 0 : index
    %32 = vector.load %arg8[%c0_20, %c0_21, %c0_22] : memref<1x1x1024xf32, #tpu.memory_space<vmem>>, vector<1x1x1024xf32>
    %33 = vector.shape_cast %32 : vector<1x1x1024xf32> to vector<1x1024xf32>
    %34 = vector.shape_cast %31 : vector<1x1024xf32> to vector<1x1x1024xf32>
    tpu.vector_store %arg8[%c0_20, %c0_21, %c0_22], %34 {strides = array<i32>} : memref<1x1x1024xf32, #tpu.memory_space<vmem>>, vector<1x1x1024xf32>,
    return
  }
  func.func @transform_0(%arg0: i32) -> (i32, i32) {
    %c0_i32 = arith.constant 0 : i32
    %c0_i32_0 = arith.constant 0 : i32
    return %arg0, %c0_i32 : i32, i32
  }
  func.func @transform_1(%arg0: i32) -> (i32, i32) {
    %c0_i32 = arith.constant 0 : i32
    %c0_i32_0 = arith.constant 0 : i32
    %c0_i32_1 = arith.constant 0 : i32
    return %c0_i32, %c0_i32_0 : i32, i32
  }
  func.func @transform_2(%arg0: i32) -> (i32, i32) {
    %c0_i32 = arith.constant 0 : i32
    %c0_i32_0 = arith.constant 0 : i32
    %c0_i32_1 = arith.constant 0 : i32
    return %c0_i32, %c0_i32_0 : i32, i32
  }
  func.func @transform_3(%arg0: i32) -> (i32, i32) {
    %c0_i32 = arith.constant 0 : i32
    %c0_i32_0 = arith.constant 0 : i32
    %c0_i32_1 = arith.constant 0 : i32
    return %c0_i32, %c0_i32_0 : i32, i32
  }
  func.func @transform_4(%arg0: i32) -> (i32, i32) {
    %c0_i32 = arith.constant 0 : i32
    %c0_i32_0 = arith.constant 0 : i32
    %c0_i32_1 = arith.constant 0 : i32
    return %c0_i32, %c0_i32_0 : i32, i32
  }
  func.func @transform_5(%arg0: i32) -> (i32, i32) {
    %c0_i32 = arith.constant 0 : i32
    %c0_i32_0 = arith.constant 0 : i32
    return %arg0, %c0_i32 : i32, i32
  }
  func.func @transform_6(%arg0: i32) -> (i32, i32, i32) {
    %c0_i32 = arith.constant 0 : i32
    %c0_i32_0 = arith.constant 0 : i32
    %c0_i32_1 = arith.constant 0 : i32
    return %arg0, %c0_i32, %c0_i32_0 : i32, i32, i32
  }
  func.func @transform_7(%arg0: i32) -> (i32, i32, i32) {
    %c0_i32 = arith.constant 0 : i32
    %c0_i32_0 = arith.constant 0 : i32
    %c0_i32_1 = arith.constant 0 : i32
    return %arg0, %c0_i32, %c0_i32_0 : i32, i32, i32
  }
}

module attributes {stable_mosaic.version = 11 : i64} {
  func.func @kernel(%arg0: i32, %arg1: memref<8x64xf32, #tpu.memory_space<vmem>>, %arg2: memref<64x1024xbf16, #tpu.memory_space<vmem>>, %arg3: memref<1x1024xf32, #tpu.memory_space<vmem>>, %arg4: memref<1024x1024xbf16, #tpu.memory_space<vmem>>, %arg5: memref<1x1024xf32, #tpu.memory_space<vmem>>, %arg6: memref<8x1024xbf16, #tpu.memory_space<vmem>>, %arg7: memref<1x1x1024xf32, #tpu.memory_space<vmem>>, %arg8: memref<1x1x1024xf32, #tpu.memory_space<vmem>>) attributes {dimension_semantics = [#tpu.dimension_semantics<parallel>], iteration_bounds = array<i64: 1>, scalar_prefetch = 0 : i64, scratch_operands = 0 : i64, tpu.core_type = #tpu.core_type<tc>, window_params = [{transform_indices = @transform_0, window_bounds = array<i64: 8, 64>}, {pipeline_mode = #tpu.pipeline_mode<synchronous>, transform_indices = @transform_1, window_bounds = array<i64: 64, 1024>}, {pipeline_mode = #tpu.pipeline_mode<synchronous>, transform_indices = @transform_2, window_bounds = array<i64: 1, 1024>}, {pipeline_mode = #tpu.pipeline_mode<synchronous>, transform_indices = @transform_3, window_bounds = array<i64: 1024, 1024>}, {pipeline_mode = #tpu.pipeline_mode<synchronous>, transform_indices = @transform_4, window_bounds = array<i64: 1, 1024>}, {transform_indices = @transform_5, window_bounds = array<i64: 8, 1024>}, {transform_indices = @transform_6, window_bounds = array<i64: 1, 1, 1024>}, {transform_indices = @transform_7, window_bounds = array<i64: 1, 1, 1024>}]} {
    %c0 = arith.constant 0 : index
    %c0_0 = arith.constant 0 : index
    %0 = vector.load %arg1[%c0, %c0_0] : memref<8x64xf32, #tpu.memory_space<vmem>>, vector<8x64xf32>
    %1 = arith.truncf %0 : vector<8x64xf32> to vector<8x64xbf16>
    %c0_1 = arith.constant 0 : index
    %c0_2 = arith.constant 0 : index
    %2 = vector.load %arg2[%c0_1, %c0_2] : memref<64x1024xbf16, #tpu.memory_space<vmem>>, vector<64x1024xbf16>
    %cst = arith.constant dense<0.000000e+00> : vector<8x1024xf32>
    %3 = tpu.matmul %1, %2, %cst {dimension_numbers = #tpu.dot_dimension_numbers<[1], [0], [0], [1], [0, 0, 1, 1], [], []>} : vector<8x64xbf16>, vector<64x1024xbf16>, vector<8x1024xf32> -> vector<8x1024xf32>
    %c0_3 = arith.constant 0 : index
    %c0_4 = arith.constant 0 : index
    %4 = vector.load %arg3[%c0_3, %c0_4] : memref<1x1024xf32, #tpu.memory_space<vmem>>, vector<1x1024xf32>
    %5 = vector.broadcast %4 : vector<1x1024xf32> to vector<8x1024xf32>
    %6 = arith.addf %3, %5 : vector<8x1024xf32>
    %cst_5 = arith.constant 0.000000e+00 : f32
    %7 = vector.broadcast %cst_5 : f32 to vector<8x1024xf32>
    %8 = arith.cmpf ogt, %6, %7 : vector<8x1024xf32>
    %cst_6 = arith.constant 2.000000e-01 : f32
    %9 = vector.broadcast %cst_6 : f32 to vector<8x1024xf32>
    %10 = arith.mulf %9, %6 : vector<8x1024xf32>
    %11 = arith.select %8, %6, %10 : vector<8x1024xi1>, vector<8x1024xf32>
    %12 = arith.truncf %11 : vector<8x1024xf32> to vector<8x1024xbf16>
    %c0_7 = arith.constant 0 : index
    %c0_8 = arith.constant 0 : index
    %13 = vector.load %arg4[%c0_7, %c0_8] : memref<1024x1024xbf16, #tpu.memory_space<vmem>>, vector<1024x1024xbf16>
    %cst_9 = arith.constant dense<0.000000e+00> : vector<8x1024xf32>
    %14 = tpu.matmul %12, %13, %cst_9 {dimension_numbers = #tpu.dot_dimension_numbers<[1], [0], [0], [1], [0, 0, 1, 1], [], []>} : vector<8x1024xbf16>, vector<1024x1024xbf16>, vector<8x1024xf32> -> vector<8x1024xf32>
    %c0_10 = arith.constant 0 : index
    %c0_11 = arith.constant 0 : index
    %15 = vector.load %arg5[%c0_10, %c0_11] : memref<1x1024xf32, #tpu.memory_space<vmem>>, vector<1x1024xf32>
    %16 = vector.broadcast %15 : vector<1x1024xf32> to vector<8x1024xf32>
    %17 = arith.addf %14, %16 : vector<8x1024xf32>
    %18 = arith.truncf %17 : vector<8x1024xf32> to vector<8x1024xbf16>
    %c0_12 = arith.constant 0 : index
    %c0_13 = arith.constant 0 : index
    %19 = vector.load %arg6[%c0_12, %c0_13] : memref<8x1024xbf16, #tpu.memory_space<vmem>>, vector<8x1024xbf16>
    tpu.vector_store %arg6[%c0_12, %c0_13], %18 {strides = array<i32>} : memref<8x1024xbf16, #tpu.memory_space<vmem>>, vector<8x1024xbf16>,
    %cst_14 = arith.constant dense<0.000000e+00> : vector<1024xf32>
    %20 = vector.multi_reduction <add>, %17, %cst_14 [0] : vector<8x1024xf32> to vector<1024xf32>
    %21 = vector.shape_cast %20 : vector<1024xf32> to vector<1x1024xf32>
    %cst_15 = arith.constant 1.250000e-01 : f32
    %22 = vector.broadcast %cst_15 : f32 to vector<1x1024xf32>
    %23 = arith.mulf %21, %22 : vector<1x1024xf32>
    %24 = vector.broadcast %23 : vector<1x1024xf32> to vector<8x1024xf32>
    %25 = arith.subf %17, %24 : vector<8x1024xf32>
    %c0_16 = arith.constant 0 : index
    %c0_17 = arith.constant 0 : index
    %c0_18 = arith.constant 0 : index
    %26 = vector.load %arg7[%c0_16, %c0_17, %c0_18] : memref<1x1x1024xf32, #tpu.memory_space<vmem>>, vector<1x1x1024xf32>
    %27 = vector.shape_cast %26 : vector<1x1x1024xf32> to vector<1x1024xf32>
    %28 = vector.shape_cast %21 : vector<1x1024xf32> to vector<1x1x1024xf32>
    tpu.vector_store %arg7[%c0_16, %c0_17, %c0_18], %28 {strides = array<i32>} : memref<1x1x1024xf32, #tpu.memory_space<vmem>>, vector<1x1x1024xf32>,
    %29 = arith.mulf %25, %25 : vector<8x1024xf32>
    %cst_19 = arith.constant dense<0.000000e+00> : vector<1024xf32>
    %30 = vector.multi_reduction <add>, %29, %cst_19 [0] : vector<8x1024xf32> to vector<1024xf32>
    %31 = vector.shape_cast %30 : vector<1024xf32> to vector<1x1024xf32>
    %c0_20 = arith.constant 0 : index
    %c0_21 = arith.constant 0 : index
    %c0_22 = arith.constant 0 : index
    %32 = vector.load %arg8[%c0_20, %c0_21, %c0_22] : memref<1x1x1024xf32, #tpu.memory_space<vmem>>, vector<1x1x1024xf32>
    %33 = vector.shape_cast %32 : vector<1x1x1024xf32> to vector<1x1024xf32>
    %34 = vector.shape_cast %31 : vector<1x1024xf32> to vector<1x1x1024xf32>
    tpu.vector_store %arg8[%c0_20, %c0_21, %c0_22], %34 {strides = array<i32>} : memref<1x1x1024xf32, #tpu.memory_space<vmem>>, vector<1x1x1024xf32>,
    return
  }
  func.func @transform_0(%arg0: i32) -> (i32, i32) {
    %c0_i32 = arith.constant 0 : i32
    %c0_i32_0 = arith.constant 0 : i32
    return %arg0, %c0_i32 : i32, i32
  }
  func.func @transform_1(%arg0: i32) -> (i32, i32) {
    %c0_i32 = arith.constant 0 : i32
    %c0_i32_0 = arith.constant 0 : i32
    %c0_i32_1 = arith.constant 0 : i32
    return %c0_i32, %c0_i32_0 : i32, i32
  }
  func.func @transform_2(%arg0: i32) -> (i32, i32) {
    %c0_i32 = arith.constant 0 : i32
    %c0_i32_0 = arith.constant 0 : i32
    %c0_i32_1 = arith.constant 0 : i32
    return %c0_i32, %c0_i32_0 : i32, i32
  }
  func.func @transform_3(%arg0: i32) -> (i32, i32) {
    %c0_i32 = arith.constant 0 : i32
    %c0_i32_0 = arith.constant 0 : i32
    %c0_i32_1 = arith.constant 0 : i32
    return %c0_i32, %c0_i32_0 : i32, i32
  }
  func.func @transform_4(%arg0: i32) -> (i32, i32) {
    %c0_i32 = arith.constant 0 : i32
    %c0_i32_0 = arith.constant 0 : i32
    %c0_i32_1 = arith.constant 0 : i32
    return %c0_i32, %c0_i32_0 : i32, i32
  }
  func.func @transform_5(%arg0: i32) -> (i32, i32) {
    %c0_i32 = arith.constant 0 : i32
    %c0_i32_0 = arith.constant 0 : i32
    return %arg0, %c0_i32 : i32, i32
  }
  func.func @transform_6(%arg0: i32) -> (i32, i32, i32) {
    %c0_i32 = arith.constant 0 : i32
    %c0_i32_0 = arith.constant 0 : i32
    %c0_i32_1 = arith.constant 0 : i32
    return %arg0, %c0_i32, %c0_i32_0 : i32, i32, i32
  }
  func.func @transform_7(%arg0: i32) -> (i32, i32, i32) {
    %c0_i32 = arith.constant 0 : i32
    %c0_i32_0 = arith.constant 0 : i32
    %c0_i32_1 = arith.constant 0 : i32
    return %arg0, %c0_i32, %c0_i32_0 : i32, i32, i32
  }
}

</mosaic_0001>

<llo_original>
// kernel: tpu_custom_call.1
$region0: #{tpu_custom_call.1}
  #allocation0 [shape = 'u32[]', space=smem, size = 0x4, offset = 0x4, fixed_abs, tag = 'smem constant byte address 0x4 - core index']
  #allocation1 [shape = 'u32[72,128]{1,0:T(1,128)}', space=vmem, size = 0x9000, scoped, tag = 'internal scratch']
  %s0 = inlined_call_operand.hbm [shape: f32[8,64], index: 0, kind: input, shape index: {}]
  %s1 = inlined_call_operand.hbm [shape: bf16[64,1024], index: 1, kind: input, shape index: {}]
  %s2 = inlined_call_operand.hbm [shape: f32[1,1024], index: 2, kind: input, shape index: {}]
  %s3 = inlined_call_operand.hbm [shape: bf16[1024,1024], index: 3, kind: input, shape index: {}]
  %s4 = inlined_call_operand.hbm [shape: f32[1,1024], index: 4, kind: input, shape index: {}]
  %s5 = inlined_call_operand.hbm [shape: bf16[8,1024], index: 5, kind: output, shape index: {0}]
  %s6 = inlined_call_operand.hbm [shape: f32[1,1,1024], index: 6, kind: output, shape index: {1}]
  %s7 = inlined_call_operand.hbm [shape: f32[1,1,1024], index: 7, kind: output, shape index: {2}]
  %8 = xla_tuple %s5, %s6, %s7
  %s9 = sld [smem:[#allocation0]]
  $region66: #{tpu_custom_call.1} parent=0
    _
  %s11 = ssub.s32 1, %s9
  %s12 = scalar_select 0, %s11, %s9
  $region1: #{tpu_custom_call.1} parent=0
    #allocation2 [shape = 'u8[4096]{0}', space=vmem, size = 0x1000, scoped, tag = 'input window, operand 0, single buffered']
    #allocation3 [shape = 's32[1]{0}', space=sflag, size = 0x4, scoped, tag = 'scoped memory for tpu_custom_call.1']
    #allocation4 [shape = 's32[1]{0}', space=sflag, size = 0x4, scoped, tag = 'scoped memory for tpu_custom_call.1']
    #allocation5 [shape = 'u8[131072]{0}', space=vmem, size = 0x20000, scoped, tag = 'input window, operand 1, single buffered']
    #allocation6 [shape = 's32[1]{0}', space=sflag, size = 0x4, scoped, tag = 'scoped memory for tpu_custom_call.1']
    #allocation7 [shape = 'u8[4096]{0}', space=vmem, size = 0x1000, scoped, tag = 'input window, operand 2, single buffered']
    #allocation8 [shape = 'u8[2097152]{0}', space=vmem, size = 0x200000, scoped, tag = 'input window, operand 3, single buffered']
    #allocation9 [shape = 's32[1]{0}', space=sflag, size = 0x4, scoped, tag = 'scoped memory for tpu_custom_call.1']
    #allocation10 [shape = 'u8[4096]{0}', space=vmem, size = 0x1000, scoped, tag = 'input window, operand 4, single buffered']
    #allocation11 [shape = 'u8[16384]{0}', space=vmem, size = 0x4000, scoped, tag = 'output window, operand 0, single buffered']
    #allocation12 [shape = 'u8[4096]{0}', space=vmem, size = 0x1000, scoped, tag = 'output window, operand 1, single buffered']
    #allocation13 [shape = 's32[1]{0}', space=sflag, size = 0x4, scoped, tag = 'scoped memory for tpu_custom_call.1']
    #allocation14 [shape = 'u8[4096]{0}', space=vmem, size = 0x1000, scoped, tag = 'output window, operand 2, single buffered']
    %13 = vsyncpa [#allocation3], 0
    %14 = vsyncpa [#allocation6], 0
    %15 = vsyncpa [#allocation9], 0
    %16 = vsyncpa [#allocation4], 0
    %17 = vsyncpa [#allocation13], 0
    // Predicated region
    $region2: #{tpu_custom_call.1} parent=1 // pred_check
      _
    $region3: #{tpu_custom_call.1} parent=1 // pred_check_branch
      %19 = sbr.rel (0) target = $region5
    $region4: #{tpu_custom_call.1} parent=1 // pred_region
      %21 = vsyncadd [#allocation3], 0
      %s23 = sshll.u32 %s0, 4
      %s24 = int_to_ptr.hbm [resolvable:$true] %s23
      %s25 = sshll.u32 [#allocation2], 4
      %s26 = int_to_ptr.vmem [resolvable:$true] %s25
      %28 = dma.hbm_to_vmem [thread:$0]  %s24, 128, %s26, [#allocation3]
    $region5: #{tpu_custom_call.1} parent=1 // pred_fallthru
      _
    // Predicated region
    $region6: #{tpu_custom_call.1} parent=1 // pred_check
      _
    $region7: #{tpu_custom_call.1} parent=1 // pred_check_branch
      %30 = sbr.rel (0) target = $region9
    $region8: #{tpu_custom_call.1} parent=1 // pred_region
      %32 = vsyncadd [#allocation6], 0
      %s33 = sshll.u32 %s1, 4
      %s34 = int_to_ptr.hbm [resolvable:$true] %s33
      %s35 = sshll.u32 [#allocation5], 4
      %s36 = int_to_ptr.vmem [resolvable:$true] %s35
      %41 = dma.hbm_to_vmem [thread:$0]  %s34, 4096, %s36, [#allocation6], 512, 512, 32
    $region9: #{tpu_custom_call.1} parent=1 // pred_fallthru
      _
    // Predicated region
    $region10: #{tpu_custom_call.1} parent=1 // pred_check
      _
    $region11: #{tpu_custom_call.1} parent=1 // pred_check_branch
      %43 = sbr.rel (0) target = $region13
    $region12: #{tpu_custom_call.1} parent=1 // pred_region
      %45 = vsyncadd [#allocation6], 0
      %s47 = sshll.u32 %s2, 4
      %s48 = int_to_ptr.hbm [resolvable:$true] %s47
      %s49 = sshll.u32 [#allocation7], 4
      %s50 = int_to_ptr.vmem [resolvable:$true] %s49
      %52 = dma.hbm_to_vmem [thread:$0]  %s48, 128, %s50, [#allocation6]
    $region13: #{tpu_custom_call.1} parent=1 // pred_fallthru
      _
    // Predicated region
    $region14: #{tpu_custom_call.1} parent=1 // pred_check
      _
    $region15: #{tpu_custom_call.1} parent=1 // pred_check_branch
      %54 = sbr.rel (0) target = $region17
    $region16: #{tpu_custom_call.1} parent=1 // pred_region
      %56 = vsyncadd [#allocation9], 0
      %s57 = sshll.u32 %s3, 4
      %s58 = int_to_ptr.hbm [resolvable:$true] %s57
      %s59 = sshll.u32 [#allocation8], 4
      %s60 = int_to_ptr.vmem [resolvable:$true] %s59
      %65 = dma.hbm_to_vmem [thread:$0]  %s58, 65536, %s60, [#allocation9], 512, 512, 32
    $region17: #{tpu_custom_call.1} parent=1 // pred_fallthru
      _
    // Predicated region
    $region18: #{tpu_custom_call.1} parent=1 // pred_check
      _
    $region19: #{tpu_custom_call.1} parent=1 // pred_check_branch
      %67 = sbr.rel (0) target = $region21
    $region20: #{tpu_custom_call.1} parent=1 // pred_region
      %69 = vsyncadd [#allocation9], 0
      %s71 = sshll.u32 %s4, 4
      %s72 = int_to_ptr.hbm [resolvable:$true] %s71
      %s73 = sshll.u32 [#allocation10], 4
      %s74 = int_to_ptr.vmem [resolvable:$true] %s73
      %76 = dma.hbm_to_vmem [thread:$0]  %s72, 128, %s74, [#allocation9]
    $region21: #{tpu_custom_call.1} parent=1 // pred_fallthru
      _
    // Predicated region
    $region22: #{tpu_custom_call.1} parent=1 // pred_check
      _
    $region23: #{tpu_custom_call.1} parent=1 // pred_check_branch
      %78 = sbr.rel (0) target = $region25
    $region24: #{tpu_custom_call.1} parent=1 // pred_region
      %80 = dma.done [#allocation3], 128
    $region25: #{tpu_custom_call.1} parent=1 // pred_fallthru
      _
    // Predicated region
    $region26: #{tpu_custom_call.1} parent=1 // pred_check
      _
    $region27: #{tpu_custom_call.1} parent=1 // pred_check_branch
      %82 = sbr.rel (0) target = $region29
    $region28: #{tpu_custom_call.1} parent=1 // pred_region
      %84 = dma.done [#allocation6], 4096
    $region29: #{tpu_custom_call.1} parent=1 // pred_fallthru
      _
    // Predicated region
    $region30: #{tpu_custom_call.1} parent=1 // pred_check
      _
    $region31: #{tpu_custom_call.1} parent=1 // pred_check_branch
      %86 = sbr.rel (0) target = $region33
    $region32: #{tpu_custom_call.1} parent=1 // pred_region
      %88 = dma.done [#allocation6], 128
    $region33: #{tpu_custom_call.1} parent=1 // pred_fallthru
      _
    // Predicated region
    $region34: #{tpu_custom_call.1} parent=1 // pred_check
      _
    $region35: #{tpu_custom_call.1} parent=1 // pred_check_branch
      %90 = sbr.rel (0) target = $region37
    $region36: #{tpu_custom_call.1} parent=1 // pred_region
      %92 = dma.done [#allocation9], 65536
    $region37: #{tpu_custom_call.1} parent=1 // pred_fallthru
      _
    // Predicated region
    $region38: #{tpu_custom_call.1} parent=1 // pred_check
      _
    $region39: #{tpu_custom_call.1} parent=1 // pred_check_branch
      %94 = sbr.rel (0) target = $region41
    $region40: #{tpu_custom_call.1} parent=1 // pred_region
      %96 = dma.done [#allocation9], 128
    $region41: #{tpu_custom_call.1} parent=1 // pred_fallthru
      _
    %v98 = vld [vmem:[#allocation2] sm:$0xff]
    %v99 = vpack.c.bf16 %v98, %v98
    %v100 = vld [vmem:[#allocation5] sm:$0xff]
    %v101 = vld [vmem:[#allocation5 + $0x8] sm:$0xff]
    %v102 = vld [vmem:[#allocation5 + $0x10] sm:$0xff]
    %v103 = vld [vmem:[#allocation5 + $0x18] sm:$0xff]
    %v104 = vld [vmem:[#allocation5 + $0x20] sm:$0xff]
    %v105 = vld [vmem:[#allocation5 + $0x28] sm:$0xff]
    %v106 = vld [vmem:[#allocation5 + $0x30] sm:$0xff]
    %v107 = vld [vmem:[#allocation5 + $0x38] sm:$0xff]
    %v108 = vld [vmem:[#allocation5 + $0x40] sm:$0xff]
    %v109 = vld [vmem:[#allocation5 + $0x48] sm:$0xff]
    %v110 = vld [vmem:[#allocation5 + $0x50] sm:$0xff]
    %v111 = vld [vmem:[#allocation5 + $0x58] sm:$0xff]
    %v112 = vld [vmem:[#allocation5 + $0x60] sm:$0xff]
    %v113 = vld [vmem:[#allocation5 + $0x68] sm:$0xff]
    %v114 = vld [vmem:[#allocation5 + $0x70] sm:$0xff]
    %v115 = vld [vmem:[#allocation5 + $0x78] sm:$0xff]
    %v116 = vld [vmem:[#allocation5 + $0x80] sm:$0xff]
    %v117 = vld [vmem:[#allocation5 + $0x88] sm:$0xff]
    %v118 = vld [vmem:[#allocation5 + $0x90] sm:$0xff]
    %v119 = vld [vmem:[#allocation5 + $0x98] sm:$0xff]
    %v120 = vld [vmem:[#allocation5 + $0xa0] sm:$0xff]
    %v121 = vld [vmem:[#allocation5 + $0xa8] sm:$0xff]
    %v122 = vld [vmem:[#allocation5 + $0xb0] sm:$0xff]
    %v123 = vld [vmem:[#allocation5 + $0xb8] sm:$0xff]
    %v124 = vld [vmem:[#allocation5 + $0xc0] sm:$0xff]
    %v125 = vld [vmem:[#allocation5 + $0xc8] sm:$0xff]
    %v126 = vld [vmem:[#allocation5 + $0xd0] sm:$0xff]
    %v127 = vld [vmem:[#allocation5 + $0xd8] sm:$0xff]
    %v128 = vld [vmem:[#allocation5 + $0xe0] sm:$0xff]
    %v129 = vld [vmem:[#allocation5 + $0xe8] sm:$0xff]
    %v130 = vld [vmem:[#allocation5 + $0xf0] sm:$0xff]
    %v131 = vld [vmem:[#allocation5 + $0xf8] sm:$0xff]
    %v132 = vld [vmem:[#allocation7] sm:$0xff]
    %v134 = vperm.slane %v132, 0
    %v135 = vperm.slane %v132, 1
    %v136 = vperm.slane %v132, 2
    %v137 = vperm.slane %v132, 3
    %v138 = vperm.slane %v132, 4
    %v139 = vperm.slane %v132, 5
    %v140 = vperm.slane %v132, 6
    %v141 = vperm.slane %v132, 7
    %v182 = vunpack.c.l.b16 %v100
    %v183 = vunpack.c.h.b16 %v100
    %v184 = vunpack.c.l.b16 %v101
    %v185 = vunpack.c.h.b16 %v101
    %v186 = vunpack.c.l.b16 %v102
    %v187 = vunpack.c.h.b16 %v102
    %v188 = vunpack.c.l.b16 %v103
    %v189 = vunpack.c.h.b16 %v103
    %v190 = vunpack.c.l.b16 %v104
    %v191 = vunpack.c.h.b16 %v104
    %v192 = vunpack.c.l.b16 %v105
    %v193 = vunpack.c.h.b16 %v105
    %v194 = vunpack.c.l.b16 %v106
    %v195 = vunpack.c.h.b16 %v106
    %v196 = vunpack.c.l.b16 %v107
    %v197 = vunpack.c.h.b16 %v107
    %v198 = vunpack.c.l.b16 %v108
    %v199 = vunpack.c.h.b16 %v108
    %v200 = vunpack.c.l.b16 %v109
    %v201 = vunpack.c.h.b16 %v109
    %v202 = vunpack.c.l.b16 %v110
    %v203 = vunpack.c.h.b16 %v110
    %v204 = vunpack.c.l.b16 %v111
    %v205 = vunpack.c.h.b16 %v111
    %v206 = vunpack.c.l.b16 %v112
    %v207 = vunpack.c.h.b16 %v112
    %v208 = vunpack.c.l.b16 %v113
    %v209 = vunpack.c.h.b16 %v113
    %v210 = vunpack.c.l.b16 %v114
    %v211 = vunpack.c.h.b16 %v114
    %v212 = vunpack.c.l.b16 %v115
    %v213 = vunpack.c.h.b16 %v115
    %v214 = vunpack.c.l.b16 %v116
    %v215 = vunpack.c.h.b16 %v116
    %v216 = vunpack.c.l.b16 %v117
    %v217 = vunpack.c.h.b16 %v117
    %v218 = vunpack.c.l.b16 %v118
    %v219 = vunpack.c.h.b16 %v118
    %v220 = vunpack.c.l.b16 %v119
    %v221 = vunpack.c.h.b16 %v119
    %v222 = vunpack.c.l.b16 %v120
    %v223 = vunpack.c.h.b16 %v120
    %v224 = vunpack.c.l.b16 %v121
    %v225 = vunpack.c.h.b16 %v121
    %v226 = vunpack.c.l.b16 %v122
    %v227 = vunpack.c.h.b16 %v122
    %v228 = vunpack.c.l.b16 %v123
    %v229 = vunpack.c.h.b16 %v123
    %v230 = vunpack.c.l.b16 %v124
    %v231 = vunpack.c.h.b16 %v124
    %v232 = vunpack.c.l.b16 %v125
    %v233 = vunpack.c.h.b16 %v125
    %v234 = vunpack.c.l.b16 %v126
    %v235 = vunpack.c.h.b16 %v126
    %v236 = vunpack.c.l.b16 %v127
    %v237 = vunpack.c.h.b16 %v127
    %v238 = vunpack.c.l.b16 %v128
    %v239 = vunpack.c.h.b16 %v128
    %v240 = vunpack.c.l.b16 %v129
    %v241 = vunpack.c.h.b16 %v129
    %v242 = vunpack.c.l.b16 %v130
    %v243 = vunpack.c.h.b16 %v130
    %v244 = vunpack.c.l.b16 %v131
    %v245 = vunpack.c.h.b16 %v131
    %v246 = vpack.c.b16 %v190, %v182
    %v247 = vpack.c.b16 %v191, %v183
    %v248 = vpack.c.b16 %v192, %v184
    %v249 = vpack.c.b16 %v193, %v185
    %v250 = vpack.c.b16 %v194, %v186
    %v251 = vpack.c.b16 %v195, %v187
    %v252 = vpack.c.b16 %v196, %v188
    %v253 = vpack.c.b16 %v197, %v189
    %v254 = vpack.c.b16 %v206, %v198
    %v255 = vpack.c.b16 %v207, %v199
    %v256 = vpack.c.b16 %v208, %v200
    %v257 = vpack.c.b16 %v209, %v201
    %v258 = vpack.c.b16 %v210, %v202
    %v259 = vpack.c.b16 %v211, %v203
    %v260 = vpack.c.b16 %v212, %v204
    %v261 = vpack.c.b16 %v213, %v205
    %v262 = vpack.c.b16 %v222, %v214
    %v263 = vpack.c.b16 %v223, %v215
    %v264 = vpack.c.b16 %v224, %v216
    %v265 = vpack.c.b16 %v225, %v217
    %v266 = vpack.c.b16 %v226, %v218
    %v267 = vpack.c.b16 %v227, %v219
    %v268 = vpack.c.b16 %v228, %v220
    %v269 = vpack.c.b16 %v229, %v221
    %v270 = vpack.c.b16 %v238, %v230
    %v271 = vpack.c.b16 %v239, %v231
    %v272 = vpack.c.b16 %v240, %v232
    %v273 = vpack.c.b16 %v241, %v233
    %v274 = vpack.c.b16 %v242, %v234
    %v275 = vpack.c.b16 %v243, %v235
    %v276 = vpack.c.b16 %v244, %v236
    %v277 = vpack.c.b16 %v245, %v237
    %vm310 = vcmask 523264
    %v312 = vsel %vm310, %v99, 0
    %314 = vmatpush.bf16.msra.mxu0 0
    %315 = vmatpush.bf16.msra.mxu0 0
    %316 = vmatpush.bf16.msra.mxu0 0
    %317 = vmatpush.bf16.msra.mxu0 0
    %318 = vmatpush.bf16.msra.mxu0 %v270
    %319 = vmatpush.bf16.msra.mxu0 %v262
    %320 = vmatpush.bf16.msra.mxu0 %v254
    %321 = vmatpush.bf16.msra.mxu0 %v246
    %322 = vmatmul.bf16.gmra.mxu0 %v312
    %v323 = vpop.f32.mrf.mxu0
    %v324 = vadd.f32 %v134, %v323
    %v325 = vpop.f32.mrf.mxu0
    %326 = vdwg.mxu0
    %327 = vmatpush.bf16.msra.mxu0 0
    %328 = vmatpush.bf16.msra.mxu0 0
    %329 = vmatpush.bf16.msra.mxu0 0
    %330 = vmatpush.bf16.msra.mxu0 0
    %331 = vmatpush.bf16.msra.mxu0 %v271
    %332 = vmatpush.bf16.msra.mxu0 %v263
    %333 = vmatpush.bf16.msra.mxu0 %v255
    %334 = vmatpush.bf16.msra.mxu0 %v247
    %335 = vmatmul.bf16.gmra.mxu0 %v312
    %v336 = vpop.f32.mrf.mxu0
    %v337 = vadd.f32 %v135, %v336
    %v338 = vpop.f32.mrf.mxu0
    %339 = vdwg.mxu0
    %340 = vmatpush.bf16.msra.mxu0 0
    %341 = vmatpush.bf16.msra.mxu0 0
    %342 = vmatpush.bf16.msra.mxu0 0
    %343 = vmatpush.bf16.msra.mxu0 0
    %344 = vmatpush.bf16.msra.mxu0 %v272
    %345 = vmatpush.bf16.msra.mxu0 %v264
    %346 = vmatpush.bf16.msra.mxu0 %v256
    %347 = vmatpush.bf16.msra.mxu0 %v248
    %348 = vmatmul.bf16.gmra.mxu0 %v312
    %v349 = vpop.f32.mrf.mxu0
    %v350 = vadd.f32 %v136, %v349
    %v351 = vpop.f32.mrf.mxu0
    %352 = vdwg.mxu0
    %353 = vmatpush.bf16.msra.mxu0 0
    %354 = vmatpush.bf16.msra.mxu0 0
    %355 = vmatpush.bf16.msra.mxu0 0
    %356 = vmatpush.bf16.msra.mxu0 0
    %357 = vmatpush.bf16.msra.mxu0 %v273
    %358 = vmatpush.bf16.msra.mxu0 %v265
    %359 = vmatpush.bf16.msra.mxu0 %v257
    %360 = vmatpush.bf16.msra.mxu0 %v249
    %361 = vmatmul.bf16.gmra.mxu0 %v312
    %v362 = vpop.f32.mrf.mxu0
    %v363 = vadd.f32 %v137, %v362
    %v364 = vpop.f32.mrf.mxu0
    %365 = vdwg.mxu0
    %366 = vmatpush.bf16.msra.mxu0 0
    %367 = vmatpush.bf16.msra.mxu0 0
    %368 = vmatpush.bf16.msra.mxu0 0
    %369 = vmatpush.bf16.msra.mxu0 0
    %370 = vmatpush.bf16.msra.mxu0 %v274
    %371 = vmatpush.bf16.msra.mxu0 %v266
    %372 = vmatpush.bf16.msra.mxu0 %v258
    %373 = vmatpush.bf16.msra.mxu0 %v250
    %374 = vmatmul.bf16.gmra.mxu0 %v312
    %v375 = vpop.f32.mrf.mxu0
    %v376 = vadd.f32 %v138, %v375
    %v377 = vpop.f32.mrf.mxu0
    %378 = vdwg.mxu0
    %379 = vmatpush.bf16.msra.mxu0 0
    %380 = vmatpush.bf16.msra.mxu0 0
    %381 = vmatpush.bf16.msra.mxu0 0
    %382 = vmatpush.bf16.msra.mxu0 0
    %383 = vmatpush.bf16.msra.mxu0 %v275
    %384 = vmatpush.bf16.msra.mxu0 %v267
    %385 = vmatpush.bf16.msra.mxu0 %v259
    %386 = vmatpush.bf16.msra.mxu0 %v251
    %387 = vmatmul.bf16.gmra.mxu0 %v312
    %v388 = vpop.f32.mrf.mxu0
    %v389 = vadd.f32 %v139, %v388
    %v390 = vpop.f32.mrf.mxu0
    %391 = vdwg.mxu0
    %392 = vmatpush.bf16.msra.mxu0 0
    %393 = vmatpush.bf16.msra.mxu0 0
    %394 = vmatpush.bf16.msra.mxu0 0
    %395 = vmatpush.bf16.msra.mxu0 0
    %396 = vmatpush.bf16.msra.mxu0 %v276
    %397 = vmatpush.bf16.msra.mxu0 %v268
    %398 = vmatpush.bf16.msra.mxu0 %v260
    %399 = vmatpush.bf16.msra.mxu0 %v252
    %400 = vmatmul.bf16.gmra.mxu0 %v312
    %v401 = vpop.f32.mrf.mxu0
    %v402 = vadd.f32 %v140, %v401
    %v403 = vpop.f32.mrf.mxu0
    %404 = vdwg.mxu0
    %405 = vmatpush.bf16.msra.mxu0 0
    %406 = vmatpush.bf16.msra.mxu0 0
    %407 = vmatpush.bf16.msra.mxu0 0
    %408 = vmatpush.bf16.msra.mxu0 0
    %409 = vmatpush.bf16.msra.mxu0 %v277
    %410 = vmatpush.bf16.msra.mxu0 %v269
    %411 = vmatpush.bf16.msra.mxu0 %v261
    %412 = vmatpush.bf16.msra.mxu0 %v253
    %413 = vmatmul.bf16.gmra.mxu0 %v312
    %v414 = vpop.f32.mrf.mxu0
    %v415 = vadd.f32 %v141, %v414
    %v416 = vpop.f32.mrf.mxu0
    %417 = vdwg.mxu0
    %vm418 = vcmp.gt.f32.partialorder %v324, 0.0
    %vm419 = vcmp.gt.f32.partialorder %v337, 0.0
    %vm420 = vcmp.gt.f32.partialorder %v350, 0.0
    %vm421 = vcmp.gt.f32.partialorder %v363, 0.0
    %vm422 = vcmp.gt.f32.partialorder %v376, 0.0
    %vm423 = vcmp.gt.f32.partialorder %v389, 0.0
    %vm424 = vcmp.gt.f32.partialorder %v402, 0.0
    %vm425 = vcmp.gt.f32.partialorder %v415, 0.0
    %v426 = vmul.f32 %v324, 0.2
    %v427 = vmul.f32 %v337, 0.2
    %v428 = vmul.f32 %v350, 0.2
    %v429 = vmul.f32 %v363, 0.2
    %v430 = vmul.f32 %v376, 0.2
    %v431 = vmul.f32 %v389, 0.2
    %v432 = vmul.f32 %v402, 0.2
    %v433 = vmul.f32 %v415, 0.2
    %v434 = vsel %vm418, %v324, %v426
    %v435 = vsel %vm419, %v337, %v427
    %v436 = vsel %vm420, %v350, %v428
    %v437 = vsel %vm421, %v363, %v429
    %v438 = vsel %vm422, %v376, %v430
    %v439 = vsel %vm423, %v389, %v431
    %v440 = vsel %vm424, %v402, %v432
    %v441 = vsel %vm425, %v415, %v433
    %v442 = vpack.c.bf16 %v434, %v434
    %v443 = vpack.c.bf16 %v435, %v435
    %v444 = vpack.c.bf16 %v436, %v436
    %v445 = vpack.c.bf16 %v437, %v437
    %v446 = vpack.c.bf16 %v438, %v438
    %v447 = vpack.c.bf16 %v439, %v439
    %v448 = vpack.c.bf16 %v440, %v440
    %v449 = vpack.c.bf16 %v441, %v441
    %v450 = vld [vmem:[#allocation8] sm:$0xff]
    %v451 = vld [vmem:[#allocation8 + $0x8] sm:$0xff]
    %v452 = vld [vmem:[#allocation8 + $0x10] sm:$0xff]
    %v453 = vld [vmem:[#allocation8 + $0x18] sm:$0xff]
    %v454 = vld [vmem:[#allocation8 + $0x20] sm:$0xff]
    %v455 = vld [vmem:[#allocation8 + $0x28] sm:$0xff]
    %v456 = vld [vmem:[#allocation8 + $0x30] sm:$0xff]
    %v457 = vld [vmem:[#allocation8 + $0x38] sm:$0xff]
    %v458 = vld [vmem:[#allocation8 + $0x40] sm:$0xff]
    %v459 = vld [vmem:[#allocation8 + $0x48] sm:$0xff]
    %v460 = vld [vmem:[#allocation8 + $0x50] sm:$0xff]
    %v461 = vld [vmem:[#allocation8 + $0x58] sm:$0xff]
    %v462 = vld [vmem:[#allocation8 + $0x60] sm:$0xff]
    %v463 = vld [vmem:[#allocation8 + $0x68] sm:$0xff]
    %v464 = vld [vmem:[#allocation8 + $0x70] sm:$0xff]
    %v465 = vld [vmem:[#allocation8 + $0x78] sm:$0xff]
    %v466 = vld [vmem:[#allocation8 + $0x80] sm:$0xff]
    %v467 = vld [vmem:[#allocation8 + $0x88] sm:$0xff]
    %v468 = vld [vmem:[#allocation8 + $0x90] sm:$0xff]
    %v469 = vld [vmem:[#allocation8 + $0x98] sm:$0xff]
    %v470 = vld [vmem:[#allocation8 + $0xa0] sm:$0xff]
    %v471 = vld [vmem:[#allocation8 + $0xa8] sm:$0xff]
    %v472 = vld [vmem:[#allocation8 + $0xb0] sm:$0xff]
    %v473 = vld [vmem:[#allocation8 + $0xb8] sm:$0xff]
    %v474 = vld [vmem:[#allocation8 + $0xc0] sm:$0xff]
    %v475 = vld [vmem:[#allocation8 + $0xc8] sm:$0xff]
    %v476 = vld [vmem:[#allocation8 + $0xd0] sm:$0xff]
    %v477 = vld [vmem:[#allocation8 + $0xd8] sm:$0xff]
    %v478 = vld [vmem:[#allocation8 + $0xe0] sm:$0xff]
    %v479 = vld [vmem:[#allocation8 + $0xe8] sm:$0xff]
    %v480 = vld [vmem:[#allocation8 + $0xf0] sm:$0xff]
    %v481 = vld [vmem:[#allocation8 + $0xf8] sm:$0xff]
    %v482 = vld [vmem:[#allocation8 + $0x100] sm:$0xff]
    %v483 = vld [vmem:[#allocation8 + $0x108] sm:$0xff]
    %v484 = vld [vmem:[#allocation8 + $0x110] sm:$0xff]
    %v485 = vld [vmem:[#allocation8 + $0x118] sm:$0xff]
    %v486 = vld [vmem:[#allocation8 + $0x120] sm:$0xff]
    %v487 = vld [vmem:[#allocation8 + $0x128] sm:$0xff]
    %v488 = vld [vmem:[#allocation8 + $0x130] sm:$0xff]
    %v489 = vld [vmem:[#allocation8 + $0x138] sm:$0xff]
    %v490 = vld [vmem:[#allocation8 + $0x140] sm:$0xff]
    %v491 = vld [vmem:[#allocation8 + $0x148] sm:$0xff]
    %v492 = vld [vmem:[#allocation8 + $0x150] sm:$0xff]
    %v493 = vld [vmem:[#allocation8 + $0x158] sm:$0xff]
    %v494 = vld [vmem:[#allocation8 + $0x160] sm:$0xff]
    %v495 = vld [vmem:[#allocation8 + $0x168] sm:$0xff]
    %v496 = vld [vmem:[#allocation8 + $0x170] sm:$0xff]
    %v497 = vld [vmem:[#allocation8 + $0x178] sm:$0xff]
    %v498 = vld [vmem:[#allocation8 + $0x180] sm:$0xff]
    %v499 = vld [vmem:[#allocation8 + $0x188] sm:$0xff]
    %v500 = vld [vmem:[#allocation8 + $0x190] sm:$0xff]
    %v501 = vld [vmem:[#allocation8 + $0x198] sm:$0xff]
    %v502 = vld [vmem:[#allocation8 + $0x1a0] sm:$0xff]
    %v503 = vld [vmem:[#allocation8 + $0x1a8] sm:$0xff]
    %v504 = vld [vmem:[#allocation8 + $0x1b0] sm:$0xff]
    %v505 = vld [vmem:[#allocation8 + $0x1b8] sm:$0xff]
    %v506 = vld [vmem:[#allocation8 + $0x1c0] sm:$0xff]
    %v507 = vld [vmem:[#allocation8 + $0x1c8] sm:$0xff]
    %v508 = vld [vmem:[#allocation8 + $0x1d0] sm:$0xff]
    %v509 = vld [vmem:[#allocation8 + $0x1d8] sm:$0xff]
    %v510 = vld [vmem:[#allocation8 + $0x1e0] sm:$0xff]
    %v511 = vld [vmem:[#allocation8 + $0x1e8] sm:$0xff]
    %v512 = vld [vmem:[#allocation8 + $0x1f0] sm:$0xff]
    %v513 = vld [vmem:[#allocation8 + $0x1f8] sm:$0xff]
    %v514 = vld [vmem:[#allocation8 + $0x200] sm:$0xff]
    %v515 = vld [vmem:[#allocation8 + $0x208] sm:$0xff]
    %v516 = vld [vmem:[#allocation8 + $0x210] sm:$0xff]
    %v517 = vld [vmem:[#allocation8 + $0x218] sm:$0xff]
    %v518 = vld [vmem:[#allocation8 + $0x220] sm:$0xff]
    %v519 = vld [vmem:[#allocation8 + $0x228] sm:$0xff]
    %v520 = vld [vmem:[#allocation8 + $0x230] sm:$0xff]
    %v521 = vld [vmem:[#allocation8 + $0x238] sm:$0xff]
    %v522 = vld [vmem:[#allocation8 + $0x240] sm:$0xff]
    %v523 = vld [vmem:[#allocation8 + $0x248] sm:$0xff]
    %v524 = vld [vmem:[#allocation8 + $0x250] sm:$0xff]
    %v525 = vld [vmem:[#allocation8 + $0x258] sm:$0xff]
    %v526 = vld [vmem:[#allocation8 + $0x260] sm:$0xff]
    %v527 = vld [vmem:[#allocation8 + $0x268] sm:$0xff]
    %v528 = vld [vmem:[#allocation8 + $0x270] sm:$0xff]
    %v529 = vld [vmem:[#allocation8 + $0x278] sm:$0xff]
    %v530 = vld [vmem:[#allocation8 + $0x280] sm:$0xff]
    %v531 = vld [vmem:[#allocation8 + $0x288] sm:$0xff]
    %v532 = vld [vmem:[#allocation8 + $0x290] sm:$0xff]
    %v533 = vld [vmem:[#allocation8 + $0x298] sm:$0xff]
    %v534 = vld [vmem:[#allocation8 + $0x2a0] sm:$0xff]
    %v535 = vld [vmem:[#allocation8 + $0x2a8] sm:$0xff]
    %v536 = vld [vmem:[#allocation8 + $0x2b0] sm:$0xff]
    %v537 = vld [vmem:[#allocation8 + $0x2b8] sm:$0xff]
    %v538 = vld [vmem:[#allocation8 + $0x2c0] sm:$0xff]
    %v539 = vld [vmem:[#allocation8 + $0x2c8] sm:$0xff]
    %v540 = vld [vmem:[#allocation8 + $0x2d0] sm:$0xff]
    %v541 = vld [vmem:[#allocation8 + $0x2d8] sm:$0xff]
    %v542 = vld [vmem:[#allocation8 + $0x2e0] sm:$0xff]
    %v543 = vld [vmem:[#allocation8 + $0x2e8] sm:$0xff]
    %v544 = vld [vmem:[#allocation8 + $0x2f0] sm:$0xff]
    %v545 = vld [vmem:[#allocation8 + $0x2f8] sm:$0xff]
    %v546 = vld [vmem:[#allocation8 + $0x300] sm:$0xff]
    %v547 = vld [vmem:[#allocation8 + $0x308] sm:$0xff]
    %v548 = vld [vmem:[#allocation8 + $0x310] sm:$0xff]
    %v549 = vld [vmem:[#allocation8 + $0x318] sm:$0xff]
    %v550 = vld [vmem:[#allocation8 + $0x320] sm:$0xff]
    %v551 = vld [vmem:[#allocation8 + $0x328] sm:$0xff]
    %v552 = vld [vmem:[#allocation8 + $0x330] sm:$0xff]
    %v553 = vld [vmem:[#allocation8 + $0x338] sm:$0xff]
    %v554 = vld [vmem:[#allocation8 + $0x340] sm:$0xff]
    %v555 = vld [vmem:[#allocation8 + $0x348] sm:$0xff]
    %v556 = vld [vmem:[#allocation8 + $0x350] sm:$0xff]
    %v557 = vld [vmem:[#allocation8 + $0x358] sm:$0xff]
    %v558 = vld [vmem:[#allocation8 + $0x360] sm:$0xff]
    %v559 = vld [vmem:[#allocation8 + $0x368] sm:$0xff]
    %v560 = vld [vmem:[#allocation8 + $0x370] sm:$0xff]
    %v561 = vld [vmem:[#allocation8 + $0x378] sm:$0xff]
    %v562 = vld [vmem:[#allocation8 + $0x380] sm:$0xff]
    %v563 = vld [vmem:[#allocation8 + $0x388] sm:$0xff]
    %v564 = vld [vmem:[#allocation8 + $0x390] sm:$0xff]
    %v565 = vld [vmem:[#allocation8 + $0x398] sm:$0xff]
    %v566 = vld [vmem:[#allocation8 + $0x3a0] sm:$0xff]
    %v567 = vld [vmem:[#allocation8 + $0x3a8] sm:$0xff]
    %v568 = vld [vmem:[#allocation8 + $0x3b0] sm:$0xff]
    %v569 = vld [vmem:[#allocation8 + $0x3b8] sm:$0xff]
    %v570 = vld [vmem:[#allocation8 + $0x3c0] sm:$0xff]
    %v571 = vld [vmem:[#allocation8 + $0x3c8] sm:$0xff]
    %v572 = vld [vmem:[#allocation8 + $0x3d0] sm:$0xff]
    %v573 = vld [vmem:[#allocation8 + $0x3d8] sm:$0xff]
    %v574 = vld [vmem:[#allocation8 + $0x3e0] sm:$0xff]
    %v575 = vld [vmem:[#allocation8 + $0x3e8] sm:$0xff]
    %v576 = vld [vmem:[#allocation8 + $0x3f0] sm:$0xff]
    %v577 = vld [vmem:[#allocation8 + $0x3f8] sm:$0xff]
    %v578 = vld [vmem:[#allocation8 + $0x400] sm:$0xff]
    %v579 = vld [vmem:[#allocation8 + $0x408] sm:$0xff]
    %v580 = vld [vmem:[#allocation8 + $0x410] sm:$0xff]
    %v581 = vld [vmem:[#allocation8 + $0x418] sm:$0xff]
    %v582 = vld [vmem:[#allocation8 + $0x420] sm:$0xff]
    %v583 = vld [vmem:[#allocation8 + $0x428] sm:$0xff]
    %v584 = vld [vmem:[#allocation8 + $0x430] sm:$0xff]
    %v585 = vld [vmem:[#allocation8 + $0x438] sm:$0xff]
    %v586 = vld [vmem:[#allocation8 + $0x440] sm:$0xff]
    %v587 = vld [vmem:[#allocation8 + $0x448] sm:$0xff]
    %v588 = vld [vmem:[#allocation8 + $0x450] sm:$0xff]
    %v589 = vld [vmem:[#allocation8 + $0x458] sm:$0xff]
    %v590 = vld [vmem:[#allocation8 + $0x460] sm:$0xff]
    %v591 = vld [vmem:[#allocation8 + $0x468] sm:$0xff]
    %v592 = vld [vmem:[#allocation8 + $0x470] sm:$0xff]
    %v593 = vld [vmem:[#allocation8 + $0x478] sm:$0xff]
    %v594 = vld [vmem:[#allocation8 + $0x480] sm:$0xff]
    %v595 = vld [vmem:[#allocation8 + $0x488] sm:$0xff]
    %v596 = vld [vmem:[#allocation8 + $0x490] sm:$0xff]
    %v597 = vld [vmem:[#allocation8 + $0x498] sm:$0xff]
    %v598 = vld [vmem:[#allocation8 + $0x4a0] sm:$0xff]
    %v599 = vld [vmem:[#allocation8 + $0x4a8] sm:$0xff]
    %v600 = vld [vmem:[#allocation8 + $0x4b0] sm:$0xff]
    %v601 = vld [vmem:[#allocation8 + $0x4b8] sm:$0xff]
    %v602 = vld [vmem:[#allocation8 + $0x4c0] sm:$0xff]
    %v603 = vld [vmem:[#allocation8 + $0x4c8] sm:$0xff]
    %v604 = vld [vmem:[#allocation8 + $0x4d0] sm:$0xff]
    %v605 = vld [vmem:[#allocation8 + $0x4d8] sm:$0xff]
    %v606 = vld [vmem:[#allocation8 + $0x4e0] sm:$0xff]
    %v607 = vld [vmem:[#allocation8 + $0x4e8] sm:$0xff]
    %v608 = vld [vmem:[#allocation8 + $0x4f0] sm:$0xff]
    %v609 = vld [vmem:[#allocation8 + $0x4f8] sm:$0xff]
    %v610 = vld [vmem:[#allocation8 + $0x500] sm:$0xff]
    %v611 = vld [vmem:[#allocation8 + $0x508] sm:$0xff]
    %v612 = vld [vmem:[#allocation8 + $0x510] sm:$0xff]
    %v613 = vld [vmem:[#allocation8 + $0x518] sm:$0xff]
    %v614 = vld [vmem:[#allocation8 + $0x520] sm:$0xff]
    %v615 = vld [vmem:[#allocation8 + $0x528] sm:$0xff]
    %v616 = vld [vmem:[#allocation8 + $0x530] sm:$0xff]
    %v617 = vld [vmem:[#allocation8 + $0x538] sm:$0xff]
    %v618 = vld [vmem:[#allocation8 + $0x540] sm:$0xff]
    %v619 = vld [vmem:[#allocation8 + $0x548] sm:$0xff]
    %v620 = vld [vmem:[#allocation8 + $0x550] sm:$0xff]
    %v621 = vld [vmem:[#allocation8 + $0x558] sm:$0xff]
    %v622 = vld [vmem:[#allocation8 + $0x560] sm:$0xff]
    %v623 = vld [vmem:[#allocation8 + $0x568] sm:$0xff]
    %v624 = vld [vmem:[#allocation8 + $0x570] sm:$0xff]
    %v625 = vld [vmem:[#allocation8 + $0x578] sm:$0xff]
    %v626 = vld [vmem:[#allocation8 + $0x580] sm:$0xff]
    %v627 = vld [vmem:[#allocation8 + $0x588] sm:$0xff]
    %v628 = vld [vmem:[#allocation8 + $0x590] sm:$0xff]
    %v629 = vld [vmem:[#allocation8 + $0x598] sm:$0xff]
    %v630 = vld [vmem:[#allocation8 + $0x5a0] sm:$0xff]
    %v631 = vld [vmem:[#allocation8 + $0x5a8] sm:$0xff]
    %v632 = vld [vmem:[#allocation8 + $0x5b0] sm:$0xff]
    %v633 = vld [vmem:[#allocation8 + $0x5b8] sm:$0xff]
    %v634 = vld [vmem:[#allocation8 + $0x5c0] sm:$0xff]
    %v635 = vld [vmem:[#allocation8 + $0x5c8] sm:$0xff]
    %v636 = vld [vmem:[#allocation8 + $0x5d0] sm:$0xff]
    %v637 = vld [vmem:[#allocation8 + $0x5d8] sm:$0xff]
    %v638 = vld [vmem:[#allocation8 + $0x5e0] sm:$0xff]
    %v639 = vld [vmem:[#allocation8 + $0x5e8] sm:$0xff]
    %v640 = vld [vmem:[#allocation8 + $0x5f0] sm:$0xff]
    %v641 = vld [vmem:[#allocation8 + $0x5f8] sm:$0xff]
    %v642 = vld [vmem:[#allocation8 + $0x600] sm:$0xff]
    %v643 = vld [vmem:[#allocation8 + $0x608] sm:$0xff]
    %v644 = vld [vmem:[#allocation8 + $0x610] sm:$0xff]
    %v645 = vld [vmem:[#allocation8 + $0x618] sm:$0xff]
    %v646 = vld [vmem:[#allocation8 + $0x620] sm:$0xff]
    %v647 = vld [vmem:[#allocation8 + $0x628] sm:$0xff]
    %v648 = vld [vmem:[#allocation8 + $0x630] sm:$0xff]
    %v649 = vld [vmem:[#allocation8 + $0x638] sm:$0xff]
    %v650 = vld [vmem:[#allocation8 + $0x640] sm:$0xff]
    %v651 = vld [vmem:[#allocation8 + $0x648] sm:$0xff]
    %v652 = vld [vmem:[#allocation8 + $0x650] sm:$0xff]
    %v653 = vld [vmem:[#allocation8 + $0x658] sm:$0xff]
    %v654 = vld [vmem:[#allocation8 + $0x660] sm:$0xff]
    %v655 = vld [vmem:[#allocation8 + $0x668] sm:$0xff]
    %v656 = vld [vmem:[#allocation8 + $0x670] sm:$0xff]
    %v657 = vld [vmem:[#allocation8 + $0x678] sm:$0xff]
    %v658 = vld [vmem:[#allocation8 + $0x680] sm:$0xff]
    %v659 = vld [vmem:[#allocation8 + $0x688] sm:$0xff]
    %v660 = vld [vmem:[#allocation8 + $0x690] sm:$0xff]
    %v661 = vld [vmem:[#allocation8 + $0x698] sm:$0xff]
    %v662 = vld [vmem:[#allocation8 + $0x6a0] sm:$0xff]
    %v663 = vld [vmem:[#allocation8 + $0x6a8] sm:$0xff]
    %v664 = vld [vmem:[#allocation8 + $0x6b0] sm:$0xff]
    %v665 = vld [vmem:[#allocation8 + $0x6b8] sm:$0xff]
    %v666 = vld [vmem:[#allocation8 + $0x6c0] sm:$0xff]
    %v667 = vld [vmem:[#allocation8 + $0x6c8] sm:$0xff]
    %v668 = vld [vmem:[#allocation8 + $0x6d0] sm:$0xff]
    %v669 = vld [vmem:[#allocation8 + $0x6d8] sm:$0xff]
    %v670 = vld [vmem:[#allocation8 + $0x6e0] sm:$0xff]
    %v671 = vld [vmem:[#allocation8 + $0x6e8] sm:$0xff]
    %v672 = vld [vmem:[#allocation8 + $0x6f0] sm:$0xff]
    %v673 = vld [vmem:[#allocation8 + $0x6f8] sm:$0xff]
    %v674 = vld [vmem:[#allocation8 + $0x700] sm:$0xff]
    %v675 = vld [vmem:[#allocation8 + $0x708] sm:$0xff]
    %v676 = vld [vmem:[#allocation8 + $0x710] sm:$0xff]
    %v677 = vld [vmem:[#allocation8 + $0x718] sm:$0xff]
    %v678 = vld [vmem:[#allocation8 + $0x720] sm:$0xff]
    %v679 = vld [vmem:[#allocation8 + $0x728] sm:$0xff]
    %v680 = vld [vmem:[#allocation8 + $0x730] sm:$0xff]
    %v681 = vld [vmem:[#allocation8 + $0x738] sm:$0xff]
    %v682 = vld [vmem:[#allocation8 + $0x740] sm:$0xff]
    %v683 = vld [vmem:[#allocation8 + $0x748] sm:$0xff]
    %v684 = vld [vmem:[#allocation8 + $0x750] sm:$0xff]
    %v685 = vld [vmem:[#allocation8 + $0x758] sm:$0xff]
    %v686 = vld [vmem:[#allocation8 + $0x760] sm:$0xff]
    %v687 = vld [vmem:[#allocation8 + $0x768] sm:$0xff]
    %v688 = vld [vmem:[#allocation8 + $0x770] sm:$0xff]
    %v689 = vld [vmem:[#allocation8 + $0x778] sm:$0xff]
    %v690 = vld [vmem:[#allocation8 + $0x780] sm:$0xff]
    %v691 = vld [vmem:[#allocation8 + $0x788] sm:$0xff]
    %v692 = vld [vmem:[#allocation8 + $0x790] sm:$0xff]
    %v693 = vld [vmem:[#allocation8 + $0x798] sm:$0xff]
    %v694 = vld [vmem:[#allocation8 + $0x7a0] sm:$0xff]
    %v695 = vld [vmem:[#allocation8 + $0x7a8] sm:$0xff]
    %v696 = vld [vmem:[#allocation8 + $0x7b0] sm:$0xff]
    %v697 = vld [vmem:[#allocation8 + $0x7b8] sm:$0xff]
    %v698 = vld [vmem:[#allocation8 + $0x7c0] sm:$0xff]
    %v699 = vld [vmem:[#allocation8 + $0x7c8] sm:$0xff]
    %v700 = vld [vmem:[#allocation8 + $0x7d0] sm:$0xff]
    %v701 = vld [vmem:[#allocation8 + $0x7d8] sm:$0xff]
    %v702 = vld [vmem:[#allocation8 + $0x7e0] sm:$0xff]
    %v703 = vld [vmem:[#allocation8 + $0x7e8] sm:$0xff]
    %v704 = vld [vmem:[#allocation8 + $0x7f0] sm:$0xff]
    %v705 = vld [vmem:[#allocation8 + $0x7f8] sm:$0xff]
    %v706 = vld [vmem:[#allocation8 + $0x800] sm:$0xff]
    %v707 = vld [vmem:[#allocation8 + $0x808] sm:$0xff]
    %v708 = vld [vmem:[#allocation8 + $0x810] sm:$0xff]
    %v709 = vld [vmem:[#allocation8 + $0x818] sm:$0xff]
    %v710 = vld [vmem:[#allocation8 + $0x820] sm:$0xff]
    %v711 = vld [vmem:[#allocation8 + $0x828] sm:$0xff]
    %v712 = vld [vmem:[#allocation8 + $0x830] sm:$0xff]
    %v713 = vld [vmem:[#allocation8 + $0x838] sm:$0xff]
    %v714 = vld [vmem:[#allocation8 + $0x840] sm:$0xff]
    %v715 = vld [vmem:[#allocation8 + $0x848] sm:$0xff]
    %v716 = vld [vmem:[#allocation8 + $0x850] sm:$0xff]
    %v717 = vld [vmem:[#allocation8 + $0x858] sm:$0xff]
    %v718 = vld [vmem:[#allocation8 + $0x860] sm:$0xff]
    %v719 = vld [vmem:[#allocation8 + $0x868] sm:$0xff]
    %v720 = vld [vmem:[#allocation8 + $0x870] sm:$0xff]
    %v721 = vld [vmem:[#allocation8 + $0x878] sm:$0xff]
    %v722 = vld [vmem:[#allocation8 + $0x880] sm:$0xff]
    %v723 = vld [vmem:[#allocation8 + $0x888] sm:$0xff]
    %v724 = vld [vmem:[#allocation8 + $0x890] sm:$0xff]
    %v725 = vld [vmem:[#allocation8 + $0x898] sm:$0xff]
    %v726 = vld [vmem:[#allocation8 + $0x8a0] sm:$0xff]
    %v727 = vld [vmem:[#allocation8 + $0x8a8] sm:$0xff]
    %v728 = vld [vmem:[#allocation8 + $0x8b0] sm:$0xff]
    %v729 = vld [vmem:[#allocation8 + $0x8b8] sm:$0xff]
    %v730 = vld [vmem:[#allocation8 + $0x8c0] sm:$0xff]
    %v731 = vld [vmem:[#allocation8 + $0x8c8] sm:$0xff]
    %v732 = vld [vmem:[#allocation8 + $0x8d0] sm:$0xff]
    %v733 = vld [vmem:[#allocation8 + $0x8d8] sm:$0xff]
    %v734 = vld [vmem:[#allocation8 + $0x8e0] sm:$0xff]
    %v735 = vld [vmem:[#allocation8 + $0x8e8] sm:$0xff]
    %v736 = vld [vmem:[#allocation8 + $0x8f0] sm:$0xff]
    %v737 = vld [vmem:[#allocation8 + $0x8f8] sm:$0xff]
    %v738 = vld [vmem:[#allocation8 + $0x900] sm:$0xff]
    %v739 = vld [vmem:[#allocation8 + $0x908] sm:$0xff]
    %v740 = vld [vmem:[#allocation8 + $0x910] sm:$0xff]
    %v741 = vld [vmem:[#allocation8 + $0x918] sm:$0xff]
    %v742 = vld [vmem:[#allocation8 + $0x920] sm:$0xff]
    %v743 = vld [vmem:[#allocation8 + $0x928] sm:$0xff]
    %v744 = vld [vmem:[#allocation8 + $0x930] sm:$0xff]
    %v745 = vld [vmem:[#allocation8 + $0x938] sm:$0xff]
    %v746 = vld [vmem:[#allocation8 + $0x940] sm:$0xff]
    %v747 = vld [vmem:[#allocation8 + $0x948] sm:$0xff]
    %v748 = vld [vmem:[#allocation8 + $0x950] sm:$0xff]
    %v749 = vld [vmem:[#allocation8 + $0x958] sm:$0xff]
    %v750 = vld [vmem:[#allocation8 + $0x960] sm:$0xff]
    %v751 = vld [vmem:[#allocation8 + $0x968] sm:$0xff]
    %v752 = vld [vmem:[#allocation8 + $0x970] sm:$0xff]
    %v753 = vld [vmem:[#allocation8 + $0x978] sm:$0xff]
    %v754 = vld [vmem:[#allocation8 + $0x980] sm:$0xff]
    %v755 = vld [vmem:[#allocation8 + $0x988] sm:$0xff]
    %v756 = vld [vmem:[#allocation8 + $0x990] sm:$0xff]
    %v757 = vld [vmem:[#allocation8 + $0x998] sm:$0xff]
    %v758 = vld [vmem:[#allocation8 + $0x9a0] sm:$0xff]
    %v759 = vld [vmem:[#allocation8 + $0x9a8] sm:$0xff]
    %v760 = vld [vmem:[#allocation8 + $0x9b0] sm:$0xff]
    %v761 = vld [vmem:[#allocation8 + $0x9b8] sm:$0xff]
    %v762 = vld [vmem:[#allocation8 + $0x9c0] sm:$0xff]
    %v763 = vld [vmem:[#allocation8 + $0x9c8] sm:$0xff]
    %v764 = vld [vmem:[#allocation8 + $0x9d0] sm:$0xff]
    %v765 = vld [vmem:[#allocation8 + $0x9d8] sm:$0xff]
    %v766 = vld [vmem:[#allocation8 + $0x9e0] sm:$0xff]
    %v767 = vld [vmem:[#allocation8 + $0x9e8] sm:$0xff]
    %v768 = vld [vmem:[#allocation8 + $0x9f0] sm:$0xff]
    %v769 = vld [vmem:[#allocation8 + $0x9f8] sm:$0xff]
    %v770 = vld [vmem:[#allocation8 + $0xa00] sm:$0xff]
    %v771 = vld [vmem:[#allocation8 + $0xa08] sm:$0xff]
    %v772 = vld [vmem:[#allocation8 + $0xa10] sm:$0xff]
    %v773 = vld [vmem:[#allocation8 + $0xa18] sm:$0xff]
    %v774 = vld [vmem:[#allocation8 + $0xa20] sm:$0xff]
    %v775 = vld [vmem:[#allocation8 + $0xa28] sm:$0xff]
    %v776 = vld [vmem:[#allocation8 + $0xa30] sm:$0xff]
    %v777 = vld [vmem:[#allocation8 + $0xa38] sm:$0xff]
    %v778 = vld [vmem:[#allocation8 + $0xa40] sm:$0xff]
    %v779 = vld [vmem:[#allocation8 + $0xa48] sm:$0xff]
    %v780 = vld [vmem:[#allocation8 + $0xa50] sm:$0xff]
    %v781 = vld [vmem:[#allocation8 + $0xa58] sm:$0xff]
    %v782 = vld [vmem:[#allocation8 + $0xa60] sm:$0xff]
    %v783 = vld [vmem:[#allocation8 + $0xa68] sm:$0xff]
    %v784 = vld [vmem:[#allocation8 + $0xa70] sm:$0xff]
    %v785 = vld [vmem:[#allocation8 + $0xa78] sm:$0xff]
    %v786 = vld [vmem:[#allocation8 + $0xa80] sm:$0xff]
    %v787 = vld [vmem:[#allocation8 + $0xa88] sm:$0xff]
    %v788 = vld [vmem:[#allocation8 + $0xa90] sm:$0xff]
    %v789 = vld [vmem:[#allocation8 + $0xa98] sm:$0xff]
    %v790 = vld [vmem:[#allocation8 + $0xaa0] sm:$0xff]
    %v791 = vld [vmem:[#allocation8 + $0xaa8] sm:$0xff]
    %v792 = vld [vmem:[#allocation8 + $0xab0] sm:$0xff]
    %v793 = vld [vmem:[#allocation8 + $0xab8] sm:$0xff]
    %v794 = vld [vmem:[#allocation8 + $0xac0] sm:$0xff]
    %v795 = vld [vmem:[#allocation8 + $0xac8] sm:$0xff]
    %v796 = vld [vmem:[#allocation8 + $0xad0] sm:$0xff]
    %v797 = vld [vmem:[#allocation8 + $0xad8] sm:$0xff]
    %v798 = vld [vmem:[#allocation8 + $0xae0] sm:$0xff]
    %v799 = vld [vmem:[#allocation8 + $0xae8] sm:$0xff]
    %v800 = vld [vmem:[#allocation8 + $0xaf0] sm:$0xff]
    %v801 = vld [vmem:[#allocation8 + $0xaf8] sm:$0xff]
    %v802 = vld [vmem:[#allocation8 + $0xb00] sm:$0xff]
    %v803 = vld [vmem:[#allocation8 + $0xb08] sm:$0xff]
    %v804 = vld [vmem:[#allocation8 + $0xb10] sm:$0xff]
    %v805 = vld [vmem:[#allocation8 + $0xb18] sm:$0xff]
    %v806 = vld [vmem:[#allocation8 + $0xb20] sm:$0xff]
    %v807 = vld [vmem:[#allocation8 + $0xb28] sm:$0xff]
    %v808 = vld [vmem:[#allocation8 + $0xb30] sm:$0xff]
    %v809 = vld [vmem:[#allocation8 + $0xb38] sm:$0xff]
    %v810 = vld [vmem:[#allocation8 + $0xb40] sm:$0xff]
    %v811 = vld [vmem:[#allocation8 + $0xb48] sm:$0xff]
    %v812 = vld [vmem:[#allocation8 + $0xb50] sm:$0xff]
    %v813 = vld [vmem:[#allocation8 + $0xb58] sm:$0xff]
    %v814 = vld [vmem:[#allocation8 + $0xb60] sm:$0xff]
    %v815 = vld [vmem:[#allocation8 + $0xb68] sm:$0xff]
    %v816 = vld [vmem:[#allocation8 + $0xb70] sm:$0xff]
    %v817 = vld [vmem:[#allocation8 + $0xb78] sm:$0xff]
    %v818 = vld [vmem:[#allocation8 + $0xb80] sm:$0xff]
    %v819 = vld [vmem:[#allocation8 + $0xb88] sm:$0xff]
    %v820 = vld [vmem:[#allocation8 + $0xb90] sm:$0xff]
    %v821 = vld [vmem:[#allocation8 + $0xb98] sm:$0xff]
    %v822 = vld [vmem:[#allocation8 + $0xba0] sm:$0xff]
    %v823 = vld [vmem:[#allocation8 + $0xba8] sm:$0xff]
    %v824 = vld [vmem:[#allocation8 + $0xbb0] sm:$0xff]
    %v825 = vld [vmem:[#allocation8 + $0xbb8] sm:$0xff]
    %v826 = vld [vmem:[#allocation8 + $0xbc0] sm:$0xff]
    %v827 = vld [vmem:[#allocation8 + $0xbc8] sm:$0xff]
    %v828 = vld [vmem:[#allocation8 + $0xbd0] sm:$0xff]
    %v829 = vld [vmem:[#allocation8 + $0xbd8] sm:$0xff]
    %v830 = vld [vmem:[#allocation8 + $0xbe0] sm:$0xff]
    %v831 = vld [vmem:[#allocation8 + $0xbe8] sm:$0xff]
    %v832 = vld [vmem:[#allocation8 + $0xbf0] sm:$0xff]
    %v833 = vld [vmem:[#allocation8 + $0xbf8] sm:$0xff]
    %v834 = vld [vmem:[#allocation8 + $0xc00] sm:$0xff]
    %v835 = vld [vmem:[#allocation8 + $0xc08] sm:$0xff]
    %v836 = vld [vmem:[#allocation8 + $0xc10] sm:$0xff]
    %v837 = vld [vmem:[#allocation8 + $0xc18] sm:$0xff]
    %v838 = vld [vmem:[#allocation8 + $0xc20] sm:$0xff]
    %v839 = vld [vmem:[#allocation8 + $0xc28] sm:$0xff]
    %v840 = vld [vmem:[#allocation8 + $0xc30] sm:$0xff]
    %v841 = vld [vmem:[#allocation8 + $0xc38] sm:$0xff]
    %v842 = vld [vmem:[#allocation8 + $0xc40] sm:$0xff]
    %v843 = vld [vmem:[#allocation8 + $0xc48] sm:$0xff]
    %v844 = vld [vmem:[#allocation8 + $0xc50] sm:$0xff]
    %v845 = vld [vmem:[#allocation8 + $0xc58] sm:$0xff]
    %v846 = vld [vmem:[#allocation8 + $0xc60] sm:$0xff]
    %v847 = vld [vmem:[#allocation8 + $0xc68] sm:$0xff]
    %v848 = vld [vmem:[#allocation8 + $0xc70] sm:$0xff]
    %v849 = vld [vmem:[#allocation8 + $0xc78] sm:$0xff]
    %v850 = vld [vmem:[#allocation8 + $0xc80] sm:$0xff]
    %v851 = vld [vmem:[#allocation8 + $0xc88] sm:$0xff]
    %v852 = vld [vmem:[#allocation8 + $0xc90] sm:$0xff]
    %v853 = vld [vmem:[#allocation8 + $0xc98] sm:$0xff]
    %v854 = vld [vmem:[#allocation8 + $0xca0] sm:$0xff]
    %v855 = vld [vmem:[#allocation8 + $0xca8] sm:$0xff]
    %v856 = vld [vmem:[#allocation8 + $0xcb0] sm:$0xff]
    %v857 = vld [vmem:[#allocation8 + $0xcb8] sm:$0xff]
    %v858 = vld [vmem:[#allocation8 + $0xcc0] sm:$0xff]
    %v859 = vld [vmem:[#allocation8 + $0xcc8] sm:$0xff]
    %v860 = vld [vmem:[#allocation8 + $0xcd0] sm:$0xff]
    %v861 = vld [vmem:[#allocation8 + $0xcd8] sm:$0xff]
    %v862 = vld [vmem:[#allocation8 + $0xce0] sm:$0xff]
    %v863 = vld [vmem:[#allocation8 + $0xce8] sm:$0xff]
    %v864 = vld [vmem:[#allocation8 + $0xcf0] sm:$0xff]
    %v865 = vld [vmem:[#allocation8 + $0xcf8] sm:$0xff]
    %v866 = vld [vmem:[#allocation8 + $0xd00] sm:$0xff]
    %v867 = vld [vmem:[#allocation8 + $0xd08] sm:$0xff]
    %v868 = vld [vmem:[#allocation8 + $0xd10] sm:$0xff]
    %v869 = vld [vmem:[#allocation8 + $0xd18] sm:$0xff]
    %v870 = vld [vmem:[#allocation8 + $0xd20] sm:$0xff]
    %v871 = vld [vmem:[#allocation8 + $0xd28] sm:$0xff]
    %v872 = vld [vmem:[#allocation8 + $0xd30] sm:$0xff]
    %v873 = vld [vmem:[#allocation8 + $0xd38] sm:$0xff]
    %v874 = vld [vmem:[#allocation8 + $0xd40] sm:$0xff]
    %v875 = vld [vmem:[#allocation8 + $0xd48] sm:$0xff]
    %v876 = vld [vmem:[#allocation8 + $0xd50] sm:$0xff]
    %v877 = vld [vmem:[#allocation8 + $0xd58] sm:$0xff]
    %v878 = vld [vmem:[#allocation8 + $0xd60] sm:$0xff]
    %v879 = vld [vmem:[#allocation8 + $0xd68] sm:$0xff]
    %v880 = vld [vmem:[#allocation8 + $0xd70] sm:$0xff]
    %v881 = vld [vmem:[#allocation8 + $0xd78] sm:$0xff]
    %v882 = vld [vmem:[#allocation8 + $0xd80] sm:$0xff]
    %v883 = vld [vmem:[#allocation8 + $0xd88] sm:$0xff]
    %v884 = vld [vmem:[#allocation8 + $0xd90] sm:$0xff]
    %v885 = vld [vmem:[#allocation8 + $0xd98] sm:$0xff]
    %v886 = vld [vmem:[#allocation8 + $0xda0] sm:$0xff]
    %v887 = vld [vmem:[#allocation8 + $0xda8] sm:$0xff]
    %v888 = vld [vmem:[#allocation8 + $0xdb0] sm:$0xff]
    %v889 = vld [vmem:[#allocation8 + $0xdb8] sm:$0xff]
    %v890 = vld [vmem:[#allocation8 + $0xdc0] sm:$0xff]
    %v891 = vld [vmem:[#allocation8 + $0xdc8] sm:$0xff]
    %v892 = vld [vmem:[#allocation8 + $0xdd0] sm:$0xff]
    %v893 = vld [vmem:[#allocation8 + $0xdd8] sm:$0xff]
    %v894 = vld [vmem:[#allocation8 + $0xde0] sm:$0xff]
    %v895 = vld [vmem:[#allocation8 + $0xde8] sm:$0xff]
    %v896 = vld [vmem:[#allocation8 + $0xdf0] sm:$0xff]
    %v897 = vld [vmem:[#allocation8 + $0xdf8] sm:$0xff]
    %v898 = vld [vmem:[#allocation8 + $0xe00] sm:$0xff]
    %v899 = vld [vmem:[#allocation8 + $0xe08] sm:$0xff]
    %v900 = vld [vmem:[#allocation8 + $0xe10] sm:$0xff]
    %v901 = vld [vmem:[#allocation8 + $0xe18] sm:$0xff]
    %v902 = vld [vmem:[#allocation8 + $0xe20] sm:$0xff]
    %v903 = vld [vmem:[#allocation8 + $0xe28] sm:$0xff]
    %v904 = vld [vmem:[#allocation8 + $0xe30] sm:$0xff]
    %v905 = vld [vmem:[#allocation8 + $0xe38] sm:$0xff]
    %v906 = vld [vmem:[#allocation8 + $0xe40] sm:$0xff]
    %v907 = vld [vmem:[#allocation8 + $0xe48] sm:$0xff]
    %v908 = vld [vmem:[#allocation8 + $0xe50] sm:$0xff]
    %v909 = vld [vmem:[#allocation8 + $0xe58] sm:$0xff]
    %v910 = vld [vmem:[#allocation8 + $0xe60] sm:$0xff]
    %v911 = vld [vmem:[#allocation8 + $0xe68] sm:$0xff]
    %v912 = vld [vmem:[#allocation8 + $0xe70] sm:$0xff]
    %v913 = vld [vmem:[#allocation8 + $0xe78] sm:$0xff]
    %v914 = vld [vmem:[#allocation8 + $0xe80] sm:$0xff]
    %v915 = vld [vmem:[#allocation8 + $0xe88] sm:$0xff]
    %v916 = vld [vmem:[#allocation8 + $0xe90] sm:$0xff]
    %v917 = vld [vmem:[#allocation8 + $0xe98] sm:$0xff]
    %v918 = vld [vmem:[#allocation8 + $0xea0] sm:$0xff]
    %v919 = vld [vmem:[#allocation8 + $0xea8] sm:$0xff]
    %v920 = vld [vmem:[#allocation8 + $0xeb0] sm:$0xff]
    %v921 = vld [vmem:[#allocation8 + $0xeb8] sm:$0xff]
    %v922 = vld [vmem:[#allocation8 + $0xec0] sm:$0xff]
    %v923 = vld [vmem:[#allocation8 + $0xec8] sm:$0xff]
    %v924 = vld [vmem:[#allocation8 + $0xed0] sm:$0xff]
    %v925 = vld [vmem:[#allocation8 + $0xed8] sm:$0xff]
    %v926 = vld [vmem:[#allocation8 + $0xee0] sm:$0xff]
    %v927 = vld [vmem:[#allocation8 + $0xee8] sm:$0xff]
    %v928 = vld [vmem:[#allocation8 + $0xef0] sm:$0xff]
    %v929 = vld [vmem:[#allocation8 + $0xef8] sm:$0xff]
    %v930 = vld [vmem:[#allocation8 + $0xf00] sm:$0xff]
    %v931 = vld [vmem:[#allocation8 + $0xf08] sm:$0xff]
    %v932 = vld [vmem:[#allocation8 + $0xf10] sm:$0xff]
    %v933 = vld [vmem:[#allocation8 + $0xf18] sm:$0xff]
    %v934 = vld [vmem:[#allocation8 + $0xf20] sm:$0xff]
    %v935 = vld [vmem:[#allocation8 + $0xf28] sm:$0xff]
    %v936 = vld [vmem:[#allocation8 + $0xf30] sm:$0xff]
    %v937 = vld [vmem:[#allocation8 + $0xf38] sm:$0xff]
    %v938 = vld [vmem:[#allocation8 + $0xf40] sm:$0xff]
    %v939 = vld [vmem:[#allocation8 + $0xf48] sm:$0xff]
    %v940 = vld [vmem:[#allocation8 + $0xf50] sm:$0xff]
    %v941 = vld [vmem:[#allocation8 + $0xf58] sm:$0xff]
    %v942 = vld [vmem:[#allocation8 + $0xf60] sm:$0xff]
    %v943 = vld [vmem:[#allocation8 + $0xf68] sm:$0xff]
    %v944 = vld [vmem:[#allocation8 + $0xf70] sm:$0xff]
    %v945 = vld [vmem:[#allocation8 + $0xf78] sm:$0xff]
    %v946 = vld [vmem:[#allocation8 + $0xf80] sm:$0xff]
    %v947 = vld [vmem:[#allocation8 + $0xf88] sm:$0xff]
    %v948 = vld [vmem:[#allocation8 + $0xf90] sm:$0xff]
    %v949 = vld [vmem:[#allocation8 + $0xf98] sm:$0xff]
    %v950 = vld [vmem:[#allocation8 + $0xfa0] sm:$0xff]
    %v951 = vld [vmem:[#allocation8 + $0xfa8] sm:$0xff]
    %v952 = vld [vmem:[#allocation8 + $0xfb0] sm:$0xff]
    %v953 = vld [vmem:[#allocation8 + $0xfb8] sm:$0xff]
    %v954 = vld [vmem:[#allocation8 + $0xfc0] sm:$0xff]
    %v955 = vld [vmem:[#allocation8 + $0xfc8] sm:$0xff]
    %v956 = vld [vmem:[#allocation8 + $0xfd0] sm:$0xff]
    %v957 = vld [vmem:[#allocation8 + $0xfd8] sm:$0xff]
    %v958 = vld [vmem:[#allocation8 + $0xfe0] sm:$0xff]
    %v959 = vld [vmem:[#allocation8 + $0xfe8] sm:$0xff]
    %v960 = vld [vmem:[#allocation8 + $0xff0] sm:$0xff]
    %v961 = vld [vmem:[#allocation8 + $0xff8] sm:$0xff]
    %v962 = vld [vmem:[#allocation10] sm:$0xff]
    %v964 = vperm.slane %v962, 0
    %v965 = vperm.slane %v962, 1
    %v966 = vperm.slane %v962, 2
    %v967 = vperm.slane %v962, 3
    %v968 = vperm.slane %v962, 4
    %v969 = vperm.slane %v962, 5
    %v970 = vperm.slane %v962, 6
    %v971 = vperm.slane %v962, 7
    %v1492 = vunpack.c.l.b16 %v450
    %v1493 = vunpack.c.h.b16 %v450
    %v1494 = vunpack.c.l.b16 %v451
    %v1495 = vunpack.c.h.b16 %v451
    %v1496 = vunpack.c.l.b16 %v452
    %v1497 = vunpack.c.h.b16 %v452
    %v1498 = vunpack.c.l.b16 %v453
    %v1499 = vunpack.c.h.b16 %v453
    %v1500 = vunpack.c.l.b16 %v454
    %v1501 = vunpack.c.h.b16 %v454
    %v1502 = vunpack.c.l.b16 %v455
    %v1503 = vunpack.c.h.b16 %v455
    %v1504 = vunpack.c.l.b16 %v456
    %v1505 = vunpack.c.h.b16 %v456
    %v1506 = vunpack.c.l.b16 %v457
    %v1507 = vunpack.c.h.b16 %v457
    %v1508 = vunpack.c.l.b16 %v458
    %v1509 = vunpack.c.h.b16 %v458
    %v1510 = vunpack.c.l.b16 %v459
    %v1511 = vunpack.c.h.b16 %v459
    %v1512 = vunpack.c.l.b16 %v460
    %v1513 = vunpack.c.h.b16 %v460
    %v1514 = vunpack.c.l.b16 %v461
    %v1515 = vunpack.c.h.b16 %v461
    %v1516 = vunpack.c.l.b16 %v462
    %v1517 = vunpack.c.h.b16 %v462
    %v1518 = vunpack.c.l.b16 %v463
    %v1519 = vunpack.c.h.b16 %v463
    %v1520 = vunpack.c.l.b16 %v464
    %v1521 = vunpack.c.h.b16 %v464
    %v1522 = vunpack.c.l.b16 %v465
    %v1523 = vunpack.c.h.b16 %v465
    %v1524 = vunpack.c.l.b16 %v466
    %v1525 = vunpack.c.h.b16 %v466
    %v1526 = vunpack.c.l.b16 %v467
    %v1527 = vunpack.c.h.b16 %v467
    %v1528 = vunpack.c.l.b16 %v468
    %v1529 = vunpack.c.h.b16 %v468
    %v1530 = vunpack.c.l.b16 %v469
    %v1531 = vunpack.c.h.b16 %v469
    %v1532 = vunpack.c.l.b16 %v470
    %v1533 = vunpack.c.h.b16 %v470
    %v1534 = vunpack.c.l.b16 %v471
    %v1535 = vunpack.c.h.b16 %v471
    %v1536 = vunpack.c.l.b16 %v472
    %v1537 = vunpack.c.h.b16 %v472
    %v1538 = vunpack.c.l.b16 %v473
    %v1539 = vunpack.c.h.b16 %v473
    %v1540 = vunpack.c.l.b16 %v474
    %v1541 = vunpack.c.h.b16 %v474
    %v1542 = vunpack.c.l.b16 %v475
    %v1543 = vunpack.c.h.b16 %v475
    %v1544 = vunpack.c.l.b16 %v476
    %v1545 = vunpack.c.h.b16 %v476
    %v1546 = vunpack.c.l.b16 %v477
    %v1547 = vunpack.c.h.b16 %v477
    %v1548 = vunpack.c.l.b16 %v478
    %v1549 = vunpack.c.h.b16 %v478
    %v1550 = vunpack.c.l.b16 %v479
    %v1551 = vunpack.c.h.b16 %v479
    %v1552 = vunpack.c.l.b16 %v480
    %v1553 = vunpack.c.h.b16 %v480
    %v1554 = vunpack.c.l.b16 %v481
    %v1555 = vunpack.c.h.b16 %v481
    %v1556 = vunpack.c.l.b16 %v482
    %v1557 = vunpack.c.h.b16 %v482
    %v1558 = vunpack.c.l.b16 %v483
    %v1559 = vunpack.c.h.b16 %v483
    %v1560 = vunpack.c.l.b16 %v484
    %v1561 = vunpack.c.h.b16 %v484
    %v1562 = vunpack.c.l.b16 %v485
    %v1563 = vunpack.c.h.b16 %v485
    %v1564 = vunpack.c.l.b16 %v486
    %v1565 = vunpack.c.h.b16 %v486
    %v1566 = vunpack.c.l.b16 %v487
    %v1567 = vunpack.c.h.b16 %v487
    %v1568 = vunpack.c.l.b16 %v488
    %v1569 = vunpack.c.h.b16 %v488
    %v1570 = vunpack.c.l.b16 %v489
    %v1571 = vunpack.c.h.b16 %v489
    %v1572 = vunpack.c.l.b16 %v490
    %v1573 = vunpack.c.h.b16 %v490
    %v1574 = vunpack.c.l.b16 %v491
    %v1575 = vunpack.c.h.b16 %v491
    %v1576 = vunpack.c.l.b16 %v492
    %v1577 = vunpack.c.h.b16 %v492
    %v1578 = vunpack.c.l.b16 %v493
    %v1579 = vunpack.c.h.b16 %v493
    %v1580 = vunpack.c.l.b16 %v494
    %v1581 = vunpack.c.h.b16 %v494
    %v1582 = vunpack.c.l.b16 %v495
    %v1583 = vunpack.c.h.b16 %v495
    %v1584 = vunpack.c.l.b16 %v496
    %v1585 = vunpack.c.h.b16 %v496
    %v1586 = vunpack.c.l.b16 %v497
    %v1587 = vunpack.c.h.b16 %v497
    %v1588 = vunpack.c.l.b16 %v498
    %v1589 = vunpack.c.h.b16 %v498
    %v1590 = vunpack.c.l.b16 %v499
    %v1591 = vunpack.c.h.b16 %v499
    %v1592 = vunpack.c.l.b16 %v500
    %v1593 = vunpack.c.h.b16 %v500
    %v1594 = vunpack.c.l.b16 %v501
    %v1595 = vunpack.c.h.b16 %v501
    %v1596 = vunpack.c.l.b16 %v502
    %v1597 = vunpack.c.h.b16 %v502
    %v1598 = vunpack.c.l.b16 %v503
    %v1599 = vunpack.c.h.b16 %v503
    %v1600 = vunpack.c.l.b16 %v504
    %v1601 = vunpack.c.h.b16 %v504
    %v1602 = vunpack.c.l.b16 %v505
    %v1603 = vunpack.c.h.b16 %v505
    %v1604 = vunpack.c.l.b16 %v506
    %v1605 = vunpack.c.h.b16 %v506
    %v1606 = vunpack.c.l.b16 %v507
    %v1607 = vunpack.c.h.b16 %v507
    %v1608 = vunpack.c.l.b16 %v508
    %v1609 = vunpack.c.h.b16 %v508
    %v1610 = vunpack.c.l.b16 %v509
    %v1611 = vunpack.c.h.b16 %v509
    %v1612 = vunpack.c.l.b16 %v510
    %v1613 = vunpack.c.h.b16 %v510
    %v1614 = vunpack.c.l.b16 %v511
    %v1615 = vunpack.c.h.b16 %v511
    %v1616 = vunpack.c.l.b16 %v512
    %v1617 = vunpack.c.h.b16 %v512
    %v1618 = vunpack.c.l.b16 %v513
    %v1619 = vunpack.c.h.b16 %v513
    %v1620 = vunpack.c.l.b16 %v514
    %v1621 = vunpack.c.h.b16 %v514
    %v1622 = vunpack.c.l.b16 %v515
    %v1623 = vunpack.c.h.b16 %v515
    %v1624 = vunpack.c.l.b16 %v516
    %v1625 = vunpack.c.h.b16 %v516
    %v1626 = vunpack.c.l.b16 %v517
    %v1627 = vunpack.c.h.b16 %v517
    %v1628 = vunpack.c.l.b16 %v518
    %v1629 = vunpack.c.h.b16 %v518
    %v1630 = vunpack.c.l.b16 %v519
    %v1631 = vunpack.c.h.b16 %v519
    %v1632 = vunpack.c.l.b16 %v520
    %v1633 = vunpack.c.h.b16 %v520
    %v1634 = vunpack.c.l.b16 %v521
    %v1635 = vunpack.c.h.b16 %v521
    %v1636 = vunpack.c.l.b16 %v522
    %v1637 = vunpack.c.h.b16 %v522
    %v1638 = vunpack.c.l.b16 %v523
    %v1639 = vunpack.c.h.b16 %v523
    %v1640 = vunpack.c.l.b16 %v524
    %v1641 = vunpack.c.h.b16 %v524
    %v1642 = vunpack.c.l.b16 %v525
    %v1643 = vunpack.c.h.b16 %v525
    %v1644 = vunpack.c.l.b16 %v526
    %v1645 = vunpack.c.h.b16 %v526
    %v1646 = vunpack.c.l.b16 %v527
    %v1647 = vunpack.c.h.b16 %v527
    %v1648 = vunpack.c.l.b16 %v528
    %v1649 = vunpack.c.h.b16 %v528
    %v1650 = vunpack.c.l.b16 %v529
    %v1651 = vunpack.c.h.b16 %v529
    %v1652 = vunpack.c.l.b16 %v530
    %v1653 = vunpack.c.h.b16 %v530
    %v1654 = vunpack.c.l.b16 %v531
    %v1655 = vunpack.c.h.b16 %v531
    %v1656 = vunpack.c.l.b16 %v532
    %v1657 = vunpack.c.h.b16 %v532
    %v1658 = vunpack.c.l.b16 %v533
    %v1659 = vunpack.c.h.b16 %v533
    %v1660 = vunpack.c.l.b16 %v534
    %v1661 = vunpack.c.h.b16 %v534
    %v1662 = vunpack.c.l.b16 %v535
    %v1663 = vunpack.c.h.b16 %v535
    %v1664 = vunpack.c.l.b16 %v536
    %v1665 = vunpack.c.h.b16 %v536
    %v1666 = vunpack.c.l.b16 %v537
    %v1667 = vunpack.c.h.b16 %v537
    %v1668 = vunpack.c.l.b16 %v538
    %v1669 = vunpack.c.h.b16 %v538
    %v1670 = vunpack.c.l.b16 %v539
    %v1671 = vunpack.c.h.b16 %v539
    %v1672 = vunpack.c.l.b16 %v540
    %v1673 = vunpack.c.h.b16 %v540
    %v1674 = vunpack.c.l.b16 %v541
    %v1675 = vunpack.c.h.b16 %v541
    %v1676 = vunpack.c.l.b16 %v542
    %v1677 = vunpack.c.h.b16 %v542
    %v1678 = vunpack.c.l.b16 %v543
    %v1679 = vunpack.c.h.b16 %v543
    %v1680 = vunpack.c.l.b16 %v544
    %v1681 = vunpack.c.h.b16 %v544
    %v1682 = vunpack.c.l.b16 %v545
    %v1683 = vunpack.c.h.b16 %v545
    %v1684 = vunpack.c.l.b16 %v546
    %v1685 = vunpack.c.h.b16 %v546
    %v1686 = vunpack.c.l.b16 %v547
    %v1687 = vunpack.c.h.b16 %v547
    %v1688 = vunpack.c.l.b16 %v548
    %v1689 = vunpack.c.h.b16 %v548
    %v1690 = vunpack.c.l.b16 %v549
    %v1691 = vunpack.c.h.b16 %v549
    %v1692 = vunpack.c.l.b16 %v550
    %v1693 = vunpack.c.h.b16 %v550
    %v1694 = vunpack.c.l.b16 %v551
    %v1695 = vunpack.c.h.b16 %v551
    %v1696 = vunpack.c.l.b16 %v552
    %v1697 = vunpack.c.h.b16 %v552
    %v1698 = vunpack.c.l.b16 %v553
    %v1699 = vunpack.c.h.b16 %v553
    %v1700 = vunpack.c.l.b16 %v554
    %v1701 = vunpack.c.h.b16 %v554
    %v1702 = vunpack.c.l.b16 %v555
    %v1703 = vunpack.c.h.b16 %v555
    %v1704 = vunpack.c.l.b16 %v556
    %v1705 = vunpack.c.h.b16 %v556
    %v1706 = vunpack.c.l.b16 %v557
    %v1707 = vunpack.c.h.b16 %v557
    %v1708 = vunpack.c.l.b16 %v558
    %v1709 = vunpack.c.h.b16 %v558
    %v1710 = vunpack.c.l.b16 %v559
    %v1711 = vunpack.c.h.b16 %v559
    %v1712 = vunpack.c.l.b16 %v560
    %v1713 = vunpack.c.h.b16 %v560
    %v1714 = vunpack.c.l.b16 %v561
    %v1715 = vunpack.c.h.b16 %v561
    %v1716 = vunpack.c.l.b16 %v562
    %v1717 = vunpack.c.h.b16 %v562
    %v1718 = vunpack.c.l.b16 %v563
    %v1719 = vunpack.c.h.b16 %v563
    %v1720 = vunpack.c.l.b16 %v564
    %v1721 = vunpack.c.h.b16 %v564
    %v1722 = vunpack.c.l.b16 %v565
    %v1723 = vunpack.c.h.b16 %v565
    %v1724 = vunpack.c.l.b16 %v566
    %v1725 = vunpack.c.h.b16 %v566
    %v1726 = vunpack.c.l.b16 %v567
    %v1727 = vunpack.c.h.b16 %v567
    %v1728 = vunpack.c.l.b16 %v568
    %v1729 = vunpack.c.h.b16 %v568
    %v1730 = vunpack.c.l.b16 %v569
    %v1731 = vunpack.c.h.b16 %v569
    %v1732 = vunpack.c.l.b16 %v570
    %v1733 = vunpack.c.h.b16 %v570
    %v1734 = vunpack.c.l.b16 %v571
    %v1735 = vunpack.c.h.b16 %v571
    %v1736 = vunpack.c.l.b16 %v572
    %v1737 = vunpack.c.h.b16 %v572
    %v1738 = vunpack.c.l.b16 %v573
    %v1739 = vunpack.c.h.b16 %v573
    %v1740 = vunpack.c.l.b16 %v574
    %v1741 = vunpack.c.h.b16 %v574
    %v1742 = vunpack.c.l.b16 %v575
    %v1743 = vunpack.c.h.b16 %v575
    %v1744 = vunpack.c.l.b16 %v576
    %v1745 = vunpack.c.h.b16 %v576
    %v1746 = vunpack.c.l.b16 %v577
    %v1747 = vunpack.c.h.b16 %v577
    %v1748 = vunpack.c.l.b16 %v578
    %v1749 = vunpack.c.h.b16 %v578
    %v1750 = vunpack.c.l.b16 %v579
    %v1751 = vunpack.c.h.b16 %v579
    %v1752 = vunpack.c.l.b16 %v580
    %v1753 = vunpack.c.h.b16 %v580
    %v1754 = vunpack.c.l.b16 %v581
    %v1755 = vunpack.c.h.b16 %v581
    %v1756 = vunpack.c.l.b16 %v582
    %v1757 = vunpack.c.h.b16 %v582
    %v1758 = vunpack.c.l.b16 %v583
    %v1759 = vunpack.c.h.b16 %v583
    %v1760 = vunpack.c.l.b16 %v584
    %v1761 = vunpack.c.h.b16 %v584
    %v1762 = vunpack.c.l.b16 %v585
    %v1763 = vunpack.c.h.b16 %v585
    %v1764 = vunpack.c.l.b16 %v586
    %v1765 = vunpack.c.h.b16 %v586
    %v1766 = vunpack.c.l.b16 %v587
    %v1767 = vunpack.c.h.b16 %v587
    %v1768 = vunpack.c.l.b16 %v588
    %v1769 = vunpack.c.h.b16 %v588
    %v1770 = vunpack.c.l.b16 %v589
    %v1771 = vunpack.c.h.b16 %v589
    %v1772 = vunpack.c.l.b16 %v590
    %v1773 = vunpack.c.h.b16 %v590
    %v1774 = vunpack.c.l.b16 %v591
    %v1775 = vunpack.c.h.b16 %v591
    %v1776 = vunpack.c.l.b16 %v592
    %v1777 = vunpack.c.h.b16 %v592
    %v1778 = vunpack.c.l.b16 %v593
    %v1779 = vunpack.c.h.b16 %v593
    %v1780 = vunpack.c.l.b16 %v594
    %v1781 = vunpack.c.h.b16 %v594
    %v1782 = vunpack.c.l.b16 %v595
    %v1783 = vunpack.c.h.b16 %v595
    %v1784 = vunpack.c.l.b16 %v596
    %v1785 = vunpack.c.h.b16 %v596
    %v1786 = vunpack.c.l.b16 %v597
    %v1787 = vunpack.c.h.b16 %v597
    %v1788 = vunpack.c.l.b16 %v598
    %v1789 = vunpack.c.h.b16 %v598
    %v1790 = vunpack.c.l.b16 %v599
    %v1791 = vunpack.c.h.b16 %v599
    %v1792 = vunpack.c.l.b16 %v600
    %v1793 = vunpack.c.h.b16 %v600
    %v1794 = vunpack.c.l.b16 %v601
    %v1795 = vunpack.c.h.b16 %v601
    %v1796 = vunpack.c.l.b16 %v602
    %v1797 = vunpack.c.h.b16 %v602
    %v1798 = vunpack.c.l.b16 %v603
    %v1799 = vunpack.c.h.b16 %v603
    %v1800 = vunpack.c.l.b16 %v604
    %v1801 = vunpack.c.h.b16 %v604
    %v1802 = vunpack.c.l.b16 %v605
    %v1803 = vunpack.c.h.b16 %v605
    %v1804 = vunpack.c.l.b16 %v606
    %v1805 = vunpack.c.h.b16 %v606
    %v1806 = vunpack.c.l.b16 %v607
    %v1807 = vunpack.c.h.b16 %v607
    %v1808 = vunpack.c.l.b16 %v608
    %v1809 = vunpack.c.h.b16 %v608
    %v1810 = vunpack.c.l.b16 %v609
    %v1811 = vunpack.c.h.b16 %v609
    %v1812 = vunpack.c.l.b16 %v610
    %v1813 = vunpack.c.h.b16 %v610
    %v1814 = vunpack.c.l.b16 %v611
    %v1815 = vunpack.c.h.b16 %v611
    %v1816 = vunpack.c.l.b16 %v612
    %v1817 = vunpack.c.h.b16 %v612
    %v1818 = vunpack.c.l.b16 %v613
    %v1819 = vunpack.c.h.b16 %v613
    %v1820 = vunpack.c.l.b16 %v614
    %v1821 = vunpack.c.h.b16 %v614
    %v1822 = vunpack.c.l.b16 %v615
    %v1823 = vunpack.c.h.b16 %v615
    %v1824 = vunpack.c.l.b16 %v616
    %v1825 = vunpack.c.h.b16 %v616
    %v1826 = vunpack.c.l.b16 %v617
    %v1827 = vunpack.c.h.b16 %v617
    %v1828 = vunpack.c.l.b16 %v618
    %v1829 = vunpack.c.h.b16 %v618
    %v1830 = vunpack.c.l.b16 %v619
    %v1831 = vunpack.c.h.b16 %v619
    %v1832 = vunpack.c.l.b16 %v620
    %v1833 = vunpack.c.h.b16 %v620
    %v1834 = vunpack.c.l.b16 %v621
    %v1835 = vunpack.c.h.b16 %v621
    %v1836 = vunpack.c.l.b16 %v622
    %v1837 = vunpack.c.h.b16 %v622
    %v1838 = vunpack.c.l.b16 %v623
    %v1839 = vunpack.c.h.b16 %v623
    %v1840 = vunpack.c.l.b16 %v624
    %v1841 = vunpack.c.h.b16 %v624
    %v1842 = vunpack.c.l.b16 %v625
    %v1843 = vunpack.c.h.b16 %v625
    %v1844 = vunpack.c.l.b16 %v626
    %v1845 = vunpack.c.h.b16 %v626
    %v1846 = vunpack.c.l.b16 %v627
    %v1847 = vunpack.c.h.b16 %v627
    %v1848 = vunpack.c.l.b16 %v628
    %v1849 = vunpack.c.h.b16 %v628
    %v1850 = vunpack.c.l.b16 %v629
    %v1851 = vunpack.c.h.b16 %v629
    %v1852 = vunpack.c.l.b16 %v630
    %v1853 = vunpack.c.h.b16 %v630
    %v1854 = vunpack.c.l.b16 %v631
    %v1855 = vunpack.c.h.b16 %v631
    %v1856 = vunpack.c.l.b16 %v632
    %v1857 = vunpack.c.h.b16 %v632
    %v1858 = vunpack.c.l.b16 %v633
    %v1859 = vunpack.c.h.b16 %v633
    %v1860 = vunpack.c.l.b16 %v634
    %v1861 = vunpack.c.h.b16 %v634
    %v1862 = vunpack.c.l.b16 %v635
    %v1863 = vunpack.c.h.b16 %v635
    %v1864 = vunpack.c.l.b16 %v636
    %v1865 = vunpack.c.h.b16 %v636
    %v1866 = vunpack.c.l.b16 %v637
    %v1867 = vunpack.c.h.b16 %v637
    %v1868 = vunpack.c.l.b16 %v638
    %v1869 = vunpack.c.h.b16 %v638
    %v1870 = vunpack.c.l.b16 %v639
    %v1871 = vunpack.c.h.b16 %v639
    %v1872 = vunpack.c.l.b16 %v640
    %v1873 = vunpack.c.h.b16 %v640
    %v1874 = vunpack.c.l.b16 %v641
    %v1875 = vunpack.c.h.b16 %v641
    %v1876 = vunpack.c.l.b16 %v642
    %v1877 = vunpack.c.h.b16 %v642
    %v1878 = vunpack.c.l.b16 %v643
    %v1879 = vunpack.c.h.b16 %v643
    %v1880 = vunpack.c.l.b16 %v644
    %v1881 = vunpack.c.h.b16 %v644
    %v1882 = vunpack.c.l.b16 %v645
    %v1883 = vunpack.c.h.b16 %v645
    %v1884 = vunpack.c.l.b16 %v646
    %v1885 = vunpack.c.h.b16 %v646
    %v1886 = vunpack.c.l.b16 %v647
    %v1887 = vunpack.c.h.b16 %v647
    %v1888 = vunpack.c.l.b16 %v648
    %v1889 = vunpack.c.h.b16 %v648
    %v1890 = vunpack.c.l.b16 %v649
    %v1891 = vunpack.c.h.b16 %v649
    %v1892 = vunpack.c.l.b16 %v650
    %v1893 = vunpack.c.h.b16 %v650
    %v1894 = vunpack.c.l.b16 %v651
    %v1895 = vunpack.c.h.b16 %v651
    %v1896 = vunpack.c.l.b16 %v652
    %v1897 = vunpack.c.h.b16 %v652
    %v1898 = vunpack.c.l.b16 %v653
    %v1899 = vunpack.c.h.b16 %v653
    %v1900 = vunpack.c.l.b16 %v654
    %v1901 = vunpack.c.h.b16 %v654
    %v1902 = vunpack.c.l.b16 %v655
    %v1903 = vunpack.c.h.b16 %v655
    %v1904 = vunpack.c.l.b16 %v656
    %v1905 = vunpack.c.h.b16 %v656
    %v1906 = vunpack.c.l.b16 %v657
    %v1907 = vunpack.c.h.b16 %v657
    %v1908 = vunpack.c.l.b16 %v658
    %v1909 = vunpack.c.h.b16 %v658
    %v1910 = vunpack.c.l.b16 %v659
    %v1911 = vunpack.c.h.b16 %v659
    %v1912 = vunpack.c.l.b16 %v660
    %v1913 = vunpack.c.h.b16 %v660
    %v1914 = vunpack.c.l.b16 %v661
    %v1915 = vunpack.c.h.b16 %v661
    %v1916 = vunpack.c.l.b16 %v662
    %v1917 = vunpack.c.h.b16 %v662
    %v1918 = vunpack.c.l.b16 %v663
    %v1919 = vunpack.c.h.b16 %v663
    %v1920 = vunpack.c.l.b16 %v664
    %v1921 = vunpack.c.h.b16 %v664
    %v1922 = vunpack.c.l.b16 %v665
    %v1923 = vunpack.c.h.b16 %v665
    %v1924 = vunpack.c.l.b16 %v666
    %v1925 = vunpack.c.h.b16 %v666
    %v1926 = vunpack.c.l.b16 %v667
    %v1927 = vunpack.c.h.b16 %v667
    %v1928 = vunpack.c.l.b16 %v668
    %v1929 = vunpack.c.h.b16 %v668
    %v1930 = vunpack.c.l.b16 %v669
    %v1931 = vunpack.c.h.b16 %v669
    %v1932 = vunpack.c.l.b16 %v670
    %v1933 = vunpack.c.h.b16 %v670
    %v1934 = vunpack.c.l.b16 %v671
    %v1935 = vunpack.c.h.b16 %v671
    %v1936 = vunpack.c.l.b16 %v672
    %v1937 = vunpack.c.h.b16 %v672
    %v1938 = vunpack.c.l.b16 %v673
    %v1939 = vunpack.c.h.b16 %v673
    %v1940 = vunpack.c.l.b16 %v674
    %v1941 = vunpack.c.h.b16 %v674
    %v1942 = vunpack.c.l.b16 %v675
    %v1943 = vunpack.c.h.b16 %v675
    %v1944 = vunpack.c.l.b16 %v676
    %v1945 = vunpack.c.h.b16 %v676
    %v1946 = vunpack.c.l.b16 %v677
    %v1947 = vunpack.c.h.b16 %v677
    %v1948 = vunpack.c.l.b16 %v678
    %v1949 = vunpack.c.h.b16 %v678
    %v1950 = vunpack.c.l.b16 %v679
    %v1951 = vunpack.c.h.b16 %v679
    %v1952 = vunpack.c.l.b16 %v680
    %v1953 = vunpack.c.h.b16 %v680
    %v1954 = vunpack.c.l.b16 %v681
    %v1955 = vunpack.c.h.b16 %v681
    %v1956 = vunpack.c.l.b16 %v682
    %v1957 = vunpack.c.h.b16 %v682
    %v1958 = vunpack.c.l.b16 %v683
    %v1959 = vunpack.c.h.b16 %v683
    %v1960 = vunpack.c.l.b16 %v684
    %v1961 = vunpack.c.h.b16 %v684
    %v1962 = vunpack.c.l.b16 %v685
    %v1963 = vunpack.c.h.b16 %v685
    %v1964 = vunpack.c.l.b16 %v686
    %v1965 = vunpack.c.h.b16 %v686
    %v1966 = vunpack.c.l.b16 %v687
    %v1967 = vunpack.c.h.b16 %v687
    %v1968 = vunpack.c.l.b16 %v688
    %v1969 = vunpack.c.h.b16 %v688
    %v1970 = vunpack.c.l.b16 %v689
    %v1971 = vunpack.c.h.b16 %v689
    %v1972 = vunpack.c.l.b16 %v690
    %v1973 = vunpack.c.h.b16 %v690
    %v1974 = vunpack.c.l.b16 %v691
    %v1975 = vunpack.c.h.b16 %v691
    %v1976 = vunpack.c.l.b16 %v692
    %v1977 = vunpack.c.h.b16 %v692
    %v1978 = vunpack.c.l.b16 %v693
    %v1979 = vunpack.c.h.b16 %v693
    %v1980 = vunpack.c.l.b16 %v694
    %v1981 = vunpack.c.h.b16 %v694
    %v1982 = vunpack.c.l.b16 %v695
    %v1983 = vunpack.c.h.b16 %v695
    %v1984 = vunpack.c.l.b16 %v696
    %v1985 = vunpack.c.h.b16 %v696
    %v1986 = vunpack.c.l.b16 %v697
    %v1987 = vunpack.c.h.b16 %v697
    %v1988 = vunpack.c.l.b16 %v698
    %v1989 = vunpack.c.h.b16 %v698
    %v1990 = vunpack.c.l.b16 %v699
    %v1991 = vunpack.c.h.b16 %v699
    %v1992 = vunpack.c.l.b16 %v700
    %v1993 = vunpack.c.h.b16 %v700
    %v1994 = vunpack.c.l.b16 %v701
    %v1995 = vunpack.c.h.b16 %v701
    %v1996 = vunpack.c.l.b16 %v702
    %v1997 = vunpack.c.h.b16 %v702
    %v1998 = vunpack.c.l.b16 %v703
    %v1999 = vunpack.c.h.b16 %v703
    %v2000 = vunpack.c.l.b16 %v704
    %v2001 = vunpack.c.h.b16 %v704
    %v2002 = vunpack.c.l.b16 %v705
    %v2003 = vunpack.c.h.b16 %v705
    %v2004 = vunpack.c.l.b16 %v706
    %v2005 = vunpack.c.h.b16 %v706
    %v2006 = vunpack.c.l.b16 %v707
    %v2007 = vunpack.c.h.b16 %v707
    %v2008 = vunpack.c.l.b16 %v708
    %v2009 = vunpack.c.h.b16 %v708
    %v2010 = vunpack.c.l.b16 %v709
    %v2011 = vunpack.c.h.b16 %v709
    %v2012 = vunpack.c.l.b16 %v710
    %v2013 = vunpack.c.h.b16 %v710
    %v2014 = vunpack.c.l.b16 %v711
    %v2015 = vunpack.c.h.b16 %v711
    %v2016 = vunpack.c.l.b16 %v712
    %v2017 = vunpack.c.h.b16 %v712
    %v2018 = vunpack.c.l.b16 %v713
    %v2019 = vunpack.c.h.b16 %v713
    %v2020 = vunpack.c.l.b16 %v714
    %v2021 = vunpack.c.h.b16 %v714
    %v2022 = vunpack.c.l.b16 %v715
    %v2023 = vunpack.c.h.b16 %v715
    %v2024 = vunpack.c.l.b16 %v716
    %v2025 = vunpack.c.h.b16 %v716
    %v2026 = vunpack.c.l.b16 %v717
    %v2027 = vunpack.c.h.b16 %v717
    %v2028 = vunpack.c.l.b16 %v718
    %v2029 = vunpack.c.h.b16 %v718
    %v2030 = vunpack.c.l.b16 %v719
    %v2031 = vunpack.c.h.b16 %v719
    %v2032 = vunpack.c.l.b16 %v720
    %v2033 = vunpack.c.h.b16 %v720
    %v2034 = vunpack.c.l.b16 %v721
    %v2035 = vunpack.c.h.b16 %v721
    %v2036 = vunpack.c.l.b16 %v722
    %v2037 = vunpack.c.h.b16 %v722
    %v2038 = vunpack.c.l.b16 %v723
    %v2039 = vunpack.c.h.b16 %v723
    %v2040 = vunpack.c.l.b16 %v724
    %v2041 = vunpack.c.h.b16 %v724
    %v2042 = vunpack.c.l.b16 %v725
    %v2043 = vunpack.c.h.b16 %v725
    %v2044 = vunpack.c.l.b16 %v726
    %v2045 = vunpack.c.h.b16 %v726
    %v2046 = vunpack.c.l.b16 %v727
    %v2047 = vunpack.c.h.b16 %v727
    %v2048 = vunpack.c.l.b16 %v728
    %v2049 = vunpack.c.h.b16 %v728
    %v2050 = vunpack.c.l.b16 %v729
    %v2051 = vunpack.c.h.b16 %v729
    %v2052 = vunpack.c.l.b16 %v730
    %v2053 = vunpack.c.h.b16 %v730
    %v2054 = vunpack.c.l.b16 %v731
    %v2055 = vunpack.c.h.b16 %v731
    %v2056 = vunpack.c.l.b16 %v732
    %v2057 = vunpack.c.h.b16 %v732
    %v2058 = vunpack.c.l.b16 %v733
    %v2059 = vunpack.c.h.b16 %v733
    %v2060 = vunpack.c.l.b16 %v734
    %v2061 = vunpack.c.h.b16 %v734
    %v2062 = vunpack.c.l.b16 %v735
    %v2063 = vunpack.c.h.b16 %v735
    %v2064 = vunpack.c.l.b16 %v736
    %v2065 = vunpack.c.h.b16 %v736
    %v2066 = vunpack.c.l.b16 %v737
    %v2067 = vunpack.c.h.b16 %v737
    %v2068 = vunpack.c.l.b16 %v738
    %v2069 = vunpack.c.h.b16 %v738
    %v2070 = vunpack.c.l.b16 %v739
    %v2071 = vunpack.c.h.b16 %v739
    %v2072 = vunpack.c.l.b16 %v740
    %v2073 = vunpack.c.h.b16 %v740
    %v2074 = vunpack.c.l.b16 %v741
    %v2075 = vunpack.c.h.b16 %v741
    %v2076 = vunpack.c.l.b16 %v742
    %v2077 = vunpack.c.h.b16 %v742
    %v2078 = vunpack.c.l.b16 %v743
    %v2079 = vunpack.c.h.b16 %v743
    %v2080 = vunpack.c.l.b16 %v744
    %v2081 = vunpack.c.h.b16 %v744
    %v2082 = vunpack.c.l.b16 %v745
    %v2083 = vunpack.c.h.b16 %v745
    %v2084 = vunpack.c.l.b16 %v746
    %v2085 = vunpack.c.h.b16 %v746
    %v2086 = vunpack.c.l.b16 %v747
    %v2087 = vunpack.c.h.b16 %v747
    %v2088 = vunpack.c.l.b16 %v748
    %v2089 = vunpack.c.h.b16 %v748
    %v2090 = vunpack.c.l.b16 %v749
    %v2091 = vunpack.c.h.b16 %v749
    %v2092 = vunpack.c.l.b16 %v750
    %v2093 = vunpack.c.h.b16 %v750
    %v2094 = vunpack.c.l.b16 %v751
    %v2095 = vunpack.c.h.b16 %v751
    %v2096 = vunpack.c.l.b16 %v752
    %v2097 = vunpack.c.h.b16 %v752
    %v2098 = vunpack.c.l.b16 %v753
    %v2099 = vunpack.c.h.b16 %v753
    %v2100 = vunpack.c.l.b16 %v754
    %v2101 = vunpack.c.h.b16 %v754
    %v2102 = vunpack.c.l.b16 %v755
    %v2103 = vunpack.c.h.b16 %v755
    %v2104 = vunpack.c.l.b16 %v756
    %v2105 = vunpack.c.h.b16 %v756
    %v2106 = vunpack.c.l.b16 %v757
    %v2107 = vunpack.c.h.b16 %v757
    %v2108 = vunpack.c.l.b16 %v758
    %v2109 = vunpack.c.h.b16 %v758
    %v2110 = vunpack.c.l.b16 %v759
    %v2111 = vunpack.c.h.b16 %v759
    %v2112 = vunpack.c.l.b16 %v760
    %v2113 = vunpack.c.h.b16 %v760
    %v2114 = vunpack.c.l.b16 %v761
    %v2115 = vunpack.c.h.b16 %v761
    %v2116 = vunpack.c.l.b16 %v762
    %v2117 = vunpack.c.h.b16 %v762
    %v2118 = vunpack.c.l.b16 %v763
    %v2119 = vunpack.c.h.b16 %v763
    %v2120 = vunpack.c.l.b16 %v764
    %v2121 = vunpack.c.h.b16 %v764
    %v2122 = vunpack.c.l.b16 %v765
    %v2123 = vunpack.c.h.b16 %v765
    %v2124 = vunpack.c.l.b16 %v766
    %v2125 = vunpack.c.h.b16 %v766
    %v2126 = vunpack.c.l.b16 %v767
    %v2127 = vunpack.c.h.b16 %v767
    %v2128 = vunpack.c.l.b16 %v768
    %v2129 = vunpack.c.h.b16 %v768
    %v2130 = vunpack.c.l.b16 %v769
    %v2131 = vunpack.c.h.b16 %v769
    %v2132 = vunpack.c.l.b16 %v770
    %v2133 = vunpack.c.h.b16 %v770
    %v2134 = vunpack.c.l.b16 %v771
    %v2135 = vunpack.c.h.b16 %v771
    %v2136 = vunpack.c.l.b16 %v772
    %v2137 = vunpack.c.h.b16 %v772
    %v2138 = vunpack.c.l.b16 %v773
    %v2139 = vunpack.c.h.b16 %v773
    %v2140 = vunpack.c.l.b16 %v774
    %v2141 = vunpack.c.h.b16 %v774
    %v2142 = vunpack.c.l.b16 %v775
    %v2143 = vunpack.c.h.b16 %v775
    %v2144 = vunpack.c.l.b16 %v776
    %v2145 = vunpack.c.h.b16 %v776
    %v2146 = vunpack.c.l.b16 %v777
    %v2147 = vunpack.c.h.b16 %v777
    %v2148 = vunpack.c.l.b16 %v778
    %v2149 = vunpack.c.h.b16 %v778
    %v2150 = vunpack.c.l.b16 %v779
    %v2151 = vunpack.c.h.b16 %v779
    %v2152 = vunpack.c.l.b16 %v780
    %v2153 = vunpack.c.h.b16 %v780
    %v2154 = vunpack.c.l.b16 %v781
    %v2155 = vunpack.c.h.b16 %v781
    %v2156 = vunpack.c.l.b16 %v782
    %v2157 = vunpack.c.h.b16 %v782
    %v2158 = vunpack.c.l.b16 %v783
    %v2159 = vunpack.c.h.b16 %v783
    %v2160 = vunpack.c.l.b16 %v784
    %v2161 = vunpack.c.h.b16 %v784
    %v2162 = vunpack.c.l.b16 %v785
    %v2163 = vunpack.c.h.b16 %v785
    %v2164 = vunpack.c.l.b16 %v786
    %v2165 = vunpack.c.h.b16 %v786
    %v2166 = vunpack.c.l.b16 %v787
    %v2167 = vunpack.c.h.b16 %v787
    %v2168 = vunpack.c.l.b16 %v788
    %v2169 = vunpack.c.h.b16 %v788
    %v2170 = vunpack.c.l.b16 %v789
    %v2171 = vunpack.c.h.b16 %v789
    %v2172 = vunpack.c.l.b16 %v790
    %v2173 = vunpack.c.h.b16 %v790
    %v2174 = vunpack.c.l.b16 %v791
    %v2175 = vunpack.c.h.b16 %v791
    %v2176 = vunpack.c.l.b16 %v792
    %v2177 = vunpack.c.h.b16 %v792
    %v2178 = vunpack.c.l.b16 %v793
    %v2179 = vunpack.c.h.b16 %v793
    %v2180 = vunpack.c.l.b16 %v794
    %v2181 = vunpack.c.h.b16 %v794
    %v2182 = vunpack.c.l.b16 %v795
    %v2183 = vunpack.c.h.b16 %v795
    %v2184 = vunpack.c.l.b16 %v796
    %v2185 = vunpack.c.h.b16 %v796
    %v2186 = vunpack.c.l.b16 %v797
    %v2187 = vunpack.c.h.b16 %v797
    %v2188 = vunpack.c.l.b16 %v798
    %v2189 = vunpack.c.h.b16 %v798
    %v2190 = vunpack.c.l.b16 %v799
    %v2191 = vunpack.c.h.b16 %v799
    %v2192 = vunpack.c.l.b16 %v800
    %v2193 = vunpack.c.h.b16 %v800
    %v2194 = vunpack.c.l.b16 %v801
    %v2195 = vunpack.c.h.b16 %v801
    %v2196 = vunpack.c.l.b16 %v802
    %v2197 = vunpack.c.h.b16 %v802
    %v2198 = vunpack.c.l.b16 %v803
    %v2199 = vunpack.c.h.b16 %v803
    %v2200 = vunpack.c.l.b16 %v804
    %v2201 = vunpack.c.h.b16 %v804
    %v2202 = vunpack.c.l.b16 %v805
    %v2203 = vunpack.c.h.b16 %v805
    %v2204 = vunpack.c.l.b16 %v806
    %v2205 = vunpack.c.h.b16 %v806
    %v2206 = vunpack.c.l.b16 %v807
    %v2207 = vunpack.c.h.b16 %v807
    %v2208 = vunpack.c.l.b16 %v808
    %v2209 = vunpack.c.h.b16 %v808
    %v2210 = vunpack.c.l.b16 %v809
    %v2211 = vunpack.c.h.b16 %v809
    %v2212 = vunpack.c.l.b16 %v810
    %v2213 = vunpack.c.h.b16 %v810
    %v2214 = vunpack.c.l.b16 %v811
    %v2215 = vunpack.c.h.b16 %v811
    %v2216 = vunpack.c.l.b16 %v812
    %v2217 = vunpack.c.h.b16 %v812
    %v2218 = vunpack.c.l.b16 %v813
    %v2219 = vunpack.c.h.b16 %v813
    %v2220 = vunpack.c.l.b16 %v814
    %v2221 = vunpack.c.h.b16 %v814
    %v2222 = vunpack.c.l.b16 %v815
    %v2223 = vunpack.c.h.b16 %v815
    %v2224 = vunpack.c.l.b16 %v816
    %v2225 = vunpack.c.h.b16 %v816
    %v2226 = vunpack.c.l.b16 %v817
    %v2227 = vunpack.c.h.b16 %v817
    %v2228 = vunpack.c.l.b16 %v818
    %v2229 = vunpack.c.h.b16 %v818
    %v2230 = vunpack.c.l.b16 %v819
    %v2231 = vunpack.c.h.b16 %v819
    %v2232 = vunpack.c.l.b16 %v820
    %v2233 = vunpack.c.h.b16 %v820
    %v2234 = vunpack.c.l.b16 %v821
    %v2235 = vunpack.c.h.b16 %v821
    %v2236 = vunpack.c.l.b16 %v822
    %v2237 = vunpack.c.h.b16 %v822
    %v2238 = vunpack.c.l.b16 %v823
    %v2239 = vunpack.c.h.b16 %v823
    %v2240 = vunpack.c.l.b16 %v824
    %v2241 = vunpack.c.h.b16 %v824
    %v2242 = vunpack.c.l.b16 %v825
    %v2243 = vunpack.c.h.b16 %v825
    %v2244 = vunpack.c.l.b16 %v826
    %v2245 = vunpack.c.h.b16 %v826
    %v2246 = vunpack.c.l.b16 %v827
    %v2247 = vunpack.c.h.b16 %v827
    %v2248 = vunpack.c.l.b16 %v828
    %v2249 = vunpack.c.h.b16 %v828
    %v2250 = vunpack.c.l.b16 %v829
    %v2251 = vunpack.c.h.b16 %v829
    %v2252 = vunpack.c.l.b16 %v830
    %v2253 = vunpack.c.h.b16 %v830
    %v2254 = vunpack.c.l.b16 %v831
    %v2255 = vunpack.c.h.b16 %v831
    %v2256 = vunpack.c.l.b16 %v832
    %v2257 = vunpack.c.h.b16 %v832
    %v2258 = vunpack.c.l.b16 %v833
    %v2259 = vunpack.c.h.b16 %v833
    %v2260 = vunpack.c.l.b16 %v834
    %v2261 = vunpack.c.h.b16 %v834
    %v2262 = vunpack.c.l.b16 %v835
    %v2263 = vunpack.c.h.b16 %v835
    %v2264 = vunpack.c.l.b16 %v836
    %v2265 = vunpack.c.h.b16 %v836
    %v2266 = vunpack.c.l.b16 %v837
    %v2267 = vunpack.c.h.b16 %v837
    %v2268 = vunpack.c.l.b16 %v838
    %v2269 = vunpack.c.h.b16 %v838
    %v2270 = vunpack.c.l.b16 %v839
    %v2271 = vunpack.c.h.b16 %v839
    %v2272 = vunpack.c.l.b16 %v840
    %v2273 = vunpack.c.h.b16 %v840
    %v2274 = vunpack.c.l.b16 %v841
    %v2275 = vunpack.c.h.b16 %v841
    %v2276 = vunpack.c.l.b16 %v842
    %v2277 = vunpack.c.h.b16 %v842
    %v2278 = vunpack.c.l.b16 %v843
    %v2279 = vunpack.c.h.b16 %v843
    %v2280 = vunpack.c.l.b16 %v844
    %v2281 = vunpack.c.h.b16 %v844
    %v2282 = vunpack.c.l.b16 %v845
    %v2283 = vunpack.c.h.b16 %v845
    %v2284 = vunpack.c.l.b16 %v846
    %v2285 = vunpack.c.h.b16 %v846
    %v2286 = vunpack.c.l.b16 %v847
    %v2287 = vunpack.c.h.b16 %v847
    %v2288 = vunpack.c.l.b16 %v848
    %v2289 = vunpack.c.h.b16 %v848
    %v2290 = vunpack.c.l.b16 %v849
    %v2291 = vunpack.c.h.b16 %v849
    %v2292 = vunpack.c.l.b16 %v850
    %v2293 = vunpack.c.h.b16 %v850
    %v2294 = vunpack.c.l.b16 %v851
    %v2295 = vunpack.c.h.b16 %v851
    %v2296 = vunpack.c.l.b16 %v852
    %v2297 = vunpack.c.h.b16 %v852
    %v2298 = vunpack.c.l.b16 %v853
    %v2299 = vunpack.c.h.b16 %v853
    %v2300 = vunpack.c.l.b16 %v854
    %v2301 = vunpack.c.h.b16 %v854
    %v2302 = vunpack.c.l.b16 %v855
    %v2303 = vunpack.c.h.b16 %v855
    %v2304 = vunpack.c.l.b16 %v856
    %v2305 = vunpack.c.h.b16 %v856
    %v2306 = vunpack.c.l.b16 %v857
    %v2307 = vunpack.c.h.b16 %v857
    %v2308 = vunpack.c.l.b16 %v858
    %v2309 = vunpack.c.h.b16 %v858
    %v2310 = vunpack.c.l.b16 %v859
    %v2311 = vunpack.c.h.b16 %v859
    %v2312 = vunpack.c.l.b16 %v860
    %v2313 = vunpack.c.h.b16 %v860
    %v2314 = vunpack.c.l.b16 %v861
    %v2315 = vunpack.c.h.b16 %v861
    %v2316 = vunpack.c.l.b16 %v862
    %v2317 = vunpack.c.h.b16 %v862
    %v2318 = vunpack.c.l.b16 %v863
    %v2319 = vunpack.c.h.b16 %v863
    %v2320 = vunpack.c.l.b16 %v864
    %v2321 = vunpack.c.h.b16 %v864
    %v2322 = vunpack.c.l.b16 %v865
    %v2323 = vunpack.c.h.b16 %v865
    %v2324 = vunpack.c.l.b16 %v866
    %v2325 = vunpack.c.h.b16 %v866
    %v2326 = vunpack.c.l.b16 %v867
    %v2327 = vunpack.c.h.b16 %v867
    %v2328 = vunpack.c.l.b16 %v868
    %v2329 = vunpack.c.h.b16 %v868
    %v2330 = vunpack.c.l.b16 %v869
    %v2331 = vunpack.c.h.b16 %v869
    %v2332 = vunpack.c.l.b16 %v870
    %v2333 = vunpack.c.h.b16 %v870
    %v2334 = vunpack.c.l.b16 %v871
    %v2335 = vunpack.c.h.b16 %v871
    %v2336 = vunpack.c.l.b16 %v872
    %v2337 = vunpack.c.h.b16 %v872
    %v2338 = vunpack.c.l.b16 %v873
    %v2339 = vunpack.c.h.b16 %v873
    %v2340 = vunpack.c.l.b16 %v874
    %v2341 = vunpack.c.h.b16 %v874
    %v2342 = vunpack.c.l.b16 %v875
    %v2343 = vunpack.c.h.b16 %v875
    %v2344 = vunpack.c.l.b16 %v876
    %v2345 = vunpack.c.h.b16 %v876
    %v2346 = vunpack.c.l.b16 %v877
    %v2347 = vunpack.c.h.b16 %v877
    %v2348 = vunpack.c.l.b16 %v878
    %v2349 = vunpack.c.h.b16 %v878
    %v2350 = vunpack.c.l.b16 %v879
    %v2351 = vunpack.c.h.b16 %v879
    %v2352 = vunpack.c.l.b16 %v880
    %v2353 = vunpack.c.h.b16 %v880
    %v2354 = vunpack.c.l.b16 %v881
    %v2355 = vunpack.c.h.b16 %v881
    %v2356 = vunpack.c.l.b16 %v882
    %v2357 = vunpack.c.h.b16 %v882
    %v2358 = vunpack.c.l.b16 %v883
    %v2359 = vunpack.c.h.b16 %v883
    %v2360 = vunpack.c.l.b16 %v884
    %v2361 = vunpack.c.h.b16 %v884
    %v2362 = vunpack.c.l.b16 %v885
    %v2363 = vunpack.c.h.b16 %v885
    %v2364 = vunpack.c.l.b16 %v886
    %v2365 = vunpack.c.h.b16 %v886
    %v2366 = vunpack.c.l.b16 %v887
    %v2367 = vunpack.c.h.b16 %v887
    %v2368 = vunpack.c.l.b16 %v888
    %v2369 = vunpack.c.h.b16 %v888
    %v2370 = vunpack.c.l.b16 %v889
    %v2371 = vunpack.c.h.b16 %v889
    %v2372 = vunpack.c.l.b16 %v890
    %v2373 = vunpack.c.h.b16 %v890
    %v2374 = vunpack.c.l.b16 %v891
    %v2375 = vunpack.c.h.b16 %v891
    %v2376 = vunpack.c.l.b16 %v892
    %v2377 = vunpack.c.h.b16 %v892
    %v2378 = vunpack.c.l.b16 %v893
    %v2379 = vunpack.c.h.b16 %v893
    %v2380 = vunpack.c.l.b16 %v894
    %v2381 = vunpack.c.h.b16 %v894
    %v2382 = vunpack.c.l.b16 %v895
    %v2383 = vunpack.c.h.b16 %v895
    %v2384 = vunpack.c.l.b16 %v896
    %v2385 = vunpack.c.h.b16 %v896
    %v2386 = vunpack.c.l.b16 %v897
    %v2387 = vunpack.c.h.b16 %v897
    %v2388 = vunpack.c.l.b16 %v898
    %v2389 = vunpack.c.h.b16 %v898
    %v2390 = vunpack.c.l.b16 %v899
    %v2391 = vunpack.c.h.b16 %v899
    %v2392 = vunpack.c.l.b16 %v900
    %v2393 = vunpack.c.h.b16 %v900
    %v2394 = vunpack.c.l.b16 %v901
    %v2395 = vunpack.c.h.b16 %v901
    %v2396 = vunpack.c.l.b16 %v902
    %v2397 = vunpack.c.h.b16 %v902
    %v2398 = vunpack.c.l.b16 %v903
    %v2399 = vunpack.c.h.b16 %v903
    %v2400 = vunpack.c.l.b16 %v904
    %v2401 = vunpack.c.h.b16 %v904
    %v2402 = vunpack.c.l.b16 %v905
    %v2403 = vunpack.c.h.b16 %v905
    %v2404 = vunpack.c.l.b16 %v906
    %v2405 = vunpack.c.h.b16 %v906
    %v2406 = vunpack.c.l.b16 %v907
    %v2407 = vunpack.c.h.b16 %v907
    %v2408 = vunpack.c.l.b16 %v908
    %v2409 = vunpack.c.h.b16 %v908
    %v2410 = vunpack.c.l.b16 %v909
    %v2411 = vunpack.c.h.b16 %v909
    %v2412 = vunpack.c.l.b16 %v910
    %v2413 = vunpack.c.h.b16 %v910
    %v2414 = vunpack.c.l.b16 %v911
    %v2415 = vunpack.c.h.b16 %v911
    %v2416 = vunpack.c.l.b16 %v912
    %v2417 = vunpack.c.h.b16 %v912
    %v2418 = vunpack.c.l.b16 %v913
    %v2419 = vunpack.c.h.b16 %v913
    %v2420 = vunpack.c.l.b16 %v914
    %v2421 = vunpack.c.h.b16 %v914
    %v2422 = vunpack.c.l.b16 %v915
    %v2423 = vunpack.c.h.b16 %v915
    %v2424 = vunpack.c.l.b16 %v916
    %v2425 = vunpack.c.h.b16 %v916
    %v2426 = vunpack.c.l.b16 %v917
    %v2427 = vunpack.c.h.b16 %v917
    %v2428 = vunpack.c.l.b16 %v918
    %v2429 = vunpack.c.h.b16 %v918
    %v2430 = vunpack.c.l.b16 %v919
    %v2431 = vunpack.c.h.b16 %v919
    %v2432 = vunpack.c.l.b16 %v920
    %v2433 = vunpack.c.h.b16 %v920
    %v2434 = vunpack.c.l.b16 %v921
    %v2435 = vunpack.c.h.b16 %v921
    %v2436 = vunpack.c.l.b16 %v922
    %v2437 = vunpack.c.h.b16 %v922
    %v2438 = vunpack.c.l.b16 %v923
    %v2439 = vunpack.c.h.b16 %v923
    %v2440 = vunpack.c.l.b16 %v924
    %v2441 = vunpack.c.h.b16 %v924
    %v2442 = vunpack.c.l.b16 %v925
    %v2443 = vunpack.c.h.b16 %v925
    %v2444 = vunpack.c.l.b16 %v926
    %v2445 = vunpack.c.h.b16 %v926
    %v2446 = vunpack.c.l.b16 %v927
    %v2447 = vunpack.c.h.b16 %v927
    %v2448 = vunpack.c.l.b16 %v928
    %v2449 = vunpack.c.h.b16 %v928
    %v2450 = vunpack.c.l.b16 %v929
    %v2451 = vunpack.c.h.b16 %v929
    %v2452 = vunpack.c.l.b16 %v930
    %v2453 = vunpack.c.h.b16 %v930
    %v2454 = vunpack.c.l.b16 %v931
    %v2455 = vunpack.c.h.b16 %v931
    %v2456 = vunpack.c.l.b16 %v932
    %v2457 = vunpack.c.h.b16 %v932
    %v2458 = vunpack.c.l.b16 %v933
    %v2459 = vunpack.c.h.b16 %v933
    %v2460 = vunpack.c.l.b16 %v934
    %v2461 = vunpack.c.h.b16 %v934
    %v2462 = vunpack.c.l.b16 %v935
    %v2463 = vunpack.c.h.b16 %v935
    %v2464 = vunpack.c.l.b16 %v936
    %v2465 = vunpack.c.h.b16 %v936
    %v2466 = vunpack.c.l.b16 %v937
    %v2467 = vunpack.c.h.b16 %v937
    %v2468 = vunpack.c.l.b16 %v938
    %v2469 = vunpack.c.h.b16 %v938
    %v2470 = vunpack.c.l.b16 %v939
    %v2471 = vunpack.c.h.b16 %v939
    %v2472 = vunpack.c.l.b16 %v940
    %v2473 = vunpack.c.h.b16 %v940
    %v2474 = vunpack.c.l.b16 %v941
    %v2475 = vunpack.c.h.b16 %v941
    %v2476 = vunpack.c.l.b16 %v942
    %v2477 = vunpack.c.h.b16 %v942
    %v2478 = vunpack.c.l.b16 %v943
    %v2479 = vunpack.c.h.b16 %v943
    %v2480 = vunpack.c.l.b16 %v944
    %v2481 = vunpack.c.h.b16 %v944
    %v2482 = vunpack.c.l.b16 %v945
    %v2483 = vunpack.c.h.b16 %v945
    %v2484 = vunpack.c.l.b16 %v946
    %v2485 = vunpack.c.h.b16 %v946
    %v2486 = vunpack.c.l.b16 %v947
    %v2487 = vunpack.c.h.b16 %v947
    %v2488 = vunpack.c.l.b16 %v948
    %v2489 = vunpack.c.h.b16 %v948
    %v2490 = vunpack.c.l.b16 %v949
    %v2491 = vunpack.c.h.b16 %v949
    %v2492 = vunpack.c.l.b16 %v950
    %v2493 = vunpack.c.h.b16 %v950
    %v2494 = vunpack.c.l.b16 %v951
    %v2495 = vunpack.c.h.b16 %v951
    %v2496 = vunpack.c.l.b16 %v952
    %v2497 = vunpack.c.h.b16 %v952
    %v2498 = vunpack.c.l.b16 %v953
    %v2499 = vunpack.c.h.b16 %v953
    %v2500 = vunpack.c.l.b16 %v954
    %v2501 = vunpack.c.h.b16 %v954
    %v2502 = vunpack.c.l.b16 %v955
    %v2503 = vunpack.c.h.b16 %v955
    %v2504 = vunpack.c.l.b16 %v956
    %v2505 = vunpack.c.h.b16 %v956
    %v2506 = vunpack.c.l.b16 %v957
    %v2507 = vunpack.c.h.b16 %v957
    %v2508 = vunpack.c.l.b16 %v958
    %v2509 = vunpack.c.h.b16 %v958
    %v2510 = vunpack.c.l.b16 %v959
    %v2511 = vunpack.c.h.b16 %v959
    %v2512 = vunpack.c.l.b16 %v960
    %v2513 = vunpack.c.h.b16 %v960
    %v2514 = vunpack.c.l.b16 %v961
    %v2515 = vunpack.c.h.b16 %v961
    %v2516 = vpack.c.b16 %v1500, %v1492
    %v2517 = vpack.c.b16 %v1501, %v1493
    %v2518 = vpack.c.b16 %v1502, %v1494
    %v2519 = vpack.c.b16 %v1503, %v1495
    %v2520 = vpack.c.b16 %v1504, %v1496
    %v2521 = vpack.c.b16 %v1505, %v1497
    %v2522 = vpack.c.b16 %v1506, %v1498
    %v2523 = vpack.c.b16 %v1507, %v1499
    %v2524 = vpack.c.b16 %v1516, %v1508
    %v2525 = vpack.c.b16 %v1517, %v1509
    %v2526 = vpack.c.b16 %v1518, %v1510
    %v2527 = vpack.c.b16 %v1519, %v1511
    %v2528 = vpack.c.b16 %v1520, %v1512
    %v2529 = vpack.c.b16 %v1521, %v1513
    %v2530 = vpack.c.b16 %v1522, %v1514
    %v2531 = vpack.c.b16 %v1523, %v1515
    %v2532 = vpack.c.b16 %v1532, %v1524
    %v2533 = vpack.c.b16 %v1533, %v1525
    %v2534 = vpack.c.b16 %v1534, %v1526
    %v2535 = vpack.c.b16 %v1535, %v1527
    %v2536 = vpack.c.b16 %v1536, %v1528
    %v2537 = vpack.c.b16 %v1537, %v1529
    %v2538 = vpack.c.b16 %v1538, %v1530
    %v2539 = vpack.c.b16 %v1539, %v1531
    %v2540 = vpack.c.b16 %v1548, %v1540
    %v2541 = vpack.c.b16 %v1549, %v1541
    %v2542 = vpack.c.b16 %v1550, %v1542
    %v2543 = vpack.c.b16 %v1551, %v1543
    %v2544 = vpack.c.b16 %v1552, %v1544
    %v2545 = vpack.c.b16 %v1553, %v1545
    %v2546 = vpack.c.b16 %v1554, %v1546
    %v2547 = vpack.c.b16 %v1555, %v1547
    %v2548 = vpack.c.b16 %v1564, %v1556
    %v2549 = vpack.c.b16 %v1565, %v1557
    %v2550 = vpack.c.b16 %v1566, %v1558
    %v2551 = vpack.c.b16 %v1567, %v1559
    %v2552 = vpack.c.b16 %v1568, %v1560
    %v2553 = vpack.c.b16 %v1569, %v1561
    %v2554 = vpack.c.b16 %v1570, %v1562
    %v2555 = vpack.c.b16 %v1571, %v1563
    %v2556 = vpack.c.b16 %v1580, %v1572
    %v2557 = vpack.c.b16 %v1581, %v1573
    %v2558 = vpack.c.b16 %v1582, %v1574
    %v2559 = vpack.c.b16 %v1583, %v1575
    %v2560 = vpack.c.b16 %v1584, %v1576
    %v2561 = vpack.c.b16 %v1585, %v1577
    %v2562 = vpack.c.b16 %v1586, %v1578
    %v2563 = vpack.c.b16 %v1587, %v1579
    %v2564 = vpack.c.b16 %v1596, %v1588
    %v2565 = vpack.c.b16 %v1597, %v1589
    %v2566 = vpack.c.b16 %v1598, %v1590
    %v2567 = vpack.c.b16 %v1599, %v1591
    %v2568 = vpack.c.b16 %v1600, %v1592
    %v2569 = vpack.c.b16 %v1601, %v1593
    %v2570 = vpack.c.b16 %v1602, %v1594
    %v2571 = vpack.c.b16 %v1603, %v1595
    %v2572 = vpack.c.b16 %v1612, %v1604
    %v2573 = vpack.c.b16 %v1613, %v1605
    %v2574 = vpack.c.b16 %v1614, %v1606
    %v2575 = vpack.c.b16 %v1615, %v1607
    %v2576 = vpack.c.b16 %v1616, %v1608
    %v2577 = vpack.c.b16 %v1617, %v1609
    %v2578 = vpack.c.b16 %v1618, %v1610
    %v2579 = vpack.c.b16 %v1619, %v1611
    %v2580 = vpack.c.b16 %v1628, %v1620
    %v2581 = vpack.c.b16 %v1629, %v1621
    %v2582 = vpack.c.b16 %v1630, %v1622
    %v2583 = vpack.c.b16 %v1631, %v1623
    %v2584 = vpack.c.b16 %v1632, %v1624
    %v2585 = vpack.c.b16 %v1633, %v1625
    %v2586 = vpack.c.b16 %v1634, %v1626
    %v2587 = vpack.c.b16 %v1635, %v1627
    %v2588 = vpack.c.b16 %v1644, %v1636
    %v2589 = vpack.c.b16 %v1645, %v1637
    %v2590 = vpack.c.b16 %v1646, %v1638
    %v2591 = vpack.c.b16 %v1647, %v1639
    %v2592 = vpack.c.b16 %v1648, %v1640
    %v2593 = vpack.c.b16 %v1649, %v1641
    %v2594 = vpack.c.b16 %v1650, %v1642
    %v2595 = vpack.c.b16 %v1651, %v1643
    %v2596 = vpack.c.b16 %v1660, %v1652
    %v2597 = vpack.c.b16 %v1661, %v1653
    %v2598 = vpack.c.b16 %v1662, %v1654
    %v2599 = vpack.c.b16 %v1663, %v1655
    %v2600 = vpack.c.b16 %v1664, %v1656
    %v2601 = vpack.c.b16 %v1665, %v1657
    %v2602 = vpack.c.b16 %v1666, %v1658
    %v2603 = vpack.c.b16 %v1667, %v1659
    %v2604 = vpack.c.b16 %v1676, %v1668
    %v2605 = vpack.c.b16 %v1677, %v1669
    %v2606 = vpack.c.b16 %v1678, %v1670
    %v2607 = vpack.c.b16 %v1679, %v1671
    %v2608 = vpack.c.b16 %v1680, %v1672
    %v2609 = vpack.c.b16 %v1681, %v1673
    %v2610 = vpack.c.b16 %v1682, %v1674
    %v2611 = vpack.c.b16 %v1683, %v1675
    %v2612 = vpack.c.b16 %v1692, %v1684
    %v2613 = vpack.c.b16 %v1693, %v1685
    %v2614 = vpack.c.b16 %v1694, %v1686
    %v2615 = vpack.c.b16 %v1695, %v1687
    %v2616 = vpack.c.b16 %v1696, %v1688
    %v2617 = vpack.c.b16 %v1697, %v1689
    %v2618 = vpack.c.b16 %v1698, %v1690
    %v2619 = vpack.c.b16 %v1699, %v1691
    %v2620 = vpack.c.b16 %v1708, %v1700
    %v2621 = vpack.c.b16 %v1709, %v1701
    %v2622 = vpack.c.b16 %v1710, %v1702
    %v2623 = vpack.c.b16 %v1711, %v1703
    %v2624 = vpack.c.b16 %v1712, %v1704
    %v2625 = vpack.c.b16 %v1713, %v1705
    %v2626 = vpack.c.b16 %v1714, %v1706
    %v2627 = vpack.c.b16 %v1715, %v1707
    %v2628 = vpack.c.b16 %v1724, %v1716
    %v2629 = vpack.c.b16 %v1725, %v1717
    %v2630 = vpack.c.b16 %v1726, %v1718
    %v2631 = vpack.c.b16 %v1727, %v1719
    %v2632 = vpack.c.b16 %v1728, %v1720
    %v2633 = vpack.c.b16 %v1729, %v1721
    %v2634 = vpack.c.b16 %v1730, %v1722
    %v2635 = vpack.c.b16 %v1731, %v1723
    %v2636 = vpack.c.b16 %v1740, %v1732
    %v2637 = vpack.c.b16 %v1741, %v1733
    %v2638 = vpack.c.b16 %v1742, %v1734
    %v2639 = vpack.c.b16 %v1743, %v1735
    %v2640 = vpack.c.b16 %v1744, %v1736
    %v2641 = vpack.c.b16 %v1745, %v1737
    %v2642 = vpack.c.b16 %v1746, %v1738
    %v2643 = vpack.c.b16 %v1747, %v1739
    %v2644 = vpack.c.b16 %v1756, %v1748
    %v2645 = vpack.c.b16 %v1757, %v1749
    %v2646 = vpack.c.b16 %v1758, %v1750
    %v2647 = vpack.c.b16 %v1759, %v1751
    %v2648 = vpack.c.b16 %v1760, %v1752
    %v2649 = vpack.c.b16 %v1761, %v1753
    %v2650 = vpack.c.b16 %v1762, %v1754
    %v2651 = vpack.c.b16 %v1763, %v1755
    %v2652 = vpack.c.b16 %v1772, %v1764
    %v2653 = vpack.c.b16 %v1773, %v1765
    %v2654 = vpack.c.b16 %v1774, %v1766
    %v2655 = vpack.c.b16 %v1775, %v1767
    %v2656 = vpack.c.b16 %v1776, %v1768
    %v2657 = vpack.c.b16 %v1777, %v1769
    %v2658 = vpack.c.b16 %v1778, %v1770
    %v2659 = vpack.c.b16 %v1779, %v1771
    %v2660 = vpack.c.b16 %v1788, %v1780
    %v2661 = vpack.c.b16 %v1789, %v1781
    %v2662 = vpack.c.b16 %v1790, %v1782
    %v2663 = vpack.c.b16 %v1791, %v1783
    %v2664 = vpack.c.b16 %v1792, %v1784
    %v2665 = vpack.c.b16 %v1793, %v1785
    %v2666 = vpack.c.b16 %v1794, %v1786
    %v2667 = vpack.c.b16 %v1795, %v1787
    %v2668 = vpack.c.b16 %v1804, %v1796
    %v2669 = vpack.c.b16 %v1805, %v1797
    %v2670 = vpack.c.b16 %v1806, %v1798
    %v2671 = vpack.c.b16 %v1807, %v1799
    %v2672 = vpack.c.b16 %v1808, %v1800
    %v2673 = vpack.c.b16 %v1809, %v1801
    %v2674 = vpack.c.b16 %v1810, %v1802
    %v2675 = vpack.c.b16 %v1811, %v1803
    %v2676 = vpack.c.b16 %v1820, %v1812
    %v2677 = vpack.c.b16 %v1821, %v1813
    %v2678 = vpack.c.b16 %v1822, %v1814
    %v2679 = vpack.c.b16 %v1823, %v1815
    %v2680 = vpack.c.b16 %v1824, %v1816
    %v2681 = vpack.c.b16 %v1825, %v1817
    %v2682 = vpack.c.b16 %v1826, %v1818
    %v2683 = vpack.c.b16 %v1827, %v1819
    %v2684 = vpack.c.b16 %v1836, %v1828
    %v2685 = vpack.c.b16 %v1837, %v1829
    %v2686 = vpack.c.b16 %v1838, %v1830
    %v2687 = vpack.c.b16 %v1839, %v1831
    %v2688 = vpack.c.b16 %v1840, %v1832
    %v2689 = vpack.c.b16 %v1841, %v1833
    %v2690 = vpack.c.b16 %v1842, %v1834
    %v2691 = vpack.c.b16 %v1843, %v1835
    %v2692 = vpack.c.b16 %v1852, %v1844
    %v2693 = vpack.c.b16 %v1853, %v1845
    %v2694 = vpack.c.b16 %v1854, %v1846
    %v2695 = vpack.c.b16 %v1855, %v1847
    %v2696 = vpack.c.b16 %v1856, %v1848
    %v2697 = vpack.c.b16 %v1857, %v1849
    %v2698 = vpack.c.b16 %v1858, %v1850
    %v2699 = vpack.c.b16 %v1859, %v1851
    %v2700 = vpack.c.b16 %v1868, %v1860
    %v2701 = vpack.c.b16 %v1869, %v1861
    %v2702 = vpack.c.b16 %v1870, %v1862
    %v2703 = vpack.c.b16 %v1871, %v1863
    %v2704 = vpack.c.b16 %v1872, %v1864
    %v2705 = vpack.c.b16 %v1873, %v1865
    %v2706 = vpack.c.b16 %v1874, %v1866
    %v2707 = vpack.c.b16 %v1875, %v1867
    %v2708 = vpack.c.b16 %v1884, %v1876
    %v2709 = vpack.c.b16 %v1885, %v1877
    %v2710 = vpack.c.b16 %v1886, %v1878
    %v2711 = vpack.c.b16 %v1887, %v1879
    %v2712 = vpack.c.b16 %v1888, %v1880
    %v2713 = vpack.c.b16 %v1889, %v1881
    %v2714 = vpack.c.b16 %v1890, %v1882
    %v2715 = vpack.c.b16 %v1891, %v1883
    %v2716 = vpack.c.b16 %v1900, %v1892
    %v2717 = vpack.c.b16 %v1901, %v1893
    %v2718 = vpack.c.b16 %v1902, %v1894
    %v2719 = vpack.c.b16 %v1903, %v1895
    %v2720 = vpack.c.b16 %v1904, %v1896
    %v2721 = vpack.c.b16 %v1905, %v1897
    %v2722 = vpack.c.b16 %v1906, %v1898
    %v2723 = vpack.c.b16 %v1907, %v1899
    %v2724 = vpack.c.b16 %v1916, %v1908
    %v2725 = vpack.c.b16 %v1917, %v1909
    %v2726 = vpack.c.b16 %v1918, %v1910
    %v2727 = vpack.c.b16 %v1919, %v1911
    %v2728 = vpack.c.b16 %v1920, %v1912
    %v2729 = vpack.c.b16 %v1921, %v1913
    %v2730 = vpack.c.b16 %v1922, %v1914
    %v2731 = vpack.c.b16 %v1923, %v1915
    %v2732 = vpack.c.b16 %v1932, %v1924
    %v2733 = vpack.c.b16 %v1933, %v1925
    %v2734 = vpack.c.b16 %v1934, %v1926
    %v2735 = vpack.c.b16 %v1935, %v1927
    %v2736 = vpack.c.b16 %v1936, %v1928
    %v2737 = vpack.c.b16 %v1937, %v1929
    %v2738 = vpack.c.b16 %v1938, %v1930
    %v2739 = vpack.c.b16 %v1939, %v1931
    %v2740 = vpack.c.b16 %v1948, %v1940
    %v2741 = vpack.c.b16 %v1949, %v1941
    %v2742 = vpack.c.b16 %v1950, %v1942
    %v2743 = vpack.c.b16 %v1951, %v1943
    %v2744 = vpack.c.b16 %v1952, %v1944
    %v2745 = vpack.c.b16 %v1953, %v1945
    %v2746 = vpack.c.b16 %v1954, %v1946
    %v2747 = vpack.c.b16 %v1955, %v1947
    %v2748 = vpack.c.b16 %v1964, %v1956
    %v2749 = vpack.c.b16 %v1965, %v1957
    %v2750 = vpack.c.b16 %v1966, %v1958
    %v2751 = vpack.c.b16 %v1967, %v1959
    %v2752 = vpack.c.b16 %v1968, %v1960
    %v2753 = vpack.c.b16 %v1969, %v1961
    %v2754 = vpack.c.b16 %v1970, %v1962
    %v2755 = vpack.c.b16 %v1971, %v1963
    %v2756 = vpack.c.b16 %v1980, %v1972
    %v2757 = vpack.c.b16 %v1981, %v1973
    %v2758 = vpack.c.b16 %v1982, %v1974
    %v2759 = vpack.c.b16 %v1983, %v1975
    %v2760 = vpack.c.b16 %v1984, %v1976
    %v2761 = vpack.c.b16 %v1985, %v1977
    %v2762 = vpack.c.b16 %v1986, %v1978
    %v2763 = vpack.c.b16 %v1987, %v1979
    %v2764 = vpack.c.b16 %v1996, %v1988
    %v2765 = vpack.c.b16 %v1997, %v1989
    %v2766 = vpack.c.b16 %v1998, %v1990
    %v2767 = vpack.c.b16 %v1999, %v1991
    %v2768 = vpack.c.b16 %v2000, %v1992
    %v2769 = vpack.c.b16 %v2001, %v1993
    %v2770 = vpack.c.b16 %v2002, %v1994
    %v2771 = vpack.c.b16 %v2003, %v1995
    %v2772 = vpack.c.b16 %v2012, %v2004
    %v2773 = vpack.c.b16 %v2013, %v2005
    %v2774 = vpack.c.b16 %v2014, %v2006
    %v2775 = vpack.c.b16 %v2015, %v2007
    %v2776 = vpack.c.b16 %v2016, %v2008
    %v2777 = vpack.c.b16 %v2017, %v2009
    %v2778 = vpack.c.b16 %v2018, %v2010
    %v2779 = vpack.c.b16 %v2019, %v2011
    %v2780 = vpack.c.b16 %v2028, %v2020
    %v2781 = vpack.c.b16 %v2029, %v2021
    %v2782 = vpack.c.b16 %v2030, %v2022
    %v2783 = vpack.c.b16 %v2031, %v2023
    %v2784 = vpack.c.b16 %v2032, %v2024
    %v2785 = vpack.c.b16 %v2033, %v2025
    %v2786 = vpack.c.b16 %v2034, %v2026
    %v2787 = vpack.c.b16 %v2035, %v2027
    %v2788 = vpack.c.b16 %v2044, %v2036
    %v2789 = vpack.c.b16 %v2045, %v2037
    %v2790 = vpack.c.b16 %v2046, %v2038
    %v2791 = vpack.c.b16 %v2047, %v2039
    %v2792 = vpack.c.b16 %v2048, %v2040
    %v2793 = vpack.c.b16 %v2049, %v2041
    %v2794 = vpack.c.b16 %v2050, %v2042
    %v2795 = vpack.c.b16 %v2051, %v2043
    %v2796 = vpack.c.b16 %v2060, %v2052
    %v2797 = vpack.c.b16 %v2061, %v2053
    %v2798 = vpack.c.b16 %v2062, %v2054
    %v2799 = vpack.c.b16 %v2063, %v2055
    %v2800 = vpack.c.b16 %v2064, %v2056
    %v2801 = vpack.c.b16 %v2065, %v2057
    %v2802 = vpack.c.b16 %v2066, %v2058
    %v2803 = vpack.c.b16 %v2067, %v2059
    %v2804 = vpack.c.b16 %v2076, %v2068
    %v2805 = vpack.c.b16 %v2077, %v2069
    %v2806 = vpack.c.b16 %v2078, %v2070
    %v2807 = vpack.c.b16 %v2079, %v2071
    %v2808 = vpack.c.b16 %v2080, %v2072
    %v2809 = vpack.c.b16 %v2081, %v2073
    %v2810 = vpack.c.b16 %v2082, %v2074
    %v2811 = vpack.c.b16 %v2083, %v2075
    %v2812 = vpack.c.b16 %v2092, %v2084
    %v2813 = vpack.c.b16 %v2093, %v2085
    %v2814 = vpack.c.b16 %v2094, %v2086
    %v2815 = vpack.c.b16 %v2095, %v2087
    %v2816 = vpack.c.b16 %v2096, %v2088
    %v2817 = vpack.c.b16 %v2097, %v2089
    %v2818 = vpack.c.b16 %v2098, %v2090
    %v2819 = vpack.c.b16 %v2099, %v2091
    %v2820 = vpack.c.b16 %v2108, %v2100
    %v2821 = vpack.c.b16 %v2109, %v2101
    %v2822 = vpack.c.b16 %v2110, %v2102
    %v2823 = vpack.c.b16 %v2111, %v2103
    %v2824 = vpack.c.b16 %v2112, %v2104
    %v2825 = vpack.c.b16 %v2113, %v2105
    %v2826 = vpack.c.b16 %v2114, %v2106
    %v2827 = vpack.c.b16 %v2115, %v2107
    %v2828 = vpack.c.b16 %v2124, %v2116
    %v2829 = vpack.c.b16 %v2125, %v2117
    %v2830 = vpack.c.b16 %v2126, %v2118
    %v2831 = vpack.c.b16 %v2127, %v2119
    %v2832 = vpack.c.b16 %v2128, %v2120
    %v2833 = vpack.c.b16 %v2129, %v2121
    %v2834 = vpack.c.b16 %v2130, %v2122
    %v2835 = vpack.c.b16 %v2131, %v2123
    %v2836 = vpack.c.b16 %v2140, %v2132
    %v2837 = vpack.c.b16 %v2141, %v2133
    %v2838 = vpack.c.b16 %v2142, %v2134
    %v2839 = vpack.c.b16 %v2143, %v2135
    %v2840 = vpack.c.b16 %v2144, %v2136
    %v2841 = vpack.c.b16 %v2145, %v2137
    %v2842 = vpack.c.b16 %v2146, %v2138
    %v2843 = vpack.c.b16 %v2147, %v2139
    %v2844 = vpack.c.b16 %v2156, %v2148
    %v2845 = vpack.c.b16 %v2157, %v2149
    %v2846 = vpack.c.b16 %v2158, %v2150
    %v2847 = vpack.c.b16 %v2159, %v2151
    %v2848 = vpack.c.b16 %v2160, %v2152
    %v2849 = vpack.c.b16 %v2161, %v2153
    %v2850 = vpack.c.b16 %v2162, %v2154
    %v2851 = vpack.c.b16 %v2163, %v2155
    %v2852 = vpack.c.b16 %v2172, %v2164
    %v2853 = vpack.c.b16 %v2173, %v2165
    %v2854 = vpack.c.b16 %v2174, %v2166
    %v2855 = vpack.c.b16 %v2175, %v2167
    %v2856 = vpack.c.b16 %v2176, %v2168
    %v2857 = vpack.c.b16 %v2177, %v2169
    %v2858 = vpack.c.b16 %v2178, %v2170
    %v2859 = vpack.c.b16 %v2179, %v2171
    %v2860 = vpack.c.b16 %v2188, %v2180
    %v2861 = vpack.c.b16 %v2189, %v2181
    %v2862 = vpack.c.b16 %v2190, %v2182
    %v2863 = vpack.c.b16 %v2191, %v2183
    %v2864 = vpack.c.b16 %v2192, %v2184
    %v2865 = vpack.c.b16 %v2193, %v2185
    %v2866 = vpack.c.b16 %v2194, %v2186
    %v2867 = vpack.c.b16 %v2195, %v2187
    %v2868 = vpack.c.b16 %v2204, %v2196
    %v2869 = vpack.c.b16 %v2205, %v2197
    %v2870 = vpack.c.b16 %v2206, %v2198
    %v2871 = vpack.c.b16 %v2207, %v2199
    %v2872 = vpack.c.b16 %v2208, %v2200
    %v2873 = vpack.c.b16 %v2209, %v2201
    %v2874 = vpack.c.b16 %v2210, %v2202
    %v2875 = vpack.c.b16 %v2211, %v2203
    %v2876 = vpack.c.b16 %v2220, %v2212
    %v2877 = vpack.c.b16 %v2221, %v2213
    %v2878 = vpack.c.b16 %v2222, %v2214
    %v2879 = vpack.c.b16 %v2223, %v2215
    %v2880 = vpack.c.b16 %v2224, %v2216
    %v2881 = vpack.c.b16 %v2225, %v2217
    %v2882 = vpack.c.b16 %v2226, %v2218
    %v2883 = vpack.c.b16 %v2227, %v2219
    %v2884 = vpack.c.b16 %v2236, %v2228
    %v2885 = vpack.c.b16 %v2237, %v2229
    %v2886 = vpack.c.b16 %v2238, %v2230
    %v2887 = vpack.c.b16 %v2239, %v2231
    %v2888 = vpack.c.b16 %v2240, %v2232
    %v2889 = vpack.c.b16 %v2241, %v2233
    %v2890 = vpack.c.b16 %v2242, %v2234
    %v2891 = vpack.c.b16 %v2243, %v2235
    %v2892 = vpack.c.b16 %v2252, %v2244
    %v2893 = vpack.c.b16 %v2253, %v2245
    %v2894 = vpack.c.b16 %v2254, %v2246
    %v2895 = vpack.c.b16 %v2255, %v2247
    %v2896 = vpack.c.b16 %v2256, %v2248
    %v2897 = vpack.c.b16 %v2257, %v2249
    %v2898 = vpack.c.b16 %v2258, %v2250
    %v2899 = vpack.c.b16 %v2259, %v2251
    %v2900 = vpack.c.b16 %v2268, %v2260
    %v2901 = vpack.c.b16 %v2269, %v2261
    %v2902 = vpack.c.b16 %v2270, %v2262
    %v2903 = vpack.c.b16 %v2271, %v2263
    %v2904 = vpack.c.b16 %v2272, %v2264
    %v2905 = vpack.c.b16 %v2273, %v2265
    %v2906 = vpack.c.b16 %v2274, %v2266
    %v2907 = vpack.c.b16 %v2275, %v2267
    %v2908 = vpack.c.b16 %v2284, %v2276
    %v2909 = vpack.c.b16 %v2285, %v2277
    %v2910 = vpack.c.b16 %v2286, %v2278
    %v2911 = vpack.c.b16 %v2287, %v2279
    %v2912 = vpack.c.b16 %v2288, %v2280
    %v2913 = vpack.c.b16 %v2289, %v2281
    %v2914 = vpack.c.b16 %v2290, %v2282
    %v2915 = vpack.c.b16 %v2291, %v2283
    %v2916 = vpack.c.b16 %v2300, %v2292
    %v2917 = vpack.c.b16 %v2301, %v2293
    %v2918 = vpack.c.b16 %v2302, %v2294
    %v2919 = vpack.c.b16 %v2303, %v2295
    %v2920 = vpack.c.b16 %v2304, %v2296
    %v2921 = vpack.c.b16 %v2305, %v2297
    %v2922 = vpack.c.b16 %v2306, %v2298
    %v2923 = vpack.c.b16 %v2307, %v2299
    %v2924 = vpack.c.b16 %v2316, %v2308
    %v2925 = vpack.c.b16 %v2317, %v2309
    %v2926 = vpack.c.b16 %v2318, %v2310
    %v2927 = vpack.c.b16 %v2319, %v2311
    %v2928 = vpack.c.b16 %v2320, %v2312
    %v2929 = vpack.c.b16 %v2321, %v2313
    %v2930 = vpack.c.b16 %v2322, %v2314
    %v2931 = vpack.c.b16 %v2323, %v2315
    %v2932 = vpack.c.b16 %v2332, %v2324
    %v2933 = vpack.c.b16 %v2333, %v2325
    %v2934 = vpack.c.b16 %v2334, %v2326
    %v2935 = vpack.c.b16 %v2335, %v2327
    %v2936 = vpack.c.b16 %v2336, %v2328
    %v2937 = vpack.c.b16 %v2337, %v2329
    %v2938 = vpack.c.b16 %v2338, %v2330
    %v2939 = vpack.c.b16 %v2339, %v2331
    %v2940 = vpack.c.b16 %v2348, %v2340
    %v2941 = vpack.c.b16 %v2349, %v2341
    %v2942 = vpack.c.b16 %v2350, %v2342
    %v2943 = vpack.c.b16 %v2351, %v2343
    %v2944 = vpack.c.b16 %v2352, %v2344
    %v2945 = vpack.c.b16 %v2353, %v2345
    %v2946 = vpack.c.b16 %v2354, %v2346
    %v2947 = vpack.c.b16 %v2355, %v2347
    %v2948 = vpack.c.b16 %v2364, %v2356
    %v2949 = vpack.c.b16 %v2365, %v2357
    %v2950 = vpack.c.b16 %v2366, %v2358
    %v2951 = vpack.c.b16 %v2367, %v2359
    %v2952 = vpack.c.b16 %v2368, %v2360
    %v2953 = vpack.c.b16 %v2369, %v2361
    %v2954 = vpack.c.b16 %v2370, %v2362
    %v2955 = vpack.c.b16 %v2371, %v2363
    %v2956 = vpack.c.b16 %v2380, %v2372
    %v2957 = vpack.c.b16 %v2381, %v2373
    %v2958 = vpack.c.b16 %v2382, %v2374
    %v2959 = vpack.c.b16 %v2383, %v2375
    %v2960 = vpack.c.b16 %v2384, %v2376
    %v2961 = vpack.c.b16 %v2385, %v2377
    %v2962 = vpack.c.b16 %v2386, %v2378
    %v2963 = vpack.c.b16 %v2387, %v2379
    %v2964 = vpack.c.b16 %v2396, %v2388
    %v2965 = vpack.c.b16 %v2397, %v2389
    %v2966 = vpack.c.b16 %v2398, %v2390
    %v2967 = vpack.c.b16 %v2399, %v2391
    %v2968 = vpack.c.b16 %v2400, %v2392
    %v2969 = vpack.c.b16 %v2401, %v2393
    %v2970 = vpack.c.b16 %v2402, %v2394
    %v2971 = vpack.c.b16 %v2403, %v2395
    %v2972 = vpack.c.b16 %v2412, %v2404
    %v2973 = vpack.c.b16 %v2413, %v2405
    %v2974 = vpack.c.b16 %v2414, %v2406
    %v2975 = vpack.c.b16 %v2415, %v2407
    %v2976 = vpack.c.b16 %v2416, %v2408
    %v2977 = vpack.c.b16 %v2417, %v2409
    %v2978 = vpack.c.b16 %v2418, %v2410
    %v2979 = vpack.c.b16 %v2419, %v2411
    %v2980 = vpack.c.b16 %v2428, %v2420
    %v2981 = vpack.c.b16 %v2429, %v2421
    %v2982 = vpack.c.b16 %v2430, %v2422
    %v2983 = vpack.c.b16 %v2431, %v2423
    %v2984 = vpack.c.b16 %v2432, %v2424
    %v2985 = vpack.c.b16 %v2433, %v2425
    %v2986 = vpack.c.b16 %v2434, %v2426
    %v2987 = vpack.c.b16 %v2435, %v2427
    %v2988 = vpack.c.b16 %v2444, %v2436
    %v2989 = vpack.c.b16 %v2445, %v2437
    %v2990 = vpack.c.b16 %v2446, %v2438
    %v2991 = vpack.c.b16 %v2447, %v2439
    %v2992 = vpack.c.b16 %v2448, %v2440
    %v2993 = vpack.c.b16 %v2449, %v2441
    %v2994 = vpack.c.b16 %v2450, %v2442
    %v2995 = vpack.c.b16 %v2451, %v2443
    %v2996 = vpack.c.b16 %v2460, %v2452
    %v2997 = vpack.c.b16 %v2461, %v2453
    %v2998 = vpack.c.b16 %v2462, %v2454
    %v2999 = vpack.c.b16 %v2463, %v2455
    %v3000 = vpack.c.b16 %v2464, %v2456
    %v3001 = vpack.c.b16 %v2465, %v2457
    %v3002 = vpack.c.b16 %v2466, %v2458
    %v3003 = vpack.c.b16 %v2467, %v2459
    %v3004 = vpack.c.b16 %v2476, %v2468
    %v3005 = vpack.c.b16 %v2477, %v2469
    %v3006 = vpack.c.b16 %v2478, %v2470
    %v3007 = vpack.c.b16 %v2479, %v2471
    %v3008 = vpack.c.b16 %v2480, %v2472
    %v3009 = vpack.c.b16 %v2481, %v2473
    %v3010 = vpack.c.b16 %v2482, %v2474
    %v3011 = vpack.c.b16 %v2483, %v2475
    %v3012 = vpack.c.b16 %v2492, %v2484
    %v3013 = vpack.c.b16 %v2493, %v2485
    %v3014 = vpack.c.b16 %v2494, %v2486
    %v3015 = vpack.c.b16 %v2495, %v2487
    %v3016 = vpack.c.b16 %v2496, %v2488
    %v3017 = vpack.c.b16 %v2497, %v2489
    %v3018 = vpack.c.b16 %v2498, %v2490
    %v3019 = vpack.c.b16 %v2499, %v2491
    %v3020 = vpack.c.b16 %v2508, %v2500
    %v3021 = vpack.c.b16 %v2509, %v2501
    %v3022 = vpack.c.b16 %v2510, %v2502
    %v3023 = vpack.c.b16 %v2511, %v2503
    %v3024 = vpack.c.b16 %v2512, %v2504
    %v3025 = vpack.c.b16 %v2513, %v2505
    %v3026 = vpack.c.b16 %v2514, %v2506
    %v3027 = vpack.c.b16 %v2515, %v2507
    %3540 = vmatpush.bf16.msra.mxu0 %v2572
    %3541 = vmatpush.bf16.msra.mxu0 %v2564
    %3542 = vmatpush.bf16.msra.mxu0 %v2556
    %3543 = vmatpush.bf16.msra.mxu0 %v2548
    %3544 = vmatpush.bf16.msra.mxu0 %v2540
    %3545 = vmatpush.bf16.msra.mxu0 %v2532
    %3546 = vmatpush.bf16.msra.mxu0 %v2524
    %3547 = vmatpush.bf16.msra.mxu0 %v2516
    %3548 = vmatmul.bf16.gmra.mxu0 %v442
    %v3549 = vpop.f32.mrf.mxu0
    %v3550 = vadd.f32 %v964, %v3549
    %v3551 = vpop.f32.mrf.mxu0
    %3552 = vdwg.mxu0
    %3553 = vmatpush.bf16.msra.mxu0 %v2636
    %3554 = vmatpush.bf16.msra.mxu0 %v2628
    %3555 = vmatpush.bf16.msra.mxu0 %v2620
    %3556 = vmatpush.bf16.msra.mxu0 %v2612
    %3557 = vmatpush.bf16.msra.mxu0 %v2604
    %3558 = vmatpush.bf16.msra.mxu0 %v2596
    %3559 = vmatpush.bf16.msra.mxu0 %v2588
    %3560 = vmatpush.bf16.msra.mxu0 %v2580
    %3561 = vmatmul.bf16.gmra.mxu0 %v443
    %v3562 = vpop.f32.mrf.mxu0
    %v3563 = vadd.f32 %v3550, %v3562
    %v3564 = vpop.f32.mrf.mxu0
    %3565 = vdwg.mxu0
    %3566 = vmatpush.bf16.msra.mxu0 %v2700
    %3567 = vmatpush.bf16.msra.mxu0 %v2692
    %3568 = vmatpush.bf16.msra.mxu0 %v2684
    %3569 = vmatpush.bf16.msra.mxu0 %v2676
    %3570 = vmatpush.bf16.msra.mxu0 %v2668
    %3571 = vmatpush.bf16.msra.mxu0 %v2660
    %3572 = vmatpush.bf16.msra.mxu0 %v2652
    %3573 = vmatpush.bf16.msra.mxu0 %v2644
    %3574 = vmatmul.bf16.gmra.mxu0 %v444
    %v3575 = vpop.f32.mrf.mxu0
    %v3576 = vadd.f32 %v3563, %v3575
    %v3577 = vpop.f32.mrf.mxu0
    %3578 = vdwg.mxu0
    %3579 = vmatpush.bf16.msra.mxu0 %v2764
    %3580 = vmatpush.bf16.msra.mxu0 %v2756
    %3581 = vmatpush.bf16.msra.mxu0 %v2748
    %3582 = vmatpush.bf16.msra.mxu0 %v2740
    %3583 = vmatpush.bf16.msra.mxu0 %v2732
    %3584 = vmatpush.bf16.msra.mxu0 %v2724
    %3585 = vmatpush.bf16.msra.mxu0 %v2716
    %3586 = vmatpush.bf16.msra.mxu0 %v2708
    %3587 = vmatmul.bf16.gmra.mxu0 %v445
    %v3588 = vpop.f32.mrf.mxu0
    %v3589 = vadd.f32 %v3576, %v3588
    %v3590 = vpop.f32.mrf.mxu0
    %3591 = vdwg.mxu0
    %3592 = vmatpush.bf16.msra.mxu0 %v2828
    %3593 = vmatpush.bf16.msra.mxu0 %v2820
    %3594 = vmatpush.bf16.msra.mxu0 %v2812
    %3595 = vmatpush.bf16.msra.mxu0 %v2804
    %3596 = vmatpush.bf16.msra.mxu0 %v2796
    %3597 = vmatpush.bf16.msra.mxu0 %v2788
    %3598 = vmatpush.bf16.msra.mxu0 %v2780
    %3599 = vmatpush.bf16.msra.mxu0 %v2772
    %3600 = vmatmul.bf16.gmra.mxu0 %v446
    %v3601 = vpop.f32.mrf.mxu0
    %v3602 = vadd.f32 %v3589, %v3601
    %v3603 = vpop.f32.mrf.mxu0
    %3604 = vdwg.mxu0
    %3605 = vmatpush.bf16.msra.mxu0 %v2892
    %3606 = vmatpush.bf16.msra.mxu0 %v2884
    %3607 = vmatpush.bf16.msra.mxu0 %v2876
    %3608 = vmatpush.bf16.msra.mxu0 %v2868
    %3609 = vmatpush.bf16.msra.mxu0 %v2860
    %3610 = vmatpush.bf16.msra.mxu0 %v2852
    %3611 = vmatpush.bf16.msra.mxu0 %v2844
    %3612 = vmatpush.bf16.msra.mxu0 %v2836
    %3613 = vmatmul.bf16.gmra.mxu0 %v447
    %v3614 = vpop.f32.mrf.mxu0
    %v3615 = vadd.f32 %v3602, %v3614
    %v3616 = vpop.f32.mrf.mxu0
    %3617 = vdwg.mxu0
    %3618 = vmatpush.bf16.msra.mxu0 %v2956
    %3619 = vmatpush.bf16.msra.mxu0 %v2948
    %3620 = vmatpush.bf16.msra.mxu0 %v2940
    %3621 = vmatpush.bf16.msra.mxu0 %v2932
    %3622 = vmatpush.bf16.msra.mxu0 %v2924
    %3623 = vmatpush.bf16.msra.mxu0 %v2916
    %3624 = vmatpush.bf16.msra.mxu0 %v2908
    %3625 = vmatpush.bf16.msra.mxu0 %v2900
    %3626 = vmatmul.bf16.gmra.mxu0 %v448
    %v3627 = vpop.f32.mrf.mxu0
    %v3628 = vadd.f32 %v3615, %v3627
    %v3629 = vpop.f32.mrf.mxu0
    %3630 = vdwg.mxu0
    %3631 = vmatpush.bf16.msra.mxu0 %v3020
    %3632 = vmatpush.bf16.msra.mxu0 %v3012
    %3633 = vmatpush.bf16.msra.mxu0 %v3004
    %3634 = vmatpush.bf16.msra.mxu0 %v2996
    %3635 = vmatpush.bf16.msra.mxu0 %v2988
    %3636 = vmatpush.bf16.msra.mxu0 %v2980
    %3637 = vmatpush.bf16.msra.mxu0 %v2972
    %3638 = vmatpush.bf16.msra.mxu0 %v2964
    %3639 = vmatmul.bf16.gmra.mxu0 %v449
    %v3640 = vpop.f32.mrf.mxu0
    %v3641 = vadd.f32 %v3628, %v3640
    %v3642 = vpop.f32.mrf.mxu0
    %3643 = vdwg.mxu0
    %3644 = vmatpush.bf16.msra.mxu0 %v2573
    %3645 = vmatpush.bf16.msra.mxu0 %v2565
    %3646 = vmatpush.bf16.msra.mxu0 %v2557
    %3647 = vmatpush.bf16.msra.mxu0 %v2549
    %3648 = vmatpush.bf16.msra.mxu0 %v2541
    %3649 = vmatpush.bf16.msra.mxu0 %v2533
    %3650 = vmatpush.bf16.msra.mxu0 %v2525
    %3651 = vmatpush.bf16.msra.mxu0 %v2517
    %3652 = vmatmul.bf16.gmra.mxu0 %v442
    %v3653 = vpop.f32.mrf.mxu0
    %v3654 = vadd.f32 %v965, %v3653
    %v3655 = vpop.f32.mrf.mxu0
    %3656 = vdwg.mxu0
    %3657 = vmatpush.bf16.msra.mxu0 %v2637
    %3658 = vmatpush.bf16.msra.mxu0 %v2629
    %3659 = vmatpush.bf16.msra.mxu0 %v2621
    %3660 = vmatpush.bf16.msra.mxu0 %v2613
    %3661 = vmatpush.bf16.msra.mxu0 %v2605
    %3662 = vmatpush.bf16.msra.mxu0 %v2597
    %3663 = vmatpush.bf16.msra.mxu0 %v2589
    %3664 = vmatpush.bf16.msra.mxu0 %v2581
    %3665 = vmatmul.bf16.gmra.mxu0 %v443
    %v3666 = vpop.f32.mrf.mxu0
    %v3667 = vadd.f32 %v3654, %v3666
    %v3668 = vpop.f32.mrf.mxu0
    %3669 = vdwg.mxu0
    %3670 = vmatpush.bf16.msra.mxu0 %v2701
    %3671 = vmatpush.bf16.msra.mxu0 %v2693
    %3672 = vmatpush.bf16.msra.mxu0 %v2685
    %3673 = vmatpush.bf16.msra.mxu0 %v2677
    %3674 = vmatpush.bf16.msra.mxu0 %v2669
    %3675 = vmatpush.bf16.msra.mxu0 %v2661
    %3676 = vmatpush.bf16.msra.mxu0 %v2653
    %3677 = vmatpush.bf16.msra.mxu0 %v2645
    %3678 = vmatmul.bf16.gmra.mxu0 %v444
    %v3679 = vpop.f32.mrf.mxu0
    %v3680 = vadd.f32 %v3667, %v3679
    %v3681 = vpop.f32.mrf.mxu0
    %3682 = vdwg.mxu0
    %3683 = vmatpush.bf16.msra.mxu0 %v2765
    %3684 = vmatpush.bf16.msra.mxu0 %v2757
    %3685 = vmatpush.bf16.msra.mxu0 %v2749
    %3686 = vmatpush.bf16.msra.mxu0 %v2741
    %3687 = vmatpush.bf16.msra.mxu0 %v2733
    %3688 = vmatpush.bf16.msra.mxu0 %v2725
    %3689 = vmatpush.bf16.msra.mxu0 %v2717
    %3690 = vmatpush.bf16.msra.mxu0 %v2709
    %3691 = vmatmul.bf16.gmra.mxu0 %v445
    %v3692 = vpop.f32.mrf.mxu0
    %v3693 = vadd.f32 %v3680, %v3692
    %v3694 = vpop.f32.mrf.mxu0
    %3695 = vdwg.mxu0
    %3696 = vmatpush.bf16.msra.mxu0 %v2829
    %3697 = vmatpush.bf16.msra.mxu0 %v2821
    %3698 = vmatpush.bf16.msra.mxu0 %v2813
    %3699 = vmatpush.bf16.msra.mxu0 %v2805
    %3700 = vmatpush.bf16.msra.mxu0 %v2797
    %3701 = vmatpush.bf16.msra.mxu0 %v2789
    %3702 = vmatpush.bf16.msra.mxu0 %v2781
    %3703 = vmatpush.bf16.msra.mxu0 %v2773
    %3704 = vmatmul.bf16.gmra.mxu0 %v446
    %v3705 = vpop.f32.mrf.mxu0
    %v3706 = vadd.f32 %v3693, %v3705
    %v3707 = vpop.f32.mrf.mxu0
    %3708 = vdwg.mxu0
    %3709 = vmatpush.bf16.msra.mxu0 %v2893
    %3710 = vmatpush.bf16.msra.mxu0 %v2885
    %3711 = vmatpush.bf16.msra.mxu0 %v2877
    %3712 = vmatpush.bf16.msra.mxu0 %v2869
    %3713 = vmatpush.bf16.msra.mxu0 %v2861
    %3714 = vmatpush.bf16.msra.mxu0 %v2853
    %3715 = vmatpush.bf16.msra.mxu0 %v2845
    %3716 = vmatpush.bf16.msra.mxu0 %v2837
    %3717 = vmatmul.bf16.gmra.mxu0 %v447
    %v3718 = vpop.f32.mrf.mxu0
    %v3719 = vadd.f32 %v3706, %v3718
    %v3720 = vpop.f32.mrf.mxu0
    %3721 = vdwg.mxu0
    %3722 = vmatpush.bf16.msra.mxu0 %v2957
    %3723 = vmatpush.bf16.msra.mxu0 %v2949
    %3724 = vmatpush.bf16.msra.mxu0 %v2941
    %3725 = vmatpush.bf16.msra.mxu0 %v2933
    %3726 = vmatpush.bf16.msra.mxu0 %v2925
    %3727 = vmatpush.bf16.msra.mxu0 %v2917
    %3728 = vmatpush.bf16.msra.mxu0 %v2909
    %3729 = vmatpush.bf16.msra.mxu0 %v2901
    %3730 = vmatmul.bf16.gmra.mxu0 %v448
    %v3731 = vpop.f32.mrf.mxu0
    %v3732 = vadd.f32 %v3719, %v3731
    %v3733 = vpop.f32.mrf.mxu0
    %3734 = vdwg.mxu0
    %3735 = vmatpush.bf16.msra.mxu0 %v3021
    %3736 = vmatpush.bf16.msra.mxu0 %v3013
    %3737 = vmatpush.bf16.msra.mxu0 %v3005
    %3738 = vmatpush.bf16.msra.mxu0 %v2997
    %3739 = vmatpush.bf16.msra.mxu0 %v2989
    %3740 = vmatpush.bf16.msra.mxu0 %v2981
    %3741 = vmatpush.bf16.msra.mxu0 %v2973
    %3742 = vmatpush.bf16.msra.mxu0 %v2965
    %3743 = vmatmul.bf16.gmra.mxu0 %v449
    %v3744 = vpop.f32.mrf.mxu0
    %v3745 = vadd.f32 %v3732, %v3744
    %v3746 = vpop.f32.mrf.mxu0
    %3747 = vdwg.mxu0
    %3748 = vmatpush.bf16.msra.mxu0 %v2574
    %3749 = vmatpush.bf16.msra.mxu0 %v2566
    %3750 = vmatpush.bf16.msra.mxu0 %v2558
    %3751 = vmatpush.bf16.msra.mxu0 %v2550
    %3752 = vmatpush.bf16.msra.mxu0 %v2542
    %3753 = vmatpush.bf16.msra.mxu0 %v2534
    %3754 = vmatpush.bf16.msra.mxu0 %v2526
    %3755 = vmatpush.bf16.msra.mxu0 %v2518
    %3756 = vmatmul.bf16.gmra.mxu0 %v442
    %v3757 = vpop.f32.mrf.mxu0
    %v3758 = vadd.f32 %v966, %v3757
    %v3759 = vpop.f32.mrf.mxu0
    %3760 = vdwg.mxu0
    %3761 = vmatpush.bf16.msra.mxu0 %v2638
    %3762 = vmatpush.bf16.msra.mxu0 %v2630
    %3763 = vmatpush.bf16.msra.mxu0 %v2622
    %3764 = vmatpush.bf16.msra.mxu0 %v2614
    %3765 = vmatpush.bf16.msra.mxu0 %v2606
    %3766 = vmatpush.bf16.msra.mxu0 %v2598
    %3767 = vmatpush.bf16.msra.mxu0 %v2590
    %3768 = vmatpush.bf16.msra.mxu0 %v2582
    %3769 = vmatmul.bf16.gmra.mxu0 %v443
    %v3770 = vpop.f32.mrf.mxu0
    %v3771 = vadd.f32 %v3758, %v3770
    %v3772 = vpop.f32.mrf.mxu0
    %3773 = vdwg.mxu0
    %3774 = vmatpush.bf16.msra.mxu0 %v2702
    %3775 = vmatpush.bf16.msra.mxu0 %v2694
    %3776 = vmatpush.bf16.msra.mxu0 %v2686
    %3777 = vmatpush.bf16.msra.mxu0 %v2678
    %3778 = vmatpush.bf16.msra.mxu0 %v2670
    %3779 = vmatpush.bf16.msra.mxu0 %v2662
    %3780 = vmatpush.bf16.msra.mxu0 %v2654
    %3781 = vmatpush.bf16.msra.mxu0 %v2646
    %3782 = vmatmul.bf16.gmra.mxu0 %v444
    %v3783 = vpop.f32.mrf.mxu0
    %v3784 = vadd.f32 %v3771, %v3783
    %v3785 = vpop.f32.mrf.mxu0
    %3786 = vdwg.mxu0
    %3787 = vmatpush.bf16.msra.mxu0 %v2766
    %3788 = vmatpush.bf16.msra.mxu0 %v2758
    %3789 = vmatpush.bf16.msra.mxu0 %v2750
    %3790 = vmatpush.bf16.msra.mxu0 %v2742
    %3791 = vmatpush.bf16.msra.mxu0 %v2734
    %3792 = vmatpush.bf16.msra.mxu0 %v2726
    %3793 = vmatpush.bf16.msra.mxu0 %v2718
    %3794 = vmatpush.bf16.msra.mxu0 %v2710
    %3795 = vmatmul.bf16.gmra.mxu0 %v445
    %v3796 = vpop.f32.mrf.mxu0
    %v3797 = vadd.f32 %v3784, %v3796
    %v3798 = vpop.f32.mrf.mxu0
    %3799 = vdwg.mxu0
    %3800 = vmatpush.bf16.msra.mxu0 %v2830
    %3801 = vmatpush.bf16.msra.mxu0 %v2822
    %3802 = vmatpush.bf16.msra.mxu0 %v2814
    %3803 = vmatpush.bf16.msra.mxu0 %v2806
    %3804 = vmatpush.bf16.msra.mxu0 %v2798
    %3805 = vmatpush.bf16.msra.mxu0 %v2790
    %3806 = vmatpush.bf16.msra.mxu0 %v2782
    %3807 = vmatpush.bf16.msra.mxu0 %v2774
    %3808 = vmatmul.bf16.gmra.mxu0 %v446
    %v3809 = vpop.f32.mrf.mxu0
    %v3810 = vadd.f32 %v3797, %v3809
    %v3811 = vpop.f32.mrf.mxu0
    %3812 = vdwg.mxu0
    %3813 = vmatpush.bf16.msra.mxu0 %v2894
    %3814 = vmatpush.bf16.msra.mxu0 %v2886
    %3815 = vmatpush.bf16.msra.mxu0 %v2878
    %3816 = vmatpush.bf16.msra.mxu0 %v2870
    %3817 = vmatpush.bf16.msra.mxu0 %v2862
    %3818 = vmatpush.bf16.msra.mxu0 %v2854
    %3819 = vmatpush.bf16.msra.mxu0 %v2846
    %3820 = vmatpush.bf16.msra.mxu0 %v2838
    %3821 = vmatmul.bf16.gmra.mxu0 %v447
    %v3822 = vpop.f32.mrf.mxu0
    %v3823 = vadd.f32 %v3810, %v3822
    %v3824 = vpop.f32.mrf.mxu0
    %3825 = vdwg.mxu0
    %3826 = vmatpush.bf16.msra.mxu0 %v2958
    %3827 = vmatpush.bf16.msra.mxu0 %v2950
    %3828 = vmatpush.bf16.msra.mxu0 %v2942
    %3829 = vmatpush.bf16.msra.mxu0 %v2934
    %3830 = vmatpush.bf16.msra.mxu0 %v2926
    %3831 = vmatpush.bf16.msra.mxu0 %v2918
    %3832 = vmatpush.bf16.msra.mxu0 %v2910
    %3833 = vmatpush.bf16.msra.mxu0 %v2902
    %3834 = vmatmul.bf16.gmra.mxu0 %v448
    %v3835 = vpop.f32.mrf.mxu0
    %v3836 = vadd.f32 %v3823, %v3835
    %v3837 = vpop.f32.mrf.mxu0
    %3838 = vdwg.mxu0
    %3839 = vmatpush.bf16.msra.mxu0 %v3022
    %3840 = vmatpush.bf16.msra.mxu0 %v3014
    %3841 = vmatpush.bf16.msra.mxu0 %v3006
    %3842 = vmatpush.bf16.msra.mxu0 %v2998
    %3843 = vmatpush.bf16.msra.mxu0 %v2990
    %3844 = vmatpush.bf16.msra.mxu0 %v2982
    %3845 = vmatpush.bf16.msra.mxu0 %v2974
    %3846 = vmatpush.bf16.msra.mxu0 %v2966
    %3847 = vmatmul.bf16.gmra.mxu0 %v449
    %v3848 = vpop.f32.mrf.mxu0
    %v3849 = vadd.f32 %v3836, %v3848
    %v3850 = vpop.f32.mrf.mxu0
    %3851 = vdwg.mxu0
    %3852 = vmatpush.bf16.msra.mxu0 %v2575
    %3853 = vmatpush.bf16.msra.mxu0 %v2567
    %3854 = vmatpush.bf16.msra.mxu0 %v2559
    %3855 = vmatpush.bf16.msra.mxu0 %v2551
    %3856 = vmatpush.bf16.msra.mxu0 %v2543
    %3857 = vmatpush.bf16.msra.mxu0 %v2535
    %3858 = vmatpush.bf16.msra.mxu0 %v2527
    %3859 = vmatpush.bf16.msra.mxu0 %v2519
    %3860 = vmatmul.bf16.gmra.mxu0 %v442
    %v3861 = vpop.f32.mrf.mxu0
    %v3862 = vadd.f32 %v967, %v3861
    %v3863 = vpop.f32.mrf.mxu0
    %3864 = vdwg.mxu0
    %3865 = vmatpush.bf16.msra.mxu0 %v2639
    %3866 = vmatpush.bf16.msra.mxu0 %v2631
    %3867 = vmatpush.bf16.msra.mxu0 %v2623
    %3868 = vmatpush.bf16.msra.mxu0 %v2615
    %3869 = vmatpush.bf16.msra.mxu0 %v2607
    %3870 = vmatpush.bf16.msra.mxu0 %v2599
    %3871 = vmatpush.bf16.msra.mxu0 %v2591
    %3872 = vmatpush.bf16.msra.mxu0 %v2583
    %3873 = vmatmul.bf16.gmra.mxu0 %v443
    %v3874 = vpop.f32.mrf.mxu0
    %v3875 = vadd.f32 %v3862, %v3874
    %v3876 = vpop.f32.mrf.mxu0
    %3877 = vdwg.mxu0
    %3878 = vmatpush.bf16.msra.mxu0 %v2703
    %3879 = vmatpush.bf16.msra.mxu0 %v2695
    %3880 = vmatpush.bf16.msra.mxu0 %v2687
    %3881 = vmatpush.bf16.msra.mxu0 %v2679
    %3882 = vmatpush.bf16.msra.mxu0 %v2671
    %3883 = vmatpush.bf16.msra.mxu0 %v2663
    %3884 = vmatpush.bf16.msra.mxu0 %v2655
    %3885 = vmatpush.bf16.msra.mxu0 %v2647
    %3886 = vmatmul.bf16.gmra.mxu0 %v444
    %v3887 = vpop.f32.mrf.mxu0
    %v3888 = vadd.f32 %v3875, %v3887
    %v3889 = vpop.f32.mrf.mxu0
    %3890 = vdwg.mxu0
    %3891 = vmatpush.bf16.msra.mxu0 %v2767
    %3892 = vmatpush.bf16.msra.mxu0 %v2759
    %3893 = vmatpush.bf16.msra.mxu0 %v2751
    %3894 = vmatpush.bf16.msra.mxu0 %v2743
    %3895 = vmatpush.bf16.msra.mxu0 %v2735
    %3896 = vmatpush.bf16.msra.mxu0 %v2727
    %3897 = vmatpush.bf16.msra.mxu0 %v2719
    %3898 = vmatpush.bf16.msra.mxu0 %v2711
    %3899 = vmatmul.bf16.gmra.mxu0 %v445
    %v3900 = vpop.f32.mrf.mxu0
    %v3901 = vadd.f32 %v3888, %v3900
    %v3902 = vpop.f32.mrf.mxu0
    %3903 = vdwg.mxu0
    %3904 = vmatpush.bf16.msra.mxu0 %v2831
    %3905 = vmatpush.bf16.msra.mxu0 %v2823
    %3906 = vmatpush.bf16.msra.mxu0 %v2815
    %3907 = vmatpush.bf16.msra.mxu0 %v2807
    %3908 = vmatpush.bf16.msra.mxu0 %v2799
    %3909 = vmatpush.bf16.msra.mxu0 %v2791
    %3910 = vmatpush.bf16.msra.mxu0 %v2783
    %3911 = vmatpush.bf16.msra.mxu0 %v2775
    %3912 = vmatmul.bf16.gmra.mxu0 %v446
    %v3913 = vpop.f32.mrf.mxu0
    %v3914 = vadd.f32 %v3901, %v3913
    %v3915 = vpop.f32.mrf.mxu0
    %3916 = vdwg.mxu0
    %3917 = vmatpush.bf16.msra.mxu0 %v2895
    %3918 = vmatpush.bf16.msra.mxu0 %v2887
    %3919 = vmatpush.bf16.msra.mxu0 %v2879
    %3920 = vmatpush.bf16.msra.mxu0 %v2871
    %3921 = vmatpush.bf16.msra.mxu0 %v2863
    %3922 = vmatpush.bf16.msra.mxu0 %v2855
    %3923 = vmatpush.bf16.msra.mxu0 %v2847
    %3924 = vmatpush.bf16.msra.mxu0 %v2839
    %3925 = vmatmul.bf16.gmra.mxu0 %v447
    %v3926 = vpop.f32.mrf.mxu0
    %v3927 = vadd.f32 %v3914, %v3926
    %v3928 = vpop.f32.mrf.mxu0
    %3929 = vdwg.mxu0
    %3930 = vmatpush.bf16.msra.mxu0 %v2959
    %3931 = vmatpush.bf16.msra.mxu0 %v2951
    %3932 = vmatpush.bf16.msra.mxu0 %v2943
    %3933 = vmatpush.bf16.msra.mxu0 %v2935
    %3934 = vmatpush.bf16.msra.mxu0 %v2927
    %3935 = vmatpush.bf16.msra.mxu0 %v2919
    %3936 = vmatpush.bf16.msra.mxu0 %v2911
    %3937 = vmatpush.bf16.msra.mxu0 %v2903
    %3938 = vmatmul.bf16.gmra.mxu0 %v448
    %v3939 = vpop.f32.mrf.mxu0
    %v3940 = vadd.f32 %v3927, %v3939
    %v3941 = vpop.f32.mrf.mxu0
    %3942 = vdwg.mxu0
    %3943 = vmatpush.bf16.msra.mxu0 %v3023
    %3944 = vmatpush.bf16.msra.mxu0 %v3015
    %3945 = vmatpush.bf16.msra.mxu0 %v3007
    %3946 = vmatpush.bf16.msra.mxu0 %v2999
    %3947 = vmatpush.bf16.msra.mxu0 %v2991
    %3948 = vmatpush.bf16.msra.mxu0 %v2983
    %3949 = vmatpush.bf16.msra.mxu0 %v2975
    %3950 = vmatpush.bf16.msra.mxu0 %v2967
    %3951 = vmatmul.bf16.gmra.mxu0 %v449
    %v3952 = vpop.f32.mrf.mxu0
    %v3953 = vadd.f32 %v3940, %v3952
    %v3954 = vpop.f32.mrf.mxu0
    %3955 = vdwg.mxu0
    %3956 = vmatpush.bf16.msra.mxu0 %v2576
    %3957 = vmatpush.bf16.msra.mxu0 %v2568
    %3958 = vmatpush.bf16.msra.mxu0 %v2560
    %3959 = vmatpush.bf16.msra.mxu0 %v2552
    %3960 = vmatpush.bf16.msra.mxu0 %v2544
    %3961 = vmatpush.bf16.msra.mxu0 %v2536
    %3962 = vmatpush.bf16.msra.mxu0 %v2528
    %3963 = vmatpush.bf16.msra.mxu0 %v2520
    %3964 = vmatmul.bf16.gmra.mxu0 %v442
    %v3965 = vpop.f32.mrf.mxu0
    %v3966 = vadd.f32 %v968, %v3965
    %v3967 = vpop.f32.mrf.mxu0
    %3968 = vdwg.mxu0
    %3969 = vmatpush.bf16.msra.mxu0 %v2640
    %3970 = vmatpush.bf16.msra.mxu0 %v2632
    %3971 = vmatpush.bf16.msra.mxu0 %v2624
    %3972 = vmatpush.bf16.msra.mxu0 %v2616
    %3973 = vmatpush.bf16.msra.mxu0 %v2608
    %3974 = vmatpush.bf16.msra.mxu0 %v2600
    %3975 = vmatpush.bf16.msra.mxu0 %v2592
    %3976 = vmatpush.bf16.msra.mxu0 %v2584
    %3977 = vmatmul.bf16.gmra.mxu0 %v443
    %v3978 = vpop.f32.mrf.mxu0
    %v3979 = vadd.f32 %v3966, %v3978
    %v3980 = vpop.f32.mrf.mxu0
    %3981 = vdwg.mxu0
    %3982 = vmatpush.bf16.msra.mxu0 %v2704
    %3983 = vmatpush.bf16.msra.mxu0 %v2696
    %3984 = vmatpush.bf16.msra.mxu0 %v2688
    %3985 = vmatpush.bf16.msra.mxu0 %v2680
    %3986 = vmatpush.bf16.msra.mxu0 %v2672
    %3987 = vmatpush.bf16.msra.mxu0 %v2664
    %3988 = vmatpush.bf16.msra.mxu0 %v2656
    %3989 = vmatpush.bf16.msra.mxu0 %v2648
    %3990 = vmatmul.bf16.gmra.mxu0 %v444
    %v3991 = vpop.f32.mrf.mxu0
    %v3992 = vadd.f32 %v3979, %v3991
    %v3993 = vpop.f32.mrf.mxu0
    %3994 = vdwg.mxu0
    %3995 = vmatpush.bf16.msra.mxu0 %v2768
    %3996 = vmatpush.bf16.msra.mxu0 %v2760
    %3997 = vmatpush.bf16.msra.mxu0 %v2752
    %3998 = vmatpush.bf16.msra.mxu0 %v2744
    %3999 = vmatpush.bf16.msra.mxu0 %v2736
    %4000 = vmatpush.bf16.msra.mxu0 %v2728
    %4001 = vmatpush.bf16.msra.mxu0 %v2720
    %4002 = vmatpush.bf16.msra.mxu0 %v2712
    %4003 = vmatmul.bf16.gmra.mxu0 %v445
    %v4004 = vpop.f32.mrf.mxu0
    %v4005 = vadd.f32 %v3992, %v4004
    %v4006 = vpop.f32.mrf.mxu0
    %4007 = vdwg.mxu0
    %4008 = vmatpush.bf16.msra.mxu0 %v2832
    %4009 = vmatpush.bf16.msra.mxu0 %v2824
    %4010 = vmatpush.bf16.msra.mxu0 %v2816
    %4011 = vmatpush.bf16.msra.mxu0 %v2808
    %4012 = vmatpush.bf16.msra.mxu0 %v2800
    %4013 = vmatpush.bf16.msra.mxu0 %v2792
    %4014 = vmatpush.bf16.msra.mxu0 %v2784
    %4015 = vmatpush.bf16.msra.mxu0 %v2776
    %4016 = vmatmul.bf16.gmra.mxu0 %v446
    %v4017 = vpop.f32.mrf.mxu0
    %v4018 = vadd.f32 %v4005, %v4017
    %v4019 = vpop.f32.mrf.mxu0
    %4020 = vdwg.mxu0
    %4021 = vmatpush.bf16.msra.mxu0 %v2896
    %4022 = vmatpush.bf16.msra.mxu0 %v2888
    %4023 = vmatpush.bf16.msra.mxu0 %v2880
    %4024 = vmatpush.bf16.msra.mxu0 %v2872
    %4025 = vmatpush.bf16.msra.mxu0 %v2864
    %4026 = vmatpush.bf16.msra.mxu0 %v2856
    %4027 = vmatpush.bf16.msra.mxu0 %v2848
    %4028 = vmatpush.bf16.msra.mxu0 %v2840
    %4029 = vmatmul.bf16.gmra.mxu0 %v447
    %v4030 = vpop.f32.mrf.mxu0
    %v4031 = vadd.f32 %v4018, %v4030
    %v4032 = vpop.f32.mrf.mxu0
    %4033 = vdwg.mxu0
    %4034 = vmatpush.bf16.msra.mxu0 %v2960
    %4035 = vmatpush.bf16.msra.mxu0 %v2952
    %4036 = vmatpush.bf16.msra.mxu0 %v2944
    %4037 = vmatpush.bf16.msra.mxu0 %v2936
    %4038 = vmatpush.bf16.msra.mxu0 %v2928
    %4039 = vmatpush.bf16.msra.mxu0 %v2920
    %4040 = vmatpush.bf16.msra.mxu0 %v2912
    %4041 = vmatpush.bf16.msra.mxu0 %v2904
    %4042 = vmatmul.bf16.gmra.mxu0 %v448
    %v4043 = vpop.f32.mrf.mxu0
    %v4044 = vadd.f32 %v4031, %v4043
    %v4045 = vpop.f32.mrf.mxu0
    %4046 = vdwg.mxu0
    %4047 = vmatpush.bf16.msra.mxu0 %v3024
    %4048 = vmatpush.bf16.msra.mxu0 %v3016
    %4049 = vmatpush.bf16.msra.mxu0 %v3008
    %4050 = vmatpush.bf16.msra.mxu0 %v3000
    %4051 = vmatpush.bf16.msra.mxu0 %v2992
    %4052 = vmatpush.bf16.msra.mxu0 %v2984
    %4053 = vmatpush.bf16.msra.mxu0 %v2976
    %4054 = vmatpush.bf16.msra.mxu0 %v2968
    %4055 = vmatmul.bf16.gmra.mxu0 %v449
    %v4056 = vpop.f32.mrf.mxu0
    %v4057 = vadd.f32 %v4044, %v4056
    %v4058 = vpop.f32.mrf.mxu0
    %4059 = vdwg.mxu0
    %4060 = vmatpush.bf16.msra.mxu0 %v2577
    %4061 = vmatpush.bf16.msra.mxu0 %v2569
    %4062 = vmatpush.bf16.msra.mxu0 %v2561
    %4063 = vmatpush.bf16.msra.mxu0 %v2553
    %4064 = vmatpush.bf16.msra.mxu0 %v2545
    %4065 = vmatpush.bf16.msra.mxu0 %v2537
    %4066 = vmatpush.bf16.msra.mxu0 %v2529
    %4067 = vmatpush.bf16.msra.mxu0 %v2521
    %4068 = vmatmul.bf16.gmra.mxu0 %v442
    %v4069 = vpop.f32.mrf.mxu0
    %v4070 = vadd.f32 %v969, %v4069
    %v4071 = vpop.f32.mrf.mxu0
    %4072 = vdwg.mxu0
    %4073 = vmatpush.bf16.msra.mxu0 %v2641
    %4074 = vmatpush.bf16.msra.mxu0 %v2633
    %4075 = vmatpush.bf16.msra.mxu0 %v2625
    %4076 = vmatpush.bf16.msra.mxu0 %v2617
    %4077 = vmatpush.bf16.msra.mxu0 %v2609
    %4078 = vmatpush.bf16.msra.mxu0 %v2601
    %4079 = vmatpush.bf16.msra.mxu0 %v2593
    %4080 = vmatpush.bf16.msra.mxu0 %v2585
    %4081 = vmatmul.bf16.gmra.mxu0 %v443
    %v4082 = vpop.f32.mrf.mxu0
    %v4083 = vadd.f32 %v4070, %v4082
    %v4084 = vpop.f32.mrf.mxu0
    %4085 = vdwg.mxu0
    %4086 = vmatpush.bf16.msra.mxu0 %v2705
    %4087 = vmatpush.bf16.msra.mxu0 %v2697
    %4088 = vmatpush.bf16.msra.mxu0 %v2689
    %4089 = vmatpush.bf16.msra.mxu0 %v2681
    %4090 = vmatpush.bf16.msra.mxu0 %v2673
    %4091 = vmatpush.bf16.msra.mxu0 %v2665
    %4092 = vmatpush.bf16.msra.mxu0 %v2657
    %4093 = vmatpush.bf16.msra.mxu0 %v2649
    %4094 = vmatmul.bf16.gmra.mxu0 %v444
    %v4095 = vpop.f32.mrf.mxu0
    %v4096 = vadd.f32 %v4083, %v4095
    %v4097 = vpop.f32.mrf.mxu0
    %4098 = vdwg.mxu0
    %4099 = vmatpush.bf16.msra.mxu0 %v2769
    %4100 = vmatpush.bf16.msra.mxu0 %v2761
    %4101 = vmatpush.bf16.msra.mxu0 %v2753
    %4102 = vmatpush.bf16.msra.mxu0 %v2745
    %4103 = vmatpush.bf16.msra.mxu0 %v2737
    %4104 = vmatpush.bf16.msra.mxu0 %v2729
    %4105 = vmatpush.bf16.msra.mxu0 %v2721
    %4106 = vmatpush.bf16.msra.mxu0 %v2713
    %4107 = vmatmul.bf16.gmra.mxu0 %v445
    %v4108 = vpop.f32.mrf.mxu0
    %v4109 = vadd.f32 %v4096, %v4108
    %v4110 = vpop.f32.mrf.mxu0
    %4111 = vdwg.mxu0
    %4112 = vmatpush.bf16.msra.mxu0 %v2833
    %4113 = vmatpush.bf16.msra.mxu0 %v2825
    %4114 = vmatpush.bf16.msra.mxu0 %v2817
    %4115 = vmatpush.bf16.msra.mxu0 %v2809
    %4116 = vmatpush.bf16.msra.mxu0 %v2801
    %4117 = vmatpush.bf16.msra.mxu0 %v2793
    %4118 = vmatpush.bf16.msra.mxu0 %v2785
    %4119 = vmatpush.bf16.msra.mxu0 %v2777
    %4120 = vmatmul.bf16.gmra.mxu0 %v446
    %v4121 = vpop.f32.mrf.mxu0
    %v4122 = vadd.f32 %v4109, %v4121
    %v4123 = vpop.f32.mrf.mxu0
    %4124 = vdwg.mxu0
    %4125 = vmatpush.bf16.msra.mxu0 %v2897
    %4126 = vmatpush.bf16.msra.mxu0 %v2889
    %4127 = vmatpush.bf16.msra.mxu0 %v2881
    %4128 = vmatpush.bf16.msra.mxu0 %v2873
    %4129 = vmatpush.bf16.msra.mxu0 %v2865
    %4130 = vmatpush.bf16.msra.mxu0 %v2857
    %4131 = vmatpush.bf16.msra.mxu0 %v2849
    %4132 = vmatpush.bf16.msra.mxu0 %v2841
    %4133 = vmatmul.bf16.gmra.mxu0 %v447
    %v4134 = vpop.f32.mrf.mxu0
    %v4135 = vadd.f32 %v4122, %v4134
    %v4136 = vpop.f32.mrf.mxu0
    %4137 = vdwg.mxu0
    %4138 = vmatpush.bf16.msra.mxu0 %v2961
    %4139 = vmatpush.bf16.msra.mxu0 %v2953
    %4140 = vmatpush.bf16.msra.mxu0 %v2945
    %4141 = vmatpush.bf16.msra.mxu0 %v2937
    %4142 = vmatpush.bf16.msra.mxu0 %v2929
    %4143 = vmatpush.bf16.msra.mxu0 %v2921
    %4144 = vmatpush.bf16.msra.mxu0 %v2913
    %4145 = vmatpush.bf16.msra.mxu0 %v2905
    %4146 = vmatmul.bf16.gmra.mxu0 %v448
    %v4147 = vpop.f32.mrf.mxu0
    %v4148 = vadd.f32 %v4135, %v4147
    %v4149 = vpop.f32.mrf.mxu0
    %4150 = vdwg.mxu0
    %4151 = vmatpush.bf16.msra.mxu0 %v3025
    %4152 = vmatpush.bf16.msra.mxu0 %v3017
    %4153 = vmatpush.bf16.msra.mxu0 %v3009
    %4154 = vmatpush.bf16.msra.mxu0 %v3001
    %4155 = vmatpush.bf16.msra.mxu0 %v2993
    %4156 = vmatpush.bf16.msra.mxu0 %v2985
    %4157 = vmatpush.bf16.msra.mxu0 %v2977
    %4158 = vmatpush.bf16.msra.mxu0 %v2969
    %4159 = vmatmul.bf16.gmra.mxu0 %v449
    %v4160 = vpop.f32.mrf.mxu0
    %v4161 = vadd.f32 %v4148, %v4160
    %v4162 = vpop.f32.mrf.mxu0
    %4163 = vdwg.mxu0
    %4164 = vmatpush.bf16.msra.mxu0 %v2578
    %4165 = vmatpush.bf16.msra.mxu0 %v2570
    %4166 = vmatpush.bf16.msra.mxu0 %v2562
    %4167 = vmatpush.bf16.msra.mxu0 %v2554
    %4168 = vmatpush.bf16.msra.mxu0 %v2546
    %4169 = vmatpush.bf16.msra.mxu0 %v2538
    %4170 = vmatpush.bf16.msra.mxu0 %v2530
    %4171 = vmatpush.bf16.msra.mxu0 %v2522
    %4172 = vmatmul.bf16.gmra.mxu0 %v442
    %v4173 = vpop.f32.mrf.mxu0
    %v4174 = vadd.f32 %v970, %v4173
    %v4175 = vpop.f32.mrf.mxu0
    %4176 = vdwg.mxu0
    %4177 = vmatpush.bf16.msra.mxu0 %v2642
    %4178 = vmatpush.bf16.msra.mxu0 %v2634
    %4179 = vmatpush.bf16.msra.mxu0 %v2626
    %4180 = vmatpush.bf16.msra.mxu0 %v2618
    %4181 = vmatpush.bf16.msra.mxu0 %v2610
    %4182 = vmatpush.bf16.msra.mxu0 %v2602
    %4183 = vmatpush.bf16.msra.mxu0 %v2594
    %4184 = vmatpush.bf16.msra.mxu0 %v2586
    %4185 = vmatmul.bf16.gmra.mxu0 %v443
    %v4186 = vpop.f32.mrf.mxu0
    %v4187 = vadd.f32 %v4174, %v4186
    %v4188 = vpop.f32.mrf.mxu0
    %4189 = vdwg.mxu0
    %4190 = vmatpush.bf16.msra.mxu0 %v2706
    %4191 = vmatpush.bf16.msra.mxu0 %v2698
    %4192 = vmatpush.bf16.msra.mxu0 %v2690
    %4193 = vmatpush.bf16.msra.mxu0 %v2682
    %4194 = vmatpush.bf16.msra.mxu0 %v2674
    %4195 = vmatpush.bf16.msra.mxu0 %v2666
    %4196 = vmatpush.bf16.msra.mxu0 %v2658
    %4197 = vmatpush.bf16.msra.mxu0 %v2650
    %4198 = vmatmul.bf16.gmra.mxu0 %v444
    %v4199 = vpop.f32.mrf.mxu0
    %v4200 = vadd.f32 %v4187, %v4199
    %v4201 = vpop.f32.mrf.mxu0
    %4202 = vdwg.mxu0
    %4203 = vmatpush.bf16.msra.mxu0 %v2770
    %4204 = vmatpush.bf16.msra.mxu0 %v2762
    %4205 = vmatpush.bf16.msra.mxu0 %v2754
    %4206 = vmatpush.bf16.msra.mxu0 %v2746
    %4207 = vmatpush.bf16.msra.mxu0 %v2738
    %4208 = vmatpush.bf16.msra.mxu0 %v2730
    %4209 = vmatpush.bf16.msra.mxu0 %v2722
    %4210 = vmatpush.bf16.msra.mxu0 %v2714
    %4211 = vmatmul.bf16.gmra.mxu0 %v445
    %v4212 = vpop.f32.mrf.mxu0
    %v4213 = vadd.f32 %v4200, %v4212
    %v4214 = vpop.f32.mrf.mxu0
    %4215 = vdwg.mxu0
    %4216 = vmatpush.bf16.msra.mxu0 %v2834
    %4217 = vmatpush.bf16.msra.mxu0 %v2826
    %4218 = vmatpush.bf16.msra.mxu0 %v2818
    %4219 = vmatpush.bf16.msra.mxu0 %v2810
    %4220 = vmatpush.bf16.msra.mxu0 %v2802
    %4221 = vmatpush.bf16.msra.mxu0 %v2794
    %4222 = vmatpush.bf16.msra.mxu0 %v2786
    %4223 = vmatpush.bf16.msra.mxu0 %v2778
    %4224 = vmatmul.bf16.gmra.mxu0 %v446
    %v4225 = vpop.f32.mrf.mxu0
    %v4226 = vadd.f32 %v4213, %v4225
    %v4227 = vpop.f32.mrf.mxu0
    %4228 = vdwg.mxu0
    %4229 = vmatpush.bf16.msra.mxu0 %v2898
    %4230 = vmatpush.bf16.msra.mxu0 %v2890
    %4231 = vmatpush.bf16.msra.mxu0 %v2882
    %4232 = vmatpush.bf16.msra.mxu0 %v2874
    %4233 = vmatpush.bf16.msra.mxu0 %v2866
    %4234 = vmatpush.bf16.msra.mxu0 %v2858
    %4235 = vmatpush.bf16.msra.mxu0 %v2850
    %4236 = vmatpush.bf16.msra.mxu0 %v2842
    %4237 = vmatmul.bf16.gmra.mxu0 %v447
    %v4238 = vpop.f32.mrf.mxu0
    %v4239 = vadd.f32 %v4226, %v4238
    %v4240 = vpop.f32.mrf.mxu0
    %4241 = vdwg.mxu0
    %4242 = vmatpush.bf16.msra.mxu0 %v2962
    %4243 = vmatpush.bf16.msra.mxu0 %v2954
    %4244 = vmatpush.bf16.msra.mxu0 %v2946
    %4245 = vmatpush.bf16.msra.mxu0 %v2938
    %4246 = vmatpush.bf16.msra.mxu0 %v2930
    %4247 = vmatpush.bf16.msra.mxu0 %v2922
    %4248 = vmatpush.bf16.msra.mxu0 %v2914
    %4249 = vmatpush.bf16.msra.mxu0 %v2906
    %4250 = vmatmul.bf16.gmra.mxu0 %v448
    %v4251 = vpop.f32.mrf.mxu0
    %v4252 = vadd.f32 %v4239, %v4251
    %v4253 = vpop.f32.mrf.mxu0
    %4254 = vdwg.mxu0
    %4255 = vmatpush.bf16.msra.mxu0 %v3026
    %4256 = vmatpush.bf16.msra.mxu0 %v3018
    %4257 = vmatpush.bf16.msra.mxu0 %v3010
    %4258 = vmatpush.bf16.msra.mxu0 %v3002
    %4259 = vmatpush.bf16.msra.mxu0 %v2994
    %4260 = vmatpush.bf16.msra.mxu0 %v2986
    %4261 = vmatpush.bf16.msra.mxu0 %v2978
    %4262 = vmatpush.bf16.msra.mxu0 %v2970
    %4263 = vmatmul.bf16.gmra.mxu0 %v449
    %v4264 = vpop.f32.mrf.mxu0
    %v4265 = vadd.f32 %v4252, %v4264
    %v4266 = vpop.f32.mrf.mxu0
    %4267 = vdwg.mxu0
    %4268 = vmatpush.bf16.msra.mxu0 %v2579
    %4269 = vmatpush.bf16.msra.mxu0 %v2571
    %4270 = vmatpush.bf16.msra.mxu0 %v2563
    %4271 = vmatpush.bf16.msra.mxu0 %v2555
    %4272 = vmatpush.bf16.msra.mxu0 %v2547
    %4273 = vmatpush.bf16.msra.mxu0 %v2539
    %4274 = vmatpush.bf16.msra.mxu0 %v2531
    %4275 = vmatpush.bf16.msra.mxu0 %v2523
    %4276 = vmatmul.bf16.gmra.mxu0 %v442
    %v4277 = vpop.f32.mrf.mxu0
    %v4278 = vadd.f32 %v971, %v4277
    %v4279 = vpop.f32.mrf.mxu0
    %4280 = vdwg.mxu0
    %4281 = vmatpush.bf16.msra.mxu0 %v2643
    %4282 = vmatpush.bf16.msra.mxu0 %v2635
    %4283 = vmatpush.bf16.msra.mxu0 %v2627
    %4284 = vmatpush.bf16.msra.mxu0 %v2619
    %4285 = vmatpush.bf16.msra.mxu0 %v2611
    %4286 = vmatpush.bf16.msra.mxu0 %v2603
    %4287 = vmatpush.bf16.msra.mxu0 %v2595
    %4288 = vmatpush.bf16.msra.mxu0 %v2587
    %4289 = vmatmul.bf16.gmra.mxu0 %v443
    %v4290 = vpop.f32.mrf.mxu0
    %v4291 = vadd.f32 %v4278, %v4290
    %v4292 = vpop.f32.mrf.mxu0
    %4293 = vdwg.mxu0
    %4294 = vmatpush.bf16.msra.mxu0 %v2707
    %4295 = vmatpush.bf16.msra.mxu0 %v2699
    %4296 = vmatpush.bf16.msra.mxu0 %v2691
    %4297 = vmatpush.bf16.msra.mxu0 %v2683
    %4298 = vmatpush.bf16.msra.mxu0 %v2675
    %4299 = vmatpush.bf16.msra.mxu0 %v2667
    %4300 = vmatpush.bf16.msra.mxu0 %v2659
    %4301 = vmatpush.bf16.msra.mxu0 %v2651
    %4302 = vmatmul.bf16.gmra.mxu0 %v444
    %v4303 = vpop.f32.mrf.mxu0
    %v4304 = vadd.f32 %v4291, %v4303
    %v4305 = vpop.f32.mrf.mxu0
    %4306 = vdwg.mxu0
    %4307 = vmatpush.bf16.msra.mxu0 %v2771
    %4308 = vmatpush.bf16.msra.mxu0 %v2763
    %4309 = vmatpush.bf16.msra.mxu0 %v2755
    %4310 = vmatpush.bf16.msra.mxu0 %v2747
    %4311 = vmatpush.bf16.msra.mxu0 %v2739
    %4312 = vmatpush.bf16.msra.mxu0 %v2731
    %4313 = vmatpush.bf16.msra.mxu0 %v2723
    %4314 = vmatpush.bf16.msra.mxu0 %v2715
    %4315 = vmatmul.bf16.gmra.mxu0 %v445
    %v4316 = vpop.f32.mrf.mxu0
    %v4317 = vadd.f32 %v4304, %v4316
    %v4318 = vpop.f32.mrf.mxu0
    %4319 = vdwg.mxu0
    %4320 = vmatpush.bf16.msra.mxu0 %v2835
    %4321 = vmatpush.bf16.msra.mxu0 %v2827
    %4322 = vmatpush.bf16.msra.mxu0 %v2819
    %4323 = vmatpush.bf16.msra.mxu0 %v2811
    %4324 = vmatpush.bf16.msra.mxu0 %v2803
    %4325 = vmatpush.bf16.msra.mxu0 %v2795
    %4326 = vmatpush.bf16.msra.mxu0 %v2787
    %4327 = vmatpush.bf16.msra.mxu0 %v2779
    %4328 = vmatmul.bf16.gmra.mxu0 %v446
    %v4329 = vpop.f32.mrf.mxu0
    %v4330 = vadd.f32 %v4317, %v4329
    %v4331 = vpop.f32.mrf.mxu0
    %4332 = vdwg.mxu0
    %4333 = vmatpush.bf16.msra.mxu0 %v2899
    %4334 = vmatpush.bf16.msra.mxu0 %v2891
    %4335 = vmatpush.bf16.msra.mxu0 %v2883
    %4336 = vmatpush.bf16.msra.mxu0 %v2875
    %4337 = vmatpush.bf16.msra.mxu0 %v2867
    %4338 = vmatpush.bf16.msra.mxu0 %v2859
    %4339 = vmatpush.bf16.msra.mxu0 %v2851
    %4340 = vmatpush.bf16.msra.mxu0 %v2843
    %4341 = vmatmul.bf16.gmra.mxu0 %v447
    %v4342 = vpop.f32.mrf.mxu0
    %v4343 = vadd.f32 %v4330, %v4342
    %v4344 = vpop.f32.mrf.mxu0
    %4345 = vdwg.mxu0
    %4346 = vmatpush.bf16.msra.mxu0 %v2963
    %4347 = vmatpush.bf16.msra.mxu0 %v2955
    %4348 = vmatpush.bf16.msra.mxu0 %v2947
    %4349 = vmatpush.bf16.msra.mxu0 %v2939
    %4350 = vmatpush.bf16.msra.mxu0 %v2931
    %4351 = vmatpush.bf16.msra.mxu0 %v2923
    %4352 = vmatpush.bf16.msra.mxu0 %v2915
    %4353 = vmatpush.bf16.msra.mxu0 %v2907
    %4354 = vmatmul.bf16.gmra.mxu0 %v448
    %v4355 = vpop.f32.mrf.mxu0
    %v4356 = vadd.f32 %v4343, %v4355
    %v4357 = vpop.f32.mrf.mxu0
    %4358 = vdwg.mxu0
    %4359 = vmatpush.bf16.msra.mxu0 %v3027
    %4360 = vmatpush.bf16.msra.mxu0 %v3019
    %4361 = vmatpush.bf16.msra.mxu0 %v3011
    %4362 = vmatpush.bf16.msra.mxu0 %v3003
    %4363 = vmatpush.bf16.msra.mxu0 %v2995
    %4364 = vmatpush.bf16.msra.mxu0 %v2987
    %4365 = vmatpush.bf16.msra.mxu0 %v2979
    %4366 = vmatpush.bf16.msra.mxu0 %v2971
    %4367 = vmatmul.bf16.gmra.mxu0 %v449
    %v4368 = vpop.f32.mrf.mxu0
    %v4369 = vadd.f32 %v4356, %v4368
    %v4370 = vpop.f32.mrf.mxu0
    %4371 = vdwg.mxu0
    %v4372 = vpack.c.bf16 %v3745, %v3641
    %v4373 = vpack.c.bf16 %v3953, %v3849
    %v4374 = vpack.c.bf16 %v4161, %v4057
    %v4375 = vpack.c.bf16 %v4369, %v4265
    %4376 = vst [vmem:[#allocation11] sm:$0xff] %v4372
    %4377 = vst [vmem:[#allocation11 + $0x8] sm:$0xff] %v4373
    %4378 = vst [vmem:[#allocation11 + $0x10] sm:$0xff] %v4374
    %4379 = vst [vmem:[#allocation11 + $0x18] sm:$0xff] %v4375
    %v4380 = vrot.slane %v3641, 4
    %v4381 = vadd.f32 %v3641, %v4380
    %v4382 = vrot.slane %v4381, 2
    %v4383 = vadd.f32 %v4381, %v4382
    %v4384 = vrot.slane %v4383, 1
    %v4385 = vadd.f32 %v4383, %v4384
    %v4386 = vrot.slane %v3745, 4
    %v4387 = vadd.f32 %v3745, %v4386
    %v4388 = vrot.slane %v4387, 2
    %v4389 = vadd.f32 %v4387, %v4388
    %v4390 = vrot.slane %v4389, 1
    %v4391 = vadd.f32 %v4389, %v4390
    %v4392 = vrot.slane %v3849, 4
    %v4393 = vadd.f32 %v3849, %v4392
    %v4394 = vrot.slane %v4393, 2
    %v4395 = vadd.f32 %v4393, %v4394
    %v4396 = vrot.slane %v4395, 1
    %v4397 = vadd.f32 %v4395, %v4396
    %v4398 = vrot.slane %v3953, 4
    %v4399 = vadd.f32 %v3953, %v4398
    %v4400 = vrot.slane %v4399, 2
    %v4401 = vadd.f32 %v4399, %v4400
    %v4402 = vrot.slane %v4401, 1
    %v4403 = vadd.f32 %v4401, %v4402
    %v4404 = vrot.slane %v4057, 4
    %v4405 = vadd.f32 %v4057, %v4404
    %v4406 = vrot.slane %v4405, 2
    %v4407 = vadd.f32 %v4405, %v4406
    %v4408 = vrot.slane %v4407, 1
    %v4409 = vadd.f32 %v4407, %v4408
    %v4410 = vrot.slane %v4161, 4
    %v4411 = vadd.f32 %v4161, %v4410
    %v4412 = vrot.slane %v4411, 2
    %v4413 = vadd.f32 %v4411, %v4412
    %v4414 = vrot.slane %v4413, 1
    %v4415 = vadd.f32 %v4413, %v4414
    %v4416 = vrot.slane %v4265, 4
    %v4417 = vadd.f32 %v4265, %v4416
    %v4418 = vrot.slane %v4417, 2
    %v4419 = vadd.f32 %v4417, %v4418
    %v4420 = vrot.slane %v4419, 1
    %v4421 = vadd.f32 %v4419, %v4420
    %v4422 = vrot.slane %v4369, 4
    %v4423 = vadd.f32 %v4369, %v4422
    %v4424 = vrot.slane %v4423, 2
    %v4425 = vadd.f32 %v4423, %v4424
    %v4426 = vrot.slane %v4425, 1
    %v4427 = vadd.f32 %v4425, %v4426
    %v4428 = vmul.f32 %v4385, 0.125
    %v4429 = vmul.f32 %v4391, 0.125
    %v4430 = vmul.f32 %v4397, 0.125
    %v4431 = vmul.f32 %v4403, 0.125
    %v4432 = vmul.f32 %v4409, 0.125
    %v4433 = vmul.f32 %v4415, 0.125
    %v4434 = vmul.f32 %v4421, 0.125
    %v4435 = vmul.f32 %v4427, 0.125
    %v4436 = vsub.f32 %v3641, %v4428
    %v4437 = vsub.f32 %v3745, %v4429
    %v4438 = vsub.f32 %v3849, %v4430
    %v4439 = vsub.f32 %v3953, %v4431
    %v4440 = vsub.f32 %v4057, %v4432
    %v4441 = vsub.f32 %v4161, %v4433
    %v4442 = vsub.f32 %v4265, %v4434
    %v4443 = vsub.f32 %v4369, %v4435
    %v4452 = vrot.slane %v4391, 7
    %v4453 = vrot.slane %v4397, 6
    %v4454 = vrot.slane %v4403, 5
    %v4455 = vrot.slane %v4409, 4
    %v4456 = vrot.slane %v4415, 3
    %v4457 = vrot.slane %v4421, 2
    %v4458 = vrot.slane %v4427, 1
    %vm4459 = vcmask 1040384
    %v4460 = vsel %vm4459, %v4385, %v4452
    %vm4461 = vcmask 1042434
    %v4462 = vsel %vm4461, %v4453, %v4454
    %vm4463 = vcmask 1041408
    %v4464 = vsel %vm4463, %v4460, %v4462
    %vm4465 = vcmask 1044484
    %v4466 = vsel %vm4465, %v4455, %v4456
    %vm4467 = vcmask 1046534
    %v4468 = vsel %vm4467, %v4457, %v4458
    %vm4469 = vcmask 1045508
    %v4470 = vsel %vm4469, %v4466, %v4468
    %vm4471 = vcmask 1043456
    %v4472 = vsel %vm4471, %v4464, %v4470
    %4474 = vst [vmem:[#allocation12] sm:$0xff] %v4472
    %v4475 = vmul.f32 %v4436, %v4436
    %v4476 = vmul.f32 %v4437, %v4437
    %v4477 = vmul.f32 %v4438, %v4438
    %v4478 = vmul.f32 %v4439, %v4439
    %v4479 = vmul.f32 %v4440, %v4440
    %v4480 = vmul.f32 %v4441, %v4441
    %v4481 = vmul.f32 %v4442, %v4442
    %v4482 = vmul.f32 %v4443, %v4443
    %v4483 = vrot.slane %v4475, 4
    %v4484 = vadd.f32 %v4475, %v4483
    %v4485 = vrot.slane %v4484, 2
    %v4486 = vadd.f32 %v4484, %v4485
    %v4487 = vrot.slane %v4486, 1
    %v4488 = vadd.f32 %v4486, %v4487
    %v4489 = vrot.slane %v4476, 4
    %v4490 = vadd.f32 %v4476, %v4489
    %v4491 = vrot.slane %v4490, 2
    %v4492 = vadd.f32 %v4490, %v4491
    %v4493 = vrot.slane %v4492, 1
    %v4494 = vadd.f32 %v4492, %v4493
    %v4495 = vrot.slane %v4477, 4
    %v4496 = vadd.f32 %v4477, %v4495
    %v4497 = vrot.slane %v4496, 2
    %v4498 = vadd.f32 %v4496, %v4497
    %v4499 = vrot.slane %v4498, 1
    %v4500 = vadd.f32 %v4498, %v4499
    %v4501 = vrot.slane %v4478, 4
    %v4502 = vadd.f32 %v4478, %v4501
    %v4503 = vrot.slane %v4502, 2
    %v4504 = vadd.f32 %v4502, %v4503
    %v4505 = vrot.slane %v4504, 1
    %v4506 = vadd.f32 %v4504, %v4505
    %v4507 = vrot.slane %v4479, 4
    %v4508 = vadd.f32 %v4479, %v4507
    %v4509 = vrot.slane %v4508, 2
    %v4510 = vadd.f32 %v4508, %v4509
    %v4511 = vrot.slane %v4510, 1
    %v4512 = vadd.f32 %v4510, %v4511
    %v4513 = vrot.slane %v4480, 4
    %v4514 = vadd.f32 %v4480, %v4513
    %v4515 = vrot.slane %v4514, 2
    %v4516 = vadd.f32 %v4514, %v4515
    %v4517 = vrot.slane %v4516, 1
    %v4518 = vadd.f32 %v4516, %v4517
    %v4519 = vrot.slane %v4481, 4
    %v4520 = vadd.f32 %v4481, %v4519
    %v4521 = vrot.slane %v4520, 2
    %v4522 = vadd.f32 %v4520, %v4521
    %v4523 = vrot.slane %v4522, 1
    %v4524 = vadd.f32 %v4522, %v4523
    %v4525 = vrot.slane %v4482, 4
    %v4526 = vadd.f32 %v4482, %v4525
    %v4527 = vrot.slane %v4526, 2
    %v4528 = vadd.f32 %v4526, %v4527
    %v4529 = vrot.slane %v4528, 1
    %v4530 = vadd.f32 %v4528, %v4529
    %v4539 = vrot.slane %v4494, 7
    %v4540 = vrot.slane %v4500, 6
    %v4541 = vrot.slane %v4506, 5
    %v4542 = vrot.slane %v4512, 4
    %v4543 = vrot.slane %v4518, 3
    %v4544 = vrot.slane %v4524, 2
    %v4545 = vrot.slane %v4530, 1
    %v4546 = vsel %vm4459, %v4488, %v4539
    %v4547 = vsel %vm4461, %v4540, %v4541
    %v4548 = vsel %vm4463, %v4546, %v4547
    %v4549 = vsel %vm4465, %v4542, %v4543
    %v4550 = vsel %vm4467, %v4544, %v4545
    %v4551 = vsel %vm4469, %v4549, %v4550
    %v4552 = vsel %vm4471, %v4548, %v4551
    %4554 = vst [vmem:[#allocation14] sm:$0xff] %v4552
    // Predicated region
    $region42: #{tpu_custom_call.1} parent=1 // pred_check
      _
    $region43: #{tpu_custom_call.1} parent=1 // pred_check_branch
      %4556 = sbr.rel (0) target = $region45
    $region44: #{tpu_custom_call.1} parent=1 // pred_region
      %4558 = vsyncadd [#allocation4], 0
      %s4560 = sshll.u32 [#allocation11], 4
      %s4561 = int_to_ptr.vmem [resolvable:$true] %s4560
      %s4562 = sshll.u32 %s5, 4
      %s4563 = int_to_ptr.hbm [resolvable:$true] %s4562
      %4565 = dma.vmem_to_hbm [thread:$0]  %s4561, 512, %s4563, [#allocation4]
    $region45: #{tpu_custom_call.1} parent=1 // pred_fallthru
      _
    // Predicated region
    $region46: #{tpu_custom_call.1} parent=1 // pred_check
      _
    $region47: #{tpu_custom_call.1} parent=1 // pred_check_branch
      %4567 = sbr.rel (0) target = $region49
    $region48: #{tpu_custom_call.1} parent=1 // pred_region
      %4569 = vsyncadd [#allocation13], 0
      %s4571 = sshll.u32 [#allocation12], 4
      %s4572 = int_to_ptr.vmem [resolvable:$true] %s4571
      %s4573 = sshll.u32 %s6, 4
      %s4574 = int_to_ptr.hbm [resolvable:$true] %s4573
      %4576 = dma.vmem_to_hbm [thread:$0]  %s4572, 128, %s4574, [#allocation13]
    $region49: #{tpu_custom_call.1} parent=1 // pred_fallthru
      _
    // Predicated region
    $region50: #{tpu_custom_call.1} parent=1 // pred_check
      _
    $region51: #{tpu_custom_call.1} parent=1 // pred_check_branch
      %4578 = sbr.rel (0) target = $region53
    $region52: #{tpu_custom_call.1} parent=1 // pred_region
      %4580 = vsyncadd [#allocation13], 0
      %s4582 = sshll.u32 [#allocation14], 4
      %s4583 = int_to_ptr.vmem [resolvable:$true] %s4582
      %s4584 = sshll.u32 %s7, 4
      %s4585 = int_to_ptr.hbm [resolvable:$true] %s4584
      %4587 = dma.vmem_to_hbm [thread:$0]  %s4583, 128, %s4585, [#allocation13]
    $region53: #{tpu_custom_call.1} parent=1 // pred_fallthru
      _
    // Predicated region
    $region54: #{tpu_custom_call.1} parent=1 // pred_check
      _
    $region55: #{tpu_custom_call.1} parent=1 // pred_check_branch
      %4589 = sbr.rel (0) target = $region57
    $region56: #{tpu_custom_call.1} parent=1 // pred_region
      %4591 = dma.done [#allocation4], 512
    $region57: #{tpu_custom_call.1} parent=1 // pred_fallthru
      _
    // Predicated region
    $region58: #{tpu_custom_call.1} parent=1 // pred_check
      _
    $region59: #{tpu_custom_call.1} parent=1 // pred_check_branch
      %4593 = sbr.rel (0) target = $region61
    $region60: #{tpu_custom_call.1} parent=1 // pred_region
      %4595 = dma.done [#allocation13], 128
    $region61: #{tpu_custom_call.1} parent=1 // pred_fallthru
      _
    // Predicated region
    $region62: #{tpu_custom_call.1} parent=1 // pred_check
      _
    $region63: #{tpu_custom_call.1} parent=1 // pred_check_branch
      %4597 = sbr.rel (0) target = $region65
    $region64: #{tpu_custom_call.1} parent=1 // pred_region
      %4599 = dma.done [#allocation13], 128
    $region65: #{tpu_custom_call.1} parent=1 // pred_fallthru
      _
    %4600 = vsyncpa [#allocation3], 1
    %4601 = vsyncpa [#allocation6], 1
    %4602 = vsyncpa [#allocation9], 1
    %4603 = vsyncpa [#allocation4], 1
    %4604 = vsyncpa [#allocation13], 1

// kernel: tpu_custom_call.1
$region0: #{tpu_custom_call.1}
  #allocation0 [shape = 'u32[]', space=smem, size = 0x4, offset = 0x4, fixed_abs, tag = 'smem constant byte address 0x4 - core index']
  #allocation1 [shape = 'u32[72,128]{1,0:T(1,128)}', space=vmem, size = 0x9000, scoped, tag = 'internal scratch']
  %s0 = inlined_call_operand.hbm [shape: f32[8,64], index: 0, kind: input, shape index: {}]
  %s1 = inlined_call_operand.hbm [shape: bf16[64,1024], index: 1, kind: input, shape index: {}]
  %s2 = inlined_call_operand.hbm [shape: f32[1,1024], index: 2, kind: input, shape index: {}]
  %s3 = inlined_call_operand.hbm [shape: bf16[1024,1024], index: 3, kind: input, shape index: {}]
  %s4 = inlined_call_operand.hbm [shape: f32[1,1024], index: 4, kind: input, shape index: {}]
  %s5 = inlined_call_operand.hbm [shape: bf16[8,1024], index: 5, kind: output, shape index: {0}]
  %s6 = inlined_call_operand.hbm [shape: f32[1,1,1024], index: 6, kind: output, shape index: {1}]
  %s7 = inlined_call_operand.hbm [shape: f32[1,1,1024], index: 7, kind: output, shape index: {2}]
  %8 = xla_tuple %s5, %s6, %s7
  %s9 = sld [smem:[#allocation0]]
  $region66: #{tpu_custom_call.1} parent=0
    _
  %s11 = ssub.s32 1, %s9
  %s12 = scalar_select 0, %s11, %s9
  $region1: #{tpu_custom_call.1} parent=0
    #allocation2 [shape = 'u8[4096]{0}', space=vmem, size = 0x1000, scoped, tag = 'input window, operand 0, single buffered']
    #allocation3 [shape = 's32[1]{0}', space=sflag, size = 0x4, scoped, tag = 'scoped memory for tpu_custom_call.1']
    #allocation4 [shape = 's32[1]{0}', space=sflag, size = 0x4, scoped, tag = 'scoped memory for tpu_custom_call.1']
    #allocation5 [shape = 'u8[131072]{0}', space=vmem, size = 0x20000, scoped, tag = 'input window, operand 1, single buffered']
    #allocation6 [shape = 's32[1]{0}', space=sflag, size = 0x4, scoped, tag = 'scoped memory for tpu_custom_call.1']
    #allocation7 [shape = 'u8[4096]{0}', space=vmem, size = 0x1000, scoped, tag = 'input window, operand 2, single buffered']
    #allocation8 [shape = 'u8[2097152]{0}', space=vmem, size = 0x200000, scoped, tag = 'input window, operand 3, single buffered']
    #allocation9 [shape = 's32[1]{0}', space=sflag, size = 0x4, scoped, tag = 'scoped memory for tpu_custom_call.1']
    #allocation10 [shape = 'u8[4096]{0}', space=vmem, size = 0x1000, scoped, tag = 'input window, operand 4, single buffered']
    #allocation11 [shape = 'u8[16384]{0}', space=vmem, size = 0x4000, scoped, tag = 'output window, operand 0, single buffered']
    #allocation12 [shape = 'u8[4096]{0}', space=vmem, size = 0x1000, scoped, tag = 'output window, operand 1, single buffered']
    #allocation13 [shape = 's32[1]{0}', space=sflag, size = 0x4, scoped, tag = 'scoped memory for tpu_custom_call.1']
    #allocation14 [shape = 'u8[4096]{0}', space=vmem, size = 0x1000, scoped, tag = 'output window, operand 2, single buffered']
    %13 = vsyncpa [#allocation3], 0
    %14 = vsyncpa [#allocation6], 0
    %15 = vsyncpa [#allocation9], 0
    %16 = vsyncpa [#allocation4], 0
    %17 = vsyncpa [#allocation13], 0
    // Predicated region
    $region2: #{tpu_custom_call.1} parent=1 // pred_check
      _
    $region3: #{tpu_custom_call.1} parent=1 // pred_check_branch
      %19 = sbr.rel (0) target = $region5
    $region4: #{tpu_custom_call.1} parent=1 // pred_region
      %21 = vsyncadd [#allocation3], 0
      %s23 = sshll.u32 %s0, 4
      %s24 = int_to_ptr.hbm [resolvable:$true] %s23
      %s25 = sshll.u32 [#allocation2], 4
      %s26 = int_to_ptr.vmem [resolvable:$true] %s25
      %28 = dma.hbm_to_vmem [thread:$0]  %s24, 128, %s26, [#allocation3]
    $region5: #{tpu_custom_call.1} parent=1 // pred_fallthru
      _
    // Predicated region
    $region6: #{tpu_custom_call.1} parent=1 // pred_check
      _
    $region7: #{tpu_custom_call.1} parent=1 // pred_check_branch
      %30 = sbr.rel (0) target = $region9
    $region8: #{tpu_custom_call.1} parent=1 // pred_region
      %32 = vsyncadd [#allocation6], 0
      %s33 = sshll.u32 %s1, 4
      %s34 = int_to_ptr.hbm [resolvable:$true] %s33
      %s35 = sshll.u32 [#allocation5], 4
      %s36 = int_to_ptr.vmem [resolvable:$true] %s35
      %41 = dma.hbm_to_vmem [thread:$0]  %s34, 4096, %s36, [#allocation6], 512, 512, 32
    $region9: #{tpu_custom_call.1} parent=1 // pred_fallthru
      _
    // Predicated region
    $region10: #{tpu_custom_call.1} parent=1 // pred_check
      _
    $region11: #{tpu_custom_call.1} parent=1 // pred_check_branch
      %43 = sbr.rel (0) target = $region13
    $region12: #{tpu_custom_call.1} parent=1 // pred_region
      %45 = vsyncadd [#allocation6], 0
      %s47 = sshll.u32 %s2, 4
      %s48 = int_to_ptr.hbm [resolvable:$true] %s47
      %s49 = sshll.u32 [#allocation7], 4
      %s50 = int_to_ptr.vmem [resolvable:$true] %s49
      %52 = dma.hbm_to_vmem [thread:$0]  %s48, 128, %s50, [#allocation6]
    $region13: #{tpu_custom_call.1} parent=1 // pred_fallthru
      _
    // Predicated region
    $region14: #{tpu_custom_call.1} parent=1 // pred_check
      _
    $region15: #{tpu_custom_call.1} parent=1 // pred_check_branch
      %54 = sbr.rel (0) target = $region17
    $region16: #{tpu_custom_call.1} parent=1 // pred_region
      %56 = vsyncadd [#allocation9], 0
      %s57 = sshll.u32 %s3, 4
      %s58 = int_to_ptr.hbm [resolvable:$true] %s57
      %s59 = sshll.u32 [#allocation8], 4
      %s60 = int_to_ptr.vmem [resolvable:$true] %s59
      %65 = dma.hbm_to_vmem [thread:$0]  %s58, 65536, %s60, [#allocation9], 512, 512, 32
    $region17: #{tpu_custom_call.1} parent=1 // pred_fallthru
      _
    // Predicated region
    $region18: #{tpu_custom_call.1} parent=1 // pred_check
      _
    $region19: #{tpu_custom_call.1} parent=1 // pred_check_branch
      %67 = sbr.rel (0) target = $region21
    $region20: #{tpu_custom_call.1} parent=1 // pred_region
      %69 = vsyncadd [#allocation9], 0
      %s71 = sshll.u32 %s4, 4
      %s72 = int_to_ptr.hbm [resolvable:$true] %s71
      %s73 = sshll.u32 [#allocation10], 4
      %s74 = int_to_ptr.vmem [resolvable:$true] %s73
      %76 = dma.hbm_to_vmem [thread:$0]  %s72, 128, %s74, [#allocation9]
    $region21: #{tpu_custom_call.1} parent=1 // pred_fallthru
      _
    // Predicated region
    $region22: #{tpu_custom_call.1} parent=1 // pred_check
      _
    $region23: #{tpu_custom_call.1} parent=1 // pred_check_branch
      %78 = sbr.rel (0) target = $region25
    $region24: #{tpu_custom_call.1} parent=1 // pred_region
      %80 = dma.done [#allocation3], 128
    $region25: #{tpu_custom_call.1} parent=1 // pred_fallthru
      _
    // Predicated region
    $region26: #{tpu_custom_call.1} parent=1 // pred_check
      _
    $region27: #{tpu_custom_call.1} parent=1 // pred_check_branch
      %82 = sbr.rel (0) target = $region29
    $region28: #{tpu_custom_call.1} parent=1 // pred_region
      %84 = dma.done [#allocation6], 4096
    $region29: #{tpu_custom_call.1} parent=1 // pred_fallthru
      _
    // Predicated region
    $region30: #{tpu_custom_call.1} parent=1 // pred_check
      _
    $region31: #{tpu_custom_call.1} parent=1 // pred_check_branch
      %86 = sbr.rel (0) target = $region33
    $region32: #{tpu_custom_call.1} parent=1 // pred_region
      %88 = dma.done [#allocation6], 128
    $region33: #{tpu_custom_call.1} parent=1 // pred_fallthru
      _
    // Predicated region
    $region34: #{tpu_custom_call.1} parent=1 // pred_check
      _
    $region35: #{tpu_custom_call.1} parent=1 // pred_check_branch
      %90 = sbr.rel (0) target = $region37
    $region36: #{tpu_custom_call.1} parent=1 // pred_region
      %92 = dma.done [#allocation9], 65536
    $region37: #{tpu_custom_call.1} parent=1 // pred_fallthru
      _
    // Predicated region
    $region38: #{tpu_custom_call.1} parent=1 // pred_check
      _
    $region39: #{tpu_custom_call.1} parent=1 // pred_check_branch
      %94 = sbr.rel (0) target = $region41
    $region40: #{tpu_custom_call.1} parent=1 // pred_region
      %96 = dma.done [#allocation9], 128
    $region41: #{tpu_custom_call.1} parent=1 // pred_fallthru
      _
    %v98 = vld [vmem:[#allocation2] sm:$0xff]
    %v99 = vpack.c.bf16 %v98, %v98
    %v100 = vld [vmem:[#allocation5] sm:$0xff]
    %v101 = vld [vmem:[#allocation5 + $0x8] sm:$0xff]
    %v102 = vld [vmem:[#allocation5 + $0x10] sm:$0xff]
    %v103 = vld [vmem:[#allocation5 + $0x18] sm:$0xff]
    %v104 = vld [vmem:[#allocation5 + $0x20] sm:$0xff]
    %v105 = vld [vmem:[#allocation5 + $0x28] sm:$0xff]
    %v106 = vld [vmem:[#allocation5 + $0x30] sm:$0xff]
    %v107 = vld [vmem:[#allocation5 + $0x38] sm:$0xff]
    %v108 = vld [vmem:[#allocation5 + $0x40] sm:$0xff]
    %v109 = vld [vmem:[#allocation5 + $0x48] sm:$0xff]
    %v110 = vld [vmem:[#allocation5 + $0x50] sm:$0xff]
    %v111 = vld [vmem:[#allocation5 + $0x58] sm:$0xff]
    %v112 = vld [vmem:[#allocation5 + $0x60] sm:$0xff]
    %v113 = vld [vmem:[#allocation5 + $0x68] sm:$0xff]
    %v114 = vld [vmem:[#allocation5 + $0x70] sm:$0xff]
    %v115 = vld [vmem:[#allocation5 + $0x78] sm:$0xff]
    %v116 = vld [vmem:[#allocation5 + $0x80] sm:$0xff]
    %v117 = vld [vmem:[#allocation5 + $0x88] sm:$0xff]
    %v118 = vld [vmem:[#allocation5 + $0x90] sm:$0xff]
    %v119 = vld [vmem:[#allocation5 + $0x98] sm:$0xff]
    %v120 = vld [vmem:[#allocation5 + $0xa0] sm:$0xff]
    %v121 = vld [vmem:[#allocation5 + $0xa8] sm:$0xff]
    %v122 = vld [vmem:[#allocation5 + $0xb0] sm:$0xff]
    %v123 = vld [vmem:[#allocation5 + $0xb8] sm:$0xff]
    %v124 = vld [vmem:[#allocation5 + $0xc0] sm:$0xff]
    %v125 = vld [vmem:[#allocation5 + $0xc8] sm:$0xff]
    %v126 = vld [vmem:[#allocation5 + $0xd0] sm:$0xff]
    %v127 = vld [vmem:[#allocation5 + $0xd8] sm:$0xff]
    %v128 = vld [vmem:[#allocation5 + $0xe0] sm:$0xff]
    %v129 = vld [vmem:[#allocation5 + $0xe8] sm:$0xff]
    %v130 = vld [vmem:[#allocation5 + $0xf0] sm:$0xff]
    %v131 = vld [vmem:[#allocation5 + $0xf8] sm:$0xff]
    %v132 = vld [vmem:[#allocation7] sm:$0xff]
    %v134 = vperm.slane %v132, 0
    %v135 = vperm.slane %v132, 1
    %v136 = vperm.slane %v132, 2
    %v137 = vperm.slane %v132, 3
    %v138 = vperm.slane %v132, 4
    %v139 = vperm.slane %v132, 5
    %v140 = vperm.slane %v132, 6
    %v141 = vperm.slane %v132, 7
    %v182 = vunpack.c.l.b16 %v100
    %v183 = vunpack.c.h.b16 %v100
    %v184 = vunpack.c.l.b16 %v101
    %v185 = vunpack.c.h.b16 %v101
    %v186 = vunpack.c.l.b16 %v102
    %v187 = vunpack.c.h.b16 %v102
    %v188 = vunpack.c.l.b16 %v103
    %v189 = vunpack.c.h.b16 %v103
    %v190 = vunpack.c.l.b16 %v104
    %v191 = vunpack.c.h.b16 %v104
    %v192 = vunpack.c.l.b16 %v105
    %v193 = vunpack.c.h.b16 %v105
    %v194 = vunpack.c.l.b16 %v106
    %v195 = vunpack.c.h.b16 %v106
    %v196 = vunpack.c.l.b16 %v107
    %v197 = vunpack.c.h.b16 %v107
    %v198 = vunpack.c.l.b16 %v108
    %v199 = vunpack.c.h.b16 %v108
    %v200 = vunpack.c.l.b16 %v109
    %v201 = vunpack.c.h.b16 %v109
    %v202 = vunpack.c.l.b16 %v110
    %v203 = vunpack.c.h.b16 %v110
    %v204 = vunpack.c.l.b16 %v111
    %v205 = vunpack.c.h.b16 %v111
    %v206 = vunpack.c.l.b16 %v112
    %v207 = vunpack.c.h.b16 %v112
    %v208 = vunpack.c.l.b16 %v113
    %v209 = vunpack.c.h.b16 %v113
    %v210 = vunpack.c.l.b16 %v114
    %v211 = vunpack.c.h.b16 %v114
    %v212 = vunpack.c.l.b16 %v115
    %v213 = vunpack.c.h.b16 %v115
    %v214 = vunpack.c.l.b16 %v116
    %v215 = vunpack.c.h.b16 %v116
    %v216 = vunpack.c.l.b16 %v117
    %v217 = vunpack.c.h.b16 %v117
    %v218 = vunpack.c.l.b16 %v118
    %v219 = vunpack.c.h.b16 %v118
    %v220 = vunpack.c.l.b16 %v119
    %v221 = vunpack.c.h.b16 %v119
    %v222 = vunpack.c.l.b16 %v120
    %v223 = vunpack.c.h.b16 %v120
    %v224 = vunpack.c.l.b16 %v121
    %v225 = vunpack.c.h.b16 %v121
    %v226 = vunpack.c.l.b16 %v122
    %v227 = vunpack.c.h.b16 %v122
    %v228 = vunpack.c.l.b16 %v123
    %v229 = vunpack.c.h.b16 %v123
    %v230 = vunpack.c.l.b16 %v124
    %v231 = vunpack.c.h.b16 %v124
    %v232 = vunpack.c.l.b16 %v125
    %v233 = vunpack.c.h.b16 %v125
    %v234 = vunpack.c.l.b16 %v126
    %v235 = vunpack.c.h.b16 %v126
    %v236 = vunpack.c.l.b16 %v127
    %v237 = vunpack.c.h.b16 %v127
    %v238 = vunpack.c.l.b16 %v128
    %v239 = vunpack.c.h.b16 %v128
    %v240 = vunpack.c.l.b16 %v129
    %v241 = vunpack.c.h.b16 %v129
    %v242 = vunpack.c.l.b16 %v130
    %v243 = vunpack.c.h.b16 %v130
    %v244 = vunpack.c.l.b16 %v131
    %v245 = vunpack.c.h.b16 %v131
    %v246 = vpack.c.b16 %v190, %v182
    %v247 = vpack.c.b16 %v191, %v183
    %v248 = vpack.c.b16 %v192, %v184
    %v249 = vpack.c.b16 %v193, %v185
    %v250 = vpack.c.b16 %v194, %v186
    %v251 = vpack.c.b16 %v195, %v187
    %v252 = vpack.c.b16 %v196, %v188
    %v253 = vpack.c.b16 %v197, %v189
    %v254 = vpack.c.b16 %v206, %v198
    %v255 = vpack.c.b16 %v207, %v199
    %v256 = vpack.c.b16 %v208, %v200
    %v257 = vpack.c.b16 %v209, %v201
    %v258 = vpack.c.b16 %v210, %v202
    %v259 = vpack.c.b16 %v211, %v203
    %v260 = vpack.c.b16 %v212, %v204
    %v261 = vpack.c.b16 %v213, %v205
    %v262 = vpack.c.b16 %v222, %v214
    %v263 = vpack.c.b16 %v223, %v215
    %v264 = vpack.c.b16 %v224, %v216
    %v265 = vpack.c.b16 %v225, %v217
    %v266 = vpack.c.b16 %v226, %v218
    %v267 = vpack.c.b16 %v227, %v219
    %v268 = vpack.c.b16 %v228, %v220
    %v269 = vpack.c.b16 %v229, %v221
    %v270 = vpack.c.b16 %v238, %v230
    %v271 = vpack.c.b16 %v239, %v231
    %v272 = vpack.c.b16 %v240, %v232
    %v273 = vpack.c.b16 %v241, %v233
    %v274 = vpack.c.b16 %v242, %v234
    %v275 = vpack.c.b16 %v243, %v235
    %v276 = vpack.c.b16 %v244, %v236
    %v277 = vpack.c.b16 %v245, %v237
    %vm310 = vcmask 523264
    %v312 = vsel %vm310, %v99, 0
    %314 = vmatpush.bf16.msra.mxu0 0
    %315 = vmatpush.bf16.msra.mxu0 0
    %316 = vmatpush.bf16.msra.mxu0 0
    %317 = vmatpush.bf16.msra.mxu0 0
    %318 = vmatpush.bf16.msra.mxu0 %v270
    %319 = vmatpush.bf16.msra.mxu0 %v262
    %320 = vmatpush.bf16.msra.mxu0 %v254
    %321 = vmatpush.bf16.msra.mxu0 %v246
    %322 = vmatmul.bf16.gmra.mxu0 %v312
    %v323 = vpop.f32.mrf.mxu0
    %v324 = vadd.f32 %v134, %v323
    %v325 = vpop.f32.mrf.mxu0
    %326 = vdwg.mxu0
    %327 = vmatpush.bf16.msra.mxu0 0
    %328 = vmatpush.bf16.msra.mxu0 0
    %329 = vmatpush.bf16.msra.mxu0 0
    %330 = vmatpush.bf16.msra.mxu0 0
    %331 = vmatpush.bf16.msra.mxu0 %v271
    %332 = vmatpush.bf16.msra.mxu0 %v263
    %333 = vmatpush.bf16.msra.mxu0 %v255
    %334 = vmatpush.bf16.msra.mxu0 %v247
    %335 = vmatmul.bf16.gmra.mxu0 %v312
    %v336 = vpop.f32.mrf.mxu0
    %v337 = vadd.f32 %v135, %v336
    %v338 = vpop.f32.mrf.mxu0
    %339 = vdwg.mxu0
    %340 = vmatpush.bf16.msra.mxu0 0
    %341 = vmatpush.bf16.msra.mxu0 0
    %342 = vmatpush.bf16.msra.mxu0 0
    %343 = vmatpush.bf16.msra.mxu0 0
    %344 = vmatpush.bf16.msra.mxu0 %v272
    %345 = vmatpush.bf16.msra.mxu0 %v264
    %346 = vmatpush.bf16.msra.mxu0 %v256
    %347 = vmatpush.bf16.msra.mxu0 %v248
    %348 = vmatmul.bf16.gmra.mxu0 %v312
    %v349 = vpop.f32.mrf.mxu0
    %v350 = vadd.f32 %v136, %v349
    %v351 = vpop.f32.mrf.mxu0
    %352 = vdwg.mxu0
    %353 = vmatpush.bf16.msra.mxu0 0
    %354 = vmatpush.bf16.msra.mxu0 0
    %355 = vmatpush.bf16.msra.mxu0 0
    %356 = vmatpush.bf16.msra.mxu0 0
    %357 = vmatpush.bf16.msra.mxu0 %v273
    %358 = vmatpush.bf16.msra.mxu0 %v265
    %359 = vmatpush.bf16.msra.mxu0 %v257
    %360 = vmatpush.bf16.msra.mxu0 %v249
    %361 = vmatmul.bf16.gmra.mxu0 %v312
    %v362 = vpop.f32.mrf.mxu0
    %v363 = vadd.f32 %v137, %v362
    %v364 = vpop.f32.mrf.mxu0
    %365 = vdwg.mxu0
    %366 = vmatpush.bf16.msra.mxu0 0
    %367 = vmatpush.bf16.msra.mxu0 0
    %368 = vmatpush.bf16.msra.mxu0 0
    %369 = vmatpush.bf16.msra.mxu0 0
    %370 = vmatpush.bf16.msra.mxu0 %v274
    %371 = vmatpush.bf16.msra.mxu0 %v266
    %372 = vmatpush.bf16.msra.mxu0 %v258
    %373 = vmatpush.bf16.msra.mxu0 %v250
    %374 = vmatmul.bf16.gmra.mxu0 %v312
    %v375 = vpop.f32.mrf.mxu0
    %v376 = vadd.f32 %v138, %v375
    %v377 = vpop.f32.mrf.mxu0
    %378 = vdwg.mxu0
    %379 = vmatpush.bf16.msra.mxu0 0
    %380 = vmatpush.bf16.msra.mxu0 0
    %381 = vmatpush.bf16.msra.mxu0 0
    %382 = vmatpush.bf16.msra.mxu0 0
    %383 = vmatpush.bf16.msra.mxu0 %v275
    %384 = vmatpush.bf16.msra.mxu0 %v267
    %385 = vmatpush.bf16.msra.mxu0 %v259
    %386 = vmatpush.bf16.msra.mxu0 %v251
    %387 = vmatmul.bf16.gmra.mxu0 %v312
    %v388 = vpop.f32.mrf.mxu0
    %v389 = vadd.f32 %v139, %v388
    %v390 = vpop.f32.mrf.mxu0
    %391 = vdwg.mxu0
    %392 = vmatpush.bf16.msra.mxu0 0
    %393 = vmatpush.bf16.msra.mxu0 0
    %394 = vmatpush.bf16.msra.mxu0 0
    %395 = vmatpush.bf16.msra.mxu0 0
    %396 = vmatpush.bf16.msra.mxu0 %v276
    %397 = vmatpush.bf16.msra.mxu0 %v268
    %398 = vmatpush.bf16.msra.mxu0 %v260
    %399 = vmatpush.bf16.msra.mxu0 %v252
    %400 = vmatmul.bf16.gmra.mxu0 %v312
    %v401 = vpop.f32.mrf.mxu0
    %v402 = vadd.f32 %v140, %v401
    %v403 = vpop.f32.mrf.mxu0
    %404 = vdwg.mxu0
    %405 = vmatpush.bf16.msra.mxu0 0
    %406 = vmatpush.bf16.msra.mxu0 0
    %407 = vmatpush.bf16.msra.mxu0 0
    %408 = vmatpush.bf16.msra.mxu0 0
    %409 = vmatpush.bf16.msra.mxu0 %v277
    %410 = vmatpush.bf16.msra.mxu0 %v269
    %411 = vmatpush.bf16.msra.mxu0 %v261
    %412 = vmatpush.bf16.msra.mxu0 %v253
    %413 = vmatmul.bf16.gmra.mxu0 %v312
    %v414 = vpop.f32.mrf.mxu0
    %v415 = vadd.f32 %v141, %v414
    %v416 = vpop.f32.mrf.mxu0
    %417 = vdwg.mxu0
    %vm418 = vcmp.gt.f32.partialorder %v324, 0.0
    %vm419 = vcmp.gt.f32.partialorder %v337, 0.0
    %vm420 = vcmp.gt.f32.partialorder %v350, 0.0
    %vm421 = vcmp.gt.f32.partialorder %v363, 0.0
    %vm422 = vcmp.gt.f32.partialorder %v376, 0.0
    %vm423 = vcmp.gt.f32.partialorder %v389, 0.0
    %vm424 = vcmp.gt.f32.partialorder %v402, 0.0
    %vm425 = vcmp.gt.f32.partialorder %v415, 0.0
    %v426 = vmul.f32 %v324, 0.2
    %v427 = vmul.f32 %v337, 0.2
    %v428 = vmul.f32 %v350, 0.2
    %v429 = vmul.f32 %v363, 0.2
    %v430 = vmul.f32 %v376, 0.2
    %v431 = vmul.f32 %v389, 0.2
    %v432 = vmul.f32 %v402, 0.2
    %v433 = vmul.f32 %v415, 0.2
    %v434 = vsel %vm418, %v324, %v426
    %v435 = vsel %vm419, %v337, %v427
    %v436 = vsel %vm420, %v350, %v428
    %v437 = vsel %vm421, %v363, %v429
    %v438 = vsel %vm422, %v376, %v430
    %v439 = vsel %vm423, %v389, %v431
    %v440 = vsel %vm424, %v402, %v432
    %v441 = vsel %vm425, %v415, %v433
    %v442 = vpack.c.bf16 %v434, %v434
    %v443 = vpack.c.bf16 %v435, %v435
    %v444 = vpack.c.bf16 %v436, %v436
    %v445 = vpack.c.bf16 %v437, %v437
    %v446 = vpack.c.bf16 %v438, %v438
    %v447 = vpack.c.bf16 %v439, %v439
    %v448 = vpack.c.bf16 %v440, %v440
    %v449 = vpack.c.bf16 %v441, %v441
    %v450 = vld [vmem:[#allocation8] sm:$0xff]
    %v451 = vld [vmem:[#allocation8 + $0x8] sm:$0xff]
    %v452 = vld [vmem:[#allocation8 + $0x10] sm:$0xff]
    %v453 = vld [vmem:[#allocation8 + $0x18] sm:$0xff]
    %v454 = vld [vmem:[#allocation8 + $0x20] sm:$0xff]
    %v455 = vld [vmem:[#allocation8 + $0x28] sm:$0xff]
    %v456 = vld [vmem:[#allocation8 + $0x30] sm:$0xff]
    %v457 = vld [vmem:[#allocation8 + $0x38] sm:$0xff]
    %v458 = vld [vmem:[#allocation8 + $0x40] sm:$0xff]
    %v459 = vld [vmem:[#allocation8 + $0x48] sm:$0xff]
    %v460 = vld [vmem:[#allocation8 + $0x50] sm:$0xff]
    %v461 = vld [vmem:[#allocation8 + $0x58] sm:$0xff]
    %v462 = vld [vmem:[#allocation8 + $0x60] sm:$0xff]
    %v463 = vld [vmem:[#allocation8 + $0x68] sm:$0xff]
    %v464 = vld [vmem:[#allocation8 + $0x70] sm:$0xff]
    %v465 = vld [vmem:[#allocation8 + $0x78] sm:$0xff]
    %v466 = vld [vmem:[#allocation8 + $0x80] sm:$0xff]
    %v467 = vld [vmem:[#allocation8 + $0x88] sm:$0xff]
    %v468 = vld [vmem:[#allocation8 + $0x90] sm:$0xff]
    %v469 = vld [vmem:[#allocation8 + $0x98] sm:$0xff]
    %v470 = vld [vmem:[#allocation8 + $0xa0] sm:$0xff]
    %v471 = vld [vmem:[#allocation8 + $0xa8] sm:$0xff]
    %v472 = vld [vmem:[#allocation8 + $0xb0] sm:$0xff]
    %v473 = vld [vmem:[#allocation8 + $0xb8] sm:$0xff]
    %v474 = vld [vmem:[#allocation8 + $0xc0] sm:$0xff]
    %v475 = vld [vmem:[#allocation8 + $0xc8] sm:$0xff]
    %v476 = vld [vmem:[#allocation8 + $0xd0] sm:$0xff]
    %v477 = vld [vmem:[#allocation8 + $0xd8] sm:$0xff]
    %v478 = vld [vmem:[#allocation8 + $0xe0] sm:$0xff]
    %v479 = vld [vmem:[#allocation8 + $0xe8] sm:$0xff]
    %v480 = vld [vmem:[#allocation8 + $0xf0] sm:$0xff]
    %v481 = vld [vmem:[#allocation8 + $0xf8] sm:$0xff]
    %v482 = vld [vmem:[#allocation8 + $0x100] sm:$0xff]
    %v483 = vld [vmem:[#allocation8 + $0x108] sm:$0xff]
    %v484 = vld [vmem:[#allocation8 + $0x110] sm:$0xff]
    %v485 = vld [vmem:[#allocation8 + $0x118] sm:$0xff]
    %v486 = vld [vmem:[#allocation8 + $0x120] sm:$0xff]
    %v487 = vld [vmem:[#allocation8 + $0x128] sm:$0xff]
    %v488 = vld [vmem:[#allocation8 + $0x130] sm:$0xff]
    %v489 = vld [vmem:[#allocation8 + $0x138] sm:$0xff]
    %v490 = vld [vmem:[#allocation8 + $0x140] sm:$0xff]
    %v491 = vld [vmem:[#allocation8 + $0x148] sm:$0xff]
    %v492 = vld [vmem:[#allocation8 + $0x150] sm:$0xff]
    %v493 = vld [vmem:[#allocation8 + $0x158] sm:$0xff]
    %v494 = vld [vmem:[#allocation8 + $0x160] sm:$0xff]
    %v495 = vld [vmem:[#allocation8 + $0x168] sm:$0xff]
    %v496 = vld [vmem:[#allocation8 + $0x170] sm:$0xff]
    %v497 = vld [vmem:[#allocation8 + $0x178] sm:$0xff]
    %v498 = vld [vmem:[#allocation8 + $0x180] sm:$0xff]
    %v499 = vld [vmem:[#allocation8 + $0x188] sm:$0xff]
    %v500 = vld [vmem:[#allocation8 + $0x190] sm:$0xff]
    %v501 = vld [vmem:[#allocation8 + $0x198] sm:$0xff]
    %v502 = vld [vmem:[#allocation8 + $0x1a0] sm:$0xff]
    %v503 = vld [vmem:[#allocation8 + $0x1a8] sm:$0xff]
    %v504 = vld [vmem:[#allocation8 + $0x1b0] sm:$0xff]
    %v505 = vld [vmem:[#allocation8 + $0x1b8] sm:$0xff]
    %v506 = vld [vmem:[#allocation8 + $0x1c0] sm:$0xff]
    %v507 = vld [vmem:[#allocation8 + $0x1c8] sm:$0xff]
    %v508 = vld [vmem:[#allocation8 + $0x1d0] sm:$0xff]
    %v509 = vld [vmem:[#allocation8 + $0x1d8] sm:$0xff]
    %v510 = vld [vmem:[#allocation8 + $0x1e0] sm:$0xff]
    %v511 = vld [vmem:[#allocation8 + $0x1e8] sm:$0xff]
    %v512 = vld [vmem:[#allocation8 + $0x1f0] sm:$0xff]
    %v513 = vld [vmem:[#allocation8 + $0x1f8] sm:$0xff]
    %v514 = vld [vmem:[#allocation8 + $0x200] sm:$0xff]
    %v515 = vld [vmem:[#allocation8 + $0x208] sm:$0xff]
    %v516 = vld [vmem:[#allocation8 + $0x210] sm:$0xff]
    %v517 = vld [vmem:[#allocation8 + $0x218] sm:$0xff]
    %v518 = vld [vmem:[#allocation8 + $0x220] sm:$0xff]
    %v519 = vld [vmem:[#allocation8 + $0x228] sm:$0xff]
    %v520 = vld [vmem:[#allocation8 + $0x230] sm:$0xff]
    %v521 = vld [vmem:[#allocation8 + $0x238] sm:$0xff]
    %v522 = vld [vmem:[#allocation8 + $0x240] sm:$0xff]
    %v523 = vld [vmem:[#allocation8 + $0x248] sm:$0xff]
    %v524 = vld [vmem:[#allocation8 + $0x250] sm:$0xff]
    %v525 = vld [vmem:[#allocation8 + $0x258] sm:$0xff]
    %v526 = vld [vmem:[#allocation8 + $0x260] sm:$0xff]
    %v527 = vld [vmem:[#allocation8 + $0x268] sm:$0xff]
    %v528 = vld [vmem:[#allocation8 + $0x270] sm:$0xff]
    %v529 = vld [vmem:[#allocation8 + $0x278] sm:$0xff]
    %v530 = vld [vmem:[#allocation8 + $0x280] sm:$0xff]
    %v531 = vld [vmem:[#allocation8 + $0x288] sm:$0xff]
    %v532 = vld [vmem:[#allocation8 + $0x290] sm:$0xff]
    %v533 = vld [vmem:[#allocation8 + $0x298] sm:$0xff]
    %v534 = vld [vmem:[#allocation8 + $0x2a0] sm:$0xff]
    %v535 = vld [vmem:[#allocation8 + $0x2a8] sm:$0xff]
    %v536 = vld [vmem:[#allocation8 + $0x2b0] sm:$0xff]
    %v537 = vld [vmem:[#allocation8 + $0x2b8] sm:$0xff]
    %v538 = vld [vmem:[#allocation8 + $0x2c0] sm:$0xff]
    %v539 = vld [vmem:[#allocation8 + $0x2c8] sm:$0xff]
    %v540 = vld [vmem:[#allocation8 + $0x2d0] sm:$0xff]
    %v541 = vld [vmem:[#allocation8 + $0x2d8] sm:$0xff]
    %v542 = vld [vmem:[#allocation8 + $0x2e0] sm:$0xff]
    %v543 = vld [vmem:[#allocation8 + $0x2e8] sm:$0xff]
    %v544 = vld [vmem:[#allocation8 + $0x2f0] sm:$0xff]
    %v545 = vld [vmem:[#allocation8 + $0x2f8] sm:$0xff]
    %v546 = vld [vmem:[#allocation8 + $0x300] sm:$0xff]
    %v547 = vld [vmem:[#allocation8 + $0x308] sm:$0xff]
    %v548 = vld [vmem:[#allocation8 + $0x310] sm:$0xff]
    %v549 = vld [vmem:[#allocation8 + $0x318] sm:$0xff]
    %v550 = vld [vmem:[#allocation8 + $0x320] sm:$0xff]
    %v551 = vld [vmem:[#allocation8 + $0x328] sm:$0xff]
    %v552 = vld [vmem:[#allocation8 + $0x330] sm:$0xff]
    %v553 = vld [vmem:[#allocation8 + $0x338] sm:$0xff]
    %v554 = vld [vmem:[#allocation8 + $0x340] sm:$0xff]
    %v555 = vld [vmem:[#allocation8 + $0x348] sm:$0xff]
    %v556 = vld [vmem:[#allocation8 + $0x350] sm:$0xff]
    %v557 = vld [vmem:[#allocation8 + $0x358] sm:$0xff]
    %v558 = vld [vmem:[#allocation8 + $0x360] sm:$0xff]
    %v559 = vld [vmem:[#allocation8 + $0x368] sm:$0xff]
    %v560 = vld [vmem:[#allocation8 + $0x370] sm:$0xff]
    %v561 = vld [vmem:[#allocation8 + $0x378] sm:$0xff]
    %v562 = vld [vmem:[#allocation8 + $0x380] sm:$0xff]
    %v563 = vld [vmem:[#allocation8 + $0x388] sm:$0xff]
    %v564 = vld [vmem:[#allocation8 + $0x390] sm:$0xff]
    %v565 = vld [vmem:[#allocation8 + $0x398] sm:$0xff]
    %v566 = vld [vmem:[#allocation8 + $0x3a0] sm:$0xff]
    %v567 = vld [vmem:[#allocation8 + $0x3a8] sm:$0xff]
    %v568 = vld [vmem:[#allocation8 + $0x3b0] sm:$0xff]
    %v569 = vld [vmem:[#allocation8 + $0x3b8] sm:$0xff]
    %v570 = vld [vmem:[#allocation8 + $0x3c0] sm:$0xff]
    %v571 = vld [vmem:[#allocation8 + $0x3c8] sm:$0xff]
    %v572 = vld [vmem:[#allocation8 + $0x3d0] sm:$0xff]
    %v573 = vld [vmem:[#allocation8 + $0x3d8] sm:$0xff]
    %v574 = vld [vmem:[#allocation8 + $0x3e0] sm:$0xff]
    %v575 = vld [vmem:[#allocation8 + $0x3e8] sm:$0xff]
    %v576 = vld [vmem:[#allocation8 + $0x3f0] sm:$0xff]
    %v577 = vld [vmem:[#allocation8 + $0x3f8] sm:$0xff]
    %v578 = vld [vmem:[#allocation8 + $0x400] sm:$0xff]
    %v579 = vld [vmem:[#allocation8 + $0x408] sm:$0xff]
    %v580 = vld [vmem:[#allocation8 + $0x410] sm:$0xff]
    %v581 = vld [vmem:[#allocation8 + $0x418] sm:$0xff]
    %v582 = vld [vmem:[#allocation8 + $0x420] sm:$0xff]
    %v583 = vld [vmem:[#allocation8 + $0x428] sm:$0xff]
    %v584 = vld [vmem:[#allocation8 + $0x430] sm:$0xff]
    %v585 = vld [vmem:[#allocation8 + $0x438] sm:$0xff]
    %v586 = vld [vmem:[#allocation8 + $0x440] sm:$0xff]
    %v587 = vld [vmem:[#allocation8 + $0x448] sm:$0xff]
    %v588 = vld [vmem:[#allocation8 + $0x450] sm:$0xff]
    %v589 = vld [vmem:[#allocation8 + $0x458] sm:$0xff]
    %v590 = vld [vmem:[#allocation8 + $0x460] sm:$0xff]
    %v591 = vld [vmem:[#allocation8 + $0x468] sm:$0xff]
    %v592 = vld [vmem:[#allocation8 + $0x470] sm:$0xff]
    %v593 = vld [vmem:[#allocation8 + $0x478] sm:$0xff]
    %v594 = vld [vmem:[#allocation8 + $0x480] sm:$0xff]
    %v595 = vld [vmem:[#allocation8 + $0x488] sm:$0xff]
    %v596 = vld [vmem:[#allocation8 + $0x490] sm:$0xff]
    %v597 = vld [vmem:[#allocation8 + $0x498] sm:$0xff]
    %v598 = vld [vmem:[#allocation8 + $0x4a0] sm:$0xff]
    %v599 = vld [vmem:[#allocation8 + $0x4a8] sm:$0xff]
    %v600 = vld [vmem:[#allocation8 + $0x4b0] sm:$0xff]
    %v601 = vld [vmem:[#allocation8 + $0x4b8] sm:$0xff]
    %v602 = vld [vmem:[#allocation8 + $0x4c0] sm:$0xff]
    %v603 = vld [vmem:[#allocation8 + $0x4c8] sm:$0xff]
    %v604 = vld [vmem:[#allocation8 + $0x4d0] sm:$0xff]
    %v605 = vld [vmem:[#allocation8 + $0x4d8] sm:$0xff]
    %v606 = vld [vmem:[#allocation8 + $0x4e0] sm:$0xff]
    %v607 = vld [vmem:[#allocation8 + $0x4e8] sm:$0xff]
    %v608 = vld [vmem:[#allocation8 + $0x4f0] sm:$0xff]
    %v609 = vld [vmem:[#allocation8 + $0x4f8] sm:$0xff]
    %v610 = vld [vmem:[#allocation8 + $0x500] sm:$0xff]
    %v611 = vld [vmem:[#allocation8 + $0x508] sm:$0xff]
    %v612 = vld [vmem:[#allocation8 + $0x510] sm:$0xff]
    %v613 = vld [vmem:[#allocation8 + $0x518] sm:$0xff]
    %v614 = vld [vmem:[#allocation8 + $0x520] sm:$0xff]
    %v615 = vld [vmem:[#allocation8 + $0x528] sm:$0xff]
    %v616 = vld [vmem:[#allocation8 + $0x530] sm:$0xff]
    %v617 = vld [vmem:[#allocation8 + $0x538] sm:$0xff]
    %v618 = vld [vmem:[#allocation8 + $0x540] sm:$0xff]
    %v619 = vld [vmem:[#allocation8 + $0x548] sm:$0xff]
    %v620 = vld [vmem:[#allocation8 + $0x550] sm:$0xff]
    %v621 = vld [vmem:[#allocation8 + $0x558] sm:$0xff]
    %v622 = vld [vmem:[#allocation8 + $0x560] sm:$0xff]
    %v623 = vld [vmem:[#allocation8 + $0x568] sm:$0xff]
    %v624 = vld [vmem:[#allocation8 + $0x570] sm:$0xff]
    %v625 = vld [vmem:[#allocation8 + $0x578] sm:$0xff]
    %v626 = vld [vmem:[#allocation8 + $0x580] sm:$0xff]
    %v627 = vld [vmem:[#allocation8 + $0x588] sm:$0xff]
    %v628 = vld [vmem:[#allocation8 + $0x590] sm:$0xff]
    %v629 = vld [vmem:[#allocation8 + $0x598] sm:$0xff]
    %v630 = vld [vmem:[#allocation8 + $0x5a0] sm:$0xff]
    %v631 = vld [vmem:[#allocation8 + $0x5a8] sm:$0xff]
    %v632 = vld [vmem:[#allocation8 + $0x5b0] sm:$0xff]
    %v633 = vld [vmem:[#allocation8 + $0x5b8] sm:$0xff]
    %v634 = vld [vmem:[#allocation8 + $0x5c0] sm:$0xff]
    %v635 = vld [vmem:[#allocation8 + $0x5c8] sm:$0xff]
    %v636 = vld [vmem:[#allocation8 + $0x5d0] sm:$0xff]
    %v637 = vld [vmem:[#allocation8 + $0x5d8] sm:$0xff]
    %v638 = vld [vmem:[#allocation8 + $0x5e0] sm:$0xff]
    %v639 = vld [vmem:[#allocation8 + $0x5e8] sm:$0xff]
    %v640 = vld [vmem:[#allocation8 + $0x5f0] sm:$0xff]
    %v641 = vld [vmem:[#allocation8 + $0x5f8] sm:$0xff]
    %v642 = vld [vmem:[#allocation8 + $0x600] sm:$0xff]
    %v643 = vld [vmem:[#allocation8 + $0x608] sm:$0xff]
    %v644 = vld [vmem:[#allocation8 + $0x610] sm:$0xff]
    %v645 = vld [vmem:[#allocation8 + $0x618] sm:$0xff]
    %v646 = vld [vmem:[#allocation8 + $0x620] sm:$0xff]
    %v647 = vld [vmem:[#allocation8 + $0x628] sm:$0xff]
    %v648 = vld [vmem:[#allocation8 + $0x630] sm:$0xff]
    %v649 = vld [vmem:[#allocation8 + $0x638] sm:$0xff]
    %v650 = vld [vmem:[#allocation8 + $0x640] sm:$0xff]
    %v651 = vld [vmem:[#allocation8 + $0x648] sm:$0xff]
    %v652 = vld [vmem:[#allocation8 + $0x650] sm:$0xff]
    %v653 = vld [vmem:[#allocation8 + $0x658] sm:$0xff]
    %v654 = vld [vmem:[#allocation8 + $0x660] sm:$0xff]
    %v655 = vld [vmem:[#allocation8 + $0x668] sm:$0xff]
    %v656 = vld [vmem:[#allocation8 + $0x670] sm:$0xff]
    %v657 = vld [vmem:[#allocation8 + $0x678] sm:$0xff]
    %v658 = vld [vmem:[#allocation8 + $0x680] sm:$0xff]
    %v659 = vld [vmem:[#allocation8 + $0x688] sm:$0xff]
    %v660 = vld [vmem:[#allocation8 + $0x690] sm:$0xff]
    %v661 = vld [vmem:[#allocation8 + $0x698] sm:$0xff]
    %v662 = vld [vmem:[#allocation8 + $0x6a0] sm:$0xff]
    %v663 = vld [vmem:[#allocation8 + $0x6a8] sm:$0xff]
    %v664 = vld [vmem:[#allocation8 + $0x6b0] sm:$0xff]
    %v665 = vld [vmem:[#allocation8 + $0x6b8] sm:$0xff]
    %v666 = vld [vmem:[#allocation8 + $0x6c0] sm:$0xff]
    %v667 = vld [vmem:[#allocation8 + $0x6c8] sm:$0xff]
    %v668 = vld [vmem:[#allocation8 + $0x6d0] sm:$0xff]
    %v669 = vld [vmem:[#allocation8 + $0x6d8] sm:$0xff]
    %v670 = vld [vmem:[#allocation8 + $0x6e0] sm:$0xff]
    %v671 = vld [vmem:[#allocation8 + $0x6e8] sm:$0xff]
    %v672 = vld [vmem:[#allocation8 + $0x6f0] sm:$0xff]
    %v673 = vld [vmem:[#allocation8 + $0x6f8] sm:$0xff]
    %v674 = vld [vmem:[#allocation8 + $0x700] sm:$0xff]
    %v675 = vld [vmem:[#allocation8 + $0x708] sm:$0xff]
    %v676 = vld [vmem:[#allocation8 + $0x710] sm:$0xff]
    %v677 = vld [vmem:[#allocation8 + $0x718] sm:$0xff]
    %v678 = vld [vmem:[#allocation8 + $0x720] sm:$0xff]
    %v679 = vld [vmem:[#allocation8 + $0x728] sm:$0xff]
    %v680 = vld [vmem:[#allocation8 + $0x730] sm:$0xff]
    %v681 = vld [vmem:[#allocation8 + $0x738] sm:$0xff]
    %v682 = vld [vmem:[#allocation8 + $0x740] sm:$0xff]
    %v683 = vld [vmem:[#allocation8 + $0x748] sm:$0xff]
    %v684 = vld [vmem:[#allocation8 + $0x750] sm:$0xff]
    %v685 = vld [vmem:[#allocation8 + $0x758] sm:$0xff]
    %v686 = vld [vmem:[#allocation8 + $0x760] sm:$0xff]
    %v687 = vld [vmem:[#allocation8 + $0x768] sm:$0xff]
    %v688 = vld [vmem:[#allocation8 + $0x770] sm:$0xff]
    %v689 = vld [vmem:[#allocation8 + $0x778] sm:$0xff]
    %v690 = vld [vmem:[#allocation8 + $0x780] sm:$0xff]
    %v691 = vld [vmem:[#allocation8 + $0x788] sm:$0xff]
    %v692 = vld [vmem:[#allocation8 + $0x790] sm:$0xff]
    %v693 = vld [vmem:[#allocation8 + $0x798] sm:$0xff]
    %v694 = vld [vmem:[#allocation8 + $0x7a0] sm:$0xff]
    %v695 = vld [vmem:[#allocation8 + $0x7a8] sm:$0xff]
    %v696 = vld [vmem:[#allocation8 + $0x7b0] sm:$0xff]
    %v697 = vld [vmem:[#allocation8 + $0x7b8] sm:$0xff]
    %v698 = vld [vmem:[#allocation8 + $0x7c0] sm:$0xff]
    %v699 = vld [vmem:[#allocation8 + $0x7c8] sm:$0xff]
    %v700 = vld [vmem:[#allocation8 + $0x7d0] sm:$0xff]
    %v701 = vld [vmem:[#allocation8 + $0x7d8] sm:$0xff]
    %v702 = vld [vmem:[#allocation8 + $0x7e0] sm:$0xff]
    %v703 = vld [vmem:[#allocation8 + $0x7e8] sm:$0xff]
    %v704 = vld [vmem:[#allocation8 + $0x7f0] sm:$0xff]
    %v705 = vld [vmem:[#allocation8 + $0x7f8] sm:$0xff]
    %v706 = vld [vmem:[#allocation8 + $0x800] sm:$0xff]
    %v707 = vld [vmem:[#allocation8 + $0x808] sm:$0xff]
    %v708 = vld [vmem:[#allocation8 + $0x810] sm:$0xff]
    %v709 = vld [vmem:[#allocation8 + $0x818] sm:$0xff]
    %v710 = vld [vmem:[#allocation8 + $0x820] sm:$0xff]
    %v711 = vld [vmem:[#allocation8 + $0x828] sm:$0xff]
    %v712 = vld [vmem:[#allocation8 + $0x830] sm:$0xff]
    %v713 = vld [vmem:[#allocation8 + $0x838] sm:$0xff]
    %v714 = vld [vmem:[#allocation8 + $0x840] sm:$0xff]
    %v715 = vld [vmem:[#allocation8 + $0x848] sm:$0xff]
    %v716 = vld [vmem:[#allocation8 + $0x850] sm:$0xff]
    %v717 = vld [vmem:[#allocation8 + $0x858] sm:$0xff]
    %v718 = vld [vmem:[#allocation8 + $0x860] sm:$0xff]
    %v719 = vld [vmem:[#allocation8 + $0x868] sm:$0xff]
    %v720 = vld [vmem:[#allocation8 + $0x870] sm:$0xff]
    %v721 = vld [vmem:[#allocation8 + $0x878] sm:$0xff]
    %v722 = vld [vmem:[#allocation8 + $0x880] sm:$0xff]
    %v723 = vld [vmem:[#allocation8 + $0x888] sm:$0xff]
    %v724 = vld [vmem:[#allocation8 + $0x890] sm:$0xff]
    %v725 = vld [vmem:[#allocation8 + $0x898] sm:$0xff]
    %v726 = vld [vmem:[#allocation8 + $0x8a0] sm:$0xff]
    %v727 = vld [vmem:[#allocation8 + $0x8a8] sm:$0xff]
    %v728 = vld [vmem:[#allocation8 + $0x8b0] sm:$0xff]
    %v729 = vld [vmem:[#allocation8 + $0x8b8] sm:$0xff]
    %v730 = vld [vmem:[#allocation8 + $0x8c0] sm:$0xff]
    %v731 = vld [vmem:[#allocation8 + $0x8c8] sm:$0xff]
    %v732 = vld [vmem:[#allocation8 + $0x8d0] sm:$0xff]
    %v733 = vld [vmem:[#allocation8 + $0x8d8] sm:$0xff]
    %v734 = vld [vmem:[#allocation8 + $0x8e0] sm:$0xff]
    %v735 = vld [vmem:[#allocation8 + $0x8e8] sm:$0xff]
    %v736 = vld [vmem:[#allocation8 + $0x8f0] sm:$0xff]
    %v737 = vld [vmem:[#allocation8 + $0x8f8] sm:$0xff]
    %v738 = vld [vmem:[#allocation8 + $0x900] sm:$0xff]
    %v739 = vld [vmem:[#allocation8 + $0x908] sm:$0xff]
    %v740 = vld [vmem:[#allocation8 + $0x910] sm:$0xff]
    %v741 = vld [vmem:[#allocation8 + $0x918] sm:$0xff]
    %v742 = vld [vmem:[#allocation8 + $0x920] sm:$0xff]
    %v743 = vld [vmem:[#allocation8 + $0x928] sm:$0xff]
    %v744 = vld [vmem:[#allocation8 + $0x930] sm:$0xff]
    %v745 = vld [vmem:[#allocation8 + $0x938] sm:$0xff]
    %v746 = vld [vmem:[#allocation8 + $0x940] sm:$0xff]
    %v747 = vld [vmem:[#allocation8 + $0x948] sm:$0xff]
    %v748 = vld [vmem:[#allocation8 + $0x950] sm:$0xff]
    %v749 = vld [vmem:[#allocation8 + $0x958] sm:$0xff]
    %v750 = vld [vmem:[#allocation8 + $0x960] sm:$0xff]
    %v751 = vld [vmem:[#allocation8 + $0x968] sm:$0xff]
    %v752 = vld [vmem:[#allocation8 + $0x970] sm:$0xff]
    %v753 = vld [vmem:[#allocation8 + $0x978] sm:$0xff]
    %v754 = vld [vmem:[#allocation8 + $0x980] sm:$0xff]
    %v755 = vld [vmem:[#allocation8 + $0x988] sm:$0xff]
    %v756 = vld [vmem:[#allocation8 + $0x990] sm:$0xff]
    %v757 = vld [vmem:[#allocation8 + $0x998] sm:$0xff]
    %v758 = vld [vmem:[#allocation8 + $0x9a0] sm:$0xff]
    %v759 = vld [vmem:[#allocation8 + $0x9a8] sm:$0xff]
    %v760 = vld [vmem:[#allocation8 + $0x9b0] sm:$0xff]
    %v761 = vld [vmem:[#allocation8 + $0x9b8] sm:$0xff]
    %v762 = vld [vmem:[#allocation8 + $0x9c0] sm:$0xff]
    %v763 = vld [vmem:[#allocation8 + $0x9c8] sm:$0xff]
    %v764 = vld [vmem:[#allocation8 + $0x9d0] sm:$0xff]
    %v765 = vld [vmem:[#allocation8 + $0x9d8] sm:$0xff]
    %v766 = vld [vmem:[#allocation8 + $0x9e0] sm:$0xff]
    %v767 = vld [vmem:[#allocation8 + $0x9e8] sm:$0xff]
    %v768 = vld [vmem:[#allocation8 + $0x9f0] sm:$0xff]
    %v769 = vld [vmem:[#allocation8 + $0x9f8] sm:$0xff]
    %v770 = vld [vmem:[#allocation8 + $0xa00] sm:$0xff]
    %v771 = vld [vmem:[#allocation8 + $0xa08] sm:$0xff]
    %v772 = vld [vmem:[#allocation8 + $0xa10] sm:$0xff]
    %v773 = vld [vmem:[#allocation8 + $0xa18] sm:$0xff]
    %v774 = vld [vmem:[#allocation8 + $0xa20] sm:$0xff]
    %v775 = vld [vmem:[#allocation8 + $0xa28] sm:$0xff]
    %v776 = vld [vmem:[#allocation8 + $0xa30] sm:$0xff]
    %v777 = vld [vmem:[#allocation8 + $0xa38] sm:$0xff]
    %v778 = vld [vmem:[#allocation8 + $0xa40] sm:$0xff]
    %v779 = vld [vmem:[#allocation8 + $0xa48] sm:$0xff]
    %v780 = vld [vmem:[#allocation8 + $0xa50] sm:$0xff]
    %v781 = vld [vmem:[#allocation8 + $0xa58] sm:$0xff]
    %v782 = vld [vmem:[#allocation8 + $0xa60] sm:$0xff]
    %v783 = vld [vmem:[#allocation8 + $0xa68] sm:$0xff]
    %v784 = vld [vmem:[#allocation8 + $0xa70] sm:$0xff]
    %v785 = vld [vmem:[#allocation8 + $0xa78] sm:$0xff]
    %v786 = vld [vmem:[#allocation8 + $0xa80] sm:$0xff]
    %v787 = vld [vmem:[#allocation8 + $0xa88] sm:$0xff]
    %v788 = vld [vmem:[#allocation8 + $0xa90] sm:$0xff]
    %v789 = vld [vmem:[#allocation8 + $0xa98] sm:$0xff]
    %v790 = vld [vmem:[#allocation8 + $0xaa0] sm:$0xff]
    %v791 = vld [vmem:[#allocation8 + $0xaa8] sm:$0xff]
    %v792 = vld [vmem:[#allocation8 + $0xab0] sm:$0xff]
    %v793 = vld [vmem:[#allocation8 + $0xab8] sm:$0xff]
    %v794 = vld [vmem:[#allocation8 + $0xac0] sm:$0xff]
    %v795 = vld [vmem:[#allocation8 + $0xac8] sm:$0xff]
    %v796 = vld [vmem:[#allocation8 + $0xad0] sm:$0xff]
    %v797 = vld [vmem:[#allocation8 + $0xad8] sm:$0xff]
    %v798 = vld [vmem:[#allocation8 + $0xae0] sm:$0xff]
    %v799 = vld [vmem:[#allocation8 + $0xae8] sm:$0xff]
    %v800 = vld [vmem:[#allocation8 + $0xaf0] sm:$0xff]
    %v801 = vld [vmem:[#allocation8 + $0xaf8] sm:$0xff]
    %v802 = vld [vmem:[#allocation8 + $0xb00] sm:$0xff]
    %v803 = vld [vmem:[#allocation8 + $0xb08] sm:$0xff]
    %v804 = vld [vmem:[#allocation8 + $0xb10] sm:$0xff]
    %v805 = vld [vmem:[#allocation8 + $0xb18] sm:$0xff]
    %v806 = vld [vmem:[#allocation8 + $0xb20] sm:$0xff]
    %v807 = vld [vmem:[#allocation8 + $0xb28] sm:$0xff]
    %v808 = vld [vmem:[#allocation8 + $0xb30] sm:$0xff]
    %v809 = vld [vmem:[#allocation8 + $0xb38] sm:$0xff]
    %v810 = vld [vmem:[#allocation8 + $0xb40] sm:$0xff]
    %v811 = vld [vmem:[#allocation8 + $0xb48] sm:$0xff]
    %v812 = vld [vmem:[#allocation8 + $0xb50] sm:$0xff]
    %v813 = vld [vmem:[#allocation8 + $0xb58] sm:$0xff]
    %v814 = vld [vmem:[#allocation8 + $0xb60] sm:$0xff]
    %v815 = vld [vmem:[#allocation8 + $0xb68] sm:$0xff]
    %v816 = vld [vmem:[#allocation8 + $0xb70] sm:$0xff]
    %v817 = vld [vmem:[#allocation8 + $0xb78] sm:$0xff]
    %v818 = vld [vmem:[#allocation8 + $0xb80] sm:$0xff]
    %v819 = vld [vmem:[#allocation8 + $0xb88] sm:$0xff]
    %v820 = vld [vmem:[#allocation8 + $0xb90] sm:$0xff]
    %v821 = vld [vmem:[#allocation8 + $0xb98] sm:$0xff]
    %v822 = vld [vmem:[#allocation8 + $0xba0] sm:$0xff]
    %v823 = vld [vmem:[#allocation8 + $0xba8] sm:$0xff]
    %v824 = vld [vmem:[#allocation8 + $0xbb0] sm:$0xff]
    %v825 = vld [vmem:[#allocation8 + $0xbb8] sm:$0xff]
    %v826 = vld [vmem:[#allocation8 + $0xbc0] sm:$0xff]
    %v827 = vld [vmem:[#allocation8 + $0xbc8] sm:$0xff]
    %v828 = vld [vmem:[#allocation8 + $0xbd0] sm:$0xff]
    %v829 = vld [vmem:[#allocation8 + $0xbd8] sm:$0xff]
    %v830 = vld [vmem:[#allocation8 + $0xbe0] sm:$0xff]
    %v831 = vld [vmem:[#allocation8 + $0xbe8] sm:$0xff]
    %v832 = vld [vmem:[#allocation8 + $0xbf0] sm:$0xff]
    %v833 = vld [vmem:[#allocation8 + $0xbf8] sm:$0xff]
    %v834 = vld [vmem:[#allocation8 + $0xc00] sm:$0xff]
    %v835 = vld [vmem:[#allocation8 + $0xc08] sm:$0xff]
    %v836 = vld [vmem:[#allocation8 + $0xc10] sm:$0xff]
    %v837 = vld [vmem:[#allocation8 + $0xc18] sm:$0xff]
    %v838 = vld [vmem:[#allocation8 + $0xc20] sm:$0xff]
    %v839 = vld [vmem:[#allocation8 + $0xc28] sm:$0xff]
    %v840 = vld [vmem:[#allocation8 + $0xc30] sm:$0xff]
    %v841 = vld [vmem:[#allocation8 + $0xc38] sm:$0xff]
    %v842 = vld [vmem:[#allocation8 + $0xc40] sm:$0xff]
    %v843 = vld [vmem:[#allocation8 + $0xc48] sm:$0xff]
    %v844 = vld [vmem:[#allocation8 + $0xc50] sm:$0xff]
    %v845 = vld [vmem:[#allocation8 + $0xc58] sm:$0xff]
    %v846 = vld [vmem:[#allocation8 + $0xc60] sm:$0xff]
    %v847 = vld [vmem:[#allocation8 + $0xc68] sm:$0xff]
    %v848 = vld [vmem:[#allocation8 + $0xc70] sm:$0xff]
    %v849 = vld [vmem:[#allocation8 + $0xc78] sm:$0xff]
    %v850 = vld [vmem:[#allocation8 + $0xc80] sm:$0xff]
    %v851 = vld [vmem:[#allocation8 + $0xc88] sm:$0xff]
    %v852 = vld [vmem:[#allocation8 + $0xc90] sm:$0xff]
    %v853 = vld [vmem:[#allocation8 + $0xc98] sm:$0xff]
    %v854 = vld [vmem:[#allocation8 + $0xca0] sm:$0xff]
    %v855 = vld [vmem:[#allocation8 + $0xca8] sm:$0xff]
    %v856 = vld [vmem:[#allocation8 + $0xcb0] sm:$0xff]
    %v857 = vld [vmem:[#allocation8 + $0xcb8] sm:$0xff]
    %v858 = vld [vmem:[#allocation8 + $0xcc0] sm:$0xff]
    %v859 = vld [vmem:[#allocation8 + $0xcc8] sm:$0xff]
    %v860 = vld [vmem:[#allocation8 + $0xcd0] sm:$0xff]
    %v861 = vld [vmem:[#allocation8 + $0xcd8] sm:$0xff]
    %v862 = vld [vmem:[#allocation8 + $0xce0] sm:$0xff]
    %v863 = vld [vmem:[#allocation8 + $0xce8] sm:$0xff]
    %v864 = vld [vmem:[#allocation8 + $0xcf0] sm:$0xff]
    %v865 = vld [vmem:[#allocation8 + $0xcf8] sm:$0xff]
    %v866 = vld [vmem:[#allocation8 + $0xd00] sm:$0xff]
    %v867 = vld [vmem:[#allocation8 + $0xd08] sm:$0xff]
    %v868 = vld [vmem:[#allocation8 + $0xd10] sm:$0xff]
    %v869 = vld [vmem:[#allocation8 + $0xd18] sm:$0xff]
    %v870 = vld [vmem:[#allocation8 + $0xd20] sm:$0xff]
    %v871 = vld [vmem:[#allocation8 + $0xd28] sm:$0xff]
    %v872 = vld [vmem:[#allocation8 + $0xd30] sm:$0xff]
    %v873 = vld [vmem:[#allocation8 + $0xd38] sm:$0xff]
    %v874 = vld [vmem:[#allocation8 + $0xd40] sm:$0xff]
    %v875 = vld [vmem:[#allocation8 + $0xd48] sm:$0xff]
    %v876 = vld [vmem:[#allocation8 + $0xd50] sm:$0xff]
    %v877 = vld [vmem:[#allocation8 + $0xd58] sm:$0xff]
    %v878 = vld [vmem:[#allocation8 + $0xd60] sm:$0xff]
    %v879 = vld [vmem:[#allocation8 + $0xd68] sm:$0xff]
    %v880 = vld [vmem:[#allocation8 + $0xd70] sm:$0xff]
    %v881 = vld [vmem:[#allocation8 + $0xd78] sm:$0xff]
    %v882 = vld [vmem:[#allocation8 + $0xd80] sm:$0xff]
    %v883 = vld [vmem:[#allocation8 + $0xd88] sm:$0xff]
    %v884 = vld [vmem:[#allocation8 + $0xd90] sm:$0xff]
    %v885 = vld [vmem:[#allocation8 + $0xd98] sm:$0xff]
    %v886 = vld [vmem:[#allocation8 + $0xda0] sm:$0xff]
    %v887 = vld [vmem:[#allocation8 + $0xda8] sm:$0xff]
    %v888 = vld [vmem:[#allocation8 + $0xdb0] sm:$0xff]
    %v889 = vld [vmem:[#allocation8 + $0xdb8] sm:$0xff]
    %v890 = vld [vmem:[#allocation8 + $0xdc0] sm:$0xff]
    %v891 = vld [vmem:[#allocation8 + $0xdc8] sm:$0xff]
    %v892 = vld [vmem:[#allocation8 + $0xdd0] sm:$0xff]
    %v893 = vld [vmem:[#allocation8 + $0xdd8] sm:$0xff]
    %v894 = vld [vmem:[#allocation8 + $0xde0] sm:$0xff]
    %v895 = vld [vmem:[#allocation8 + $0xde8] sm:$0xff]
    %v896 = vld [vmem:[#allocation8 + $0xdf0] sm:$0xff]
    %v897 = vld [vmem:[#allocation8 + $0xdf8] sm:$0xff]
    %v898 = vld [vmem:[#allocation8 + $0xe00] sm:$0xff]
    %v899 = vld [vmem:[#allocation8 + $0xe08] sm:$0xff]
    %v900 = vld [vmem:[#allocation8 + $0xe10] sm:$0xff]
    %v901 = vld [vmem:[#allocation8 + $0xe18] sm:$0xff]
    %v902 = vld [vmem:[#allocation8 + $0xe20] sm:$0xff]
    %v903 = vld [vmem:[#allocation8 + $0xe28] sm:$0xff]
    %v904 = vld [vmem:[#allocation8 + $0xe30] sm:$0xff]
    %v905 = vld [vmem:[#allocation8 + $0xe38] sm:$0xff]
    %v906 = vld [vmem:[#allocation8 + $0xe40] sm:$0xff]
    %v907 = vld [vmem:[#allocation8 + $0xe48] sm:$0xff]
    %v908 = vld [vmem:[#allocation8 + $0xe50] sm:$0xff]
    %v909 = vld [vmem:[#allocation8 + $0xe58] sm:$0xff]
    %v910 = vld [vmem:[#allocation8 + $0xe60] sm:$0xff]
    %v911 = vld [vmem:[#allocation8 + $0xe68] sm:$0xff]
    %v912 = vld [vmem:[#allocation8 + $0xe70] sm:$0xff]
    %v913 = vld [vmem:[#allocation8 + $0xe78] sm:$0xff]
    %v914 = vld [vmem:[#allocation8 + $0xe80] sm:$0xff]
    %v915 = vld [vmem:[#allocation8 + $0xe88] sm:$0xff]
    %v916 = vld [vmem:[#allocation8 + $0xe90] sm:$0xff]
    %v917 = vld [vmem:[#allocation8 + $0xe98] sm:$0xff]
    %v918 = vld [vmem:[#allocation8 + $0xea0] sm:$0xff]
    %v919 = vld [vmem:[#allocation8 + $0xea8] sm:$0xff]
    %v920 = vld [vmem:[#allocation8 + $0xeb0] sm:$0xff]
    %v921 = vld [vmem:[#allocation8 + $0xeb8] sm:$0xff]
    %v922 = vld [vmem:[#allocation8 + $0xec0] sm:$0xff]
    %v923 = vld [vmem:[#allocation8 + $0xec8] sm:$0xff]
    %v924 = vld [vmem:[#allocation8 + $0xed0] sm:$0xff]
    %v925 = vld [vmem:[#allocation8 + $0xed8] sm:$0xff]
    %v926 = vld [vmem:[#allocation8 + $0xee0] sm:$0xff]
    %v927 = vld [vmem:[#allocation8 + $0xee8] sm:$0xff]
    %v928 = vld [vmem:[#allocation8 + $0xef0] sm:$0xff]
    %v929 = vld [vmem:[#allocation8 + $0xef8] sm:$0xff]
    %v930 = vld [vmem:[#allocation8 + $0xf00] sm:$0xff]
    %v931 = vld [vmem:[#allocation8 + $0xf08] sm:$0xff]
    %v932 = vld [vmem:[#allocation8 + $0xf10] sm:$0xff]
    %v933 = vld [vmem:[#allocation8 + $0xf18] sm:$0xff]
    %v934 = vld [vmem:[#allocation8 + $0xf20] sm:$0xff]
    %v935 = vld [vmem:[#allocation8 + $0xf28] sm:$0xff]
    %v936 = vld [vmem:[#allocation8 + $0xf30] sm:$0xff]
    %v937 = vld [vmem:[#allocation8 + $0xf38] sm:$0xff]
    %v938 = vld [vmem:[#allocation8 + $0xf40] sm:$0xff]
    %v939 = vld [vmem:[#allocation8 + $0xf48] sm:$0xff]
    %v940 = vld [vmem:[#allocation8 + $0xf50] sm:$0xff]
    %v941 = vld [vmem:[#allocation8 + $0xf58] sm:$0xff]
    %v942 = vld [vmem:[#allocation8 + $0xf60] sm:$0xff]
    %v943 = vld [vmem:[#allocation8 + $0xf68] sm:$0xff]
    %v944 = vld [vmem:[#allocation8 + $0xf70] sm:$0xff]
    %v945 = vld [vmem:[#allocation8 + $0xf78] sm:$0xff]
    %v946 = vld [vmem:[#allocation8 + $0xf80] sm:$0xff]
    %v947 = vld [vmem:[#allocation8 + $0xf88] sm:$0xff]
    %v948 = vld [vmem:[#allocation8 + $0xf90] sm:$0xff]
    %v949 = vld [vmem:[#allocation8 + $0xf98] sm:$0xff]
    %v950 = vld [vmem:[#allocation8 + $0xfa0] sm:$0xff]
    %v951 = vld [vmem:[#allocation8 + $0xfa8] sm:$0xff]
    %v952 = vld [vmem:[#allocation8 + $0xfb0] sm:$0xff]
    %v953 = vld [vmem:[#allocation8 + $0xfb8] sm:$0xff]
    %v954 = vld [vmem:[#allocation8 + $0xfc0] sm:$0xff]
    %v955 = vld [vmem:[#allocation8 + $0xfc8] sm:$0xff]
    %v956 = vld [vmem:[#allocation8 + $0xfd0] sm:$0xff]
    %v957 = vld [vmem:[#allocation8 + $0xfd8] sm:$0xff]
    %v958 = vld [vmem:[#allocation8 + $0xfe0] sm:$0xff]
    %v959 = vld [vmem:[#allocation8 + $0xfe8] sm:$0xff]
    %v960 = vld [vmem:[#allocation8 + $0xff0] sm:$0xff]
    %v961 = vld [vmem:[#allocation8 + $0xff8] sm:$0xff]
    %v962 = vld [vmem:[#allocation10] sm:$0xff]
    %v964 = vperm.slane %v962, 0
    %v965 = vperm.slane %v962, 1
    %v966 = vperm.slane %v962, 2
    %v967 = vperm.slane %v962, 3
    %v968 = vperm.slane %v962, 4
    %v969 = vperm.slane %v962, 5
    %v970 = vperm.slane %v962, 6
    %v971 = vperm.slane %v962, 7
    %v1492 = vunpack.c.l.b16 %v450
    %v1493 = vunpack.c.h.b16 %v450
    %v1494 = vunpack.c.l.b16 %v451
    %v1495 = vunpack.c.h.b16 %v451
    %v1496 = vunpack.c.l.b16 %v452
    %v1497 = vunpack.c.h.b16 %v452
    %v1498 = vunpack.c.l.b16 %v453
    %v1499 = vunpack.c.h.b16 %v453
    %v1500 = vunpack.c.l.b16 %v454
    %v1501 = vunpack.c.h.b16 %v454
    %v1502 = vunpack.c.l.b16 %v455
    %v1503 = vunpack.c.h.b16 %v455
    %v1504 = vunpack.c.l.b16 %v456
    %v1505 = vunpack.c.h.b16 %v456
    %v1506 = vunpack.c.l.b16 %v457
    %v1507 = vunpack.c.h.b16 %v457
    %v1508 = vunpack.c.l.b16 %v458
    %v1509 = vunpack.c.h.b16 %v458
    %v1510 = vunpack.c.l.b16 %v459
    %v1511 = vunpack.c.h.b16 %v459
    %v1512 = vunpack.c.l.b16 %v460
    %v1513 = vunpack.c.h.b16 %v460
    %v1514 = vunpack.c.l.b16 %v461
    %v1515 = vunpack.c.h.b16 %v461
    %v1516 = vunpack.c.l.b16 %v462
    %v1517 = vunpack.c.h.b16 %v462
    %v1518 = vunpack.c.l.b16 %v463
    %v1519 = vunpack.c.h.b16 %v463
    %v1520 = vunpack.c.l.b16 %v464
    %v1521 = vunpack.c.h.b16 %v464
    %v1522 = vunpack.c.l.b16 %v465
    %v1523 = vunpack.c.h.b16 %v465
    %v1524 = vunpack.c.l.b16 %v466
    %v1525 = vunpack.c.h.b16 %v466
    %v1526 = vunpack.c.l.b16 %v467
    %v1527 = vunpack.c.h.b16 %v467
    %v1528 = vunpack.c.l.b16 %v468
    %v1529 = vunpack.c.h.b16 %v468
    %v1530 = vunpack.c.l.b16 %v469
    %v1531 = vunpack.c.h.b16 %v469
    %v1532 = vunpack.c.l.b16 %v470
    %v1533 = vunpack.c.h.b16 %v470
    %v1534 = vunpack.c.l.b16 %v471
    %v1535 = vunpack.c.h.b16 %v471
    %v1536 = vunpack.c.l.b16 %v472
    %v1537 = vunpack.c.h.b16 %v472
    %v1538 = vunpack.c.l.b16 %v473
    %v1539 = vunpack.c.h.b16 %v473
    %v1540 = vunpack.c.l.b16 %v474
    %v1541 = vunpack.c.h.b16 %v474
    %v1542 = vunpack.c.l.b16 %v475
    %v1543 = vunpack.c.h.b16 %v475
    %v1544 = vunpack.c.l.b16 %v476
    %v1545 = vunpack.c.h.b16 %v476
    %v1546 = vunpack.c.l.b16 %v477
    %v1547 = vunpack.c.h.b16 %v477
    %v1548 = vunpack.c.l.b16 %v478
    %v1549 = vunpack.c.h.b16 %v478
    %v1550 = vunpack.c.l.b16 %v479
    %v1551 = vunpack.c.h.b16 %v479
    %v1552 = vunpack.c.l.b16 %v480
    %v1553 = vunpack.c.h.b16 %v480
    %v1554 = vunpack.c.l.b16 %v481
    %v1555 = vunpack.c.h.b16 %v481
    %v1556 = vunpack.c.l.b16 %v482
    %v1557 = vunpack.c.h.b16 %v482
    %v1558 = vunpack.c.l.b16 %v483
    %v1559 = vunpack.c.h.b16 %v483
    %v1560 = vunpack.c.l.b16 %v484
    %v1561 = vunpack.c.h.b16 %v484
    %v1562 = vunpack.c.l.b16 %v485
    %v1563 = vunpack.c.h.b16 %v485
    %v1564 = vunpack.c.l.b16 %v486
    %v1565 = vunpack.c.h.b16 %v486
    %v1566 = vunpack.c.l.b16 %v487
    %v1567 = vunpack.c.h.b16 %v487
    %v1568 = vunpack.c.l.b16 %v488
    %v1569 = vunpack.c.h.b16 %v488
    %v1570 = vunpack.c.l.b16 %v489
    %v1571 = vunpack.c.h.b16 %v489
    %v1572 = vunpack.c.l.b16 %v490
    %v1573 = vunpack.c.h.b16 %v490
    %v1574 = vunpack.c.l.b16 %v491
    %v1575 = vunpack.c.h.b16 %v491
    %v1576 = vunpack.c.l.b16 %v492
    %v1577 = vunpack.c.h.b16 %v492
    %v1578 = vunpack.c.l.b16 %v493
    %v1579 = vunpack.c.h.b16 %v493
    %v1580 = vunpack.c.l.b16 %v494
    %v1581 = vunpack.c.h.b16 %v494
    %v1582 = vunpack.c.l.b16 %v495
    %v1583 = vunpack.c.h.b16 %v495
    %v1584 = vunpack.c.l.b16 %v496
    %v1585 = vunpack.c.h.b16 %v496
    %v1586 = vunpack.c.l.b16 %v497
    %v1587 = vunpack.c.h.b16 %v497
    %v1588 = vunpack.c.l.b16 %v498
    %v1589 = vunpack.c.h.b16 %v498
    %v1590 = vunpack.c.l.b16 %v499
    %v1591 = vunpack.c.h.b16 %v499
    %v1592 = vunpack.c.l.b16 %v500
    %v1593 = vunpack.c.h.b16 %v500
    %v1594 = vunpack.c.l.b16 %v501
    %v1595 = vunpack.c.h.b16 %v501
    %v1596 = vunpack.c.l.b16 %v502
    %v1597 = vunpack.c.h.b16 %v502
    %v1598 = vunpack.c.l.b16 %v503
    %v1599 = vunpack.c.h.b16 %v503
    %v1600 = vunpack.c.l.b16 %v504
    %v1601 = vunpack.c.h.b16 %v504
    %v1602 = vunpack.c.l.b16 %v505
    %v1603 = vunpack.c.h.b16 %v505
    %v1604 = vunpack.c.l.b16 %v506
    %v1605 = vunpack.c.h.b16 %v506
    %v1606 = vunpack.c.l.b16 %v507
    %v1607 = vunpack.c.h.b16 %v507
    %v1608 = vunpack.c.l.b16 %v508
    %v1609 = vunpack.c.h.b16 %v508
    %v1610 = vunpack.c.l.b16 %v509
    %v1611 = vunpack.c.h.b16 %v509
    %v1612 = vunpack.c.l.b16 %v510
    %v1613 = vunpack.c.h.b16 %v510
    %v1614 = vunpack.c.l.b16 %v511
    %v1615 = vunpack.c.h.b16 %v511
    %v1616 = vunpack.c.l.b16 %v512
    %v1617 = vunpack.c.h.b16 %v512
    %v1618 = vunpack.c.l.b16 %v513
    %v1619 = vunpack.c.h.b16 %v513
    %v1620 = vunpack.c.l.b16 %v514
    %v1621 = vunpack.c.h.b16 %v514
    %v1622 = vunpack.c.l.b16 %v515
    %v1623 = vunpack.c.h.b16 %v515
    %v1624 = vunpack.c.l.b16 %v516
    %v1625 = vunpack.c.h.b16 %v516
    %v1626 = vunpack.c.l.b16 %v517
    %v1627 = vunpack.c.h.b16 %v517
    %v1628 = vunpack.c.l.b16 %v518
    %v1629 = vunpack.c.h.b16 %v518
    %v1630 = vunpack.c.l.b16 %v519
    %v1631 = vunpack.c.h.b16 %v519
    %v1632 = vunpack.c.l.b16 %v520
    %v1633 = vunpack.c.h.b16 %v520
    %v1634 = vunpack.c.l.b16 %v521
    %v1635 = vunpack.c.h.b16 %v521
    %v1636 = vunpack.c.l.b16 %v522
    %v1637 = vunpack.c.h.b16 %v522
    %v1638 = vunpack.c.l.b16 %v523
    %v1639 = vunpack.c.h.b16 %v523
    %v1640 = vunpack.c.l.b16 %v524
    %v1641 = vunpack.c.h.b16 %v524
    %v1642 = vunpack.c.l.b16 %v525
    %v1643 = vunpack.c.h.b16 %v525
    %v1644 = vunpack.c.l.b16 %v526
    %v1645 = vunpack.c.h.b16 %v526
    %v1646 = vunpack.c.l.b16 %v527
    %v1647 = vunpack.c.h.b16 %v527
    %v1648 = vunpack.c.l.b16 %v528
    %v1649 = vunpack.c.h.b16 %v528
    %v1650 = vunpack.c.l.b16 %v529
    %v1651 = vunpack.c.h.b16 %v529
    %v1652 = vunpack.c.l.b16 %v530
    %v1653 = vunpack.c.h.b16 %v530
    %v1654 = vunpack.c.l.b16 %v531
    %v1655 = vunpack.c.h.b16 %v531
    %v1656 = vunpack.c.l.b16 %v532
    %v1657 = vunpack.c.h.b16 %v532
    %v1658 = vunpack.c.l.b16 %v533
    %v1659 = vunpack.c.h.b16 %v533
    %v1660 = vunpack.c.l.b16 %v534
    %v1661 = vunpack.c.h.b16 %v534
    %v1662 = vunpack.c.l.b16 %v535
    %v1663 = vunpack.c.h.b16 %v535
    %v1664 = vunpack.c.l.b16 %v536
    %v1665 = vunpack.c.h.b16 %v536
    %v1666 = vunpack.c.l.b16 %v537
    %v1667 = vunpack.c.h.b16 %v537
    %v1668 = vunpack.c.l.b16 %v538
    %v1669 = vunpack.c.h.b16 %v538
    %v1670 = vunpack.c.l.b16 %v539
    %v1671 = vunpack.c.h.b16 %v539
    %v1672 = vunpack.c.l.b16 %v540
    %v1673 = vunpack.c.h.b16 %v540
    %v1674 = vunpack.c.l.b16 %v541
    %v1675 = vunpack.c.h.b16 %v541
    %v1676 = vunpack.c.l.b16 %v542
    %v1677 = vunpack.c.h.b16 %v542
    %v1678 = vunpack.c.l.b16 %v543
    %v1679 = vunpack.c.h.b16 %v543
    %v1680 = vunpack.c.l.b16 %v544
    %v1681 = vunpack.c.h.b16 %v544
    %v1682 = vunpack.c.l.b16 %v545
    %v1683 = vunpack.c.h.b16 %v545
    %v1684 = vunpack.c.l.b16 %v546
    %v1685 = vunpack.c.h.b16 %v546
    %v1686 = vunpack.c.l.b16 %v547
    %v1687 = vunpack.c.h.b16 %v547
    %v1688 = vunpack.c.l.b16 %v548
    %v1689 = vunpack.c.h.b16 %v548
    %v1690 = vunpack.c.l.b16 %v549
    %v1691 = vunpack.c.h.b16 %v549
    %v1692 = vunpack.c.l.b16 %v550
    %v1693 = vunpack.c.h.b16 %v550
    %v1694 = vunpack.c.l.b16 %v551
    %v1695 = vunpack.c.h.b16 %v551
    %v1696 = vunpack.c.l.b16 %v552
    %v1697 = vunpack.c.h.b16 %v552
    %v1698 = vunpack.c.l.b16 %v553
    %v1699 = vunpack.c.h.b16 %v553
    %v1700 = vunpack.c.l.b16 %v554
    %v1701 = vunpack.c.h.b16 %v554
    %v1702 = vunpack.c.l.b16 %v555
    %v1703 = vunpack.c.h.b16 %v555
    %v1704 = vunpack.c.l.b16 %v556
    %v1705 = vunpack.c.h.b16 %v556
    %v1706 = vunpack.c.l.b16 %v557
    %v1707 = vunpack.c.h.b16 %v557
    %v1708 = vunpack.c.l.b16 %v558
    %v1709 = vunpack.c.h.b16 %v558
    %v1710 = vunpack.c.l.b16 %v559
    %v1711 = vunpack.c.h.b16 %v559
    %v1712 = vunpack.c.l.b16 %v560
    %v1713 = vunpack.c.h.b16 %v560
    %v1714 = vunpack.c.l.b16 %v561
    %v1715 = vunpack.c.h.b16 %v561
    %v1716 = vunpack.c.l.b16 %v562
    %v1717 = vunpack.c.h.b16 %v562
    %v1718 = vunpack.c.l.b16 %v563
    %v1719 = vunpack.c.h.b16 %v563
    %v1720 = vunpack.c.l.b16 %v564
    %v1721 = vunpack.c.h.b16 %v564
    %v1722 = vunpack.c.l.b16 %v565
    %v1723 = vunpack.c.h.b16 %v565
    %v1724 = vunpack.c.l.b16 %v566
    %v1725 = vunpack.c.h.b16 %v566
    %v1726 = vunpack.c.l.b16 %v567
    %v1727 = vunpack.c.h.b16 %v567
    %v1728 = vunpack.c.l.b16 %v568
    %v1729 = vunpack.c.h.b16 %v568
    %v1730 = vunpack.c.l.b16 %v569
    %v1731 = vunpack.c.h.b16 %v569
    %v1732 = vunpack.c.l.b16 %v570
    %v1733 = vunpack.c.h.b16 %v570
    %v1734 = vunpack.c.l.b16 %v571
    %v1735 = vunpack.c.h.b16 %v571
    %v1736 = vunpack.c.l.b16 %v572
    %v1737 = vunpack.c.h.b16 %v572
    %v1738 = vunpack.c.l.b16 %v573
    %v1739 = vunpack.c.h.b16 %v573
    %v1740 = vunpack.c.l.b16 %v574
    %v1741 = vunpack.c.h.b16 %v574
    %v1742 = vunpack.c.l.b16 %v575
    %v1743 = vunpack.c.h.b16 %v575
    %v1744 = vunpack.c.l.b16 %v576
    %v1745 = vunpack.c.h.b16 %v576
    %v1746 = vunpack.c.l.b16 %v577
    %v1747 = vunpack.c.h.b16 %v577
    %v1748 = vunpack.c.l.b16 %v578
    %v1749 = vunpack.c.h.b16 %v578
    %v1750 = vunpack.c.l.b16 %v579
    %v1751 = vunpack.c.h.b16 %v579
    %v1752 = vunpack.c.l.b16 %v580
    %v1753 = vunpack.c.h.b16 %v580
    %v1754 = vunpack.c.l.b16 %v581
    %v1755 = vunpack.c.h.b16 %v581
    %v1756 = vunpack.c.l.b16 %v582
    %v1757 = vunpack.c.h.b16 %v582
    %v1758 = vunpack.c.l.b16 %v583
    %v1759 = vunpack.c.h.b16 %v583
    %v1760 = vunpack.c.l.b16 %v584
    %v1761 = vunpack.c.h.b16 %v584
    %v1762 = vunpack.c.l.b16 %v585
    %v1763 = vunpack.c.h.b16 %v585
    %v1764 = vunpack.c.l.b16 %v586
    %v1765 = vunpack.c.h.b16 %v586
    %v1766 = vunpack.c.l.b16 %v587
    %v1767 = vunpack.c.h.b16 %v587
    %v1768 = vunpack.c.l.b16 %v588
    %v1769 = vunpack.c.h.b16 %v588
    %v1770 = vunpack.c.l.b16 %v589
    %v1771 = vunpack.c.h.b16 %v589
    %v1772 = vunpack.c.l.b16 %v590
    %v1773 = vunpack.c.h.b16 %v590
    %v1774 = vunpack.c.l.b16 %v591
    %v1775 = vunpack.c.h.b16 %v591
    %v1776 = vunpack.c.l.b16 %v592
    %v1777 = vunpack.c.h.b16 %v592
    %v1778 = vunpack.c.l.b16 %v593
    %v1779 = vunpack.c.h.b16 %v593
    %v1780 = vunpack.c.l.b16 %v594
    %v1781 = vunpack.c.h.b16 %v594
    %v1782 = vunpack.c.l.b16 %v595
    %v1783 = vunpack.c.h.b16 %v595
    %v1784 = vunpack.c.l.b16 %v596
    %v1785 = vunpack.c.h.b16 %v596
    %v1786 = vunpack.c.l.b16 %v597
    %v1787 = vunpack.c.h.b16 %v597
    %v1788 = vunpack.c.l.b16 %v598
    %v1789 = vunpack.c.h.b16 %v598
    %v1790 = vunpack.c.l.b16 %v599
    %v1791 = vunpack.c.h.b16 %v599
    %v1792 = vunpack.c.l.b16 %v600
    %v1793 = vunpack.c.h.b16 %v600
    %v1794 = vunpack.c.l.b16 %v601
    %v1795 = vunpack.c.h.b16 %v601
    %v1796 = vunpack.c.l.b16 %v602
    %v1797 = vunpack.c.h.b16 %v602
    %v1798 = vunpack.c.l.b16 %v603
    %v1799 = vunpack.c.h.b16 %v603
    %v1800 = vunpack.c.l.b16 %v604
    %v1801 = vunpack.c.h.b16 %v604
    %v1802 = vunpack.c.l.b16 %v605
    %v1803 = vunpack.c.h.b16 %v605
    %v1804 = vunpack.c.l.b16 %v606
    %v1805 = vunpack.c.h.b16 %v606
    %v1806 = vunpack.c.l.b16 %v607
    %v1807 = vunpack.c.h.b16 %v607
    %v1808 = vunpack.c.l.b16 %v608
    %v1809 = vunpack.c.h.b16 %v608
    %v1810 = vunpack.c.l.b16 %v609
    %v1811 = vunpack.c.h.b16 %v609
    %v1812 = vunpack.c.l.b16 %v610
    %v1813 = vunpack.c.h.b16 %v610
    %v1814 = vunpack.c.l.b16 %v611
    %v1815 = vunpack.c.h.b16 %v611
    %v1816 = vunpack.c.l.b16 %v612
    %v1817 = vunpack.c.h.b16 %v612
    %v1818 = vunpack.c.l.b16 %v613
    %v1819 = vunpack.c.h.b16 %v613
    %v1820 = vunpack.c.l.b16 %v614
    %v1821 = vunpack.c.h.b16 %v614
    %v1822 = vunpack.c.l.b16 %v615
    %v1823 = vunpack.c.h.b16 %v615
    %v1824 = vunpack.c.l.b16 %v616
    %v1825 = vunpack.c.h.b16 %v616
    %v1826 = vunpack.c.l.b16 %v617
    %v1827 = vunpack.c.h.b16 %v617
    %v1828 = vunpack.c.l.b16 %v618
    %v1829 = vunpack.c.h.b16 %v618
    %v1830 = vunpack.c.l.b16 %v619
    %v1831 = vunpack.c.h.b16 %v619
    %v1832 = vunpack.c.l.b16 %v620
    %v1833 = vunpack.c.h.b16 %v620
    %v1834 = vunpack.c.l.b16 %v621
    %v1835 = vunpack.c.h.b16 %v621
    %v1836 = vunpack.c.l.b16 %v622
    %v1837 = vunpack.c.h.b16 %v622
    %v1838 = vunpack.c.l.b16 %v623
    %v1839 = vunpack.c.h.b16 %v623
    %v1840 = vunpack.c.l.b16 %v624
    %v1841 = vunpack.c.h.b16 %v624
    %v1842 = vunpack.c.l.b16 %v625
    %v1843 = vunpack.c.h.b16 %v625
    %v1844 = vunpack.c.l.b16 %v626
    %v1845 = vunpack.c.h.b16 %v626
    %v1846 = vunpack.c.l.b16 %v627
    %v1847 = vunpack.c.h.b16 %v627
    %v1848 = vunpack.c.l.b16 %v628
    %v1849 = vunpack.c.h.b16 %v628
    %v1850 = vunpack.c.l.b16 %v629
    %v1851 = vunpack.c.h.b16 %v629
    %v1852 = vunpack.c.l.b16 %v630
    %v1853 = vunpack.c.h.b16 %v630
    %v1854 = vunpack.c.l.b16 %v631
    %v1855 = vunpack.c.h.b16 %v631
    %v1856 = vunpack.c.l.b16 %v632
    %v1857 = vunpack.c.h.b16 %v632
    %v1858 = vunpack.c.l.b16 %v633
    %v1859 = vunpack.c.h.b16 %v633
    %v1860 = vunpack.c.l.b16 %v634
    %v1861 = vunpack.c.h.b16 %v634
    %v1862 = vunpack.c.l.b16 %v635
    %v1863 = vunpack.c.h.b16 %v635
    %v1864 = vunpack.c.l.b16 %v636
    %v1865 = vunpack.c.h.b16 %v636
    %v1866 = vunpack.c.l.b16 %v637
    %v1867 = vunpack.c.h.b16 %v637
    %v1868 = vunpack.c.l.b16 %v638
    %v1869 = vunpack.c.h.b16 %v638
    %v1870 = vunpack.c.l.b16 %v639
    %v1871 = vunpack.c.h.b16 %v639
    %v1872 = vunpack.c.l.b16 %v640
    %v1873 = vunpack.c.h.b16 %v640
    %v1874 = vunpack.c.l.b16 %v641
    %v1875 = vunpack.c.h.b16 %v641
    %v1876 = vunpack.c.l.b16 %v642
    %v1877 = vunpack.c.h.b16 %v642
    %v1878 = vunpack.c.l.b16 %v643
    %v1879 = vunpack.c.h.b16 %v643
    %v1880 = vunpack.c.l.b16 %v644
    %v1881 = vunpack.c.h.b16 %v644
    %v1882 = vunpack.c.l.b16 %v645
    %v1883 = vunpack.c.h.b16 %v645
    %v1884 = vunpack.c.l.b16 %v646
    %v1885 = vunpack.c.h.b16 %v646
    %v1886 = vunpack.c.l.b16 %v647
    %v1887 = vunpack.c.h.b16 %v647
    %v1888 = vunpack.c.l.b16 %v648
    %v1889 = vunpack.c.h.b16 %v648
    %v1890 = vunpack.c.l.b16 %v649
    %v1891 = vunpack.c.h.b16 %v649
    %v1892 = vunpack.c.l.b16 %v650
    %v1893 = vunpack.c.h.b16 %v650
    %v1894 = vunpack.c.l.b16 %v651
    %v1895 = vunpack.c.h.b16 %v651
    %v1896 = vunpack.c.l.b16 %v652
    %v1897 = vunpack.c.h.b16 %v652
    %v1898 = vunpack.c.l.b16 %v653
    %v1899 = vunpack.c.h.b16 %v653
    %v1900 = vunpack.c.l.b16 %v654
    %v1901 = vunpack.c.h.b16 %v654
    %v1902 = vunpack.c.l.b16 %v655
    %v1903 = vunpack.c.h.b16 %v655
    %v1904 = vunpack.c.l.b16 %v656
    %v1905 = vunpack.c.h.b16 %v656
    %v1906 = vunpack.c.l.b16 %v657
    %v1907 = vunpack.c.h.b16 %v657
    %v1908 = vunpack.c.l.b16 %v658
    %v1909 = vunpack.c.h.b16 %v658
    %v1910 = vunpack.c.l.b16 %v659
    %v1911 = vunpack.c.h.b16 %v659
    %v1912 = vunpack.c.l.b16 %v660
    %v1913 = vunpack.c.h.b16 %v660
    %v1914 = vunpack.c.l.b16 %v661
    %v1915 = vunpack.c.h.b16 %v661
    %v1916 = vunpack.c.l.b16 %v662
    %v1917 = vunpack.c.h.b16 %v662
    %v1918 = vunpack.c.l.b16 %v663
    %v1919 = vunpack.c.h.b16 %v663
    %v1920 = vunpack.c.l.b16 %v664
    %v1921 = vunpack.c.h.b16 %v664
    %v1922 = vunpack.c.l.b16 %v665
    %v1923 = vunpack.c.h.b16 %v665
    %v1924 = vunpack.c.l.b16 %v666
    %v1925 = vunpack.c.h.b16 %v666
    %v1926 = vunpack.c.l.b16 %v667
    %v1927 = vunpack.c.h.b16 %v667
    %v1928 = vunpack.c.l.b16 %v668
    %v1929 = vunpack.c.h.b16 %v668
    %v1930 = vunpack.c.l.b16 %v669
    %v1931 = vunpack.c.h.b16 %v669
    %v1932 = vunpack.c.l.b16 %v670
    %v1933 = vunpack.c.h.b16 %v670
    %v1934 = vunpack.c.l.b16 %v671
    %v1935 = vunpack.c.h.b16 %v671
    %v1936 = vunpack.c.l.b16 %v672
    %v1937 = vunpack.c.h.b16 %v672
    %v1938 = vunpack.c.l.b16 %v673
    %v1939 = vunpack.c.h.b16 %v673
    %v1940 = vunpack.c.l.b16 %v674
    %v1941 = vunpack.c.h.b16 %v674
    %v1942 = vunpack.c.l.b16 %v675
    %v1943 = vunpack.c.h.b16 %v675
    %v1944 = vunpack.c.l.b16 %v676
    %v1945 = vunpack.c.h.b16 %v676
    %v1946 = vunpack.c.l.b16 %v677
    %v1947 = vunpack.c.h.b16 %v677
    %v1948 = vunpack.c.l.b16 %v678
    %v1949 = vunpack.c.h.b16 %v678
    %v1950 = vunpack.c.l.b16 %v679
    %v1951 = vunpack.c.h.b16 %v679
    %v1952 = vunpack.c.l.b16 %v680
    %v1953 = vunpack.c.h.b16 %v680
    %v1954 = vunpack.c.l.b16 %v681
    %v1955 = vunpack.c.h.b16 %v681
    %v1956 = vunpack.c.l.b16 %v682
    %v1957 = vunpack.c.h.b16 %v682
    %v1958 = vunpack.c.l.b16 %v683
    %v1959 = vunpack.c.h.b16 %v683
    %v1960 = vunpack.c.l.b16 %v684
    %v1961 = vunpack.c.h.b16 %v684
    %v1962 = vunpack.c.l.b16 %v685
    %v1963 = vunpack.c.h.b16 %v685
    %v1964 = vunpack.c.l.b16 %v686
    %v1965 = vunpack.c.h.b16 %v686
    %v1966 = vunpack.c.l.b16 %v687
    %v1967 = vunpack.c.h.b16 %v687
    %v1968 = vunpack.c.l.b16 %v688
    %v1969 = vunpack.c.h.b16 %v688
    %v1970 = vunpack.c.l.b16 %v689
    %v1971 = vunpack.c.h.b16 %v689
    %v1972 = vunpack.c.l.b16 %v690
    %v1973 = vunpack.c.h.b16 %v690
    %v1974 = vunpack.c.l.b16 %v691
    %v1975 = vunpack.c.h.b16 %v691
    %v1976 = vunpack.c.l.b16 %v692
    %v1977 = vunpack.c.h.b16 %v692
    %v1978 = vunpack.c.l.b16 %v693
    %v1979 = vunpack.c.h.b16 %v693
    %v1980 = vunpack.c.l.b16 %v694
    %v1981 = vunpack.c.h.b16 %v694
    %v1982 = vunpack.c.l.b16 %v695
    %v1983 = vunpack.c.h.b16 %v695
    %v1984 = vunpack.c.l.b16 %v696
    %v1985 = vunpack.c.h.b16 %v696
    %v1986 = vunpack.c.l.b16 %v697
    %v1987 = vunpack.c.h.b16 %v697
    %v1988 = vunpack.c.l.b16 %v698
    %v1989 = vunpack.c.h.b16 %v698
    %v1990 = vunpack.c.l.b16 %v699
    %v1991 = vunpack.c.h.b16 %v699
    %v1992 = vunpack.c.l.b16 %v700
    %v1993 = vunpack.c.h.b16 %v700
    %v1994 = vunpack.c.l.b16 %v701
    %v1995 = vunpack.c.h.b16 %v701
    %v1996 = vunpack.c.l.b16 %v702
    %v1997 = vunpack.c.h.b16 %v702
    %v1998 = vunpack.c.l.b16 %v703
    %v1999 = vunpack.c.h.b16 %v703
    %v2000 = vunpack.c.l.b16 %v704
    %v2001 = vunpack.c.h.b16 %v704
    %v2002 = vunpack.c.l.b16 %v705
    %v2003 = vunpack.c.h.b16 %v705
    %v2004 = vunpack.c.l.b16 %v706
    %v2005 = vunpack.c.h.b16 %v706
    %v2006 = vunpack.c.l.b16 %v707
    %v2007 = vunpack.c.h.b16 %v707
    %v2008 = vunpack.c.l.b16 %v708
    %v2009 = vunpack.c.h.b16 %v708
    %v2010 = vunpack.c.l.b16 %v709
    %v2011 = vunpack.c.h.b16 %v709
    %v2012 = vunpack.c.l.b16 %v710
    %v2013 = vunpack.c.h.b16 %v710
    %v2014 = vunpack.c.l.b16 %v711
    %v2015 = vunpack.c.h.b16 %v711
    %v2016 = vunpack.c.l.b16 %v712
    %v2017 = vunpack.c.h.b16 %v712
    %v2018 = vunpack.c.l.b16 %v713
    %v2019 = vunpack.c.h.b16 %v713
    %v2020 = vunpack.c.l.b16 %v714
    %v2021 = vunpack.c.h.b16 %v714
    %v2022 = vunpack.c.l.b16 %v715
    %v2023 = vunpack.c.h.b16 %v715
    %v2024 = vunpack.c.l.b16 %v716
    %v2025 = vunpack.c.h.b16 %v716
    %v2026 = vunpack.c.l.b16 %v717
    %v2027 = vunpack.c.h.b16 %v717
    %v2028 = vunpack.c.l.b16 %v718
    %v2029 = vunpack.c.h.b16 %v718
    %v2030 = vunpack.c.l.b16 %v719
    %v2031 = vunpack.c.h.b16 %v719
    %v2032 = vunpack.c.l.b16 %v720
    %v2033 = vunpack.c.h.b16 %v720
    %v2034 = vunpack.c.l.b16 %v721
    %v2035 = vunpack.c.h.b16 %v721
    %v2036 = vunpack.c.l.b16 %v722
    %v2037 = vunpack.c.h.b16 %v722
    %v2038 = vunpack.c.l.b16 %v723
    %v2039 = vunpack.c.h.b16 %v723
    %v2040 = vunpack.c.l.b16 %v724
    %v2041 = vunpack.c.h.b16 %v724
    %v2042 = vunpack.c.l.b16 %v725
    %v2043 = vunpack.c.h.b16 %v725
    %v2044 = vunpack.c.l.b16 %v726
    %v2045 = vunpack.c.h.b16 %v726
    %v2046 = vunpack.c.l.b16 %v727
    %v2047 = vunpack.c.h.b16 %v727
    %v2048 = vunpack.c.l.b16 %v728
    %v2049 = vunpack.c.h.b16 %v728
    %v2050 = vunpack.c.l.b16 %v729
    %v2051 = vunpack.c.h.b16 %v729
    %v2052 = vunpack.c.l.b16 %v730
    %v2053 = vunpack.c.h.b16 %v730
    %v2054 = vunpack.c.l.b16 %v731
    %v2055 = vunpack.c.h.b16 %v731
    %v2056 = vunpack.c.l.b16 %v732
    %v2057 = vunpack.c.h.b16 %v732
    %v2058 = vunpack.c.l.b16 %v733
    %v2059 = vunpack.c.h.b16 %v733
    %v2060 = vunpack.c.l.b16 %v734
    %v2061 = vunpack.c.h.b16 %v734
    %v2062 = vunpack.c.l.b16 %v735
    %v2063 = vunpack.c.h.b16 %v735
    %v2064 = vunpack.c.l.b16 %v736
    %v2065 = vunpack.c.h.b16 %v736
    %v2066 = vunpack.c.l.b16 %v737
    %v2067 = vunpack.c.h.b16 %v737
    %v2068 = vunpack.c.l.b16 %v738
    %v2069 = vunpack.c.h.b16 %v738
    %v2070 = vunpack.c.l.b16 %v739
    %v2071 = vunpack.c.h.b16 %v739
    %v2072 = vunpack.c.l.b16 %v740
    %v2073 = vunpack.c.h.b16 %v740
    %v2074 = vunpack.c.l.b16 %v741
    %v2075 = vunpack.c.h.b16 %v741
    %v2076 = vunpack.c.l.b16 %v742
    %v2077 = vunpack.c.h.b16 %v742
    %v2078 = vunpack.c.l.b16 %v743
    %v2079 = vunpack.c.h.b16 %v743
    %v2080 = vunpack.c.l.b16 %v744
    %v2081 = vunpack.c.h.b16 %v744
    %v2082 = vunpack.c.l.b16 %v745
    %v2083 = vunpack.c.h.b16 %v745
    %v2084 = vunpack.c.l.b16 %v746
    %v2085 = vunpack.c.h.b16 %v746
    %v2086 = vunpack.c.l.b16 %v747
    %v2087 = vunpack.c.h.b16 %v747
    %v2088 = vunpack.c.l.b16 %v748
    %v2089 = vunpack.c.h.b16 %v748
    %v2090 = vunpack.c.l.b16 %v749
    %v2091 = vunpack.c.h.b16 %v749
    %v2092 = vunpack.c.l.b16 %v750
    %v2093 = vunpack.c.h.b16 %v750
    %v2094 = vunpack.c.l.b16 %v751
    %v2095 = vunpack.c.h.b16 %v751
    %v2096 = vunpack.c.l.b16 %v752
    %v2097 = vunpack.c.h.b16 %v752
    %v2098 = vunpack.c.l.b16 %v753
    %v2099 = vunpack.c.h.b16 %v753
    %v2100 = vunpack.c.l.b16 %v754
    %v2101 = vunpack.c.h.b16 %v754
    %v2102 = vunpack.c.l.b16 %v755
    %v2103 = vunpack.c.h.b16 %v755
    %v2104 = vunpack.c.l.b16 %v756
    %v2105 = vunpack.c.h.b16 %v756
    %v2106 = vunpack.c.l.b16 %v757
    %v2107 = vunpack.c.h.b16 %v757
    %v2108 = vunpack.c.l.b16 %v758
    %v2109 = vunpack.c.h.b16 %v758
    %v2110 = vunpack.c.l.b16 %v759
    %v2111 = vunpack.c.h.b16 %v759
    %v2112 = vunpack.c.l.b16 %v760
    %v2113 = vunpack.c.h.b16 %v760
    %v2114 = vunpack.c.l.b16 %v761
    %v2115 = vunpack.c.h.b16 %v761
    %v2116 = vunpack.c.l.b16 %v762
    %v2117 = vunpack.c.h.b16 %v762
    %v2118 = vunpack.c.l.b16 %v763
    %v2119 = vunpack.c.h.b16 %v763
    %v2120 = vunpack.c.l.b16 %v764
    %v2121 = vunpack.c.h.b16 %v764
    %v2122 = vunpack.c.l.b16 %v765
    %v2123 = vunpack.c.h.b16 %v765
    %v2124 = vunpack.c.l.b16 %v766
    %v2125 = vunpack.c.h.b16 %v766
    %v2126 = vunpack.c.l.b16 %v767
    %v2127 = vunpack.c.h.b16 %v767
    %v2128 = vunpack.c.l.b16 %v768
    %v2129 = vunpack.c.h.b16 %v768
    %v2130 = vunpack.c.l.b16 %v769
    %v2131 = vunpack.c.h.b16 %v769
    %v2132 = vunpack.c.l.b16 %v770
    %v2133 = vunpack.c.h.b16 %v770
    %v2134 = vunpack.c.l.b16 %v771
    %v2135 = vunpack.c.h.b16 %v771
    %v2136 = vunpack.c.l.b16 %v772
    %v2137 = vunpack.c.h.b16 %v772
    %v2138 = vunpack.c.l.b16 %v773
    %v2139 = vunpack.c.h.b16 %v773
    %v2140 = vunpack.c.l.b16 %v774
    %v2141 = vunpack.c.h.b16 %v774
    %v2142 = vunpack.c.l.b16 %v775
    %v2143 = vunpack.c.h.b16 %v775
    %v2144 = vunpack.c.l.b16 %v776
    %v2145 = vunpack.c.h.b16 %v776
    %v2146 = vunpack.c.l.b16 %v777
    %v2147 = vunpack.c.h.b16 %v777
    %v2148 = vunpack.c.l.b16 %v778
    %v2149 = vunpack.c.h.b16 %v778
    %v2150 = vunpack.c.l.b16 %v779
    %v2151 = vunpack.c.h.b16 %v779
    %v2152 = vunpack.c.l.b16 %v780
    %v2153 = vunpack.c.h.b16 %v780
    %v2154 = vunpack.c.l.b16 %v781
    %v2155 = vunpack.c.h.b16 %v781
    %v2156 = vunpack.c.l.b16 %v782
    %v2157 = vunpack.c.h.b16 %v782
    %v2158 = vunpack.c.l.b16 %v783
    %v2159 = vunpack.c.h.b16 %v783
    %v2160 = vunpack.c.l.b16 %v784
    %v2161 = vunpack.c.h.b16 %v784
    %v2162 = vunpack.c.l.b16 %v785
    %v2163 = vunpack.c.h.b16 %v785
    %v2164 = vunpack.c.l.b16 %v786
    %v2165 = vunpack.c.h.b16 %v786
    %v2166 = vunpack.c.l.b16 %v787
    %v2167 = vunpack.c.h.b16 %v787
    %v2168 = vunpack.c.l.b16 %v788
    %v2169 = vunpack.c.h.b16 %v788
    %v2170 = vunpack.c.l.b16 %v789
    %v2171 = vunpack.c.h.b16 %v789
    %v2172 = vunpack.c.l.b16 %v790
    %v2173 = vunpack.c.h.b16 %v790
    %v2174 = vunpack.c.l.b16 %v791
    %v2175 = vunpack.c.h.b16 %v791
    %v2176 = vunpack.c.l.b16 %v792
    %v2177 = vunpack.c.h.b16 %v792
    %v2178 = vunpack.c.l.b16 %v793
    %v2179 = vunpack.c.h.b16 %v793
    %v2180 = vunpack.c.l.b16 %v794
    %v2181 = vunpack.c.h.b16 %v794
    %v2182 = vunpack.c.l.b16 %v795
    %v2183 = vunpack.c.h.b16 %v795
    %v2184 = vunpack.c.l.b16 %v796
    %v2185 = vunpack.c.h.b16 %v796
    %v2186 = vunpack.c.l.b16 %v797
    %v2187 = vunpack.c.h.b16 %v797
    %v2188 = vunpack.c.l.b16 %v798
    %v2189 = vunpack.c.h.b16 %v798
    %v2190 = vunpack.c.l.b16 %v799
    %v2191 = vunpack.c.h.b16 %v799
    %v2192 = vunpack.c.l.b16 %v800
    %v2193 = vunpack.c.h.b16 %v800
    %v2194 = vunpack.c.l.b16 %v801
    %v2195 = vunpack.c.h.b16 %v801
    %v2196 = vunpack.c.l.b16 %v802
    %v2197 = vunpack.c.h.b16 %v802
    %v2198 = vunpack.c.l.b16 %v803
    %v2199 = vunpack.c.h.b16 %v803
    %v2200 = vunpack.c.l.b16 %v804
    %v2201 = vunpack.c.h.b16 %v804
    %v2202 = vunpack.c.l.b16 %v805
    %v2203 = vunpack.c.h.b16 %v805
    %v2204 = vunpack.c.l.b16 %v806
    %v2205 = vunpack.c.h.b16 %v806
    %v2206 = vunpack.c.l.b16 %v807
    %v2207 = vunpack.c.h.b16 %v807
    %v2208 = vunpack.c.l.b16 %v808
    %v2209 = vunpack.c.h.b16 %v808
    %v2210 = vunpack.c.l.b16 %v809
    %v2211 = vunpack.c.h.b16 %v809
    %v2212 = vunpack.c.l.b16 %v810
    %v2213 = vunpack.c.h.b16 %v810
    %v2214 = vunpack.c.l.b16 %v811
    %v2215 = vunpack.c.h.b16 %v811
    %v2216 = vunpack.c.l.b16 %v812
    %v2217 = vunpack.c.h.b16 %v812
    %v2218 = vunpack.c.l.b16 %v813
    %v2219 = vunpack.c.h.b16 %v813
    %v2220 = vunpack.c.l.b16 %v814
    %v2221 = vunpack.c.h.b16 %v814
    %v2222 = vunpack.c.l.b16 %v815
    %v2223 = vunpack.c.h.b16 %v815
    %v2224 = vunpack.c.l.b16 %v816
    %v2225 = vunpack.c.h.b16 %v816
    %v2226 = vunpack.c.l.b16 %v817
    %v2227 = vunpack.c.h.b16 %v817
    %v2228 = vunpack.c.l.b16 %v818
    %v2229 = vunpack.c.h.b16 %v818
    %v2230 = vunpack.c.l.b16 %v819
    %v2231 = vunpack.c.h.b16 %v819
    %v2232 = vunpack.c.l.b16 %v820
    %v2233 = vunpack.c.h.b16 %v820
    %v2234 = vunpack.c.l.b16 %v821
    %v2235 = vunpack.c.h.b16 %v821
    %v2236 = vunpack.c.l.b16 %v822
    %v2237 = vunpack.c.h.b16 %v822
    %v2238 = vunpack.c.l.b16 %v823
    %v2239 = vunpack.c.h.b16 %v823
    %v2240 = vunpack.c.l.b16 %v824
    %v2241 = vunpack.c.h.b16 %v824
    %v2242 = vunpack.c.l.b16 %v825
    %v2243 = vunpack.c.h.b16 %v825
    %v2244 = vunpack.c.l.b16 %v826
    %v2245 = vunpack.c.h.b16 %v826
    %v2246 = vunpack.c.l.b16 %v827
    %v2247 = vunpack.c.h.b16 %v827
    %v2248 = vunpack.c.l.b16 %v828
    %v2249 = vunpack.c.h.b16 %v828
    %v2250 = vunpack.c.l.b16 %v829
    %v2251 = vunpack.c.h.b16 %v829
    %v2252 = vunpack.c.l.b16 %v830
    %v2253 = vunpack.c.h.b16 %v830
    %v2254 = vunpack.c.l.b16 %v831
    %v2255 = vunpack.c.h.b16 %v831
    %v2256 = vunpack.c.l.b16 %v832
    %v2257 = vunpack.c.h.b16 %v832
    %v2258 = vunpack.c.l.b16 %v833
    %v2259 = vunpack.c.h.b16 %v833
    %v2260 = vunpack.c.l.b16 %v834
    %v2261 = vunpack.c.h.b16 %v834
    %v2262 = vunpack.c.l.b16 %v835
    %v2263 = vunpack.c.h.b16 %v835
    %v2264 = vunpack.c.l.b16 %v836
    %v2265 = vunpack.c.h.b16 %v836
    %v2266 = vunpack.c.l.b16 %v837
    %v2267 = vunpack.c.h.b16 %v837
    %v2268 = vunpack.c.l.b16 %v838
    %v2269 = vunpack.c.h.b16 %v838
    %v2270 = vunpack.c.l.b16 %v839
    %v2271 = vunpack.c.h.b16 %v839
    %v2272 = vunpack.c.l.b16 %v840
    %v2273 = vunpack.c.h.b16 %v840
    %v2274 = vunpack.c.l.b16 %v841
    %v2275 = vunpack.c.h.b16 %v841
    %v2276 = vunpack.c.l.b16 %v842
    %v2277 = vunpack.c.h.b16 %v842
    %v2278 = vunpack.c.l.b16 %v843
    %v2279 = vunpack.c.h.b16 %v843
    %v2280 = vunpack.c.l.b16 %v844
    %v2281 = vunpack.c.h.b16 %v844
    %v2282 = vunpack.c.l.b16 %v845
    %v2283 = vunpack.c.h.b16 %v845
    %v2284 = vunpack.c.l.b16 %v846
    %v2285 = vunpack.c.h.b16 %v846
    %v2286 = vunpack.c.l.b16 %v847
    %v2287 = vunpack.c.h.b16 %v847
    %v2288 = vunpack.c.l.b16 %v848
    %v2289 = vunpack.c.h.b16 %v848
    %v2290 = vunpack.c.l.b16 %v849
    %v2291 = vunpack.c.h.b16 %v849
    %v2292 = vunpack.c.l.b16 %v850
    %v2293 = vunpack.c.h.b16 %v850
    %v2294 = vunpack.c.l.b16 %v851
    %v2295 = vunpack.c.h.b16 %v851
    %v2296 = vunpack.c.l.b16 %v852
    %v2297 = vunpack.c.h.b16 %v852
    %v2298 = vunpack.c.l.b16 %v853
    %v2299 = vunpack.c.h.b16 %v853
    %v2300 = vunpack.c.l.b16 %v854
    %v2301 = vunpack.c.h.b16 %v854
    %v2302 = vunpack.c.l.b16 %v855
    %v2303 = vunpack.c.h.b16 %v855
    %v2304 = vunpack.c.l.b16 %v856
    %v2305 = vunpack.c.h.b16 %v856
    %v2306 = vunpack.c.l.b16 %v857
    %v2307 = vunpack.c.h.b16 %v857
    %v2308 = vunpack.c.l.b16 %v858
    %v2309 = vunpack.c.h.b16 %v858
    %v2310 = vunpack.c.l.b16 %v859
    %v2311 = vunpack.c.h.b16 %v859
    %v2312 = vunpack.c.l.b16 %v860
    %v2313 = vunpack.c.h.b16 %v860
    %v2314 = vunpack.c.l.b16 %v861
    %v2315 = vunpack.c.h.b16 %v861
    %v2316 = vunpack.c.l.b16 %v862
    %v2317 = vunpack.c.h.b16 %v862
    %v2318 = vunpack.c.l.b16 %v863
    %v2319 = vunpack.c.h.b16 %v863
    %v2320 = vunpack.c.l.b16 %v864
    %v2321 = vunpack.c.h.b16 %v864
    %v2322 = vunpack.c.l.b16 %v865
    %v2323 = vunpack.c.h.b16 %v865
    %v2324 = vunpack.c.l.b16 %v866
    %v2325 = vunpack.c.h.b16 %v866
    %v2326 = vunpack.c.l.b16 %v867
    %v2327 = vunpack.c.h.b16 %v867
    %v2328 = vunpack.c.l.b16 %v868
    %v2329 = vunpack.c.h.b16 %v868
    %v2330 = vunpack.c.l.b16 %v869
    %v2331 = vunpack.c.h.b16 %v869
    %v2332 = vunpack.c.l.b16 %v870
    %v2333 = vunpack.c.h.b16 %v870
    %v2334 = vunpack.c.l.b16 %v871
    %v2335 = vunpack.c.h.b16 %v871
    %v2336 = vunpack.c.l.b16 %v872
    %v2337 = vunpack.c.h.b16 %v872
    %v2338 = vunpack.c.l.b16 %v873
    %v2339 = vunpack.c.h.b16 %v873
    %v2340 = vunpack.c.l.b16 %v874
    %v2341 = vunpack.c.h.b16 %v874
    %v2342 = vunpack.c.l.b16 %v875
    %v2343 = vunpack.c.h.b16 %v875
    %v2344 = vunpack.c.l.b16 %v876
    %v2345 = vunpack.c.h.b16 %v876
    %v2346 = vunpack.c.l.b16 %v877
    %v2347 = vunpack.c.h.b16 %v877
    %v2348 = vunpack.c.l.b16 %v878
    %v2349 = vunpack.c.h.b16 %v878
    %v2350 = vunpack.c.l.b16 %v879
    %v2351 = vunpack.c.h.b16 %v879
    %v2352 = vunpack.c.l.b16 %v880
    %v2353 = vunpack.c.h.b16 %v880
    %v2354 = vunpack.c.l.b16 %v881
    %v2355 = vunpack.c.h.b16 %v881
    %v2356 = vunpack.c.l.b16 %v882
    %v2357 = vunpack.c.h.b16 %v882
    %v2358 = vunpack.c.l.b16 %v883
    %v2359 = vunpack.c.h.b16 %v883
    %v2360 = vunpack.c.l.b16 %v884
    %v2361 = vunpack.c.h.b16 %v884
    %v2362 = vunpack.c.l.b16 %v885
    %v2363 = vunpack.c.h.b16 %v885
    %v2364 = vunpack.c.l.b16 %v886
    %v2365 = vunpack.c.h.b16 %v886
    %v2366 = vunpack.c.l.b16 %v887
    %v2367 = vunpack.c.h.b16 %v887
    %v2368 = vunpack.c.l.b16 %v888
    %v2369 = vunpack.c.h.b16 %v888
    %v2370 = vunpack.c.l.b16 %v889
    %v2371 = vunpack.c.h.b16 %v889
    %v2372 = vunpack.c.l.b16 %v890
    %v2373 = vunpack.c.h.b16 %v890
    %v2374 = vunpack.c.l.b16 %v891
    %v2375 = vunpack.c.h.b16 %v891
    %v2376 = vunpack.c.l.b16 %v892
    %v2377 = vunpack.c.h.b16 %v892
    %v2378 = vunpack.c.l.b16 %v893
    %v2379 = vunpack.c.h.b16 %v893
    %v2380 = vunpack.c.l.b16 %v894
    %v2381 = vunpack.c.h.b16 %v894
    %v2382 = vunpack.c.l.b16 %v895
    %v2383 = vunpack.c.h.b16 %v895
    %v2384 = vunpack.c.l.b16 %v896
    %v2385 = vunpack.c.h.b16 %v896
    %v2386 = vunpack.c.l.b16 %v897
    %v2387 = vunpack.c.h.b16 %v897
    %v2388 = vunpack.c.l.b16 %v898
    %v2389 = vunpack.c.h.b16 %v898
    %v2390 = vunpack.c.l.b16 %v899
    %v2391 = vunpack.c.h.b16 %v899
    %v2392 = vunpack.c.l.b16 %v900
    %v2393 = vunpack.c.h.b16 %v900
    %v2394 = vunpack.c.l.b16 %v901
    %v2395 = vunpack.c.h.b16 %v901
    %v2396 = vunpack.c.l.b16 %v902
    %v2397 = vunpack.c.h.b16 %v902
    %v2398 = vunpack.c.l.b16 %v903
    %v2399 = vunpack.c.h.b16 %v903
    %v2400 = vunpack.c.l.b16 %v904
    %v2401 = vunpack.c.h.b16 %v904
    %v2402 = vunpack.c.l.b16 %v905
    %v2403 = vunpack.c.h.b16 %v905
    %v2404 = vunpack.c.l.b16 %v906
    %v2405 = vunpack.c.h.b16 %v906
    %v2406 = vunpack.c.l.b16 %v907
    %v2407 = vunpack.c.h.b16 %v907
    %v2408 = vunpack.c.l.b16 %v908
    %v2409 = vunpack.c.h.b16 %v908
    %v2410 = vunpack.c.l.b16 %v909
    %v2411 = vunpack.c.h.b16 %v909
    %v2412 = vunpack.c.l.b16 %v910
    %v2413 = vunpack.c.h.b16 %v910
    %v2414 = vunpack.c.l.b16 %v911
    %v2415 = vunpack.c.h.b16 %v911
    %v2416 = vunpack.c.l.b16 %v912
    %v2417 = vunpack.c.h.b16 %v912
    %v2418 = vunpack.c.l.b16 %v913
    %v2419 = vunpack.c.h.b16 %v913
    %v2420 = vunpack.c.l.b16 %v914
    %v2421 = vunpack.c.h.b16 %v914
    %v2422 = vunpack.c.l.b16 %v915
    %v2423 = vunpack.c.h.b16 %v915
    %v2424 = vunpack.c.l.b16 %v916
    %v2425 = vunpack.c.h.b16 %v916
    %v2426 = vunpack.c.l.b16 %v917
    %v2427 = vunpack.c.h.b16 %v917
    %v2428 = vunpack.c.l.b16 %v918
    %v2429 = vunpack.c.h.b16 %v918
    %v2430 = vunpack.c.l.b16 %v919
    %v2431 = vunpack.c.h.b16 %v919
    %v2432 = vunpack.c.l.b16 %v920
    %v2433 = vunpack.c.h.b16 %v920
    %v2434 = vunpack.c.l.b16 %v921
    %v2435 = vunpack.c.h.b16 %v921
    %v2436 = vunpack.c.l.b16 %v922
    %v2437 = vunpack.c.h.b16 %v922
    %v2438 = vunpack.c.l.b16 %v923
    %v2439 = vunpack.c.h.b16 %v923
    %v2440 = vunpack.c.l.b16 %v924
    %v2441 = vunpack.c.h.b16 %v924
    %v2442 = vunpack.c.l.b16 %v925
    %v2443 = vunpack.c.h.b16 %v925
    %v2444 = vunpack.c.l.b16 %v926
    %v2445 = vunpack.c.h.b16 %v926
    %v2446 = vunpack.c.l.b16 %v927
    %v2447 = vunpack.c.h.b16 %v927
    %v2448 = vunpack.c.l.b16 %v928
    %v2449 = vunpack.c.h.b16 %v928
    %v2450 = vunpack.c.l.b16 %v929
    %v2451 = vunpack.c.h.b16 %v929
    %v2452 = vunpack.c.l.b16 %v930
    %v2453 = vunpack.c.h.b16 %v930
    %v2454 = vunpack.c.l.b16 %v931
    %v2455 = vunpack.c.h.b16 %v931
    %v2456 = vunpack.c.l.b16 %v932
    %v2457 = vunpack.c.h.b16 %v932
    %v2458 = vunpack.c.l.b16 %v933
    %v2459 = vunpack.c.h.b16 %v933
    %v2460 = vunpack.c.l.b16 %v934
    %v2461 = vunpack.c.h.b16 %v934
    %v2462 = vunpack.c.l.b16 %v935
    %v2463 = vunpack.c.h.b16 %v935
    %v2464 = vunpack.c.l.b16 %v936
    %v2465 = vunpack.c.h.b16 %v936
    %v2466 = vunpack.c.l.b16 %v937
    %v2467 = vunpack.c.h.b16 %v937
    %v2468 = vunpack.c.l.b16 %v938
    %v2469 = vunpack.c.h.b16 %v938
    %v2470 = vunpack.c.l.b16 %v939
    %v2471 = vunpack.c.h.b16 %v939
    %v2472 = vunpack.c.l.b16 %v940
    %v2473 = vunpack.c.h.b16 %v940
    %v2474 = vunpack.c.l.b16 %v941
    %v2475 = vunpack.c.h.b16 %v941
    %v2476 = vunpack.c.l.b16 %v942
    %v2477 = vunpack.c.h.b16 %v942
    %v2478 = vunpack.c.l.b16 %v943
    %v2479 = vunpack.c.h.b16 %v943
    %v2480 = vunpack.c.l.b16 %v944
    %v2481 = vunpack.c.h.b16 %v944
    %v2482 = vunpack.c.l.b16 %v945
    %v2483 = vunpack.c.h.b16 %v945
    %v2484 = vunpack.c.l.b16 %v946
    %v2485 = vunpack.c.h.b16 %v946
    %v2486 = vunpack.c.l.b16 %v947
    %v2487 = vunpack.c.h.b16 %v947
    %v2488 = vunpack.c.l.b16 %v948
    %v2489 = vunpack.c.h.b16 %v948
    %v2490 = vunpack.c.l.b16 %v949
    %v2491 = vunpack.c.h.b16 %v949
    %v2492 = vunpack.c.l.b16 %v950
    %v2493 = vunpack.c.h.b16 %v950
    %v2494 = vunpack.c.l.b16 %v951
    %v2495 = vunpack.c.h.b16 %v951
    %v2496 = vunpack.c.l.b16 %v952
    %v2497 = vunpack.c.h.b16 %v952
    %v2498 = vunpack.c.l.b16 %v953
    %v2499 = vunpack.c.h.b16 %v953
    %v2500 = vunpack.c.l.b16 %v954
    %v2501 = vunpack.c.h.b16 %v954
    %v2502 = vunpack.c.l.b16 %v955
    %v2503 = vunpack.c.h.b16 %v955
    %v2504 = vunpack.c.l.b16 %v956
    %v2505 = vunpack.c.h.b16 %v956
    %v2506 = vunpack.c.l.b16 %v957
    %v2507 = vunpack.c.h.b16 %v957
    %v2508 = vunpack.c.l.b16 %v958
    %v2509 = vunpack.c.h.b16 %v958
    %v2510 = vunpack.c.l.b16 %v959
    %v2511 = vunpack.c.h.b16 %v959
    %v2512 = vunpack.c.l.b16 %v960
    %v2513 = vunpack.c.h.b16 %v960
    %v2514 = vunpack.c.l.b16 %v961
    %v2515 = vunpack.c.h.b16 %v961
    %v2516 = vpack.c.b16 %v1500, %v1492
    %v2517 = vpack.c.b16 %v1501, %v1493
    %v2518 = vpack.c.b16 %v1502, %v1494
    %v2519 = vpack.c.b16 %v1503, %v1495
    %v2520 = vpack.c.b16 %v1504, %v1496
    %v2521 = vpack.c.b16 %v1505, %v1497
    %v2522 = vpack.c.b16 %v1506, %v1498
    %v2523 = vpack.c.b16 %v1507, %v1499
    %v2524 = vpack.c.b16 %v1516, %v1508
    %v2525 = vpack.c.b16 %v1517, %v1509
    %v2526 = vpack.c.b16 %v1518, %v1510
    %v2527 = vpack.c.b16 %v1519, %v1511
    %v2528 = vpack.c.b16 %v1520, %v1512
    %v2529 = vpack.c.b16 %v1521, %v1513
    %v2530 = vpack.c.b16 %v1522, %v1514
    %v2531 = vpack.c.b16 %v1523, %v1515
    %v2532 = vpack.c.b16 %v1532, %v1524
    %v2533 = vpack.c.b16 %v1533, %v1525
    %v2534 = vpack.c.b16 %v1534, %v1526
    %v2535 = vpack.c.b16 %v1535, %v1527
    %v2536 = vpack.c.b16 %v1536, %v1528
    %v2537 = vpack.c.b16 %v1537, %v1529
    %v2538 = vpack.c.b16 %v1538, %v1530
    %v2539 = vpack.c.b16 %v1539, %v1531
    %v2540 = vpack.c.b16 %v1548, %v1540
    %v2541 = vpack.c.b16 %v1549, %v1541
    %v2542 = vpack.c.b16 %v1550, %v1542
    %v2543 = vpack.c.b16 %v1551, %v1543
    %v2544 = vpack.c.b16 %v1552, %v1544
    %v2545 = vpack.c.b16 %v1553, %v1545
    %v2546 = vpack.c.b16 %v1554, %v1546
    %v2547 = vpack.c.b16 %v1555, %v1547
    %v2548 = vpack.c.b16 %v1564, %v1556
    %v2549 = vpack.c.b16 %v1565, %v1557
    %v2550 = vpack.c.b16 %v1566, %v1558
    %v2551 = vpack.c.b16 %v1567, %v1559
    %v2552 = vpack.c.b16 %v1568, %v1560
    %v2553 = vpack.c.b16 %v1569, %v1561
    %v2554 = vpack.c.b16 %v1570, %v1562
    %v2555 = vpack.c.b16 %v1571, %v1563
    %v2556 = vpack.c.b16 %v1580, %v1572
    %v2557 = vpack.c.b16 %v1581, %v1573
    %v2558 = vpack.c.b16 %v1582, %v1574
    %v2559 = vpack.c.b16 %v1583, %v1575
    %v2560 = vpack.c.b16 %v1584, %v1576
    %v2561 = vpack.c.b16 %v1585, %v1577
    %v2562 = vpack.c.b16 %v1586, %v1578
    %v2563 = vpack.c.b16 %v1587, %v1579
    %v2564 = vpack.c.b16 %v1596, %v1588
    %v2565 = vpack.c.b16 %v1597, %v1589
    %v2566 = vpack.c.b16 %v1598, %v1590
    %v2567 = vpack.c.b16 %v1599, %v1591
    %v2568 = vpack.c.b16 %v1600, %v1592
    %v2569 = vpack.c.b16 %v1601, %v1593
    %v2570 = vpack.c.b16 %v1602, %v1594
    %v2571 = vpack.c.b16 %v1603, %v1595
    %v2572 = vpack.c.b16 %v1612, %v1604
    %v2573 = vpack.c.b16 %v1613, %v1605
    %v2574 = vpack.c.b16 %v1614, %v1606
    %v2575 = vpack.c.b16 %v1615, %v1607
    %v2576 = vpack.c.b16 %v1616, %v1608
    %v2577 = vpack.c.b16 %v1617, %v1609
    %v2578 = vpack.c.b16 %v1618, %v1610
    %v2579 = vpack.c.b16 %v1619, %v1611
    %v2580 = vpack.c.b16 %v1628, %v1620
    %v2581 = vpack.c.b16 %v1629, %v1621
    %v2582 = vpack.c.b16 %v1630, %v1622
    %v2583 = vpack.c.b16 %v1631, %v1623
    %v2584 = vpack.c.b16 %v1632, %v1624
    %v2585 = vpack.c.b16 %v1633, %v1625
    %v2586 = vpack.c.b16 %v1634, %v1626
    %v2587 = vpack.c.b16 %v1635, %v1627
    %v2588 = vpack.c.b16 %v1644, %v1636
    %v2589 = vpack.c.b16 %v1645, %v1637
    %v2590 = vpack.c.b16 %v1646, %v1638
    %v2591 = vpack.c.b16 %v1647, %v1639
    %v2592 = vpack.c.b16 %v1648, %v1640
    %v2593 = vpack.c.b16 %v1649, %v1641
    %v2594 = vpack.c.b16 %v1650, %v1642
    %v2595 = vpack.c.b16 %v1651, %v1643
    %v2596 = vpack.c.b16 %v1660, %v1652
    %v2597 = vpack.c.b16 %v1661, %v1653
    %v2598 = vpack.c.b16 %v1662, %v1654
    %v2599 = vpack.c.b16 %v1663, %v1655
    %v2600 = vpack.c.b16 %v1664, %v1656
    %v2601 = vpack.c.b16 %v1665, %v1657
    %v2602 = vpack.c.b16 %v1666, %v1658
    %v2603 = vpack.c.b16 %v1667, %v1659
    %v2604 = vpack.c.b16 %v1676, %v1668
    %v2605 = vpack.c.b16 %v1677, %v1669
    %v2606 = vpack.c.b16 %v1678, %v1670
    %v2607 = vpack.c.b16 %v1679, %v1671
    %v2608 = vpack.c.b16 %v1680, %v1672
    %v2609 = vpack.c.b16 %v1681, %v1673
    %v2610 = vpack.c.b16 %v1682, %v1674
    %v2611 = vpack.c.b16 %v1683, %v1675
    %v2612 = vpack.c.b16 %v1692, %v1684
    %v2613 = vpack.c.b16 %v1693, %v1685
    %v2614 = vpack.c.b16 %v1694, %v1686
    %v2615 = vpack.c.b16 %v1695, %v1687
    %v2616 = vpack.c.b16 %v1696, %v1688
    %v2617 = vpack.c.b16 %v1697, %v1689
    %v2618 = vpack.c.b16 %v1698, %v1690
    %v2619 = vpack.c.b16 %v1699, %v1691
    %v2620 = vpack.c.b16 %v1708, %v1700
    %v2621 = vpack.c.b16 %v1709, %v1701
    %v2622 = vpack.c.b16 %v1710, %v1702
    %v2623 = vpack.c.b16 %v1711, %v1703
    %v2624 = vpack.c.b16 %v1712, %v1704
    %v2625 = vpack.c.b16 %v1713, %v1705
    %v2626 = vpack.c.b16 %v1714, %v1706
    %v2627 = vpack.c.b16 %v1715, %v1707
    %v2628 = vpack.c.b16 %v1724, %v1716
    %v2629 = vpack.c.b16 %v1725, %v1717
    %v2630 = vpack.c.b16 %v1726, %v1718
    %v2631 = vpack.c.b16 %v1727, %v1719
    %v2632 = vpack.c.b16 %v1728, %v1720
    %v2633 = vpack.c.b16 %v1729, %v1721
    %v2634 = vpack.c.b16 %v1730, %v1722
    %v2635 = vpack.c.b16 %v1731, %v1723
    %v2636 = vpack.c.b16 %v1740, %v1732
    %v2637 = vpack.c.b16 %v1741, %v1733
    %v2638 = vpack.c.b16 %v1742, %v1734
    %v2639 = vpack.c.b16 %v1743, %v1735
    %v2640 = vpack.c.b16 %v1744, %v1736
    %v2641 = vpack.c.b16 %v1745, %v1737
    %v2642 = vpack.c.b16 %v1746, %v1738
    %v2643 = vpack.c.b16 %v1747, %v1739
    %v2644 = vpack.c.b16 %v1756, %v1748
    %v2645 = vpack.c.b16 %v1757, %v1749
    %v2646 = vpack.c.b16 %v1758, %v1750
    %v2647 = vpack.c.b16 %v1759, %v1751
    %v2648 = vpack.c.b16 %v1760, %v1752
    %v2649 = vpack.c.b16 %v1761, %v1753
    %v2650 = vpack.c.b16 %v1762, %v1754
    %v2651 = vpack.c.b16 %v1763, %v1755
    %v2652 = vpack.c.b16 %v1772, %v1764
    %v2653 = vpack.c.b16 %v1773, %v1765
    %v2654 = vpack.c.b16 %v1774, %v1766
    %v2655 = vpack.c.b16 %v1775, %v1767
    %v2656 = vpack.c.b16 %v1776, %v1768
    %v2657 = vpack.c.b16 %v1777, %v1769
    %v2658 = vpack.c.b16 %v1778, %v1770
    %v2659 = vpack.c.b16 %v1779, %v1771
    %v2660 = vpack.c.b16 %v1788, %v1780
    %v2661 = vpack.c.b16 %v1789, %v1781
    %v2662 = vpack.c.b16 %v1790, %v1782
    %v2663 = vpack.c.b16 %v1791, %v1783
    %v2664 = vpack.c.b16 %v1792, %v1784
    %v2665 = vpack.c.b16 %v1793, %v1785
    %v2666 = vpack.c.b16 %v1794, %v1786
    %v2667 = vpack.c.b16 %v1795, %v1787
    %v2668 = vpack.c.b16 %v1804, %v1796
    %v2669 = vpack.c.b16 %v1805, %v1797
    %v2670 = vpack.c.b16 %v1806, %v1798
    %v2671 = vpack.c.b16 %v1807, %v1799
    %v2672 = vpack.c.b16 %v1808, %v1800
    %v2673 = vpack.c.b16 %v1809, %v1801
    %v2674 = vpack.c.b16 %v1810, %v1802
    %v2675 = vpack.c.b16 %v1811, %v1803
    %v2676 = vpack.c.b16 %v1820, %v1812
    %v2677 = vpack.c.b16 %v1821, %v1813
    %v2678 = vpack.c.b16 %v1822, %v1814
    %v2679 = vpack.c.b16 %v1823, %v1815
    %v2680 = vpack.c.b16 %v1824, %v1816
    %v2681 = vpack.c.b16 %v1825, %v1817
    %v2682 = vpack.c.b16 %v1826, %v1818
    %v2683 = vpack.c.b16 %v1827, %v1819
    %v2684 = vpack.c.b16 %v1836, %v1828
    %v2685 = vpack.c.b16 %v1837, %v1829
    %v2686 = vpack.c.b16 %v1838, %v1830
    %v2687 = vpack.c.b16 %v1839, %v1831
    %v2688 = vpack.c.b16 %v1840, %v1832
    %v2689 = vpack.c.b16 %v1841, %v1833
    %v2690 = vpack.c.b16 %v1842, %v1834
    %v2691 = vpack.c.b16 %v1843, %v1835
    %v2692 = vpack.c.b16 %v1852, %v1844
    %v2693 = vpack.c.b16 %v1853, %v1845
    %v2694 = vpack.c.b16 %v1854, %v1846
    %v2695 = vpack.c.b16 %v1855, %v1847
    %v2696 = vpack.c.b16 %v1856, %v1848
    %v2697 = vpack.c.b16 %v1857, %v1849
    %v2698 = vpack.c.b16 %v1858, %v1850
    %v2699 = vpack.c.b16 %v1859, %v1851
    %v2700 = vpack.c.b16 %v1868, %v1860
    %v2701 = vpack.c.b16 %v1869, %v1861
    %v2702 = vpack.c.b16 %v1870, %v1862
    %v2703 = vpack.c.b16 %v1871, %v1863
    %v2704 = vpack.c.b16 %v1872, %v1864
    %v2705 = vpack.c.b16 %v1873, %v1865
    %v2706 = vpack.c.b16 %v1874, %v1866
    %v2707 = vpack.c.b16 %v1875, %v1867
    %v2708 = vpack.c.b16 %v1884, %v1876
    %v2709 = vpack.c.b16 %v1885, %v1877
    %v2710 = vpack.c.b16 %v1886, %v1878
    %v2711 = vpack.c.b16 %v1887, %v1879
    %v2712 = vpack.c.b16 %v1888, %v1880
    %v2713 = vpack.c.b16 %v1889, %v1881
    %v2714 = vpack.c.b16 %v1890, %v1882
    %v2715 = vpack.c.b16 %v1891, %v1883
    %v2716 = vpack.c.b16 %v1900, %v1892
    %v2717 = vpack.c.b16 %v1901, %v1893
    %v2718 = vpack.c.b16 %v1902, %v1894
    %v2719 = vpack.c.b16 %v1903, %v1895
    %v2720 = vpack.c.b16 %v1904, %v1896
    %v2721 = vpack.c.b16 %v1905, %v1897
    %v2722 = vpack.c.b16 %v1906, %v1898
    %v2723 = vpack.c.b16 %v1907, %v1899
    %v2724 = vpack.c.b16 %v1916, %v1908
    %v2725 = vpack.c.b16 %v1917, %v1909
    %v2726 = vpack.c.b16 %v1918, %v1910
    %v2727 = vpack.c.b16 %v1919, %v1911
    %v2728 = vpack.c.b16 %v1920, %v1912
    %v2729 = vpack.c.b16 %v1921, %v1913
    %v2730 = vpack.c.b16 %v1922, %v1914
    %v2731 = vpack.c.b16 %v1923, %v1915
    %v2732 = vpack.c.b16 %v1932, %v1924
    %v2733 = vpack.c.b16 %v1933, %v1925
    %v2734 = vpack.c.b16 %v1934, %v1926
    %v2735 = vpack.c.b16 %v1935, %v1927
    %v2736 = vpack.c.b16 %v1936, %v1928
    %v2737 = vpack.c.b16 %v1937, %v1929
    %v2738 = vpack.c.b16 %v1938, %v1930
    %v2739 = vpack.c.b16 %v1939, %v1931
    %v2740 = vpack.c.b16 %v1948, %v1940
    %v2741 = vpack.c.b16 %v1949, %v1941
    %v2742 = vpack.c.b16 %v1950, %v1942
    %v2743 = vpack.c.b16 %v1951, %v1943
    %v2744 = vpack.c.b16 %v1952, %v1944
    %v2745 = vpack.c.b16 %v1953, %v1945
    %v2746 = vpack.c.b16 %v1954, %v1946
    %v2747 = vpack.c.b16 %v1955, %v1947
    %v2748 = vpack.c.b16 %v1964, %v1956
    %v2749 = vpack.c.b16 %v1965, %v1957
    %v2750 = vpack.c.b16 %v1966, %v1958
    %v2751 = vpack.c.b16 %v1967, %v1959
    %v2752 = vpack.c.b16 %v1968, %v1960
    %v2753 = vpack.c.b16 %v1969, %v1961
    %v2754 = vpack.c.b16 %v1970, %v1962
    %v2755 = vpack.c.b16 %v1971, %v1963
    %v2756 = vpack.c.b16 %v1980, %v1972
    %v2757 = vpack.c.b16 %v1981, %v1973
    %v2758 = vpack.c.b16 %v1982, %v1974
    %v2759 = vpack.c.b16 %v1983, %v1975
    %v2760 = vpack.c.b16 %v1984, %v1976
    %v2761 = vpack.c.b16 %v1985, %v1977
    %v2762 = vpack.c.b16 %v1986, %v1978
    %v2763 = vpack.c.b16 %v1987, %v1979
    %v2764 = vpack.c.b16 %v1996, %v1988
    %v2765 = vpack.c.b16 %v1997, %v1989
    %v2766 = vpack.c.b16 %v1998, %v1990
    %v2767 = vpack.c.b16 %v1999, %v1991
    %v2768 = vpack.c.b16 %v2000, %v1992
    %v2769 = vpack.c.b16 %v2001, %v1993
    %v2770 = vpack.c.b16 %v2002, %v1994
    %v2771 = vpack.c.b16 %v2003, %v1995
    %v2772 = vpack.c.b16 %v2012, %v2004
    %v2773 = vpack.c.b16 %v2013, %v2005
    %v2774 = vpack.c.b16 %v2014, %v2006
    %v2775 = vpack.c.b16 %v2015, %v2007
    %v2776 = vpack.c.b16 %v2016, %v2008
    %v2777 = vpack.c.b16 %v2017, %v2009
    %v2778 = vpack.c.b16 %v2018, %v2010
    %v2779 = vpack.c.b16 %v2019, %v2011
    %v2780 = vpack.c.b16 %v2028, %v2020
    %v2781 = vpack.c.b16 %v2029, %v2021
    %v2782 = vpack.c.b16 %v2030, %v2022
    %v2783 = vpack.c.b16 %v2031, %v2023
    %v2784 = vpack.c.b16 %v2032, %v2024
    %v2785 = vpack.c.b16 %v2033, %v2025
    %v2786 = vpack.c.b16 %v2034, %v2026
    %v2787 = vpack.c.b16 %v2035, %v2027
    %v2788 = vpack.c.b16 %v2044, %v2036
    %v2789 = vpack.c.b16 %v2045, %v2037
    %v2790 = vpack.c.b16 %v2046, %v2038
    %v2791 = vpack.c.b16 %v2047, %v2039
    %v2792 = vpack.c.b16 %v2048, %v2040
    %v2793 = vpack.c.b16 %v2049, %v2041
    %v2794 = vpack.c.b16 %v2050, %v2042
    %v2795 = vpack.c.b16 %v2051, %v2043
    %v2796 = vpack.c.b16 %v2060, %v2052
    %v2797 = vpack.c.b16 %v2061, %v2053
    %v2798 = vpack.c.b16 %v2062, %v2054
    %v2799 = vpack.c.b16 %v2063, %v2055
    %v2800 = vpack.c.b16 %v2064, %v2056
    %v2801 = vpack.c.b16 %v2065, %v2057
    %v2802 = vpack.c.b16 %v2066, %v2058
    %v2803 = vpack.c.b16 %v2067, %v2059
    %v2804 = vpack.c.b16 %v2076, %v2068
    %v2805 = vpack.c.b16 %v2077, %v2069
    %v2806 = vpack.c.b16 %v2078, %v2070
    %v2807 = vpack.c.b16 %v2079, %v2071
    %v2808 = vpack.c.b16 %v2080, %v2072
    %v2809 = vpack.c.b16 %v2081, %v2073
    %v2810 = vpack.c.b16 %v2082, %v2074
    %v2811 = vpack.c.b16 %v2083, %v2075
    %v2812 = vpack.c.b16 %v2092, %v2084
    %v2813 = vpack.c.b16 %v2093, %v2085
    %v2814 = vpack.c.b16 %v2094, %v2086
    %v2815 = vpack.c.b16 %v2095, %v2087
    %v2816 = vpack.c.b16 %v2096, %v2088
    %v2817 = vpack.c.b16 %v2097, %v2089
    %v2818 = vpack.c.b16 %v2098, %v2090
    %v2819 = vpack.c.b16 %v2099, %v2091
    %v2820 = vpack.c.b16 %v2108, %v2100
    %v2821 = vpack.c.b16 %v2109, %v2101
    %v2822 = vpack.c.b16 %v2110, %v2102
    %v2823 = vpack.c.b16 %v2111, %v2103
    %v2824 = vpack.c.b16 %v2112, %v2104
    %v2825 = vpack.c.b16 %v2113, %v2105
    %v2826 = vpack.c.b16 %v2114, %v2106
    %v2827 = vpack.c.b16 %v2115, %v2107
    %v2828 = vpack.c.b16 %v2124, %v2116
    %v2829 = vpack.c.b16 %v2125, %v2117
    %v2830 = vpack.c.b16 %v2126, %v2118
    %v2831 = vpack.c.b16 %v2127, %v2119
    %v2832 = vpack.c.b16 %v2128, %v2120
    %v2833 = vpack.c.b16 %v2129, %v2121
    %v2834 = vpack.c.b16 %v2130, %v2122
    %v2835 = vpack.c.b16 %v2131, %v2123
    %v2836 = vpack.c.b16 %v2140, %v2132
    %v2837 = vpack.c.b16 %v2141, %v2133
    %v2838 = vpack.c.b16 %v2142, %v2134
    %v2839 = vpack.c.b16 %v2143, %v2135
    %v2840 = vpack.c.b16 %v2144, %v2136
    %v2841 = vpack.c.b16 %v2145, %v2137
    %v2842 = vpack.c.b16 %v2146, %v2138
    %v2843 = vpack.c.b16 %v2147, %v2139
    %v2844 = vpack.c.b16 %v2156, %v2148
    %v2845 = vpack.c.b16 %v2157, %v2149
    %v2846 = vpack.c.b16 %v2158, %v2150
    %v2847 = vpack.c.b16 %v2159, %v2151
    %v2848 = vpack.c.b16 %v2160, %v2152
    %v2849 = vpack.c.b16 %v2161, %v2153
    %v2850 = vpack.c.b16 %v2162, %v2154
    %v2851 = vpack.c.b16 %v2163, %v2155
    %v2852 = vpack.c.b16 %v2172, %v2164
    %v2853 = vpack.c.b16 %v2173, %v2165
    %v2854 = vpack.c.b16 %v2174, %v2166
    %v2855 = vpack.c.b16 %v2175, %v2167
    %v2856 = vpack.c.b16 %v2176, %v2168
    %v2857 = vpack.c.b16 %v2177, %v2169
    %v2858 = vpack.c.b16 %v2178, %v2170
    %v2859 = vpack.c.b16 %v2179, %v2171
    %v2860 = vpack.c.b16 %v2188, %v2180
    %v2861 = vpack.c.b16 %v2189, %v2181
    %v2862 = vpack.c.b16 %v2190, %v2182
    %v2863 = vpack.c.b16 %v2191, %v2183
    %v2864 = vpack.c.b16 %v2192, %v2184
    %v2865 = vpack.c.b16 %v2193, %v2185
    %v2866 = vpack.c.b16 %v2194, %v2186
    %v2867 = vpack.c.b16 %v2195, %v2187
    %v2868 = vpack.c.b16 %v2204, %v2196
    %v2869 = vpack.c.b16 %v2205, %v2197
    %v2870 = vpack.c.b16 %v2206, %v2198
    %v2871 = vpack.c.b16 %v2207, %v2199
    %v2872 = vpack.c.b16 %v2208, %v2200
    %v2873 = vpack.c.b16 %v2209, %v2201
    %v2874 = vpack.c.b16 %v2210, %v2202
    %v2875 = vpack.c.b16 %v2211, %v2203
    %v2876 = vpack.c.b16 %v2220, %v2212
    %v2877 = vpack.c.b16 %v2221, %v2213
    %v2878 = vpack.c.b16 %v2222, %v2214
    %v2879 = vpack.c.b16 %v2223, %v2215
    %v2880 = vpack.c.b16 %v2224, %v2216
    %v2881 = vpack.c.b16 %v2225, %v2217
    %v2882 = vpack.c.b16 %v2226, %v2218
    %v2883 = vpack.c.b16 %v2227, %v2219
    %v2884 = vpack.c.b16 %v2236, %v2228
    %v2885 = vpack.c.b16 %v2237, %v2229
    %v2886 = vpack.c.b16 %v2238, %v2230
    %v2887 = vpack.c.b16 %v2239, %v2231
    %v2888 = vpack.c.b16 %v2240, %v2232
    %v2889 = vpack.c.b16 %v2241, %v2233
    %v2890 = vpack.c.b16 %v2242, %v2234
    %v2891 = vpack.c.b16 %v2243, %v2235
    %v2892 = vpack.c.b16 %v2252, %v2244
    %v2893 = vpack.c.b16 %v2253, %v2245
    %v2894 = vpack.c.b16 %v2254, %v2246
    %v2895 = vpack.c.b16 %v2255, %v2247
    %v2896 = vpack.c.b16 %v2256, %v2248
    %v2897 = vpack.c.b16 %v2257, %v2249
    %v2898 = vpack.c.b16 %v2258, %v2250
    %v2899 = vpack.c.b16 %v2259, %v2251
    %v2900 = vpack.c.b16 %v2268, %v2260
    %v2901 = vpack.c.b16 %v2269, %v2261
    %v2902 = vpack.c.b16 %v2270, %v2262
    %v2903 = vpack.c.b16 %v2271, %v2263
    %v2904 = vpack.c.b16 %v2272, %v2264
    %v2905 = vpack.c.b16 %v2273, %v2265
    %v2906 = vpack.c.b16 %v2274, %v2266
    %v2907 = vpack.c.b16 %v2275, %v2267
    %v2908 = vpack.c.b16 %v2284, %v2276
    %v2909 = vpack.c.b16 %v2285, %v2277
    %v2910 = vpack.c.b16 %v2286, %v2278
    %v2911 = vpack.c.b16 %v2287, %v2279
    %v2912 = vpack.c.b16 %v2288, %v2280
    %v2913 = vpack.c.b16 %v2289, %v2281
    %v2914 = vpack.c.b16 %v2290, %v2282
    %v2915 = vpack.c.b16 %v2291, %v2283
    %v2916 = vpack.c.b16 %v2300, %v2292
    %v2917 = vpack.c.b16 %v2301, %v2293
    %v2918 = vpack.c.b16 %v2302, %v2294
    %v2919 = vpack.c.b16 %v2303, %v2295
    %v2920 = vpack.c.b16 %v2304, %v2296
    %v2921 = vpack.c.b16 %v2305, %v2297
    %v2922 = vpack.c.b16 %v2306, %v2298
    %v2923 = vpack.c.b16 %v2307, %v2299
    %v2924 = vpack.c.b16 %v2316, %v2308
    %v2925 = vpack.c.b16 %v2317, %v2309
    %v2926 = vpack.c.b16 %v2318, %v2310
    %v2927 = vpack.c.b16 %v2319, %v2311
    %v2928 = vpack.c.b16 %v2320, %v2312
    %v2929 = vpack.c.b16 %v2321, %v2313
    %v2930 = vpack.c.b16 %v2322, %v2314
    %v2931 = vpack.c.b16 %v2323, %v2315
    %v2932 = vpack.c.b16 %v2332, %v2324
    %v2933 = vpack.c.b16 %v2333, %v2325
    %v2934 = vpack.c.b16 %v2334, %v2326
    %v2935 = vpack.c.b16 %v2335, %v2327
    %v2936 = vpack.c.b16 %v2336, %v2328
    %v2937 = vpack.c.b16 %v2337, %v2329
    %v2938 = vpack.c.b16 %v2338, %v2330
    %v2939 = vpack.c.b16 %v2339, %v2331
    %v2940 = vpack.c.b16 %v2348, %v2340
    %v2941 = vpack.c.b16 %v2349, %v2341
    %v2942 = vpack.c.b16 %v2350, %v2342
    %v2943 = vpack.c.b16 %v2351, %v2343
    %v2944 = vpack.c.b16 %v2352, %v2344
    %v2945 = vpack.c.b16 %v2353, %v2345
    %v2946 = vpack.c.b16 %v2354, %v2346
    %v2947 = vpack.c.b16 %v2355, %v2347
    %v2948 = vpack.c.b16 %v2364, %v2356
    %v2949 = vpack.c.b16 %v2365, %v2357
    %v2950 = vpack.c.b16 %v2366, %v2358
    %v2951 = vpack.c.b16 %v2367, %v2359
    %v2952 = vpack.c.b16 %v2368, %v2360
    %v2953 = vpack.c.b16 %v2369, %v2361
    %v2954 = vpack.c.b16 %v2370, %v2362
    %v2955 = vpack.c.b16 %v2371, %v2363
    %v2956 = vpack.c.b16 %v2380, %v2372
    %v2957 = vpack.c.b16 %v2381, %v2373
    %v2958 = vpack.c.b16 %v2382, %v2374
    %v2959 = vpack.c.b16 %v2383, %v2375
    %v2960 = vpack.c.b16 %v2384, %v2376
    %v2961 = vpack.c.b16 %v2385, %v2377
    %v2962 = vpack.c.b16 %v2386, %v2378
    %v2963 = vpack.c.b16 %v2387, %v2379
    %v2964 = vpack.c.b16 %v2396, %v2388
    %v2965 = vpack.c.b16 %v2397, %v2389
    %v2966 = vpack.c.b16 %v2398, %v2390
    %v2967 = vpack.c.b16 %v2399, %v2391
    %v2968 = vpack.c.b16 %v2400, %v2392
    %v2969 = vpack.c.b16 %v2401, %v2393
    %v2970 = vpack.c.b16 %v2402, %v2394
    %v2971 = vpack.c.b16 %v2403, %v2395
    %v2972 = vpack.c.b16 %v2412, %v2404
    %v2973 = vpack.c.b16 %v2413, %v2405
    %v2974 = vpack.c.b16 %v2414, %v2406
    %v2975 = vpack.c.b16 %v2415, %v2407
    %v2976 = vpack.c.b16 %v2416, %v2408
    %v2977 = vpack.c.b16 %v2417, %v2409
    %v2978 = vpack.c.b16 %v2418, %v2410
    %v2979 = vpack.c.b16 %v2419, %v2411
    %v2980 = vpack.c.b16 %v2428, %v2420
    %v2981 = vpack.c.b16 %v2429, %v2421
    %v2982 = vpack.c.b16 %v2430, %v2422
    %v2983 = vpack.c.b16 %v2431, %v2423
    %v2984 = vpack.c.b16 %v2432, %v2424
    %v2985 = vpack.c.b16 %v2433, %v2425
    %v2986 = vpack.c.b16 %v2434, %v2426
    %v2987 = vpack.c.b16 %v2435, %v2427
    %v2988 = vpack.c.b16 %v2444, %v2436
    %v2989 = vpack.c.b16 %v2445, %v2437
    %v2990 = vpack.c.b16 %v2446, %v2438
    %v2991 = vpack.c.b16 %v2447, %v2439
    %v2992 = vpack.c.b16 %v2448, %v2440
    %v2993 = vpack.c.b16 %v2449, %v2441
    %v2994 = vpack.c.b16 %v2450, %v2442
    %v2995 = vpack.c.b16 %v2451, %v2443
    %v2996 = vpack.c.b16 %v2460, %v2452
    %v2997 = vpack.c.b16 %v2461, %v2453
    %v2998 = vpack.c.b16 %v2462, %v2454
    %v2999 = vpack.c.b16 %v2463, %v2455
    %v3000 = vpack.c.b16 %v2464, %v2456
    %v3001 = vpack.c.b16 %v2465, %v2457
    %v3002 = vpack.c.b16 %v2466, %v2458
    %v3003 = vpack.c.b16 %v2467, %v2459
    %v3004 = vpack.c.b16 %v2476, %v2468
    %v3005 = vpack.c.b16 %v2477, %v2469
    %v3006 = vpack.c.b16 %v2478, %v2470
    %v3007 = vpack.c.b16 %v2479, %v2471
    %v3008 = vpack.c.b16 %v2480, %v2472
    %v3009 = vpack.c.b16 %v2481, %v2473
    %v3010 = vpack.c.b16 %v2482, %v2474
    %v3011 = vpack.c.b16 %v2483, %v2475
    %v3012 = vpack.c.b16 %v2492, %v2484
    %v3013 = vpack.c.b16 %v2493, %v2485
    %v3014 = vpack.c.b16 %v2494, %v2486
    %v3015 = vpack.c.b16 %v2495, %v2487
    %v3016 = vpack.c.b16 %v2496, %v2488
    %v3017 = vpack.c.b16 %v2497, %v2489
    %v3018 = vpack.c.b16 %v2498, %v2490
    %v3019 = vpack.c.b16 %v2499, %v2491
    %v3020 = vpack.c.b16 %v2508, %v2500
    %v3021 = vpack.c.b16 %v2509, %v2501
    %v3022 = vpack.c.b16 %v2510, %v2502
    %v3023 = vpack.c.b16 %v2511, %v2503
    %v3024 = vpack.c.b16 %v2512, %v2504
    %v3025 = vpack.c.b16 %v2513, %v2505
    %v3026 = vpack.c.b16 %v2514, %v2506
    %v3027 = vpack.c.b16 %v2515, %v2507
    %3540 = vmatpush.bf16.msra.mxu0 %v2572
    %3541 = vmatpush.bf16.msra.mxu0 %v2564
    %3542 = vmatpush.bf16.msra.mxu0 %v2556
    %3543 = vmatpush.bf16.msra.mxu0 %v2548
    %3544 = vmatpush.bf16.msra.mxu0 %v2540
    %3545 = vmatpush.bf16.msra.mxu0 %v2532
    %3546 = vmatpush.bf16.msra.mxu0 %v2524
    %3547 = vmatpush.bf16.msra.mxu0 %v2516
    %3548 = vmatmul.bf16.gmra.mxu0 %v442
    %v3549 = vpop.f32.mrf.mxu0
    %v3550 = vadd.f32 %v964, %v3549
    %v3551 = vpop.f32.mrf.mxu0
    %3552 = vdwg.mxu0
    %3553 = vmatpush.bf16.msra.mxu0 %v2636
    %3554 = vmatpush.bf16.msra.mxu0 %v2628
    %3555 = vmatpush.bf16.msra.mxu0 %v2620
    %3556 = vmatpush.bf16.msra.mxu0 %v2612
    %3557 = vmatpush.bf16.msra.mxu0 %v2604
    %3558 = vmatpush.bf16.msra.mxu0 %v2596
    %3559 = vmatpush.bf16.msra.mxu0 %v2588
    %3560 = vmatpush.bf16.msra.mxu0 %v2580
    %3561 = vmatmul.bf16.gmra.mxu0 %v443
    %v3562 = vpop.f32.mrf.mxu0
    %v3563 = vadd.f32 %v3550, %v3562
    %v3564 = vpop.f32.mrf.mxu0
    %3565 = vdwg.mxu0
    %3566 = vmatpush.bf16.msra.mxu0 %v2700
    %3567 = vmatpush.bf16.msra.mxu0 %v2692
    %3568 = vmatpush.bf16.msra.mxu0 %v2684
    %3569 = vmatpush.bf16.msra.mxu0 %v2676
    %3570 = vmatpush.bf16.msra.mxu0 %v2668
    %3571 = vmatpush.bf16.msra.mxu0 %v2660
    %3572 = vmatpush.bf16.msra.mxu0 %v2652
    %3573 = vmatpush.bf16.msra.mxu0 %v2644
    %3574 = vmatmul.bf16.gmra.mxu0 %v444
    %v3575 = vpop.f32.mrf.mxu0
    %v3576 = vadd.f32 %v3563, %v3575
    %v3577 = vpop.f32.mrf.mxu0
    %3578 = vdwg.mxu0
    %3579 = vmatpush.bf16.msra.mxu0 %v2764
    %3580 = vmatpush.bf16.msra.mxu0 %v2756
    %3581 = vmatpush.bf16.msra.mxu0 %v2748
    %3582 = vmatpush.bf16.msra.mxu0 %v2740
    %3583 = vmatpush.bf16.msra.mxu0 %v2732
    %3584 = vmatpush.bf16.msra.mxu0 %v2724
    %3585 = vmatpush.bf16.msra.mxu0 %v2716
    %3586 = vmatpush.bf16.msra.mxu0 %v2708
    %3587 = vmatmul.bf16.gmra.mxu0 %v445
    %v3588 = vpop.f32.mrf.mxu0
    %v3589 = vadd.f32 %v3576, %v3588
    %v3590 = vpop.f32.mrf.mxu0
    %3591 = vdwg.mxu0
    %3592 = vmatpush.bf16.msra.mxu0 %v2828
    %3593 = vmatpush.bf16.msra.mxu0 %v2820
    %3594 = vmatpush.bf16.msra.mxu0 %v2812
    %3595 = vmatpush.bf16.msra.mxu0 %v2804
    %3596 = vmatpush.bf16.msra.mxu0 %v2796
    %3597 = vmatpush.bf16.msra.mxu0 %v2788
    %3598 = vmatpush.bf16.msra.mxu0 %v2780
    %3599 = vmatpush.bf16.msra.mxu0 %v2772
    %3600 = vmatmul.bf16.gmra.mxu0 %v446
    %v3601 = vpop.f32.mrf.mxu0
    %v3602 = vadd.f32 %v3589, %v3601
    %v3603 = vpop.f32.mrf.mxu0
    %3604 = vdwg.mxu0
    %3605 = vmatpush.bf16.msra.mxu0 %v2892
    %3606 = vmatpush.bf16.msra.mxu0 %v2884
    %3607 = vmatpush.bf16.msra.mxu0 %v2876
    %3608 = vmatpush.bf16.msra.mxu0 %v2868
    %3609 = vmatpush.bf16.msra.mxu0 %v2860
    %3610 = vmatpush.bf16.msra.mxu0 %v2852
    %3611 = vmatpush.bf16.msra.mxu0 %v2844
    %3612 = vmatpush.bf16.msra.mxu0 %v2836
    %3613 = vmatmul.bf16.gmra.mxu0 %v447
    %v3614 = vpop.f32.mrf.mxu0
    %v3615 = vadd.f32 %v3602, %v3614
    %v3616 = vpop.f32.mrf.mxu0
    %3617 = vdwg.mxu0
    %3618 = vmatpush.bf16.msra.mxu0 %v2956
    %3619 = vmatpush.bf16.msra.mxu0 %v2948
    %3620 = vmatpush.bf16.msra.mxu0 %v2940
    %3621 = vmatpush.bf16.msra.mxu0 %v2932
    %3622 = vmatpush.bf16.msra.mxu0 %v2924
    %3623 = vmatpush.bf16.msra.mxu0 %v2916
    %3624 = vmatpush.bf16.msra.mxu0 %v2908
    %3625 = vmatpush.bf16.msra.mxu0 %v2900
    %3626 = vmatmul.bf16.gmra.mxu0 %v448
    %v3627 = vpop.f32.mrf.mxu0
    %v3628 = vadd.f32 %v3615, %v3627
    %v3629 = vpop.f32.mrf.mxu0
    %3630 = vdwg.mxu0
    %3631 = vmatpush.bf16.msra.mxu0 %v3020
    %3632 = vmatpush.bf16.msra.mxu0 %v3012
    %3633 = vmatpush.bf16.msra.mxu0 %v3004
    %3634 = vmatpush.bf16.msra.mxu0 %v2996
    %3635 = vmatpush.bf16.msra.mxu0 %v2988
    %3636 = vmatpush.bf16.msra.mxu0 %v2980
    %3637 = vmatpush.bf16.msra.mxu0 %v2972
    %3638 = vmatpush.bf16.msra.mxu0 %v2964
    %3639 = vmatmul.bf16.gmra.mxu0 %v449
    %v3640 = vpop.f32.mrf.mxu0
    %v3641 = vadd.f32 %v3628, %v3640
    %v3642 = vpop.f32.mrf.mxu0
    %3643 = vdwg.mxu0
    %3644 = vmatpush.bf16.msra.mxu0 %v2573
    %3645 = vmatpush.bf16.msra.mxu0 %v2565
    %3646 = vmatpush.bf16.msra.mxu0 %v2557
    %3647 = vmatpush.bf16.msra.mxu0 %v2549
    %3648 = vmatpush.bf16.msra.mxu0 %v2541
    %3649 = vmatpush.bf16.msra.mxu0 %v2533
    %3650 = vmatpush.bf16.msra.mxu0 %v2525
    %3651 = vmatpush.bf16.msra.mxu0 %v2517
    %3652 = vmatmul.bf16.gmra.mxu0 %v442
    %v3653 = vpop.f32.mrf.mxu0
    %v3654 = vadd.f32 %v965, %v3653
    %v3655 = vpop.f32.mrf.mxu0
    %3656 = vdwg.mxu0
    %3657 = vmatpush.bf16.msra.mxu0 %v2637
    %3658 = vmatpush.bf16.msra.mxu0 %v2629
    %3659 = vmatpush.bf16.msra.mxu0 %v2621
    %3660 = vmatpush.bf16.msra.mxu0 %v2613
    %3661 = vmatpush.bf16.msra.mxu0 %v2605
    %3662 = vmatpush.bf16.msra.mxu0 %v2597
    %3663 = vmatpush.bf16.msra.mxu0 %v2589
    %3664 = vmatpush.bf16.msra.mxu0 %v2581
    %3665 = vmatmul.bf16.gmra.mxu0 %v443
    %v3666 = vpop.f32.mrf.mxu0
    %v3667 = vadd.f32 %v3654, %v3666
    %v3668 = vpop.f32.mrf.mxu0
    %3669 = vdwg.mxu0
    %3670 = vmatpush.bf16.msra.mxu0 %v2701
    %3671 = vmatpush.bf16.msra.mxu0 %v2693
    %3672 = vmatpush.bf16.msra.mxu0 %v2685
    %3673 = vmatpush.bf16.msra.mxu0 %v2677
    %3674 = vmatpush.bf16.msra.mxu0 %v2669
    %3675 = vmatpush.bf16.msra.mxu0 %v2661
    %3676 = vmatpush.bf16.msra.mxu0 %v2653
    %3677 = vmatpush.bf16.msra.mxu0 %v2645
    %3678 = vmatmul.bf16.gmra.mxu0 %v444
    %v3679 = vpop.f32.mrf.mxu0
    %v3680 = vadd.f32 %v3667, %v3679
    %v3681 = vpop.f32.mrf.mxu0
    %3682 = vdwg.mxu0
    %3683 = vmatpush.bf16.msra.mxu0 %v2765
    %3684 = vmatpush.bf16.msra.mxu0 %v2757
    %3685 = vmatpush.bf16.msra.mxu0 %v2749
    %3686 = vmatpush.bf16.msra.mxu0 %v2741
    %3687 = vmatpush.bf16.msra.mxu0 %v2733
    %3688 = vmatpush.bf16.msra.mxu0 %v2725
    %3689 = vmatpush.bf16.msra.mxu0 %v2717
    %3690 = vmatpush.bf16.msra.mxu0 %v2709
    %3691 = vmatmul.bf16.gmra.mxu0 %v445
    %v3692 = vpop.f32.mrf.mxu0
    %v3693 = vadd.f32 %v3680, %v3692
    %v3694 = vpop.f32.mrf.mxu0
    %3695 = vdwg.mxu0
    %3696 = vmatpush.bf16.msra.mxu0 %v2829
    %3697 = vmatpush.bf16.msra.mxu0 %v2821
    %3698 = vmatpush.bf16.msra.mxu0 %v2813
    %3699 = vmatpush.bf16.msra.mxu0 %v2805
    %3700 = vmatpush.bf16.msra.mxu0 %v2797
    %3701 = vmatpush.bf16.msra.mxu0 %v2789
    %3702 = vmatpush.bf16.msra.mxu0 %v2781
    %3703 = vmatpush.bf16.msra.mxu0 %v2773
    %3704 = vmatmul.bf16.gmra.mxu0 %v446
    %v3705 = vpop.f32.mrf.mxu0
    %v3706 = vadd.f32 %v3693, %v3705
    %v3707 = vpop.f32.mrf.mxu0
    %3708 = vdwg.mxu0
    %3709 = vmatpush.bf16.msra.mxu0 %v2893
    %3710 = vmatpush.bf16.msra.mxu0 %v2885
    %3711 = vmatpush.bf16.msra.mxu0 %v2877
    %3712 = vmatpush.bf16.msra.mxu0 %v2869
    %3713 = vmatpush.bf16.msra.mxu0 %v2861
    %3714 = vmatpush.bf16.msra.mxu0 %v2853
    %3715 = vmatpush.bf16.msra.mxu0 %v2845
    %3716 = vmatpush.bf16.msra.mxu0 %v2837
    %3717 = vmatmul.bf16.gmra.mxu0 %v447
    %v3718 = vpop.f32.mrf.mxu0
    %v3719 = vadd.f32 %v3706, %v3718
    %v3720 = vpop.f32.mrf.mxu0
    %3721 = vdwg.mxu0
    %3722 = vmatpush.bf16.msra.mxu0 %v2957
    %3723 = vmatpush.bf16.msra.mxu0 %v2949
    %3724 = vmatpush.bf16.msra.mxu0 %v2941
    %3725 = vmatpush.bf16.msra.mxu0 %v2933
    %3726 = vmatpush.bf16.msra.mxu0 %v2925
    %3727 = vmatpush.bf16.msra.mxu0 %v2917
    %3728 = vmatpush.bf16.msra.mxu0 %v2909
    %3729 = vmatpush.bf16.msra.mxu0 %v2901
    %3730 = vmatmul.bf16.gmra.mxu0 %v448
    %v3731 = vpop.f32.mrf.mxu0
    %v3732 = vadd.f32 %v3719, %v3731
    %v3733 = vpop.f32.mrf.mxu0
    %3734 = vdwg.mxu0
    %3735 = vmatpush.bf16.msra.mxu0 %v3021
    %3736 = vmatpush.bf16.msra.mxu0 %v3013
    %3737 = vmatpush.bf16.msra.mxu0 %v3005
    %3738 = vmatpush.bf16.msra.mxu0 %v2997
    %3739 = vmatpush.bf16.msra.mxu0 %v2989
    %3740 = vmatpush.bf16.msra.mxu0 %v2981
    %3741 = vmatpush.bf16.msra.mxu0 %v2973
    %3742 = vmatpush.bf16.msra.mxu0 %v2965
    %3743 = vmatmul.bf16.gmra.mxu0 %v449
    %v3744 = vpop.f32.mrf.mxu0
    %v3745 = vadd.f32 %v3732, %v3744
    %v3746 = vpop.f32.mrf.mxu0
    %3747 = vdwg.mxu0
    %3748 = vmatpush.bf16.msra.mxu0 %v2574
    %3749 = vmatpush.bf16.msra.mxu0 %v2566
    %3750 = vmatpush.bf16.msra.mxu0 %v2558
    %3751 = vmatpush.bf16.msra.mxu0 %v2550
    %3752 = vmatpush.bf16.msra.mxu0 %v2542
    %3753 = vmatpush.bf16.msra.mxu0 %v2534
    %3754 = vmatpush.bf16.msra.mxu0 %v2526
    %3755 = vmatpush.bf16.msra.mxu0 %v2518
    %3756 = vmatmul.bf16.gmra.mxu0 %v442
    %v3757 = vpop.f32.mrf.mxu0
    %v3758 = vadd.f32 %v966, %v3757
    %v3759 = vpop.f32.mrf.mxu0
    %3760 = vdwg.mxu0
    %3761 = vmatpush.bf16.msra.mxu0 %v2638
    %3762 = vmatpush.bf16.msra.mxu0 %v2630
    %3763 = vmatpush.bf16.msra.mxu0 %v2622
    %3764 = vmatpush.bf16.msra.mxu0 %v2614
    %3765 = vmatpush.bf16.msra.mxu0 %v2606
    %3766 = vmatpush.bf16.msra.mxu0 %v2598
    %3767 = vmatpush.bf16.msra.mxu0 %v2590
    %3768 = vmatpush.bf16.msra.mxu0 %v2582
    %3769 = vmatmul.bf16.gmra.mxu0 %v443
    %v3770 = vpop.f32.mrf.mxu0
    %v3771 = vadd.f32 %v3758, %v3770
    %v3772 = vpop.f32.mrf.mxu0
    %3773 = vdwg.mxu0
    %3774 = vmatpush.bf16.msra.mxu0 %v2702
    %3775 = vmatpush.bf16.msra.mxu0 %v2694
    %3776 = vmatpush.bf16.msra.mxu0 %v2686
    %3777 = vmatpush.bf16.msra.mxu0 %v2678
    %3778 = vmatpush.bf16.msra.mxu0 %v2670
    %3779 = vmatpush.bf16.msra.mxu0 %v2662
    %3780 = vmatpush.bf16.msra.mxu0 %v2654
    %3781 = vmatpush.bf16.msra.mxu0 %v2646
    %3782 = vmatmul.bf16.gmra.mxu0 %v444
    %v3783 = vpop.f32.mrf.mxu0
    %v3784 = vadd.f32 %v3771, %v3783
    %v3785 = vpop.f32.mrf.mxu0
    %3786 = vdwg.mxu0
    %3787 = vmatpush.bf16.msra.mxu0 %v2766
    %3788 = vmatpush.bf16.msra.mxu0 %v2758
    %3789 = vmatpush.bf16.msra.mxu0 %v2750
    %3790 = vmatpush.bf16.msra.mxu0 %v2742
    %3791 = vmatpush.bf16.msra.mxu0 %v2734
    %3792 = vmatpush.bf16.msra.mxu0 %v2726
    %3793 = vmatpush.bf16.msra.mxu0 %v2718
    %3794 = vmatpush.bf16.msra.mxu0 %v2710
    %3795 = vmatmul.bf16.gmra.mxu0 %v445
    %v3796 = vpop.f32.mrf.mxu0
    %v3797 = vadd.f32 %v3784, %v3796
    %v3798 = vpop.f32.mrf.mxu0
    %3799 = vdwg.mxu0
    %3800 = vmatpush.bf16.msra.mxu0 %v2830
    %3801 = vmatpush.bf16.msra.mxu0 %v2822
    %3802 = vmatpush.bf16.msra.mxu0 %v2814
    %3803 = vmatpush.bf16.msra.mxu0 %v2806
    %3804 = vmatpush.bf16.msra.mxu0 %v2798
    %3805 = vmatpush.bf16.msra.mxu0 %v2790
    %3806 = vmatpush.bf16.msra.mxu0 %v2782
    %3807 = vmatpush.bf16.msra.mxu0 %v2774
    %3808 = vmatmul.bf16.gmra.mxu0 %v446
    %v3809 = vpop.f32.mrf.mxu0
    %v3810 = vadd.f32 %v3797, %v3809
    %v3811 = vpop.f32.mrf.mxu0
    %3812 = vdwg.mxu0
    %3813 = vmatpush.bf16.msra.mxu0 %v2894
    %3814 = vmatpush.bf16.msra.mxu0 %v2886
    %3815 = vmatpush.bf16.msra.mxu0 %v2878
    %3816 = vmatpush.bf16.msra.mxu0 %v2870
    %3817 = vmatpush.bf16.msra.mxu0 %v2862
    %3818 = vmatpush.bf16.msra.mxu0 %v2854
    %3819 = vmatpush.bf16.msra.mxu0 %v2846
    %3820 = vmatpush.bf16.msra.mxu0 %v2838
    %3821 = vmatmul.bf16.gmra.mxu0 %v447
    %v3822 = vpop.f32.mrf.mxu0
    %v3823 = vadd.f32 %v3810, %v3822
    %v3824 = vpop.f32.mrf.mxu0
    %3825 = vdwg.mxu0
    %3826 = vmatpush.bf16.msra.mxu0 %v2958
    %3827 = vmatpush.bf16.msra.mxu0 %v2950
    %3828 = vmatpush.bf16.msra.mxu0 %v2942
    %3829 = vmatpush.bf16.msra.mxu0 %v2934
    %3830 = vmatpush.bf16.msra.mxu0 %v2926
    %3831 = vmatpush.bf16.msra.mxu0 %v2918
    %3832 = vmatpush.bf16.msra.mxu0 %v2910
    %3833 = vmatpush.bf16.msra.mxu0 %v2902
    %3834 = vmatmul.bf16.gmra.mxu0 %v448
    %v3835 = vpop.f32.mrf.mxu0
    %v3836 = vadd.f32 %v3823, %v3835
    %v3837 = vpop.f32.mrf.mxu0
    %3838 = vdwg.mxu0
    %3839 = vmatpush.bf16.msra.mxu0 %v3022
    %3840 = vmatpush.bf16.msra.mxu0 %v3014
    %3841 = vmatpush.bf16.msra.mxu0 %v3006
    %3842 = vmatpush.bf16.msra.mxu0 %v2998
    %3843 = vmatpush.bf16.msra.mxu0 %v2990
    %3844 = vmatpush.bf16.msra.mxu0 %v2982
    %3845 = vmatpush.bf16.msra.mxu0 %v2974
    %3846 = vmatpush.bf16.msra.mxu0 %v2966
    %3847 = vmatmul.bf16.gmra.mxu0 %v449
    %v3848 = vpop.f32.mrf.mxu0
    %v3849 = vadd.f32 %v3836, %v3848
    %v3850 = vpop.f32.mrf.mxu0
    %3851 = vdwg.mxu0
    %3852 = vmatpush.bf16.msra.mxu0 %v2575
    %3853 = vmatpush.bf16.msra.mxu0 %v2567
    %3854 = vmatpush.bf16.msra.mxu0 %v2559
    %3855 = vmatpush.bf16.msra.mxu0 %v2551
    %3856 = vmatpush.bf16.msra.mxu0 %v2543
    %3857 = vmatpush.bf16.msra.mxu0 %v2535
    %3858 = vmatpush.bf16.msra.mxu0 %v2527
    %3859 = vmatpush.bf16.msra.mxu0 %v2519
    %3860 = vmatmul.bf16.gmra.mxu0 %v442
    %v3861 = vpop.f32.mrf.mxu0
    %v3862 = vadd.f32 %v967, %v3861
    %v3863 = vpop.f32.mrf.mxu0
    %3864 = vdwg.mxu0
    %3865 = vmatpush.bf16.msra.mxu0 %v2639
    %3866 = vmatpush.bf16.msra.mxu0 %v2631
    %3867 = vmatpush.bf16.msra.mxu0 %v2623
    %3868 = vmatpush.bf16.msra.mxu0 %v2615
    %3869 = vmatpush.bf16.msra.mxu0 %v2607
    %3870 = vmatpush.bf16.msra.mxu0 %v2599
    %3871 = vmatpush.bf16.msra.mxu0 %v2591
    %3872 = vmatpush.bf16.msra.mxu0 %v2583
    %3873 = vmatmul.bf16.gmra.mxu0 %v443
    %v3874 = vpop.f32.mrf.mxu0
    %v3875 = vadd.f32 %v3862, %v3874
    %v3876 = vpop.f32.mrf.mxu0
    %3877 = vdwg.mxu0
    %3878 = vmatpush.bf16.msra.mxu0 %v2703
    %3879 = vmatpush.bf16.msra.mxu0 %v2695
    %3880 = vmatpush.bf16.msra.mxu0 %v2687
    %3881 = vmatpush.bf16.msra.mxu0 %v2679
    %3882 = vmatpush.bf16.msra.mxu0 %v2671
    %3883 = vmatpush.bf16.msra.mxu0 %v2663
    %3884 = vmatpush.bf16.msra.mxu0 %v2655
    %3885 = vmatpush.bf16.msra.mxu0 %v2647
    %3886 = vmatmul.bf16.gmra.mxu0 %v444
    %v3887 = vpop.f32.mrf.mxu0
    %v3888 = vadd.f32 %v3875, %v3887
    %v3889 = vpop.f32.mrf.mxu0
    %3890 = vdwg.mxu0
    %3891 = vmatpush.bf16.msra.mxu0 %v2767
    %3892 = vmatpush.bf16.msra.mxu0 %v2759
    %3893 = vmatpush.bf16.msra.mxu0 %v2751
    %3894 = vmatpush.bf16.msra.mxu0 %v2743
    %3895 = vmatpush.bf16.msra.mxu0 %v2735
    %3896 = vmatpush.bf16.msra.mxu0 %v2727
    %3897 = vmatpush.bf16.msra.mxu0 %v2719
    %3898 = vmatpush.bf16.msra.mxu0 %v2711
    %3899 = vmatmul.bf16.gmra.mxu0 %v445
    %v3900 = vpop.f32.mrf.mxu0
    %v3901 = vadd.f32 %v3888, %v3900
    %v3902 = vpop.f32.mrf.mxu0
    %3903 = vdwg.mxu0
    %3904 = vmatpush.bf16.msra.mxu0 %v2831
    %3905 = vmatpush.bf16.msra.mxu0 %v2823
    %3906 = vmatpush.bf16.msra.mxu0 %v2815
    %3907 = vmatpush.bf16.msra.mxu0 %v2807
    %3908 = vmatpush.bf16.msra.mxu0 %v2799
    %3909 = vmatpush.bf16.msra.mxu0 %v2791
    %3910 = vmatpush.bf16.msra.mxu0 %v2783
    %3911 = vmatpush.bf16.msra.mxu0 %v2775
    %3912 = vmatmul.bf16.gmra.mxu0 %v446
    %v3913 = vpop.f32.mrf.mxu0
    %v3914 = vadd.f32 %v3901, %v3913
    %v3915 = vpop.f32.mrf.mxu0
    %3916 = vdwg.mxu0
    %3917 = vmatpush.bf16.msra.mxu0 %v2895
    %3918 = vmatpush.bf16.msra.mxu0 %v2887
    %3919 = vmatpush.bf16.msra.mxu0 %v2879
    %3920 = vmatpush.bf16.msra.mxu0 %v2871
    %3921 = vmatpush.bf16.msra.mxu0 %v2863
    %3922 = vmatpush.bf16.msra.mxu0 %v2855
    %3923 = vmatpush.bf16.msra.mxu0 %v2847
    %3924 = vmatpush.bf16.msra.mxu0 %v2839
    %3925 = vmatmul.bf16.gmra.mxu0 %v447
    %v3926 = vpop.f32.mrf.mxu0
    %v3927 = vadd.f32 %v3914, %v3926
    %v3928 = vpop.f32.mrf.mxu0
    %3929 = vdwg.mxu0
    %3930 = vmatpush.bf16.msra.mxu0 %v2959
    %3931 = vmatpush.bf16.msra.mxu0 %v2951
    %3932 = vmatpush.bf16.msra.mxu0 %v2943
    %3933 = vmatpush.bf16.msra.mxu0 %v2935
    %3934 = vmatpush.bf16.msra.mxu0 %v2927
    %3935 = vmatpush.bf16.msra.mxu0 %v2919
    %3936 = vmatpush.bf16.msra.mxu0 %v2911
    %3937 = vmatpush.bf16.msra.mxu0 %v2903
    %3938 = vmatmul.bf16.gmra.mxu0 %v448
    %v3939 = vpop.f32.mrf.mxu0
    %v3940 = vadd.f32 %v3927, %v3939
    %v3941 = vpop.f32.mrf.mxu0
    %3942 = vdwg.mxu0
    %3943 = vmatpush.bf16.msra.mxu0 %v3023
    %3944 = vmatpush.bf16.msra.mxu0 %v3015
    %3945 = vmatpush.bf16.msra.mxu0 %v3007
    %3946 = vmatpush.bf16.msra.mxu0 %v2999
    %3947 = vmatpush.bf16.msra.mxu0 %v2991
    %3948 = vmatpush.bf16.msra.mxu0 %v2983
    %3949 = vmatpush.bf16.msra.mxu0 %v2975
    %3950 = vmatpush.bf16.msra.mxu0 %v2967
    %3951 = vmatmul.bf16.gmra.mxu0 %v449
    %v3952 = vpop.f32.mrf.mxu0
    %v3953 = vadd.f32 %v3940, %v3952
    %v3954 = vpop.f32.mrf.mxu0
    %3955 = vdwg.mxu0
    %3956 = vmatpush.bf16.msra.mxu0 %v2576
    %3957 = vmatpush.bf16.msra.mxu0 %v2568
    %3958 = vmatpush.bf16.msra.mxu0 %v2560
    %3959 = vmatpush.bf16.msra.mxu0 %v2552
    %3960 = vmatpush.bf16.msra.mxu0 %v2544
    %3961 = vmatpush.bf16.msra.mxu0 %v2536
    %3962 = vmatpush.bf16.msra.mxu0 %v2528
    %3963 = vmatpush.bf16.msra.mxu0 %v2520
    %3964 = vmatmul.bf16.gmra.mxu0 %v442
    %v3965 = vpop.f32.mrf.mxu0
    %v3966 = vadd.f32 %v968, %v3965
    %v3967 = vpop.f32.mrf.mxu0
    %3968 = vdwg.mxu0
    %3969 = vmatpush.bf16.msra.mxu0 %v2640
    %3970 = vmatpush.bf16.msra.mxu0 %v2632
    %3971 = vmatpush.bf16.msra.mxu0 %v2624
    %3972 = vmatpush.bf16.msra.mxu0 %v2616
    %3973 = vmatpush.bf16.msra.mxu0 %v2608
    %3974 = vmatpush.bf16.msra.mxu0 %v2600
    %3975 = vmatpush.bf16.msra.mxu0 %v2592
    %3976 = vmatpush.bf16.msra.mxu0 %v2584
    %3977 = vmatmul.bf16.gmra.mxu0 %v443
    %v3978 = vpop.f32.mrf.mxu0
    %v3979 = vadd.f32 %v3966, %v3978
    %v3980 = vpop.f32.mrf.mxu0
    %3981 = vdwg.mxu0
    %3982 = vmatpush.bf16.msra.mxu0 %v2704
    %3983 = vmatpush.bf16.msra.mxu0 %v2696
    %3984 = vmatpush.bf16.msra.mxu0 %v2688
    %3985 = vmatpush.bf16.msra.mxu0 %v2680
    %3986 = vmatpush.bf16.msra.mxu0 %v2672
    %3987 = vmatpush.bf16.msra.mxu0 %v2664
    %3988 = vmatpush.bf16.msra.mxu0 %v2656
    %3989 = vmatpush.bf16.msra.mxu0 %v2648
    %3990 = vmatmul.bf16.gmra.mxu0 %v444
    %v3991 = vpop.f32.mrf.mxu0
    %v3992 = vadd.f32 %v3979, %v3991
    %v3993 = vpop.f32.mrf.mxu0
    %3994 = vdwg.mxu0
    %3995 = vmatpush.bf16.msra.mxu0 %v2768
    %3996 = vmatpush.bf16.msra.mxu0 %v2760
    %3997 = vmatpush.bf16.msra.mxu0 %v2752
    %3998 = vmatpush.bf16.msra.mxu0 %v2744
    %3999 = vmatpush.bf16.msra.mxu0 %v2736
    %4000 = vmatpush.bf16.msra.mxu0 %v2728
    %4001 = vmatpush.bf16.msra.mxu0 %v2720
    %4002 = vmatpush.bf16.msra.mxu0 %v2712
    %4003 = vmatmul.bf16.gmra.mxu0 %v445
    %v4004 = vpop.f32.mrf.mxu0
    %v4005 = vadd.f32 %v3992, %v4004
    %v4006 = vpop.f32.mrf.mxu0
    %4007 = vdwg.mxu0
    %4008 = vmatpush.bf16.msra.mxu0 %v2832
    %4009 = vmatpush.bf16.msra.mxu0 %v2824
    %4010 = vmatpush.bf16.msra.mxu0 %v2816
    %4011 = vmatpush.bf16.msra.mxu0 %v2808
    %4012 = vmatpush.bf16.msra.mxu0 %v2800
    %4013 = vmatpush.bf16.msra.mxu0 %v2792
    %4014 = vmatpush.bf16.msra.mxu0 %v2784
    %4015 = vmatpush.bf16.msra.mxu0 %v2776
    %4016 = vmatmul.bf16.gmra.mxu0 %v446
    %v4017 = vpop.f32.mrf.mxu0
    %v4018 = vadd.f32 %v4005, %v4017
    %v4019 = vpop.f32.mrf.mxu0
    %4020 = vdwg.mxu0
    %4021 = vmatpush.bf16.msra.mxu0 %v2896
    %4022 = vmatpush.bf16.msra.mxu0 %v2888
    %4023 = vmatpush.bf16.msra.mxu0 %v2880
    %4024 = vmatpush.bf16.msra.mxu0 %v2872
    %4025 = vmatpush.bf16.msra.mxu0 %v2864
    %4026 = vmatpush.bf16.msra.mxu0 %v2856
    %4027 = vmatpush.bf16.msra.mxu0 %v2848
    %4028 = vmatpush.bf16.msra.mxu0 %v2840
    %4029 = vmatmul.bf16.gmra.mxu0 %v447
    %v4030 = vpop.f32.mrf.mxu0
    %v4031 = vadd.f32 %v4018, %v4030
    %v4032 = vpop.f32.mrf.mxu0
    %4033 = vdwg.mxu0
    %4034 = vmatpush.bf16.msra.mxu0 %v2960
    %4035 = vmatpush.bf16.msra.mxu0 %v2952
    %4036 = vmatpush.bf16.msra.mxu0 %v2944
    %4037 = vmatpush.bf16.msra.mxu0 %v2936
    %4038 = vmatpush.bf16.msra.mxu0 %v2928
    %4039 = vmatpush.bf16.msra.mxu0 %v2920
    %4040 = vmatpush.bf16.msra.mxu0 %v2912
    %4041 = vmatpush.bf16.msra.mxu0 %v2904
    %4042 = vmatmul.bf16.gmra.mxu0 %v448
    %v4043 = vpop.f32.mrf.mxu0
    %v4044 = vadd.f32 %v4031, %v4043
    %v4045 = vpop.f32.mrf.mxu0
    %4046 = vdwg.mxu0
    %4047 = vmatpush.bf16.msra.mxu0 %v3024
    %4048 = vmatpush.bf16.msra.mxu0 %v3016
    %4049 = vmatpush.bf16.msra.mxu0 %v3008
    %4050 = vmatpush.bf16.msra.mxu0 %v3000
    %4051 = vmatpush.bf16.msra.mxu0 %v2992
    %4052 = vmatpush.bf16.msra.mxu0 %v2984
    %4053 = vmatpush.bf16.msra.mxu0 %v2976
    %4054 = vmatpush.bf16.msra.mxu0 %v2968
    %4055 = vmatmul.bf16.gmra.mxu0 %v449
    %v4056 = vpop.f32.mrf.mxu0
    %v4057 = vadd.f32 %v4044, %v4056
    %v4058 = vpop.f32.mrf.mxu0
    %4059 = vdwg.mxu0
    %4060 = vmatpush.bf16.msra.mxu0 %v2577
    %4061 = vmatpush.bf16.msra.mxu0 %v2569
    %4062 = vmatpush.bf16.msra.mxu0 %v2561
    %4063 = vmatpush.bf16.msra.mxu0 %v2553
    %4064 = vmatpush.bf16.msra.mxu0 %v2545
    %4065 = vmatpush.bf16.msra.mxu0 %v2537
    %4066 = vmatpush.bf16.msra.mxu0 %v2529
    %4067 = vmatpush.bf16.msra.mxu0 %v2521
    %4068 = vmatmul.bf16.gmra.mxu0 %v442
    %v4069 = vpop.f32.mrf.mxu0
    %v4070 = vadd.f32 %v969, %v4069
    %v4071 = vpop.f32.mrf.mxu0
    %4072 = vdwg.mxu0
    %4073 = vmatpush.bf16.msra.mxu0 %v2641
    %4074 = vmatpush.bf16.msra.mxu0 %v2633
    %4075 = vmatpush.bf16.msra.mxu0 %v2625
    %4076 = vmatpush.bf16.msra.mxu0 %v2617
    %4077 = vmatpush.bf16.msra.mxu0 %v2609
    %4078 = vmatpush.bf16.msra.mxu0 %v2601
    %4079 = vmatpush.bf16.msra.mxu0 %v2593
    %4080 = vmatpush.bf16.msra.mxu0 %v2585
    %4081 = vmatmul.bf16.gmra.mxu0 %v443
    %v4082 = vpop.f32.mrf.mxu0
    %v4083 = vadd.f32 %v4070, %v4082
    %v4084 = vpop.f32.mrf.mxu0
    %4085 = vdwg.mxu0
    %4086 = vmatpush.bf16.msra.mxu0 %v2705
    %4087 = vmatpush.bf16.msra.mxu0 %v2697
    %4088 = vmatpush.bf16.msra.mxu0 %v2689
    %4089 = vmatpush.bf16.msra.mxu0 %v2681
    %4090 = vmatpush.bf16.msra.mxu0 %v2673
    %4091 = vmatpush.bf16.msra.mxu0 %v2665
    %4092 = vmatpush.bf16.msra.mxu0 %v2657
    %4093 = vmatpush.bf16.msra.mxu0 %v2649
    %4094 = vmatmul.bf16.gmra.mxu0 %v444
    %v4095 = vpop.f32.mrf.mxu0
    %v4096 = vadd.f32 %v4083, %v4095
    %v4097 = vpop.f32.mrf.mxu0
    %4098 = vdwg.mxu0
    %4099 = vmatpush.bf16.msra.mxu0 %v2769
    %4100 = vmatpush.bf16.msra.mxu0 %v2761
    %4101 = vmatpush.bf16.msra.mxu0 %v2753
    %4102 = vmatpush.bf16.msra.mxu0 %v2745
    %4103 = vmatpush.bf16.msra.mxu0 %v2737
    %4104 = vmatpush.bf16.msra.mxu0 %v2729
    %4105 = vmatpush.bf16.msra.mxu0 %v2721
    %4106 = vmatpush.bf16.msra.mxu0 %v2713
    %4107 = vmatmul.bf16.gmra.mxu0 %v445
    %v4108 = vpop.f32.mrf.mxu0
    %v4109 = vadd.f32 %v4096, %v4108
    %v4110 = vpop.f32.mrf.mxu0
    %4111 = vdwg.mxu0
    %4112 = vmatpush.bf16.msra.mxu0 %v2833
    %4113 = vmatpush.bf16.msra.mxu0 %v2825
    %4114 = vmatpush.bf16.msra.mxu0 %v2817
    %4115 = vmatpush.bf16.msra.mxu0 %v2809
    %4116 = vmatpush.bf16.msra.mxu0 %v2801
    %4117 = vmatpush.bf16.msra.mxu0 %v2793
    %4118 = vmatpush.bf16.msra.mxu0 %v2785
    %4119 = vmatpush.bf16.msra.mxu0 %v2777
    %4120 = vmatmul.bf16.gmra.mxu0 %v446
    %v4121 = vpop.f32.mrf.mxu0
    %v4122 = vadd.f32 %v4109, %v4121
    %v4123 = vpop.f32.mrf.mxu0
    %4124 = vdwg.mxu0
    %4125 = vmatpush.bf16.msra.mxu0 %v2897
    %4126 = vmatpush.bf16.msra.mxu0 %v2889
    %4127 = vmatpush.bf16.msra.mxu0 %v2881
    %4128 = vmatpush.bf16.msra.mxu0 %v2873
    %4129 = vmatpush.bf16.msra.mxu0 %v2865
    %4130 = vmatpush.bf16.msra.mxu0 %v2857
    %4131 = vmatpush.bf16.msra.mxu0 %v2849
    %4132 = vmatpush.bf16.msra.mxu0 %v2841
    %4133 = vmatmul.bf16.gmra.mxu0 %v447
    %v4134 = vpop.f32.mrf.mxu0
    %v4135 = vadd.f32 %v4122, %v4134
    %v4136 = vpop.f32.mrf.mxu0
    %4137 = vdwg.mxu0
    %4138 = vmatpush.bf16.msra.mxu0 %v2961
    %4139 = vmatpush.bf16.msra.mxu0 %v2953
    %4140 = vmatpush.bf16.msra.mxu0 %v2945
    %4141 = vmatpush.bf16.msra.mxu0 %v2937
    %4142 = vmatpush.bf16.msra.mxu0 %v2929
    %4143 = vmatpush.bf16.msra.mxu0 %v2921
    %4144 = vmatpush.bf16.msra.mxu0 %v2913
    %4145 = vmatpush.bf16.msra.mxu0 %v2905
    %4146 = vmatmul.bf16.gmra.mxu0 %v448
    %v4147 = vpop.f32.mrf.mxu0
    %v4148 = vadd.f32 %v4135, %v4147
    %v4149 = vpop.f32.mrf.mxu0
    %4150 = vdwg.mxu0
    %4151 = vmatpush.bf16.msra.mxu0 %v3025
    %4152 = vmatpush.bf16.msra.mxu0 %v3017
    %4153 = vmatpush.bf16.msra.mxu0 %v3009
    %4154 = vmatpush.bf16.msra.mxu0 %v3001
    %4155 = vmatpush.bf16.msra.mxu0 %v2993
    %4156 = vmatpush.bf16.msra.mxu0 %v2985
    %4157 = vmatpush.bf16.msra.mxu0 %v2977
    %4158 = vmatpush.bf16.msra.mxu0 %v2969
    %4159 = vmatmul.bf16.gmra.mxu0 %v449
    %v4160 = vpop.f32.mrf.mxu0
    %v4161 = vadd.f32 %v4148, %v4160
    %v4162 = vpop.f32.mrf.mxu0
    %4163 = vdwg.mxu0
    %4164 = vmatpush.bf16.msra.mxu0 %v2578
    %4165 = vmatpush.bf16.msra.mxu0 %v2570
    %4166 = vmatpush.bf16.msra.mxu0 %v2562
    %4167 = vmatpush.bf16.msra.mxu0 %v2554
    %4168 = vmatpush.bf16.msra.mxu0 %v2546
    %4169 = vmatpush.bf16.msra.mxu0 %v2538
    %4170 = vmatpush.bf16.msra.mxu0 %v2530
    %4171 = vmatpush.bf16.msra.mxu0 %v2522
    %4172 = vmatmul.bf16.gmra.mxu0 %v442
    %v4173 = vpop.f32.mrf.mxu0
    %v4174 = vadd.f32 %v970, %v4173
    %v4175 = vpop.f32.mrf.mxu0
    %4176 = vdwg.mxu0
    %4177 = vmatpush.bf16.msra.mxu0 %v2642
    %4178 = vmatpush.bf16.msra.mxu0 %v2634
    %4179 = vmatpush.bf16.msra.mxu0 %v2626
    %4180 = vmatpush.bf16.msra.mxu0 %v2618
    %4181 = vmatpush.bf16.msra.mxu0 %v2610
    %4182 = vmatpush.bf16.msra.mxu0 %v2602
    %4183 = vmatpush.bf16.msra.mxu0 %v2594
    %4184 = vmatpush.bf16.msra.mxu0 %v2586
    %4185 = vmatmul.bf16.gmra.mxu0 %v443
    %v4186 = vpop.f32.mrf.mxu0
    %v4187 = vadd.f32 %v4174, %v4186
    %v4188 = vpop.f32.mrf.mxu0
    %4189 = vdwg.mxu0
    %4190 = vmatpush.bf16.msra.mxu0 %v2706
    %4191 = vmatpush.bf16.msra.mxu0 %v2698
    %4192 = vmatpush.bf16.msra.mxu0 %v2690
    %4193 = vmatpush.bf16.msra.mxu0 %v2682
    %4194 = vmatpush.bf16.msra.mxu0 %v2674
    %4195 = vmatpush.bf16.msra.mxu0 %v2666
    %4196 = vmatpush.bf16.msra.mxu0 %v2658
    %4197 = vmatpush.bf16.msra.mxu0 %v2650
    %4198 = vmatmul.bf16.gmra.mxu0 %v444
    %v4199 = vpop.f32.mrf.mxu0
    %v4200 = vadd.f32 %v4187, %v4199
    %v4201 = vpop.f32.mrf.mxu0
    %4202 = vdwg.mxu0
    %4203 = vmatpush.bf16.msra.mxu0 %v2770
    %4204 = vmatpush.bf16.msra.mxu0 %v2762
    %4205 = vmatpush.bf16.msra.mxu0 %v2754
    %4206 = vmatpush.bf16.msra.mxu0 %v2746
    %4207 = vmatpush.bf16.msra.mxu0 %v2738
    %4208 = vmatpush.bf16.msra.mxu0 %v2730
    %4209 = vmatpush.bf16.msra.mxu0 %v2722
    %4210 = vmatpush.bf16.msra.mxu0 %v2714
    %4211 = vmatmul.bf16.gmra.mxu0 %v445
    %v4212 = vpop.f32.mrf.mxu0
    %v4213 = vadd.f32 %v4200, %v4212
    %v4214 = vpop.f32.mrf.mxu0
    %4215 = vdwg.mxu0
    %4216 = vmatpush.bf16.msra.mxu0 %v2834
    %4217 = vmatpush.bf16.msra.mxu0 %v2826
    %4218 = vmatpush.bf16.msra.mxu0 %v2818
    %4219 = vmatpush.bf16.msra.mxu0 %v2810
    %4220 = vmatpush.bf16.msra.mxu0 %v2802
    %4221 = vmatpush.bf16.msra.mxu0 %v2794
    %4222 = vmatpush.bf16.msra.mxu0 %v2786
    %4223 = vmatpush.bf16.msra.mxu0 %v2778
    %4224 = vmatmul.bf16.gmra.mxu0 %v446
    %v4225 = vpop.f32.mrf.mxu0
    %v4226 = vadd.f32 %v4213, %v4225
    %v4227 = vpop.f32.mrf.mxu0
    %4228 = vdwg.mxu0
    %4229 = vmatpush.bf16.msra.mxu0 %v2898
    %4230 = vmatpush.bf16.msra.mxu0 %v2890
    %4231 = vmatpush.bf16.msra.mxu0 %v2882
    %4232 = vmatpush.bf16.msra.mxu0 %v2874
    %4233 = vmatpush.bf16.msra.mxu0 %v2866
    %4234 = vmatpush.bf16.msra.mxu0 %v2858
    %4235 = vmatpush.bf16.msra.mxu0 %v2850
    %4236 = vmatpush.bf16.msra.mxu0 %v2842
    %4237 = vmatmul.bf16.gmra.mxu0 %v447
    %v4238 = vpop.f32.mrf.mxu0
    %v4239 = vadd.f32 %v4226, %v4238
    %v4240 = vpop.f32.mrf.mxu0
    %4241 = vdwg.mxu0
    %4242 = vmatpush.bf16.msra.mxu0 %v2962
    %4243 = vmatpush.bf16.msra.mxu0 %v2954
    %4244 = vmatpush.bf16.msra.mxu0 %v2946
    %4245 = vmatpush.bf16.msra.mxu0 %v2938
    %4246 = vmatpush.bf16.msra.mxu0 %v2930
    %4247 = vmatpush.bf16.msra.mxu0 %v2922
    %4248 = vmatpush.bf16.msra.mxu0 %v2914
    %4249 = vmatpush.bf16.msra.mxu0 %v2906
    %4250 = vmatmul.bf16.gmra.mxu0 %v448
    %v4251 = vpop.f32.mrf.mxu0
    %v4252 = vadd.f32 %v4239, %v4251
    %v4253 = vpop.f32.mrf.mxu0
    %4254 = vdwg.mxu0
    %4255 = vmatpush.bf16.msra.mxu0 %v3026
    %4256 = vmatpush.bf16.msra.mxu0 %v3018
    %4257 = vmatpush.bf16.msra.mxu0 %v3010
    %4258 = vmatpush.bf16.msra.mxu0 %v3002
    %4259 = vmatpush.bf16.msra.mxu0 %v2994
    %4260 = vmatpush.bf16.msra.mxu0 %v2986
    %4261 = vmatpush.bf16.msra.mxu0 %v2978
    %4262 = vmatpush.bf16.msra.mxu0 %v2970
    %4263 = vmatmul.bf16.gmra.mxu0 %v449
    %v4264 = vpop.f32.mrf.mxu0
    %v4265 = vadd.f32 %v4252, %v4264
    %v4266 = vpop.f32.mrf.mxu0
    %4267 = vdwg.mxu0
    %4268 = vmatpush.bf16.msra.mxu0 %v2579
    %4269 = vmatpush.bf16.msra.mxu0 %v2571
    %4270 = vmatpush.bf16.msra.mxu0 %v2563
    %4271 = vmatpush.bf16.msra.mxu0 %v2555
    %4272 = vmatpush.bf16.msra.mxu0 %v2547
    %4273 = vmatpush.bf16.msra.mxu0 %v2539
    %4274 = vmatpush.bf16.msra.mxu0 %v2531
    %4275 = vmatpush.bf16.msra.mxu0 %v2523
    %4276 = vmatmul.bf16.gmra.mxu0 %v442
    %v4277 = vpop.f32.mrf.mxu0
    %v4278 = vadd.f32 %v971, %v4277
    %v4279 = vpop.f32.mrf.mxu0
    %4280 = vdwg.mxu0
    %4281 = vmatpush.bf16.msra.mxu0 %v2643
    %4282 = vmatpush.bf16.msra.mxu0 %v2635
    %4283 = vmatpush.bf16.msra.mxu0 %v2627
    %4284 = vmatpush.bf16.msra.mxu0 %v2619
    %4285 = vmatpush.bf16.msra.mxu0 %v2611
    %4286 = vmatpush.bf16.msra.mxu0 %v2603
    %4287 = vmatpush.bf16.msra.mxu0 %v2595
    %4288 = vmatpush.bf16.msra.mxu0 %v2587
    %4289 = vmatmul.bf16.gmra.mxu0 %v443
    %v4290 = vpop.f32.mrf.mxu0
    %v4291 = vadd.f32 %v4278, %v4290
    %v4292 = vpop.f32.mrf.mxu0
    %4293 = vdwg.mxu0
    %4294 = vmatpush.bf16.msra.mxu0 %v2707
    %4295 = vmatpush.bf16.msra.mxu0 %v2699
    %4296 = vmatpush.bf16.msra.mxu0 %v2691
    %4297 = vmatpush.bf16.msra.mxu0 %v2683
    %4298 = vmatpush.bf16.msra.mxu0 %v2675
    %4299 = vmatpush.bf16.msra.mxu0 %v2667
    %4300 = vmatpush.bf16.msra.mxu0 %v2659
    %4301 = vmatpush.bf16.msra.mxu0 %v2651
    %4302 = vmatmul.bf16.gmra.mxu0 %v444
    %v4303 = vpop.f32.mrf.mxu0
    %v4304 = vadd.f32 %v4291, %v4303
    %v4305 = vpop.f32.mrf.mxu0
    %4306 = vdwg.mxu0
    %4307 = vmatpush.bf16.msra.mxu0 %v2771
    %4308 = vmatpush.bf16.msra.mxu0 %v2763
    %4309 = vmatpush.bf16.msra.mxu0 %v2755
    %4310 = vmatpush.bf16.msra.mxu0 %v2747
    %4311 = vmatpush.bf16.msra.mxu0 %v2739
    %4312 = vmatpush.bf16.msra.mxu0 %v2731
    %4313 = vmatpush.bf16.msra.mxu0 %v2723
    %4314 = vmatpush.bf16.msra.mxu0 %v2715
    %4315 = vmatmul.bf16.gmra.mxu0 %v445
    %v4316 = vpop.f32.mrf.mxu0
    %v4317 = vadd.f32 %v4304, %v4316
    %v4318 = vpop.f32.mrf.mxu0
    %4319 = vdwg.mxu0
    %4320 = vmatpush.bf16.msra.mxu0 %v2835
    %4321 = vmatpush.bf16.msra.mxu0 %v2827
    %4322 = vmatpush.bf16.msra.mxu0 %v2819
    %4323 = vmatpush.bf16.msra.mxu0 %v2811
    %4324 = vmatpush.bf16.msra.mxu0 %v2803
    %4325 = vmatpush.bf16.msra.mxu0 %v2795
    %4326 = vmatpush.bf16.msra.mxu0 %v2787
    %4327 = vmatpush.bf16.msra.mxu0 %v2779
    %4328 = vmatmul.bf16.gmra.mxu0 %v446
    %v4329 = vpop.f32.mrf.mxu0
    %v4330 = vadd.f32 %v4317, %v4329
    %v4331 = vpop.f32.mrf.mxu0
    %4332 = vdwg.mxu0
    %4333 = vmatpush.bf16.msra.mxu0 %v2899
    %4334 = vmatpush.bf16.msra.mxu0 %v2891
    %4335 = vmatpush.bf16.msra.mxu0 %v2883
    %4336 = vmatpush.bf16.msra.mxu0 %v2875
    %4337 = vmatpush.bf16.msra.mxu0 %v2867
    %4338 = vmatpush.bf16.msra.mxu0 %v2859
    %4339 = vmatpush.bf16.msra.mxu0 %v2851
    %4340 = vmatpush.bf16.msra.mxu0 %v2843
    %4341 = vmatmul.bf16.gmra.mxu0 %v447
    %v4342 = vpop.f32.mrf.mxu0
    %v4343 = vadd.f32 %v4330, %v4342
    %v4344 = vpop.f32.mrf.mxu0
    %4345 = vdwg.mxu0
    %4346 = vmatpush.bf16.msra.mxu0 %v2963
    %4347 = vmatpush.bf16.msra.mxu0 %v2955
    %4348 = vmatpush.bf16.msra.mxu0 %v2947
    %4349 = vmatpush.bf16.msra.mxu0 %v2939
    %4350 = vmatpush.bf16.msra.mxu0 %v2931
    %4351 = vmatpush.bf16.msra.mxu0 %v2923
    %4352 = vmatpush.bf16.msra.mxu0 %v2915
    %4353 = vmatpush.bf16.msra.mxu0 %v2907
    %4354 = vmatmul.bf16.gmra.mxu0 %v448
    %v4355 = vpop.f32.mrf.mxu0
    %v4356 = vadd.f32 %v4343, %v4355
    %v4357 = vpop.f32.mrf.mxu0
    %4358 = vdwg.mxu0
    %4359 = vmatpush.bf16.msra.mxu0 %v3027
    %4360 = vmatpush.bf16.msra.mxu0 %v3019
    %4361 = vmatpush.bf16.msra.mxu0 %v3011
    %4362 = vmatpush.bf16.msra.mxu0 %v3003
    %4363 = vmatpush.bf16.msra.mxu0 %v2995
    %4364 = vmatpush.bf16.msra.mxu0 %v2987
    %4365 = vmatpush.bf16.msra.mxu0 %v2979
    %4366 = vmatpush.bf16.msra.mxu0 %v2971
    %4367 = vmatmul.bf16.gmra.mxu0 %v449
    %v4368 = vpop.f32.mrf.mxu0
    %v4369 = vadd.f32 %v4356, %v4368
    %v4370 = vpop.f32.mrf.mxu0
    %4371 = vdwg.mxu0
    %v4372 = vpack.c.bf16 %v3745, %v3641
    %v4373 = vpack.c.bf16 %v3953, %v3849
    %v4374 = vpack.c.bf16 %v4161, %v4057
    %v4375 = vpack.c.bf16 %v4369, %v4265
    %4376 = vst [vmem:[#allocation11] sm:$0xff] %v4372
    %4377 = vst [vmem:[#allocation11 + $0x8] sm:$0xff] %v4373
    %4378 = vst [vmem:[#allocation11 + $0x10] sm:$0xff] %v4374
    %4379 = vst [vmem:[#allocation11 + $0x18] sm:$0xff] %v4375
    %v4380 = vrot.slane %v3641, 4
    %v4381 = vadd.f32 %v3641, %v4380
    %v4382 = vrot.slane %v4381, 2
    %v4383 = vadd.f32 %v4381, %v4382
    %v4384 = vrot.slane %v4383, 1
    %v4385 = vadd.f32 %v4383, %v4384
    %v4386 = vrot.slane %v3745, 4
    %v4387 = vadd.f32 %v3745, %v4386
    %v4388 = vrot.slane %v4387, 2
    %v4389 = vadd.f32 %v4387, %v4388
    %v4390 = vrot.slane %v4389, 1
    %v4391 = vadd.f32 %v4389, %v4390
    %v4392 = vrot.slane %v3849, 4
    %v4393 = vadd.f32 %v3849, %v4392
    %v4394 = vrot.slane %v4393, 2
    %v4395 = vadd.f32 %v4393, %v4394
    %v4396 = vrot.slane %v4395, 1
    %v4397 = vadd.f32 %v4395, %v4396
    %v4398 = vrot.slane %v3953, 4
    %v4399 = vadd.f32 %v3953, %v4398
    %v4400 = vrot.slane %v4399, 2
    %v4401 = vadd.f32 %v4399, %v4400
    %v4402 = vrot.slane %v4401, 1
    %v4403 = vadd.f32 %v4401, %v4402
    %v4404 = vrot.slane %v4057, 4
    %v4405 = vadd.f32 %v4057, %v4404
    %v4406 = vrot.slane %v4405, 2
    %v4407 = vadd.f32 %v4405, %v4406
    %v4408 = vrot.slane %v4407, 1
    %v4409 = vadd.f32 %v4407, %v4408
    %v4410 = vrot.slane %v4161, 4
    %v4411 = vadd.f32 %v4161, %v4410
    %v4412 = vrot.slane %v4411, 2
    %v4413 = vadd.f32 %v4411, %v4412
    %v4414 = vrot.slane %v4413, 1
    %v4415 = vadd.f32 %v4413, %v4414
    %v4416 = vrot.slane %v4265, 4
    %v4417 = vadd.f32 %v4265, %v4416
    %v4418 = vrot.slane %v4417, 2
    %v4419 = vadd.f32 %v4417, %v4418
    %v4420 = vrot.slane %v4419, 1
    %v4421 = vadd.f32 %v4419, %v4420
    %v4422 = vrot.slane %v4369, 4
    %v4423 = vadd.f32 %v4369, %v4422
    %v4424 = vrot.slane %v4423, 2
    %v4425 = vadd.f32 %v4423, %v4424
    %v4426 = vrot.slane %v4425, 1
    %v4427 = vadd.f32 %v4425, %v4426
    %v4428 = vmul.f32 %v4385, 0.125
    %v4429 = vmul.f32 %v4391, 0.125
    %v4430 = vmul.f32 %v4397, 0.125
    %v4431 = vmul.f32 %v4403, 0.125
    %v4432 = vmul.f32 %v4409, 0.125
    %v4433 = vmul.f32 %v4415, 0.125
    %v4434 = vmul.f32 %v4421, 0.125
    %v4435 = vmul.f32 %v4427, 0.125
    %v4436 = vsub.f32 %v3641, %v4428
    %v4437 = vsub.f32 %v3745, %v4429
    %v4438 = vsub.f32 %v3849, %v4430
    %v4439 = vsub.f32 %v3953, %v4431
    %v4440 = vsub.f32 %v4057, %v4432
    %v4441 = vsub.f32 %v4161, %v4433
    %v4442 = vsub.f32 %v4265, %v4434
    %v4443 = vsub.f32 %v4369, %v4435
    %v4452 = vrot.slane %v4391, 7
    %v4453 = vrot.slane %v4397, 6
    %v4454 = vrot.slane %v4403, 5
    %v4455 = vrot.slane %v4409, 4
    %v4456 = vrot.slane %v4415, 3
    %v4457 = vrot.slane %v4421, 2
    %v4458 = vrot.slane %v4427, 1
    %vm4459 = vcmask 1040384
    %v4460 = vsel %vm4459, %v4385, %v4452
    %vm4461 = vcmask 1042434
    %v4462 = vsel %vm4461, %v4453, %v4454
    %vm4463 = vcmask 1041408
    %v4464 = vsel %vm4463, %v4460, %v4462
    %vm4465 = vcmask 1044484
    %v4466 = vsel %vm4465, %v4455, %v4456
    %vm4467 = vcmask 1046534
    %v4468 = vsel %vm4467, %v4457, %v4458
    %vm4469 = vcmask 1045508
    %v4470 = vsel %vm4469, %v4466, %v4468
    %vm4471 = vcmask 1043456
    %v4472 = vsel %vm4471, %v4464, %v4470
    %4474 = vst [vmem:[#allocation12] sm:$0xff] %v4472
    %v4475 = vmul.f32 %v4436, %v4436
    %v4476 = vmul.f32 %v4437, %v4437
    %v4477 = vmul.f32 %v4438, %v4438
    %v4478 = vmul.f32 %v4439, %v4439
    %v4479 = vmul.f32 %v4440, %v4440
    %v4480 = vmul.f32 %v4441, %v4441
    %v4481 = vmul.f32 %v4442, %v4442
    %v4482 = vmul.f32 %v4443, %v4443
    %v4483 = vrot.slane %v4475, 4
    %v4484 = vadd.f32 %v4475, %v4483
    %v4485 = vrot.slane %v4484, 2
    %v4486 = vadd.f32 %v4484, %v4485
    %v4487 = vrot.slane %v4486, 1
    %v4488 = vadd.f32 %v4486, %v4487
    %v4489 = vrot.slane %v4476, 4
    %v4490 = vadd.f32 %v4476, %v4489
    %v4491 = vrot.slane %v4490, 2
    %v4492 = vadd.f32 %v4490, %v4491
    %v4493 = vrot.slane %v4492, 1
    %v4494 = vadd.f32 %v4492, %v4493
    %v4495 = vrot.slane %v4477, 4
    %v4496 = vadd.f32 %v4477, %v4495
    %v4497 = vrot.slane %v4496, 2
    %v4498 = vadd.f32 %v4496, %v4497
    %v4499 = vrot.slane %v4498, 1
    %v4500 = vadd.f32 %v4498, %v4499
    %v4501 = vrot.slane %v4478, 4
    %v4502 = vadd.f32 %v4478, %v4501
    %v4503 = vrot.slane %v4502, 2
    %v4504 = vadd.f32 %v4502, %v4503
    %v4505 = vrot.slane %v4504, 1
    %v4506 = vadd.f32 %v4504, %v4505
    %v4507 = vrot.slane %v4479, 4
    %v4508 = vadd.f32 %v4479, %v4507
    %v4509 = vrot.slane %v4508, 2
    %v4510 = vadd.f32 %v4508, %v4509
    %v4511 = vrot.slane %v4510, 1
    %v4512 = vadd.f32 %v4510, %v4511
    %v4513 = vrot.slane %v4480, 4
    %v4514 = vadd.f32 %v4480, %v4513
    %v4515 = vrot.slane %v4514, 2
    %v4516 = vadd.f32 %v4514, %v4515
    %v4517 = vrot.slane %v4516, 1
    %v4518 = vadd.f32 %v4516, %v4517
    %v4519 = vrot.slane %v4481, 4
    %v4520 = vadd.f32 %v4481, %v4519
    %v4521 = vrot.slane %v4520, 2
    %v4522 = vadd.f32 %v4520, %v4521
    %v4523 = vrot.slane %v4522, 1
    %v4524 = vadd.f32 %v4522, %v4523
    %v4525 = vrot.slane %v4482, 4
    %v4526 = vadd.f32 %v4482, %v4525
    %v4527 = vrot.slane %v4526, 2
    %v4528 = vadd.f32 %v4526, %v4527
    %v4529 = vrot.slane %v4528, 1
    %v4530 = vadd.f32 %v4528, %v4529
    %v4539 = vrot.slane %v4494, 7
    %v4540 = vrot.slane %v4500, 6
    %v4541 = vrot.slane %v4506, 5
    %v4542 = vrot.slane %v4512, 4
    %v4543 = vrot.slane %v4518, 3
    %v4544 = vrot.slane %v4524, 2
    %v4545 = vrot.slane %v4530, 1
    %v4546 = vsel %vm4459, %v4488, %v4539
    %v4547 = vsel %vm4461, %v4540, %v4541
    %v4548 = vsel %vm4463, %v4546, %v4547
    %v4549 = vsel %vm4465, %v4542, %v4543
    %v4550 = vsel %vm4467, %v4544, %v4545
    %v4551 = vsel %vm4469, %v4549, %v4550
    %v4552 = vsel %vm4471, %v4548, %v4551
    %4554 = vst [vmem:[#allocation14] sm:$0xff] %v4552
    // Predicated region
    $region42: #{tpu_custom_call.1} parent=1 // pred_check
      _
    $region43: #{tpu_custom_call.1} parent=1 // pred_check_branch
      %4556 = sbr.rel (0) target = $region45
    $region44: #{tpu_custom_call.1} parent=1 // pred_region
      %4558 = vsyncadd [#allocation4], 0
      %s4560 = sshll.u32 [#allocation11], 4
      %s4561 = int_to_ptr.vmem [resolvable:$true] %s4560
      %s4562 = sshll.u32 %s5, 4
      %s4563 = int_to_ptr.hbm [resolvable:$true] %s4562
      %4565 = dma.vmem_to_hbm [thread:$0]  %s4561, 512, %s4563, [#allocation4]
    $region45: #{tpu_custom_call.1} parent=1 // pred_fallthru
      _
    // Predicated region
    $region46: #{tpu_custom_call.1} parent=1 // pred_check
      _
    $region47: #{tpu_custom_call.1} parent=1 // pred_check_branch
      %4567 = sbr.rel (0) target = $region49
    $region48: #{tpu_custom_call.1} parent=1 // pred_region
      %4569 = vsyncadd [#allocation13], 0
      %s4571 = sshll.u32 [#allocation12], 4
      %s4572 = int_to_ptr.vmem [resolvable:$true] %s4571
      %s4573 = sshll.u32 %s6, 4
      %s4574 = int_to_ptr.hbm [resolvable:$true] %s4573
      %4576 = dma.vmem_to_hbm [thread:$0]  %s4572, 128, %s4574, [#allocation13]
    $region49: #{tpu_custom_call.1} parent=1 // pred_fallthru
      _
    // Predicated region
    $region50: #{tpu_custom_call.1} parent=1 // pred_check
      _
    $region51: #{tpu_custom_call.1} parent=1 // pred_check_branch
      %4578 = sbr.rel (0) target = $region53
    $region52: #{tpu_custom_call.1} parent=1 // pred_region
      %4580 = vsyncadd [#allocation13], 0
      %s4582 = sshll.u32 [#allocation14], 4
      %s4583 = int_to_ptr.vmem [resolvable:$true] %s4582
      %s4584 = sshll.u32 %s7, 4
      %s4585 = int_to_ptr.hbm [resolvable:$true] %s4584
      %4587 = dma.vmem_to_hbm [thread:$0]  %s4583, 128, %s4585, [#allocation13]
    $region53: #{tpu_custom_call.1} parent=1 // pred_fallthru
      _
    // Predicated region
    $region54: #{tpu_custom_call.1} parent=1 // pred_check
      _
    $region55: #{tpu_custom_call.1} parent=1 // pred_check_branch
      %4589 = sbr.rel (0) target = $region57
    $region56: #{tpu_custom_call.1} parent=1 // pred_region
      %4591 = dma.done [#allocation4], 512
    $region57: #{tpu_custom_call.1} parent=1 // pred_fallthru
      _
    // Predicated region
    $region58: #{tpu_custom_call.1} parent=1 // pred_check
      _
    $region59: #{tpu_custom_call.1} parent=1 // pred_check_branch
      %4593 = sbr.rel (0) target = $region61
    $region60: #{tpu_custom_call.1} parent=1 // pred_region
      %4595 = dma.done [#allocation13], 128
    $region61: #{tpu_custom_call.1} parent=1 // pred_fallthru
      _
    // Predicated region
    $region62: #{tpu_custom_call.1} parent=1 // pred_check
      _
    $region63: #{tpu_custom_call.1} parent=1 // pred_check_branch
      %4597 = sbr.rel (0) target = $region65
    $region64: #{tpu_custom_call.1} parent=1 // pred_region
      %4599 = dma.done [#allocation13], 128
    $region65: #{tpu_custom_call.1} parent=1 // pred_fallthru
      _
    %4600 = vsyncpa [#allocation3], 1
    %4601 = vsyncpa [#allocation6], 1
    %4602 = vsyncpa [#allocation9], 1
    %4603 = vsyncpa [#allocation4], 1
    %4604 = vsyncpa [#allocation13], 1

</llo_original>
